<compile_context>
chip_gen: v7x
topology: tpu7x:2x2x1
jax: 0.10.0
libtpu: 0.0.40
codegen_flags: <defaults>
</compile_context>

<pallas_src>
import jax
import jax.numpy as jnp
from jax import lax
from jax.experimental import pallas as pl
from jax.experimental.pallas import tpu as pltpu

LANE = 128


def _round_up(x, m):
    return (x + m - 1) // m * m


# ------------------------------ fused kernel --------------------------------

def _fused_up_block_kernel(x_ref, crop_ref, wup_ref, bup_ref, w1_ref, b1_ref,
                           w2_ref, b2_ref, o_ref, e_cat, o_cat, e_mid, o_mid):
    """One image per grid step.

    x_ref   : (1, H*W, Cin)        low-res input, spatial flattened
    crop_ref: (1, 2H, W, 2*Cb)     cropped bridge, column parity folded into lanes
    wup_ref : (Cin, 4*CUP)         ConvTranspose2d weight, columns ordered (kh, kw, c)
    bup_ref : (1, 4*CUP)
    w1_ref  : (3, 3, CCAT, C1P)    conv1 weight; in-channels = [up block | crop block]
    b1_ref  : (1, C1P)
    w2_ref  : (3, 3, C1P, C2P)
    b2_ref  : (1, C2P)
    o_ref   : (1, 2H, W, 2*COUT)   output, column parity folded into lanes
    e_cat/o_cat : (2H+2, W+2, CCAT) padded conv1-input parity planes (VMEM scratch)
    e_mid/o_mid : (2H+2, W+2, C1P)  padded conv1-output parity planes (VMEM scratch)
    """
    H2, W = o_ref.shape[1], o_ref.shape[2]
    H = H2 // 2
    COUT = o_ref.shape[3] // 2
    CB = crop_ref.shape[3] // 2
    CUP = wup_ref.shape[1] // 4

    # Zero scratches: halo rows/cols and padded channel tails must be exact zeros.
    e_cat[...] = jnp.zeros(e_cat.shape, e_cat.dtype)
    o_cat[...] = jnp.zeros(o_cat.shape, o_cat.dtype)
    e_mid[...] = jnp.zeros(e_mid.shape, e_mid.dtype)
    o_mid[...] = jnp.zeros(o_mid.shape, o_mid.dtype)

    # ---- Stage 1: ConvTranspose2d(k=2, s=2) as a single MXU matmul ----------
    up = jnp.dot(x_ref[0], wup_ref[...], preferred_element_type=jnp.float32)
    up = up + bup_ref[...]                               # (H*W, 4*CUP)
    p00 = up[:, 0 * CUP:1 * CUP].reshape(H, W, CUP)      # sub-pixel (kh=0, kw=0)
    p01 = up[:, 1 * CUP:2 * CUP].reshape(H, W, CUP)      # (0, 1)
    p10 = up[:, 2 * CUP:3 * CUP].reshape(H, W, CUP)      # (1, 0)
    p11 = up[:, 3 * CUP:4 * CUP].reshape(H, W, CUP)      # (1, 1)
    # Interleave rows (kh); the minor (W, CUP) dims stay put so the reshape is free.
    up_e = jnp.concatenate(
        [p00.reshape(H, 1, W, CUP), p10.reshape(H, 1, W, CUP)], axis=1
    ).reshape(H2, W, CUP)                                # even output columns
    up_o = jnp.concatenate(
        [p01.reshape(H, 1, W, CUP), p11.reshape(H, 1, W, CUP)], axis=1
    ).reshape(H2, W, CUP)                                # odd output columns

    # ---- Stage 2: channel-concat with the cropped bridge, in VMEM only ------
    e_cat[1:H2 + 1, 1:W + 1, 0:CUP] = up_e
    o_cat[1:H2 + 1, 1:W + 1, 0:CUP] = up_o
    crop = crop_ref[0]                                   # (2H, W, 2*CB)
    e_cat[1:H2 + 1, 1:W + 1, CUP:CUP + CB] = crop[:, :, 0:CB]
    o_cat[1:H2 + 1, 1:W + 1, CUP:CUP + CB] = crop[:, :, CB:2 * CB]

    # ---- 3x3 conv (pad=1) + ReLU, evaluated on column-parity planes ---------
    def conv3x3_parity(e_pad, o_pad, w_ref, b_ref):
        c_out = w_ref.shape[3]
        bias = b_ref[...].reshape(1, 1, c_out).astype(jnp.float32)
        acc_e = jnp.broadcast_to(bias, (H2, W, c_out))   # bias-initialized accumulators
        acc_o = jnp.broadcast_to(bias, (H2, W, c_out))

        def dot(lhs, rhs):
            return lax.dot_general(lhs, rhs, (((2,), (0,)), ((), ())),
                                   preferred_element_type=jnp.float32)

        for dy in range(3):
            e_band = e_pad[dy:dy + H2]                   # (2H, W+2, C) free row slice
            o_band = o_pad[dy:dy + H2]
            e1 = e_band[:, 1:W + 1, :]                   # even cols, offset  0
            e2 = e_band[:, 2:W + 2, :]                   # even cols, offset +1
            o0 = o_band[:, 0:W, :]                       # odd  cols, offset -1
            o1 = o_band[:, 1:W + 1, :]                   # odd  cols, offset  0
            wa = w_ref[dy, 0]
            wb = w_ref[dy, 1]
            wc = w_ref[dy, 2]
            # even output column x=2w: x-1 -> odd(w-1), x -> even(w), x+1 -> odd(w)
            acc_e = acc_e + dot(o0, wa) + dot(e1, wb) + dot(o1, wc)
            # odd output column x=2w+1: x-1 -> even(w), x -> odd(w), x+1 -> even(w+1)
            acc_o = acc_o + dot(e1, wa) + dot(o1, wb) + dot(e2, wc)
        return jnp.maximum(acc_e, 0.0), jnp.maximum(acc_o, 0.0)

    # ---- Stage 3: conv1 + ReLU, result stays in VMEM ------------------------
    r1_e, r1_o = conv3x3_parity(e_cat, o_cat, w1_ref, b1_ref)
    e_mid[1:H2 + 1, 1:W + 1, :] = r1_e
    o_mid[1:H2 + 1, 1:W + 1, :] = r1_o

    # ---- Stage 4: conv2 + ReLU ----------------------------------------------
    r2_e, r2_o = conv3x3_parity(e_mid, o_mid, w2_ref, b2_ref)

    # ---- Stage 5: store (parity folded back into the lane axis) -------------
    o_ref[0, :, :, 0:COUT] = r2_e[:, :, 0:COUT].astype(o_ref.dtype)
    o_ref[0, :, :, COUT:2 * COUT] = r2_o[:, :, 0:COUT].astype(o_ref.dtype)


# ------------------------------ wrapper --------------------------------------

def unet_up_block(x_nchw, bridge_nchw, params):
    """Forward of UNetUpBlock(up_mode='upconv', padding=True, batch_norm=False). NCHW in/out."""
    w_up, b_up = params["w_up"], params["b_up"]
    w1, b1 = params["w1"], params["b1"]
    w2, b2 = params["w2"], params["b2"]

    N, Cin, H, W = x_nchw.shape
    Cout = w_up.shape[1]
    Cb = bridge_nchw.shape[1]
    C1 = w1.shape[3]
    C2 = w2.shape[3]
    H2, W2 = 2 * H, 2 * W
    assert w1.shape[2] == Cout + Cb, "conv1 in-channels must equal up+bridge channels"

    CUP = _round_up(Cout, LANE)
    CCAT = CUP + _round_up(Cb, LANE)
    C1P = _round_up(C1, LANE)
    C2P = _round_up(C2, LANE)

    # ---- host-side, one-time weight packing (tiny tensors) ------------------
    # ConvTranspose2d weight (Cin, Cout, 2, 2) -> (Cin, 4*CUP), columns ordered (kh, kw, c).
    wup_p = jnp.transpose(w_up, (0, 2, 3, 1))
    wup_p = jnp.pad(wup_p, ((0, 0), (0, 0), (0, 0), (0, CUP - Cout))).reshape(Cin, 4 * CUP)
    bup_p = jnp.tile(jnp.pad(b_up, (0, CUP - Cout)), 4).reshape(1, 4 * CUP)
    # conv1 weight (3,3,Cout+Cb,C1) -> (3,3,CCAT,C1P): up channels at [0,Cout),
    # bridge channels at [CUP, CUP+Cb); all padding rows/cols are zero.
    w1_p = jnp.zeros((3, 3, CCAT, C1P), w1.dtype)
    w1_p = w1_p.at[:, :, 0:Cout, 0:C1].set(w1[:, :, 0:Cout, :])
    w1_p = w1_p.at[:, :, CUP:CUP + Cb, 0:C1].set(w1[:, :, Cout:Cout + Cb, :])
    b1_p = jnp.pad(b1, (0, C1P - C1)).reshape(1, C1P)
    w2_p = jnp.zeros((3, 3, C1P, C2P), w2.dtype)
    w2_p = w2_p.at[:, :, 0:C1, 0:C2].set(w2)
    b2_p = jnp.pad(b2, (0, C2P - C2)).reshape(1, C2P)

    # ---- input plumbing (NCHW <-> NHWC boundary transposes only) ------------
    x_rows = jnp.transpose(x_nchw, (0, 2, 3, 1)).reshape(N, H * W, Cin)
    bh, bw = bridge_nchw.shape[2], bridge_nchw.shape[3]
    dy, dx = (bh - H2) // 2, (bw - W2) // 2
    crop = bridge_nchw[:, :, dy:dy + H2, dx:dx + W2]
    # fold the column parity into the lane axis: free reshape after the layout transpose
    crop = jnp.transpose(crop, (0, 2, 3, 1)).reshape(N, H2, W, 2 * Cb)

    out = pl.pallas_call(
        _fused_up_block_kernel,
        out_shape=jax.ShapeDtypeStruct((N, H2, W, 2 * C2), x_nchw.dtype),
        grid=(N,),
        in_specs=[
            pl.BlockSpec((1, H * W, Cin), lambda n: (n, 0, 0)),
            pl.BlockSpec((1, H2, W, 2 * Cb), lambda n: (n, 0, 0, 0)),
            pl.BlockSpec((Cin, 4 * CUP), lambda n: (0, 0)),
            pl.BlockSpec((1, 4 * CUP), lambda n: (0, 0)),
            pl.BlockSpec((3, 3, CCAT, C1P), lambda n: (0, 0, 0, 0)),
            pl.BlockSpec((1, C1P), lambda n: (0, 0)),
            pl.BlockSpec((3, 3, C1P, C2P), lambda n: (0, 0, 0, 0)),
            pl.BlockSpec((1, C2P), lambda n: (0, 0)),
        ],
        out_specs=pl.BlockSpec((1, H2, W, 2 * C2), lambda n: (n, 0, 0, 0)),
        scratch_shapes=[
            pltpu.VMEM((H2 + 2, W + 2, CCAT), jnp.float32),
            pltpu.VMEM((H2 + 2, W + 2, CCAT), jnp.float32),
            pltpu.VMEM((H2 + 2, W + 2, C1P), jnp.float32),
            pltpu.VMEM((H2 + 2, W + 2, C1P), jnp.float32),
        ],
        compiler_params=pltpu.CompilerParams(dimension_semantics=("parallel",)),
    )(x_rows, crop, wup_p, bup_p, w1_p, b1_p, w2_p, b2_p)

    # unfolding the parity back to 2W is a free (contiguous) reshape
    out = out.reshape(N, H2, W2, C2)
    return jnp.transpose(out, (0, 3, 1, 2))              # -> NCHW


# ----------------------------- pure-JAX reference ---------------------------

def _ref_forward(x_nchw, bridge_nchw, params):
    w_up, b_up = params["w_up"], params["b_up"]
    N, Cin, H, W = x_nchw.shape
    Cout = w_up.shape[1]
    t = jnp.einsum("nihw,iokl->nohkwl", x_nchw, w_up)
    up = t.reshape(N, Cout, 2 * H, 2 * W) + b_up[None, :, None, None]

    _, _, uh, uw = up.shape
    _, _, bh, bw = bridge_nchw.shape
    dy = (bh - uh) // 2
    dx = (bw - uw) // 2
    crop = bridge_nchw[:, :, dy:dy + uh, dx:dx + uw]
    out = jnp.concatenate([up, crop], axis=1)

    def conv_relu(z, w_hwio, b):
        w_oihw = jnp.transpose(w_hwio, (3, 2, 0, 1))
        y = lax.conv_general_dilated(z, w_oihw, window_strides=(1, 1),
                                     padding=((1, 1), (1, 1)),
                                     dimension_numbers=("NCHW", "OIHW", "NCHW"))
        return jnp.maximum(y + b[None, :, None, None], 0.0)

    out = conv_relu(out, params["w1"], params["b1"])
    out = conv_relu(out, params["w2"], params["b2"])
    return out


# ----------------------------- main ----------------------------------------

if __name__ == "__main__":
    in_size, out_size = 8, 4
    N, H, W = 2, 8, 8                       # x spatial; up -> 16x16
    BH, BW = 18, 18                         # bridge larger -> exercises center_crop

    key = jax.random.PRNGKey(0)
    k = jax.random.split(key, 8)
    params = {
        # nn.ConvTranspose2d(in_size, out_size, 2, 2): weight (in, out, 2, 2)
        "w_up": 0.1 * jax.random.normal(k[0], (in_size, out_size, 2, 2), jnp.float32),
        "b_up": 0.1 * jax.random.normal(k[1], (out_size,), jnp.float32),
        # nn.Conv2d(in_size, out_size, 3, padding=1): stored HWIO (3,3,in,out)
        "w1": 0.1 * jax.random.normal(k[2], (3, 3, in_size, out_size), jnp.float32),
        "b1": 0.1 * jax.random.normal(k[3], (out_size,), jnp.float32),
        # nn.Conv2d(out_size, out_size, 3, padding=1)
        "w2": 0.1 * jax.random.normal(k[4], (3, 3, out_size, out_size), jnp.float32),
        "b2": 0.1 * jax.random.normal(k[5], (out_size,), jnp.float32),
    }

    x = jax.random.normal(k[6], (N, in_size, H, W), jnp.float32)
    bridge = jax.random.normal(k[7], (N, out_size, BH, BW), jnp.float32)

    out = jax.block_until_ready(jax.jit(unet_up_block)(x, bridge, params))
    ref = jax.block_until_ready(_ref_forward(x, bridge, params))

    assert out.shape == (N, out_size, 2 * H, 2 * W), out.shape
    err = float(jnp.max(jnp.abs(out - ref)))
    assert jnp.allclose(out, ref, rtol=2e-3, atol=2e-3), err
    print("KERNEL_OK")
</pallas_src>

<mosaic_0001>
module attributes {stable_mosaic.version = 11 : i64} {
  func.func @_fused_up_block_kernel(%arg0: i32, %arg1: memref<1x64x8xf32, #tpu.memory_space<vmem>>, %arg2: memref<1x16x8x8xf32, #tpu.memory_space<vmem>>, %arg3: memref<8x512xf32, #tpu.memory_space<vmem>>, %arg4: memref<1x512xf32, #tpu.memory_space<vmem>>, %arg5: memref<3x3x256x128xf32, #tpu.memory_space<vmem>>, %arg6: memref<1x128xf32, #tpu.memory_space<vmem>>, %arg7: memref<3x3x128x128xf32, #tpu.memory_space<vmem>>, %arg8: memref<1x128xf32, #tpu.memory_space<vmem>>, %arg9: memref<1x16x8x8xf32, #tpu.memory_space<vmem>>, %arg10: memref<18x10x256xf32, #tpu.memory_space<vmem>>, %arg11: memref<18x10x256xf32, #tpu.memory_space<vmem>>, %arg12: memref<18x10x128xf32, #tpu.memory_space<vmem>>, %arg13: memref<18x10x128xf32, #tpu.memory_space<vmem>>) attributes {dimension_semantics = [#tpu.dimension_semantics<parallel>], iteration_bounds = array<i64: 2>, scalar_prefetch = 0 : i64, scratch_operands = 4 : i64, tpu.core_type = #tpu.core_type<tc>, window_params = [{transform_indices = @transform_0, window_bounds = array<i64: 1, 64, 8>}, {transform_indices = @transform_1, window_bounds = array<i64: 1, 16, 8, 8>}, {pipeline_mode = #tpu.pipeline_mode<synchronous>, transform_indices = @transform_2, window_bounds = array<i64: 8, 512>}, {pipeline_mode = #tpu.pipeline_mode<synchronous>, transform_indices = @transform_3, window_bounds = array<i64: 1, 512>}, {pipeline_mode = #tpu.pipeline_mode<synchronous>, transform_indices = @transform_4, window_bounds = array<i64: 3, 3, 256, 128>}, {pipeline_mode = #tpu.pipeline_mode<synchronous>, transform_indices = @transform_5, window_bounds = array<i64: 1, 128>}, {pipeline_mode = #tpu.pipeline_mode<synchronous>, transform_indices = @transform_6, window_bounds = array<i64: 3, 3, 128, 128>}, {pipeline_mode = #tpu.pipeline_mode<synchronous>, transform_indices = @transform_7, window_bounds = array<i64: 1, 128>}, {transform_indices = @transform_8, window_bounds = array<i64: 1, 16, 8, 8>}]} {
    %cst = arith.constant 0.000000e+00 : f32
    %0 = vector.broadcast %cst : f32 to vector<18x10x256xf32>
    %c0 = arith.constant 0 : index
    %c0_0 = arith.constant 0 : index
    %c0_1 = arith.constant 0 : index
    %1 = vector.load %arg10[%c0, %c0_0, %c0_1] : memref<18x10x256xf32, #tpu.memory_space<vmem>>, vector<18x10x256xf32>
    tpu.vector_store %arg10[%c0, %c0_0, %c0_1], %0 {strides = array<i32>} : memref<18x10x256xf32, #tpu.memory_space<vmem>>, vector<18x10x256xf32>,
    %cst_2 = arith.constant 0.000000e+00 : f32
    %2 = vector.broadcast %cst_2 : f32 to vector<18x10x256xf32>
    %c0_3 = arith.constant 0 : index
    %c0_4 = arith.constant 0 : index
    %c0_5 = arith.constant 0 : index
    %3 = vector.load %arg11[%c0_3, %c0_4, %c0_5] : memref<18x10x256xf32, #tpu.memory_space<vmem>>, vector<18x10x256xf32>
    tpu.vector_store %arg11[%c0_3, %c0_4, %c0_5], %2 {strides = array<i32>} : memref<18x10x256xf32, #tpu.memory_space<vmem>>, vector<18x10x256xf32>,
    %cst_6 = arith.constant 0.000000e+00 : f32
    %4 = vector.broadcast %cst_6 : f32 to vector<18x10x128xf32>
    %c0_7 = arith.constant 0 : index
    %c0_8 = arith.constant 0 : index
    %c0_9 = arith.constant 0 : index
    %5 = vector.load %arg12[%c0_7, %c0_8, %c0_9] : memref<18x10x128xf32, #tpu.memory_space<vmem>>, vector<18x10x128xf32>
    tpu.vector_store %arg12[%c0_7, %c0_8, %c0_9], %4 {strides = array<i32>} : memref<18x10x128xf32, #tpu.memory_space<vmem>>, vector<18x10x128xf32>,
    %cst_10 = arith.constant 0.000000e+00 : f32
    %6 = vector.broadcast %cst_10 : f32 to vector<18x10x128xf32>
    %c0_11 = arith.constant 0 : index
    %c0_12 = arith.constant 0 : index
    %c0_13 = arith.constant 0 : index
    %7 = vector.load %arg13[%c0_11, %c0_12, %c0_13] : memref<18x10x128xf32, #tpu.memory_space<vmem>>, vector<18x10x128xf32>
    tpu.vector_store %arg13[%c0_11, %c0_12, %c0_13], %6 {strides = array<i32>} : memref<18x10x128xf32, #tpu.memory_space<vmem>>, vector<18x10x128xf32>,
    %c0_14 = arith.constant 0 : index
    %c0_15 = arith.constant 0 : index
    %c0_16 = arith.constant 0 : index
    %8 = vector.load %arg1[%c0_14, %c0_15, %c0_16] : memref<1x64x8xf32, #tpu.memory_space<vmem>>, vector<1x64x8xf32>
    %9 = vector.shape_cast %8 : vector<1x64x8xf32> to vector<64x8xf32>
    %c0_17 = arith.constant 0 : index
    %c0_18 = arith.constant 0 : index
    %10 = vector.load %arg3[%c0_17, %c0_18] : memref<8x512xf32, #tpu.memory_space<vmem>>, vector<8x512xf32>
    %cst_19 = arith.constant dense<0.000000e+00> : vector<64x512xf32>
    %11 = tpu.matmul %9, %10, %cst_19 {dimension_numbers = #tpu.dot_dimension_numbers<[1], [0], [0], [1], [0, 0, 1, 1], [], []>} : vector<64x8xf32>, vector<8x512xf32>, vector<64x512xf32> -> vector<64x512xf32>
    %c0_20 = arith.constant 0 : index
    %c0_21 = arith.constant 0 : index
    %12 = vector.load %arg4[%c0_20, %c0_21] : memref<1x512xf32, #tpu.memory_space<vmem>>, vector<1x512xf32>
    %13 = vector.broadcast %12 : vector<1x512xf32> to vector<64x512xf32>
    %14 = arith.addf %11, %13 : vector<64x512xf32>
    %15 = vector.extract_strided_slice %14 {offsets = [0, 0], sizes = [64, 128], strides = [1, 1]} : vector<64x512xf32> to vector<64x128xf32>
    %16 = vector.shape_cast %15 : vector<64x128xf32> to vector<8x8x128xf32>
    %17 = vector.extract_strided_slice %14 {offsets = [0, 128], sizes = [64, 128], strides = [1, 1]} : vector<64x512xf32> to vector<64x128xf32>
    %18 = vector.shape_cast %17 : vector<64x128xf32> to vector<8x8x128xf32>
    %19 = vector.extract_strided_slice %14 {offsets = [0, 256], sizes = [64, 128], strides = [1, 1]} : vector<64x512xf32> to vector<64x128xf32>
    %20 = vector.shape_cast %19 : vector<64x128xf32> to vector<8x8x128xf32>
    %21 = vector.extract_strided_slice %14 {offsets = [0, 384], sizes = [64, 128], strides = [1, 1]} : vector<64x512xf32> to vector<64x128xf32>
    %22 = vector.shape_cast %21 : vector<64x128xf32> to vector<8x8x128xf32>
    %23 = vector.shape_cast %16 : vector<8x8x128xf32> to vector<8x1x8x128xf32>
    %24 = vector.shape_cast %20 : vector<8x8x128xf32> to vector<8x1x8x128xf32>
    %25 = tpu.concatenate %23, %24 in 1 : vector<8x1x8x128xf32>, vector<8x1x8x128xf32> -> vector<8x2x8x128xf32>
    %26 = vector.shape_cast %25 : vector<8x2x8x128xf32> to vector<16x8x128xf32>
    %27 = vector.shape_cast %18 : vector<8x8x128xf32> to vector<8x1x8x128xf32>
    %28 = vector.shape_cast %22 : vector<8x8x128xf32> to vector<8x1x8x128xf32>
    %29 = tpu.concatenate %27, %28 in 1 : vector<8x1x8x128xf32>, vector<8x1x8x128xf32> -> vector<8x2x8x128xf32>
    %30 = vector.shape_cast %29 : vector<8x2x8x128xf32> to vector<16x8x128xf32>
    %c1 = arith.constant 1 : index
    %c1_22 = arith.constant 1 : index
    %c0_23 = arith.constant 0 : index
    %31 = vector.load %arg10[%c1, %c1_22, %c0_23] : memref<18x10x256xf32, #tpu.memory_space<vmem>>, vector<16x8x128xf32>
    tpu.vector_store %arg10[%c1, %c1_22, %c0_23], %26 {strides = array<i32>} : memref<18x10x256xf32, #tpu.memory_space<vmem>>, vector<16x8x128xf32>,
    %c1_24 = arith.constant 1 : index
    %c1_25 = arith.constant 1 : index
    %c0_26 = arith.constant 0 : index
    %32 = vector.load %arg11[%c1_24, %c1_25, %c0_26] : memref<18x10x256xf32, #tpu.memory_space<vmem>>, vector<16x8x128xf32>
    tpu.vector_store %arg11[%c1_24, %c1_25, %c0_26], %30 {strides = array<i32>} : memref<18x10x256xf32, #tpu.memory_space<vmem>>, vector<16x8x128xf32>,
    %c0_27 = arith.constant 0 : index
    %c0_28 = arith.constant 0 : index
    %c0_29 = arith.constant 0 : index
    %c0_30 = arith.constant 0 : index
    %33 = vector.load %arg2[%c0_27, %c0_28, %c0_29, %c0_30] : memref<1x16x8x8xf32, #tpu.memory_space<vmem>>, vector<1x16x8x8xf32>
    %34 = vector.shape_cast %33 : vector<1x16x8x8xf32> to vector<16x8x8xf32>
    %35 = vector.extract_strided_slice %34 {offsets = [0, 0, 0], sizes = [16, 8, 4], strides = [1, 1, 1]} : vector<16x8x8xf32> to vector<16x8x4xf32>
    %c1_31 = arith.constant 1 : index
    %c1_32 = arith.constant 1 : index
    %c128 = arith.constant 128 : index
    %36 = vector.load %arg10[%c1_31, %c1_32, %c128] : memref<18x10x256xf32, #tpu.memory_space<vmem>>, vector<16x8x4xf32>
    tpu.vector_store %arg10[%c1_31, %c1_32, %c128], %35 {strides = array<i32>} : memref<18x10x256xf32, #tpu.memory_space<vmem>>, vector<16x8x4xf32>,
    %37 = vector.extract_strided_slice %34 {offsets = [0, 0, 4], sizes = [16, 8, 4], strides = [1, 1, 1]} : vector<16x8x8xf32> to vector<16x8x4xf32>
    %c1_33 = arith.constant 1 : index
    %c1_34 = arith.constant 1 : index
    %c128_35 = arith.constant 128 : index
    %38 = vector.load %arg11[%c1_33, %c1_34, %c128_35] : memref<18x10x256xf32, #tpu.memory_space<vmem>>, vector<16x8x4xf32>
    tpu.vector_store %arg11[%c1_33, %c1_34, %c128_35], %37 {strides = array<i32>} : memref<18x10x256xf32, #tpu.memory_space<vmem>>, vector<16x8x4xf32>,
    %c0_36 = arith.constant 0 : index
    %c0_37 = arith.constant 0 : index
    %39 = vector.load %arg6[%c0_36, %c0_37] : memref<1x128xf32, #tpu.memory_space<vmem>>, vector<1x128xf32>
    %40 = vector.shape_cast %39 : vector<1x128xf32> to vector<1x1x128xf32>
    %41 = vector.shape_cast %40 : vector<1x1x128xf32> to vector<1x1x128xf32>
    %42 = vector.broadcast %41 : vector<1x1x128xf32> to vector<16x8x128xf32>
    %43 = vector.shape_cast %40 : vector<1x1x128xf32> to vector<1x1x128xf32>
    %44 = vector.broadcast %43 : vector<1x1x128xf32> to vector<16x8x128xf32>
    %c0_38 = arith.constant 0 : index
    %c0_39 = arith.constant 0 : index
    %c0_40 = arith.constant 0 : index
    %45 = vector.load %arg10[%c0_38, %c0_39, %c0_40] : memref<18x10x256xf32, #tpu.memory_space<vmem>>, vector<16x10x256xf32>
    %c0_41 = arith.constant 0 : index
    %c0_42 = arith.constant 0 : index
    %c0_43 = arith.constant 0 : index
    %46 = vector.load %arg11[%c0_41, %c0_42, %c0_43] : memref<18x10x256xf32, #tpu.memory_space<vmem>>, vector<16x10x256xf32>
    %47 = vector.extract_strided_slice %45 {offsets = [0, 1, 0], sizes = [16, 8, 256], strides = [1, 1, 1]} : vector<16x10x256xf32> to vector<16x8x256xf32>
    %48 = vector.extract_strided_slice %45 {offsets = [0, 2, 0], sizes = [16, 8, 256], strides = [1, 1, 1]} : vector<16x10x256xf32> to vector<16x8x256xf32>
    %49 = vector.extract_strided_slice %46 {offsets = [0, 0, 0], sizes = [16, 8, 256], strides = [1, 1, 1]} : vector<16x10x256xf32> to vector<16x8x256xf32>
    %50 = vector.extract_strided_slice %46 {offsets = [0, 1, 0], sizes = [16, 8, 256], strides = [1, 1, 1]} : vector<16x10x256xf32> to vector<16x8x256xf32>
    %c0_44 = arith.constant 0 : index
    %c0_45 = arith.constant 0 : index
    %c0_46 = arith.constant 0 : index
    %c0_47 = arith.constant 0 : index
    %51 = vector.load %arg5[%c0_44, %c0_45, %c0_46, %c0_47] : memref<3x3x256x128xf32, #tpu.memory_space<vmem>>, vector<1x1x256x128xf32>
    %52 = vector.shape_cast %51 : vector<1x1x256x128xf32> to vector<256x128xf32>
    %c0_48 = arith.constant 0 : index
    %c1_49 = arith.constant 1 : index
    %c0_50 = arith.constant 0 : index
    %c0_51 = arith.constant 0 : index
    %53 = vector.load %arg5[%c0_48, %c1_49, %c0_50, %c0_51] : memref<3x3x256x128xf32, #tpu.memory_space<vmem>>, vector<1x1x256x128xf32>
    %54 = vector.shape_cast %53 : vector<1x1x256x128xf32> to vector<256x128xf32>
    %c0_52 = arith.constant 0 : index
    %c2 = arith.constant 2 : index
    %c0_53 = arith.constant 0 : index
    %c0_54 = arith.constant 0 : index
    %55 = vector.load %arg5[%c0_52, %c2, %c0_53, %c0_54] : memref<3x3x256x128xf32, #tpu.memory_space<vmem>>, vector<1x1x256x128xf32>
    %56 = vector.shape_cast %55 : vector<1x1x256x128xf32> to vector<256x128xf32>
    %cst_55 = arith.constant dense<0.000000e+00> : vector<16x8x128xf32>
    %57 = tpu.matmul %49, %52, %cst_55 {dimension_numbers = #tpu.dot_dimension_numbers<[2], [0], [0, 1], [1], [0, 0, 0, 1, 1, 1], [], []>} : vector<16x8x256xf32>, vector<256x128xf32>, vector<16x8x128xf32> -> vector<16x8x128xf32>
    %58 = arith.addf %42, %57 : vector<16x8x128xf32>
    %cst_56 = arith.constant dense<0.000000e+00> : vector<16x8x128xf32>
    %59 = tpu.matmul %47, %54, %cst_56 {dimension_numbers = #tpu.dot_dimension_numbers<[2], [0], [0, 1], [1], [0, 0, 0, 1, 1, 1], [], []>} : vector<16x8x256xf32>, vector<256x128xf32>, vector<16x8x128xf32> -> vector<16x8x128xf32>
    %60 = arith.addf %58, %59 : vector<16x8x128xf32>
    %cst_57 = arith.constant dense<0.000000e+00> : vector<16x8x128xf32>
    %61 = tpu.matmul %50, %56, %cst_57 {dimension_numbers = #tpu.dot_dimension_numbers<[2], [0], [0, 1], [1], [0, 0, 0, 1, 1, 1], [], []>} : vector<16x8x256xf32>, vector<256x128xf32>, vector<16x8x128xf32> -> vector<16x8x128xf32>
    %62 = arith.addf %60, %61 : vector<16x8x128xf32>
    %cst_58 = arith.constant dense<0.000000e+00> : vector<16x8x128xf32>
    %63 = tpu.matmul %47, %52, %cst_58 {dimension_numbers = #tpu.dot_dimension_numbers<[2], [0], [0, 1], [1], [0, 0, 0, 1, 1, 1], [], []>} : vector<16x8x256xf32>, vector<256x128xf32>, vector<16x8x128xf32> -> vector<16x8x128xf32>
    %64 = arith.addf %44, %63 : vector<16x8x128xf32>
    %cst_59 = arith.constant dense<0.000000e+00> : vector<16x8x128xf32>
    %65 = tpu.matmul %50, %54, %cst_59 {dimension_numbers = #tpu.dot_dimension_numbers<[2], [0], [0, 1], [1], [0, 0, 0, 1, 1, 1], [], []>} : vector<16x8x256xf32>, vector<256x128xf32>, vector<16x8x128xf32> -> vector<16x8x128xf32>
    %66 = arith.addf %64, %65 : vector<16x8x128xf32>
    %cst_60 = arith.constant dense<0.000000e+00> : vector<16x8x128xf32>
    %67 = tpu.matmul %48, %56, %cst_60 {dimension_numbers = #tpu.dot_dimension_numbers<[2], [0], [0, 1], [1], [0, 0, 0, 1, 1, 1], [], []>} : vector<16x8x256xf32>, vector<256x128xf32>, vector<16x8x128xf32> -> vector<16x8x128xf32>
    %68 = arith.addf %66, %67 : vector<16x8x128xf32>
    %c1_61 = arith.constant 1 : index
    %c0_62 = arith.constant 0 : index
    %c0_63 = arith.constant 0 : index
    %69 = vector.load %arg10[%c1_61, %c0_62, %c0_63] : memref<18x10x256xf32, #tpu.memory_space<vmem>>, vector<16x10x256xf32>
    %c1_64 = arith.constant 1 : index
    %c0_65 = arith.constant 0 : index
    %c0_66 = arith.constant 0 : index
    %70 = vector.load %arg11[%c1_64, %c0_65, %c0_66] : memref<18x10x256xf32, #tpu.memory_space<vmem>>, vector<16x10x256xf32>
    %71 = vector.extract_strided_slice %69 {offsets = [0, 1, 0], sizes = [16, 8, 256], strides = [1, 1, 1]} : vector<16x10x256xf32> to vector<16x8x256xf32>
    %72 = vector.extract_strided_slice %69 {offsets = [0, 2, 0], sizes = [16, 8, 256], strides = [1, 1, 1]} : vector<16x10x256xf32> to vector<16x8x256xf32>
    %73 = vector.extract_strided_slice %70 {offsets = [0, 0, 0], sizes = [16, 8, 256], strides = [1, 1, 1]} : vector<16x10x256xf32> to vector<16x8x256xf32>
    %74 = vector.extract_strided_slice %70 {offsets = [0, 1, 0], sizes = [16, 8, 256], strides = [1, 1, 1]} : vector<16x10x256xf32> to vector<16x8x256xf32>
    %c1_67 = arith.constant 1 : index
    %c0_68 = arith.constant 0 : index
    %c0_69 = arith.constant 0 : index
    %c0_70 = arith.constant 0 : index
    %75 = vector.load %arg5[%c1_67, %c0_68, %c0_69, %c0_70] : memref<3x3x256x128xf32, #tpu.memory_space<vmem>>, vector<1x1x256x128xf32>
    %76 = vector.shape_cast %75 : vector<1x1x256x128xf32> to vector<256x128xf32>
    %c1_71 = arith.constant 1 : index
    %c1_72 = arith.constant 1 : index
    %c0_73 = arith.constant 0 : index
    %c0_74 = arith.constant 0 : index
    %77 = vector.load %arg5[%c1_71, %c1_72, %c0_73, %c0_74] : memref<3x3x256x128xf32, #tpu.memory_space<vmem>>, vector<1x1x256x128xf32>
    %78 = vector.shape_cast %77 : vector<1x1x256x128xf32> to vector<256x128xf32>
    %c1_75 = arith.constant 1 : index
    %c2_76 = arith.constant 2 : index
    %c0_77 = arith.constant 0 : index
    %c0_78 = arith.constant 0 : index
    %79 = vector.load %arg5[%c1_75, %c2_76, %c0_77, %c0_78] : memref<3x3x256x128xf32, #tpu.memory_space<vmem>>, vector<1x1x256x128xf32>
    %80 = vector.shape_cast %79 : vector<1x1x256x128xf32> to vector<256x128xf32>
    %cst_79 = arith.constant dense<0.000000e+00> : vector<16x8x128xf32>
    %81 = tpu.matmul %73, %76, %cst_79 {dimension_numbers = #tpu.dot_dimension_numbers<[2], [0], [0, 1], [1], [0, 0, 0, 1, 1, 1], [], []>} : vector<16x8x256xf32>, vector<256x128xf32>, vector<16x8x128xf32> -> vector<16x8x128xf32>
    %82 = arith.addf %62, %81 : vector<16x8x128xf32>
    %cst_80 = arith.constant dense<0.000000e+00> : vector<16x8x128xf32>
    %83 = tpu.matmul %71, %78, %cst_80 {dimension_numbers = #tpu.dot_dimension_numbers<[2], [0], [0, 1], [1], [0, 0, 0, 1, 1, 1], [], []>} : vector<16x8x256xf32>, vector<256x128xf32>, vector<16x8x128xf32> -> vector<16x8x128xf32>
    %84 = arith.addf %82, %83 : vector<16x8x128xf32>
    %cst_81 = arith.constant dense<0.000000e+00> : vector<16x8x128xf32>
    %85 = tpu.matmul %74, %80, %cst_81 {dimension_numbers = #tpu.dot_dimension_numbers<[2], [0], [0, 1], [1], [0, 0, 0, 1, 1, 1], [], []>} : vector<16x8x256xf32>, vector<256x128xf32>, vector<16x8x128xf32> -> vector<16x8x128xf32>
    %86 = arith.addf %84, %85 : vector<16x8x128xf32>
    %cst_82 = arith.constant dense<0.000000e+00> : vector<16x8x128xf32>
    %87 = tpu.matmul %71, %76, %cst_82 {dimension_numbers = #tpu.dot_dimension_numbers<[2], [0], [0, 1], [1], [0, 0, 0, 1, 1, 1], [], []>} : vector<16x8x256xf32>, vector<256x128xf32>, vector<16x8x128xf32> -> vector<16x8x128xf32>
    %88 = arith.addf %68, %87 : vector<16x8x128xf32>
    %cst_83 = arith.constant dense<0.000000e+00> : vector<16x8x128xf32>
    %89 = tpu.matmul %74, %78, %cst_83 {dimension_numbers = #tpu.dot_dimension_numbers<[2], [0], [0, 1], [1], [0, 0, 0, 1, 1, 1], [], []>} : vector<16x8x256xf32>, vector<256x128xf32>, vector<16x8x128xf32> -> vector<16x8x128xf32>
    %90 = arith.addf %88, %89 : vector<16x8x128xf32>
    %cst_84 = arith.constant dense<0.000000e+00> : vector<16x8x128xf32>
    %91 = tpu.matmul %72, %80, %cst_84 {dimension_numbers = #tpu.dot_dimension_numbers<[2], [0], [0, 1], [1], [0, 0, 0, 1, 1, 1], [], []>} : vector<16x8x256xf32>, vector<256x128xf32>, vector<16x8x128xf32> -> vector<16x8x128xf32>
    %92 = arith.addf %90, %91 : vector<16x8x128xf32>
    %c2_85 = arith.constant 2 : index
    %c0_86 = arith.constant 0 : index
    %c0_87 = arith.constant 0 : index
    %93 = vector.load %arg10[%c2_85, %c0_86, %c0_87] : memref<18x10x256xf32, #tpu.memory_space<vmem>>, vector<16x10x256xf32>
    %c2_88 = arith.constant 2 : index
    %c0_89 = arith.constant 0 : index
    %c0_90 = arith.constant 0 : index
    %94 = vector.load %arg11[%c2_88, %c0_89, %c0_90] : memref<18x10x256xf32, #tpu.memory_space<vmem>>, vector<16x10x256xf32>
    %95 = vector.extract_strided_slice %93 {offsets = [0, 1, 0], sizes = [16, 8, 256], strides = [1, 1, 1]} : vector<16x10x256xf32> to vector<16x8x256xf32>
    %96 = vector.extract_strided_slice %93 {offsets = [0, 2, 0], sizes = [16, 8, 256], strides = [1, 1, 1]} : vector<16x10x256xf32> to vector<16x8x256xf32>
    %97 = vector.extract_strided_slice %94 {offsets = [0, 0, 0], sizes = [16, 8, 256], strides = [1, 1, 1]} : vector<16x10x256xf32> to vector<16x8x256xf32>
    %98 = vector.extract_strided_slice %94 {offsets = [0, 1, 0], sizes = [16, 8, 256], strides = [1, 1, 1]} : vector<16x10x256xf32> to vector<16x8x256xf32>
    %c2_91 = arith.constant 2 : index
    %c0_92 = arith.constant 0 : index
    %c0_93 = arith.constant 0 : index
    %c0_94 = arith.constant 0 : index
    %99 = vector.load %arg5[%c2_91, %c0_92, %c0_93, %c0_94] : memref<3x3x256x128xf32, #tpu.memory_space<vmem>>, vector<1x1x256x128xf32>
    %100 = vector.shape_cast %99 : vector<1x1x256x128xf32> to vector<256x128xf32>
    %c2_95 = arith.constant 2 : index
    %c1_96 = arith.constant 1 : index
    %c0_97 = arith.constant 0 : index
    %c0_98 = arith.constant 0 : index
    %101 = vector.load %arg5[%c2_95, %c1_96, %c0_97, %c0_98] : memref<3x3x256x128xf32, #tpu.memory_space<vmem>>, vector<1x1x256x128xf32>
    %102 = vector.shape_cast %101 : vector<1x1x256x128xf32> to vector<256x128xf32>
    %c2_99 = arith.constant 2 : index
    %c2_100 = arith.constant 2 : index
    %c0_101 = arith.constant 0 : index
    %c0_102 = arith.constant 0 : index
    %103 = vector.load %arg5[%c2_99, %c2_100, %c0_101, %c0_102] : memref<3x3x256x128xf32, #tpu.memory_space<vmem>>, vector<1x1x256x128xf32>
    %104 = vector.shape_cast %103 : vector<1x1x256x128xf32> to vector<256x128xf32>
    %cst_103 = arith.constant dense<0.000000e+00> : vector<16x8x128xf32>
    %105 = tpu.matmul %97, %100, %cst_103 {dimension_numbers = #tpu.dot_dimension_numbers<[2], [0], [0, 1], [1], [0, 0, 0, 1, 1, 1], [], []>} : vector<16x8x256xf32>, vector<256x128xf32>, vector<16x8x128xf32> -> vector<16x8x128xf32>
    %106 = arith.addf %86, %105 : vector<16x8x128xf32>
    %cst_104 = arith.constant dense<0.000000e+00> : vector<16x8x128xf32>
    %107 = tpu.matmul %95, %102, %cst_104 {dimension_numbers = #tpu.dot_dimension_numbers<[2], [0], [0, 1], [1], [0, 0, 0, 1, 1, 1], [], []>} : vector<16x8x256xf32>, vector<256x128xf32>, vector<16x8x128xf32> -> vector<16x8x128xf32>
    %108 = arith.addf %106, %107 : vector<16x8x128xf32>
    %cst_105 = arith.constant dense<0.000000e+00> : vector<16x8x128xf32>
    %109 = tpu.matmul %98, %104, %cst_105 {dimension_numbers = #tpu.dot_dimension_numbers<[2], [0], [0, 1], [1], [0, 0, 0, 1, 1, 1], [], []>} : vector<16x8x256xf32>, vector<256x128xf32>, vector<16x8x128xf32> -> vector<16x8x128xf32>
    %110 = arith.addf %108, %109 : vector<16x8x128xf32>
    %cst_106 = arith.constant dense<0.000000e+00> : vector<16x8x128xf32>
    %111 = tpu.matmul %95, %100, %cst_106 {dimension_numbers = #tpu.dot_dimension_numbers<[2], [0], [0, 1], [1], [0, 0, 0, 1, 1, 1], [], []>} : vector<16x8x256xf32>, vector<256x128xf32>, vector<16x8x128xf32> -> vector<16x8x128xf32>
    %112 = arith.addf %92, %111 : vector<16x8x128xf32>
    %cst_107 = arith.constant dense<0.000000e+00> : vector<16x8x128xf32>
    %113 = tpu.matmul %98, %102, %cst_107 {dimension_numbers = #tpu.dot_dimension_numbers<[2], [0], [0, 1], [1], [0, 0, 0, 1, 1, 1], [], []>} : vector<16x8x256xf32>, vector<256x128xf32>, vector<16x8x128xf32> -> vector<16x8x128xf32>
    %114 = arith.addf %112, %113 : vector<16x8x128xf32>
    %cst_108 = arith.constant dense<0.000000e+00> : vector<16x8x128xf32>
    %115 = tpu.matmul %96, %104, %cst_108 {dimension_numbers = #tpu.dot_dimension_numbers<[2], [0], [0, 1], [1], [0, 0, 0, 1, 1, 1], [], []>} : vector<16x8x256xf32>, vector<256x128xf32>, vector<16x8x128xf32> -> vector<16x8x128xf32>
    %116 = arith.addf %114, %115 : vector<16x8x128xf32>
    %cst_109 = arith.constant 0.000000e+00 : f32
    %117 = vector.broadcast %cst_109 : f32 to vector<16x8x128xf32>
    %118 = arith.maximumf %110, %117 : vector<16x8x128xf32>
    %cst_110 = arith.constant 0.000000e+00 : f32
    %119 = vector.broadcast %cst_110 : f32 to vector<16x8x128xf32>
    %120 = arith.maximumf %116, %119 : vector<16x8x128xf32>
    %c1_111 = arith.constant 1 : index
    %c1_112 = arith.constant 1 : index
    %c0_113 = arith.constant 0 : index
    %121 = vector.load %arg12[%c1_111, %c1_112, %c0_113] : memref<18x10x128xf32, #tpu.memory_space<vmem>>, vector<16x8x128xf32>
    tpu.vector_store %arg12[%c1_111, %c1_112, %c0_113], %118 {strides = array<i32>} : memref<18x10x128xf32, #tpu.memory_space<vmem>>, vector<16x8x128xf32>,
    %c1_114 = arith.constant 1 : index
    %c1_115 = arith.constant 1 : index
    %c0_116 = arith.constant 0 : index
    %122 = vector.load %arg13[%c1_114, %c1_115, %c0_116] : memref<18x10x128xf32, #tpu.memory_space<vmem>>, vector<16x8x128xf32>
    tpu.vector_store %arg13[%c1_114, %c1_115, %c0_116], %120 {strides = array<i32>} : memref<18x10x128xf32, #tpu.memory_space<vmem>>, vector<16x8x128xf32>,
    %c0_117 = arith.constant 0 : index
    %c0_118 = arith.constant 0 : index
    %123 = vector.load %arg8[%c0_117, %c0_118] : memref<1x128xf32, #tpu.memory_space<vmem>>, vector<1x128xf32>
    %124 = vector.shape_cast %123 : vector<1x128xf32> to vector<1x1x128xf32>
    %125 = vector.shape_cast %124 : vector<1x1x128xf32> to vector<1x1x128xf32>
    %126 = vector.broadcast %125 : vector<1x1x128xf32> to vector<16x8x128xf32>
    %127 = vector.shape_cast %124 : vector<1x1x128xf32> to vector<1x1x128xf32>
    %128 = vector.broadcast %127 : vector<1x1x128xf32> to vector<16x8x128xf32>
    %c0_119 = arith.constant 0 : index
    %c0_120 = arith.constant 0 : index
    %c0_121 = arith.constant 0 : index
    %129 = vector.load %arg12[%c0_119, %c0_120, %c0_121] : memref<18x10x128xf32, #tpu.memory_space<vmem>>, vector<16x10x128xf32>
    %c0_122 = arith.constant 0 : index
    %c0_123 = arith.constant 0 : index
    %c0_124 = arith.constant 0 : index
    %130 = vector.load %arg13[%c0_122, %c0_123, %c0_124] : memref<18x10x128xf32, #tpu.memory_space<vmem>>, vector<16x10x128xf32>
    %131 = vector.extract_strided_slice %129 {offsets = [0, 1, 0], sizes = [16, 8, 128], strides = [1, 1, 1]} : vector<16x10x128xf32> to vector<16x8x128xf32>
    %132 = vector.extract_strided_slice %129 {offsets = [0, 2, 0], sizes = [16, 8, 128], strides = [1, 1, 1]} : vector<16x10x128xf32> to vector<16x8x128xf32>
    %133 = vector.extract_strided_slice %130 {offsets = [0, 0, 0], sizes = [16, 8, 128], strides = [1, 1, 1]} : vector<16x10x128xf32> to vector<16x8x128xf32>
    %134 = vector.extract_strided_slice %130 {offsets = [0, 1, 0], sizes = [16, 8, 128], strides = [1, 1, 1]} : vector<16x10x128xf32> to vector<16x8x128xf32>
    %c0_125 = arith.constant 0 : index
    %c0_126 = arith.constant 0 : index
    %c0_127 = arith.constant 0 : index
    %c0_128 = arith.constant 0 : index
    %135 = vector.load %arg7[%c0_125, %c0_126, %c0_127, %c0_128] : memref<3x3x128x128xf32, #tpu.memory_space<vmem>>, vector<1x1x128x128xf32>
    %136 = vector.shape_cast %135 : vector<1x1x128x128xf32> to vector<128x128xf32>
    %c0_129 = arith.constant 0 : index
    %c1_130 = arith.constant 1 : index
    %c0_131 = arith.constant 0 : index
    %c0_132 = arith.constant 0 : index
    %137 = vector.load %arg7[%c0_129, %c1_130, %c0_131, %c0_132] : memref<3x3x128x128xf32, #tpu.memory_space<vmem>>, vector<1x1x128x128xf32>
    %138 = vector.shape_cast %137 : vector<1x1x128x128xf32> to vector<128x128xf32>
    %c0_133 = arith.constant 0 : index
    %c2_134 = arith.constant 2 : index
    %c0_135 = arith.constant 0 : index
    %c0_136 = arith.constant 0 : index
    %139 = vector.load %arg7[%c0_133, %c2_134, %c0_135, %c0_136] : memref<3x3x128x128xf32, #tpu.memory_space<vmem>>, vector<1x1x128x128xf32>
    %140 = vector.shape_cast %139 : vector<1x1x128x128xf32> to vector<128x128xf32>
    %cst_137 = arith.constant dense<0.000000e+00> : vector<16x8x128xf32>
    %141 = tpu.matmul %133, %136, %cst_137 {dimension_numbers = #tpu.dot_dimension_numbers<[2], [0], [0, 1], [1], [0, 0, 0, 1, 1, 1], [], []>} : vector<16x8x128xf32>, vector<128x128xf32>, vector<16x8x128xf32> -> vector<16x8x128xf32>
    %142 = arith.addf %126, %141 : vector<16x8x128xf32>
    %cst_138 = arith.constant dense<0.000000e+00> : vector<16x8x128xf32>
    %143 = tpu.matmul %131, %138, %cst_138 {dimension_numbers = #tpu.dot_dimension_numbers<[2], [0], [0, 1], [1], [0, 0, 0, 1, 1, 1], [], []>} : vector<16x8x128xf32>, vector<128x128xf32>, vector<16x8x128xf32> -> vector<16x8x128xf32>
    %144 = arith.addf %142, %143 : vector<16x8x128xf32>
    %cst_139 = arith.constant dense<0.000000e+00> : vector<16x8x128xf32>
    %145 = tpu.matmul %134, %140, %cst_139 {dimension_numbers = #tpu.dot_dimension_numbers<[2], [0], [0, 1], [1], [0, 0, 0, 1, 1, 1], [], []>} : vector<16x8x128xf32>, vector<128x128xf32>, vector<16x8x128xf32> -> vector<16x8x128xf32>
    %146 = arith.addf %144, %145 : vector<16x8x128xf32>
    %cst_140 = arith.constant dense<0.000000e+00> : vector<16x8x128xf32>
    %147 = tpu.matmul %131, %136, %cst_140 {dimension_numbers = #tpu.dot_dimension_numbers<[2], [0], [0, 1], [1], [0, 0, 0, 1, 1, 1], [], []>} : vector<16x8x128xf32>, vector<128x128xf32>, vector<16x8x128xf32> -> vector<16x8x128xf32>
    %148 = arith.addf %128, %147 : vector<16x8x128xf32>
    %cst_141 = arith.constant dense<0.000000e+00> : vector<16x8x128xf32>
    %149 = tpu.matmul %134, %138, %cst_141 {dimension_numbers = #tpu.dot_dimension_numbers<[2], [0], [0, 1], [1], [0, 0, 0, 1, 1, 1], [], []>} : vector<16x8x128xf32>, vector<128x128xf32>, vector<16x8x128xf32> -> vector<16x8x128xf32>
    %150 = arith.addf %148, %149 : vector<16x8x128xf32>
    %cst_142 = arith.constant dense<0.000000e+00> : vector<16x8x128xf32>
    %151 = tpu.matmul %132, %140, %cst_142 {dimension_numbers = #tpu.dot_dimension_numbers<[2], [0], [0, 1], [1], [0, 0, 0, 1, 1, 1], [], []>} : vector<16x8x128xf32>, vector<128x128xf32>, vector<16x8x128xf32> -> vector<16x8x128xf32>
    %152 = arith.addf %150, %151 : vector<16x8x128xf32>
    %c1_143 = arith.constant 1 : index
    %c0_144 = arith.constant 0 : index
    %c0_145 = arith.constant 0 : index
    %153 = vector.load %arg12[%c1_143, %c0_144, %c0_145] : memref<18x10x128xf32, #tpu.memory_space<vmem>>, vector<16x10x128xf32>
    %c1_146 = arith.constant 1 : index
    %c0_147 = arith.constant 0 : index
    %c0_148 = arith.constant 0 : index
    %154 = vector.load %arg13[%c1_146, %c0_147, %c0_148] : memref<18x10x128xf32, #tpu.memory_space<vmem>>, vector<16x10x128xf32>
    %155 = vector.extract_strided_slice %153 {offsets = [0, 1, 0], sizes = [16, 8, 128], strides = [1, 1, 1]} : vector<16x10x128xf32> to vector<16x8x128xf32>
    %156 = vector.extract_strided_slice %153 {offsets = [0, 2, 0], sizes = [16, 8, 128], strides = [1, 1, 1]} : vector<16x10x128xf32> to vector<16x8x128xf32>
    %157 = vector.extract_strided_slice %154 {offsets = [0, 0, 0], sizes = [16, 8, 128], strides = [1, 1, 1]} : vector<16x10x128xf32> to vector<16x8x128xf32>
    %158 = vector.extract_strided_slice %154 {offsets = [0, 1, 0], sizes = [16, 8, 128], strides = [1, 1, 1]} : vector<16x10x128xf32> to vector<16x8x128xf32>
    %c1_149 = arith.constant 1 : index
    %c0_150 = arith.constant 0 : index
    %c0_151 = arith.constant 0 : index
    %c0_152 = arith.constant 0 : index
    %159 = vector.load %arg7[%c1_149, %c0_150, %c0_151, %c0_152] : memref<3x3x128x128xf32, #tpu.memory_space<vmem>>, vector<1x1x128x128xf32>
    %160 = vector.shape_cast %159 : vector<1x1x128x128xf32> to vector<128x128xf32>
    %c1_153 = arith.constant 1 : index
    %c1_154 = arith.constant 1 : index
    %c0_155 = arith.constant 0 : index
    %c0_156 = arith.constant 0 : index
    %161 = vector.load %arg7[%c1_153, %c1_154, %c0_155, %c0_156] : memref<3x3x128x128xf32, #tpu.memory_space<vmem>>, vector<1x1x128x128xf32>
    %162 = vector.shape_cast %161 : vector<1x1x128x128xf32> to vector<128x128xf32>
    %c1_157 = arith.constant 1 : index
    %c2_158 = arith.constant 2 : index
    %c0_159 = arith.constant 0 : index
    %c0_160 = arith.constant 0 : index
    %163 = vector.load %arg7[%c1_157, %c2_158, %c0_159, %c0_160] : memref<3x3x128x128xf32, #tpu.memory_space<vmem>>, vector<1x1x128x128xf32>
    %164 = vector.shape_cast %163 : vector<1x1x128x128xf32> to vector<128x128xf32>
    %cst_161 = arith.constant dense<0.000000e+00> : vector<16x8x128xf32>
    %165 = tpu.matmul %157, %160, %cst_161 {dimension_numbers = #tpu.dot_dimension_numbers<[2], [0], [0, 1], [1], [0, 0, 0, 1, 1, 1], [], []>} : vector<16x8x128xf32>, vector<128x128xf32>, vector<16x8x128xf32> -> vector<16x8x128xf32>
    %166 = arith.addf %146, %165 : vector<16x8x128xf32>
    %cst_162 = arith.constant dense<0.000000e+00> : vector<16x8x128xf32>
    %167 = tpu.matmul %155, %162, %cst_162 {dimension_numbers = #tpu.dot_dimension_numbers<[2], [0], [0, 1], [1], [0, 0, 0, 1, 1, 1], [], []>} : vector<16x8x128xf32>, vector<128x128xf32>, vector<16x8x128xf32> -> vector<16x8x128xf32>
    %168 = arith.addf %166, %167 : vector<16x8x128xf32>
    %cst_163 = arith.constant dense<0.000000e+00> : vector<16x8x128xf32>
    %169 = tpu.matmul %158, %164, %cst_163 {dimension_numbers = #tpu.dot_dimension_numbers<[2], [0], [0, 1], [1], [0, 0, 0, 1, 1, 1], [], []>} : vector<16x8x128xf32>, vector<128x128xf32>, vector<16x8x128xf32> -> vector<16x8x128xf32>
    %170 = arith.addf %168, %169 : vector<16x8x128xf32>
    %cst_164 = arith.constant dense<0.000000e+00> : vector<16x8x128xf32>
    %171 = tpu.matmul %155, %160, %cst_164 {dimension_numbers = #tpu.dot_dimension_numbers<[2], [0], [0, 1], [1], [0, 0, 0, 1, 1, 1], [], []>} : vector<16x8x128xf32>, vector<128x128xf32>, vector<16x8x128xf32> -> vector<16x8x128xf32>
    %172 = arith.addf %152, %171 : vector<16x8x128xf32>
    %cst_165 = arith.constant dense<0.000000e+00> : vector<16x8x128xf32>
    %173 = tpu.matmul %158, %162, %cst_165 {dimension_numbers = #tpu.dot_dimension_numbers<[2], [0], [0, 1], [1], [0, 0, 0, 1, 1, 1], [], []>} : vector<16x8x128xf32>, vector<128x128xf32>, vector<16x8x128xf32> -> vector<16x8x128xf32>
    %174 = arith.addf %172, %173 : vector<16x8x128xf32>
    %cst_166 = arith.constant dense<0.000000e+00> : vector<16x8x128xf32>
    %175 = tpu.matmul %156, %164, %cst_166 {dimension_numbers = #tpu.dot_dimension_numbers<[2], [0], [0, 1], [1], [0, 0, 0, 1, 1, 1], [], []>} : vector<16x8x128xf32>, vector<128x128xf32>, vector<16x8x128xf32> -> vector<16x8x128xf32>
    %176 = arith.addf %174, %175 : vector<16x8x128xf32>
    %c2_167 = arith.constant 2 : index
    %c0_168 = arith.constant 0 : index
    %c0_169 = arith.constant 0 : index
    %177 = vector.load %arg12[%c2_167, %c0_168, %c0_169] : memref<18x10x128xf32, #tpu.memory_space<vmem>>, vector<16x10x128xf32>
    %c2_170 = arith.constant 2 : index
    %c0_171 = arith.constant 0 : index
    %c0_172 = arith.constant 0 : index
    %178 = vector.load %arg13[%c2_170, %c0_171, %c0_172] : memref<18x10x128xf32, #tpu.memory_space<vmem>>, vector<16x10x128xf32>
    %179 = vector.extract_strided_slice %177 {offsets = [0, 1, 0], sizes = [16, 8, 128], strides = [1, 1, 1]} : vector<16x10x128xf32> to vector<16x8x128xf32>
    %180 = vector.extract_strided_slice %177 {offsets = [0, 2, 0], sizes = [16, 8, 128], strides = [1, 1, 1]} : vector<16x10x128xf32> to vector<16x8x128xf32>
    %181 = vector.extract_strided_slice %178 {offsets = [0, 0, 0], sizes = [16, 8, 128], strides = [1, 1, 1]} : vector<16x10x128xf32> to vector<16x8x128xf32>
    %182 = vector.extract_strided_slice %178 {offsets = [0, 1, 0], sizes = [16, 8, 128], strides = [1, 1, 1]} : vector<16x10x128xf32> to vector<16x8x128xf32>
    %c2_173 = arith.constant 2 : index
    %c0_174 = arith.constant 0 : index
    %c0_175 = arith.constant 0 : index
    %c0_176 = arith.constant 0 : index
    %183 = vector.load %arg7[%c2_173, %c0_174, %c0_175, %c0_176] : memref<3x3x128x128xf32, #tpu.memory_space<vmem>>, vector<1x1x128x128xf32>
    %184 = vector.shape_cast %183 : vector<1x1x128x128xf32> to vector<128x128xf32>
    %c2_177 = arith.constant 2 : index
    %c1_178 = arith.constant 1 : index
    %c0_179 = arith.constant 0 : index
    %c0_180 = arith.constant 0 : index
    %185 = vector.load %arg7[%c2_177, %c1_178, %c0_179, %c0_180] : memref<3x3x128x128xf32, #tpu.memory_space<vmem>>, vector<1x1x128x128xf32>
    %186 = vector.shape_cast %185 : vector<1x1x128x128xf32> to vector<128x128xf32>
    %c2_181 = arith.constant 2 : index
    %c2_182 = arith.constant 2 : index
    %c0_183 = arith.constant 0 : index
    %c0_184 = arith.constant 0 : index
    %187 = vector.load %arg7[%c2_181, %c2_182, %c0_183, %c0_184] : memref<3x3x128x128xf32, #tpu.memory_space<vmem>>, vector<1x1x128x128xf32>
    %188 = vector.shape_cast %187 : vector<1x1x128x128xf32> to vector<128x128xf32>
    %cst_185 = arith.constant dense<0.000000e+00> : vector<16x8x128xf32>
    %189 = tpu.matmul %181, %184, %cst_185 {dimension_numbers = #tpu.dot_dimension_numbers<[2], [0], [0, 1], [1], [0, 0, 0, 1, 1, 1], [], []>} : vector<16x8x128xf32>, vector<128x128xf32>, vector<16x8x128xf32> -> vector<16x8x128xf32>
    %190 = arith.addf %170, %189 : vector<16x8x128xf32>
    %cst_186 = arith.constant dense<0.000000e+00> : vector<16x8x128xf32>
    %191 = tpu.matmul %179, %186, %cst_186 {dimension_numbers = #tpu.dot_dimension_numbers<[2], [0], [0, 1], [1], [0, 0, 0, 1, 1, 1], [], []>} : vector<16x8x128xf32>, vector<128x128xf32>, vector<16x8x128xf32> -> vector<16x8x128xf32>
    %192 = arith.addf %190, %191 : vector<16x8x128xf32>
    %cst_187 = arith.constant dense<0.000000e+00> : vector<16x8x128xf32>
    %193 = tpu.matmul %182, %188, %cst_187 {dimension_numbers = #tpu.dot_dimension_numbers<[2], [0], [0, 1], [1], [0, 0, 0, 1, 1, 1], [], []>} : vector<16x8x128xf32>, vector<128x128xf32>, vector<16x8x128xf32> -> vector<16x8x128xf32>
    %194 = arith.addf %192, %193 : vector<16x8x128xf32>
    %cst_188 = arith.constant dense<0.000000e+00> : vector<16x8x128xf32>
    %195 = tpu.matmul %179, %184, %cst_188 {dimension_numbers = #tpu.dot_dimension_numbers<[2], [0], [0, 1], [1], [0, 0, 0, 1, 1, 1], [], []>} : vector<16x8x128xf32>, vector<128x128xf32>, vector<16x8x128xf32> -> vector<16x8x128xf32>
    %196 = arith.addf %176, %195 : vector<16x8x128xf32>
    %cst_189 = arith.constant dense<0.000000e+00> : vector<16x8x128xf32>
    %197 = tpu.matmul %182, %186, %cst_189 {dimension_numbers = #tpu.dot_dimension_numbers<[2], [0], [0, 1], [1], [0, 0, 0, 1, 1, 1], [], []>} : vector<16x8x128xf32>, vector<128x128xf32>, vector<16x8x128xf32> -> vector<16x8x128xf32>
    %198 = arith.addf %196, %197 : vector<16x8x128xf32>
    %cst_190 = arith.constant dense<0.000000e+00> : vector<16x8x128xf32>
    %199 = tpu.matmul %180, %188, %cst_190 {dimension_numbers = #tpu.dot_dimension_numbers<[2], [0], [0, 1], [1], [0, 0, 0, 1, 1, 1], [], []>} : vector<16x8x128xf32>, vector<128x128xf32>, vector<16x8x128xf32> -> vector<16x8x128xf32>
    %200 = arith.addf %198, %199 : vector<16x8x128xf32>
    %cst_191 = arith.constant 0.000000e+00 : f32
    %201 = vector.broadcast %cst_191 : f32 to vector<16x8x128xf32>
    %202 = arith.maximumf %194, %201 : vector<16x8x128xf32>
    %cst_192 = arith.constant 0.000000e+00 : f32
    %203 = vector.broadcast %cst_192 : f32 to vector<16x8x128xf32>
    %204 = arith.maximumf %200, %203 : vector<16x8x128xf32>
    %205 = vector.extract_strided_slice %202 {offsets = [0, 0, 0], sizes = [16, 8, 4], strides = [1, 1, 1]} : vector<16x8x128xf32> to vector<16x8x4xf32>
    %c0_193 = arith.constant 0 : index
    %c0_194 = arith.constant 0 : index
    %c0_195 = arith.constant 0 : index
    %c0_196 = arith.constant 0 : index
    %206 = vector.load %arg9[%c0_193, %c0_194, %c0_195, %c0_196] : memref<1x16x8x8xf32, #tpu.memory_space<vmem>>, vector<1x16x8x4xf32>
    %207 = vector.shape_cast %206 : vector<1x16x8x4xf32> to vector<16x8x4xf32>
    %208 = vector.shape_cast %205 : vector<16x8x4xf32> to vector<1x16x8x4xf32>
    tpu.vector_store %arg9[%c0_193, %c0_194, %c0_195, %c0_196], %208 {strides = array<i32>} : memref<1x16x8x8xf32, #tpu.memory_space<vmem>>, vector<1x16x8x4xf32>,
    %209 = vector.extract_strided_slice %204 {offsets = [0, 0, 0], sizes = [16, 8, 4], strides = [1, 1, 1]} : vector<16x8x128xf32> to vector<16x8x4xf32>
    %c0_197 = arith.constant 0 : index
    %c0_198 = arith.constant 0 : index
    %c0_199 = arith.constant 0 : index
    %c4 = arith.constant 4 : index
    %210 = vector.load %arg9[%c0_197, %c0_198, %c0_199, %c4] : memref<1x16x8x8xf32, #tpu.memory_space<vmem>>, vector<1x16x8x4xf32>
    %211 = vector.shape_cast %210 : vector<1x16x8x4xf32> to vector<16x8x4xf32>
    %212 = vector.shape_cast %209 : vector<16x8x4xf32> to vector<1x16x8x4xf32>
    tpu.vector_store %arg9[%c0_197, %c0_198, %c0_199, %c4], %212 {strides = array<i32>} : memref<1x16x8x8xf32, #tpu.memory_space<vmem>>, vector<1x16x8x4xf32>,
    return
  }
  func.func @transform_0(%arg0: i32) -> (i32, i32, i32) {
    %c0_i32 = arith.constant 0 : i32
    %c0_i32_0 = arith.constant 0 : i32
    %c0_i32_1 = arith.constant 0 : i32
    return %arg0, %c0_i32, %c0_i32_0 : i32, i32, i32
  }
  func.func @transform_1(%arg0: i32) -> (i32, i32, i32, i32) {
    %c0_i32 = arith.constant 0 : i32
    %c0_i32_0 = arith.constant 0 : i32
    %c0_i32_1 = arith.constant 0 : i32
    %c0_i32_2 = arith.constant 0 : i32
    return %arg0, %c0_i32, %c0_i32_0, %c0_i32_1 : i32, i32, i32, i32
  }
  func.func @transform_2(%arg0: i32) -> (i32, i32) {
    %c0_i32 = arith.constant 0 : i32
    %c0_i32_0 = arith.constant 0 : i32
    %c0_i32_1 = arith.constant 0 : i32
    return %c0_i32, %c0_i32_0 : i32, i32
  }
  func.func @transform_3(%arg0: i32) -> (i32, i32) {
    %c0_i32 = arith.constant 0 : i32
    %c0_i32_0 = arith.constant 0 : i32
    %c0_i32_1 = arith.constant 0 : i32
    return %c0_i32, %c0_i32_0 : i32, i32
  }
  func.func @transform_4(%arg0: i32) -> (i32, i32, i32, i32) {
    %c0_i32 = arith.constant 0 : i32
    %c0_i32_0 = arith.constant 0 : i32
    %c0_i32_1 = arith.constant 0 : i32
    %c0_i32_2 = arith.constant 0 : i32
    %c0_i32_3 = arith.constant 0 : i32
    return %c0_i32, %c0_i32_0, %c0_i32_1, %c0_i32_2 : i32, i32, i32, i32
  }
  func.func @transform_5(%arg0: i32) -> (i32, i32) {
    %c0_i32 = arith.constant 0 : i32
    %c0_i32_0 = arith.constant 0 : i32
    %c0_i32_1 = arith.constant 0 : i32
    return %c0_i32, %c0_i32_0 : i32, i32
  }
  func.func @transform_6(%arg0: i32) -> (i32, i32, i32, i32) {
    %c0_i32 = arith.constant 0 : i32
    %c0_i32_0 = arith.constant 0 : i32
    %c0_i32_1 = arith.constant 0 : i32
    %c0_i32_2 = arith.constant 0 : i32
    %c0_i32_3 = arith.constant 0 : i32
    return %c0_i32, %c0_i32_0, %c0_i32_1, %c0_i32_2 : i32, i32, i32, i32
  }
  func.func @transform_7(%arg0: i32) -> (i32, i32) {
    %c0_i32 = arith.constant 0 : i32
    %c0_i32_0 = arith.constant 0 : i32
    %c0_i32_1 = arith.constant 0 : i32
    return %c0_i32, %c0_i32_0 : i32, i32
  }
  func.func @transform_8(%arg0: i32) -> (i32, i32, i32, i32) {
    %c0_i32 = arith.constant 0 : i32
    %c0_i32_0 = arith.constant 0 : i32
    %c0_i32_1 = arith.constant 0 : i32
    %c0_i32_2 = arith.constant 0 : i32
    return %arg0, %c0_i32, %c0_i32_0, %c0_i32_1 : i32, i32, i32, i32
  }
}

</mosaic_0001>

<llo_original>
// kernel: tile.8
$region0: #{tile.8}
  #allocation0 [shape = 's32[1]{0}', space=sflag, size = 0x4, scoped, tag = 'scoped memory for tile.8']
  %s0 = inlined_call_operand.vmem [shape: f32[128], index: 0, kind: input, shape index: {}]
  %s1 = inlined_call_operand.vmem [shape: f32[4,128], index: 1, kind: output, shape index: {}]
  // Predicated region
  $region2: #{tile.8} parent=0 // pred_check
    _
  $region3: #{tile.8} parent=0 // pred_check_branch
    %3 = sbr.rel (0) target = $region5
  $region4: #{tile.8} parent=0 // pred_region
    _
  $region5: #{tile.8} parent=0 // pred_fallthru
    _
  %v4 = vld [vmem:[%s0] ss:$0 sm:$0xff]
  %5 = vst [vmem:[%s1] sm:$0xf] %v4

// kernel: unet_up_block.1
$region0: #{unet_up_block.1}
  #allocation0 [shape = 'u32[]', space=smem, size = 0x4, offset = 0x4, fixed_abs, tag = 'smem constant byte address 0x4 - core index']
  #allocation1 [shape = 'u32[144,128]{1,0:T(1,128)}', space=vmem, size = 0x12000, scoped, tag = 'internal scratch']
  #allocation2 [shape = 'f32[18,10,256]{2,1,0:T(8,128)}', space=vmem, size = 0x48000, scoped, tag = 'scratch operand']
  #allocation3 [shape = 'f32[18,10,256]{2,1,0:T(8,128)}', space=vmem, size = 0x48000, scoped, tag = 'scratch operand']
  #allocation4 [shape = 'f32[18,10,128]{2,1,0:T(8,128)}', space=vmem, size = 0x24000, scoped, tag = 'scratch operand']
  #allocation5 [shape = 'f32[18,10,128]{2,1,0:T(8,128)}', space=vmem, size = 0x24000, scoped, tag = 'scratch operand']
  %s0 = inlined_call_operand.vmem [shape: f32[2,64,8], index: 0, kind: input, shape index: {}]
  %s1 = inlined_call_operand.vmem [shape: f32[2,16,8,8], index: 1, kind: input, shape index: {}]
  %s2 = inlined_call_operand.vmem [shape: f32[8,512], index: 2, kind: input, shape index: {}]
  %s3 = inlined_call_operand.vmem [shape: f32[1,512], index: 3, kind: input, shape index: {}]
  %s4 = inlined_call_operand.vmem [shape: f32[3,3,256,128], index: 4, kind: input, shape index: {}]
  %s5 = inlined_call_operand.vmem [shape: f32[1,128], index: 5, kind: input, shape index: {}]
  %s6 = inlined_call_operand.vmem [shape: f32[3,3,128,128], index: 6, kind: input, shape index: {}]
  %s7 = inlined_call_operand.vmem [shape: f32[1,128], index: 7, kind: input, shape index: {}]
  %s8 = inlined_call_operand.vmem [shape: f32[2,16,8,8], index: 8, kind: output, shape index: {}]
  %s9 = sld [smem:[#allocation0]]
  $region65: #{unet_up_block.1} parent=0
    _
  %s11 = ssub.s32 1, %s9
  %s12 = scalar_select 0, %s11, %s9
  loop: start=0, step=1, limit=4
  $region2: #{unet_up_block.1} parent=0 // loop_pre_header
    _
  $region3: #{unet_up_block.1} parent=0 // loop_header
    %s14 = sphi 0, %s18
    %p15 = scmp.ge.s32.totalorder %s14, 4
    %s24 = sphi 0, %s26
    %s27 = sphi 0, %s24
    %s28 = sphi 0, %s27
    %s44 = sphi 0, %s28
    %s50 = sphi 0, %s52
    %s53 = sphi 0, %s50
    %s54 = sphi 0, %s53
    %s70 = sphi 0, %s54
    %s74 = sphi 0, %s74
    %s76 = sphi 0, %s74
    %s77 = sphi 0, %s76
    %s91 = sphi 0, %s77
    %s95 = sphi 0, %s95
    %s97 = sphi 0, %s95
    %s98 = sphi 0, %s97
    %s112 = sphi 0, %s98
    %s116 = sphi 0, %s116
    %s118 = sphi 0, %s116
    %s119 = sphi 0, %s118
    %s133 = sphi 0, %s119
    %s137 = sphi 0, %s137
    %s139 = sphi 0, %s137
    %s140 = sphi 0, %s139
    %s154 = sphi 0, %s140
    %s158 = sphi 0, %s158
    %s160 = sphi 0, %s158
    %s161 = sphi 0, %s160
    %s175 = sphi 0, %s161
    %s179 = sphi 0, %s179
    %s181 = sphi 0, %s179
    %s182 = sphi 0, %s181
    %s196 = sphi 0, %s182
    %s202 = sphi 0, %s204
    %s205 = sphi 0, %s202
    %s206 = sphi 0, %s205
    %s222 = sphi 0, %s206
  $region4: #{unet_up_block.1} parent=0 // loop_header_branch
    %17 = sbr.rel (%p15) target = $region8
  $region5: #{unet_up_block.1} parent=0 // loop_body
    %s19 = ssub.s32 %s14, 1
    %s20 = ssub.s32 %s14, 2
    %s21 = sadd.s32 %s14, 1
    %s22 = ssub.s32 %s14, %s21
    %p23 = scmp.eq.s32.totalorder %s22, 0
    %s25 = sadd.s32 %s24, 1
    %s26 = scalar_select %p23, %s24, %s25
    %p29 = pneg %p23
    %p30 = scmp.eq.s32.totalorder %s14, 1
    %p31 = por %p29, %p30
    %p32 = scmp.ne.s32.totalorder %s24, %s27
    %p33 = scmp.eq.s32.totalorder %s14, 0
    %p34 = por %p32, %p33
    %p35 = scmp.ne.s32.totalorder %s24, %s27
    %p36 = scmp.eq.s32.totalorder %s19, 1
    %p37 = por %p35, %p36
    %p38 = scmp.ne.s32.totalorder %s27, %s28
    %p39 = scmp.eq.s32.totalorder %s19, 0
    %p40 = por %p38, %p39
    %p41 = scmp.ne.s32.totalorder %s27, %s28
    %p42 = scmp.eq.s32.totalorder %s20, 1
    %p43 = por %p41, %p42
    %p45 = scmp.ne.s32.totalorder %s28, %s44
    %p46 = scmp.eq.s32.totalorder %s20, 0
    %p47 = por %p45, %p46
    %s48 = ssub.s32 %s14, %s21
    %p49 = scmp.eq.s32.totalorder %s48, 0
    %s51 = sadd.s32 %s50, 1
    %s52 = scalar_select %p49, %s50, %s51
    %p55 = pneg %p49
    %p56 = scmp.eq.s32.totalorder %s14, 1
    %p57 = por %p55, %p56
    %p58 = scmp.ne.s32.totalorder %s50, %s53
    %p59 = scmp.eq.s32.totalorder %s14, 0
    %p60 = por %p58, %p59
    %p61 = scmp.ne.s32.totalorder %s50, %s53
    %p62 = scmp.eq.s32.totalorder %s19, 1
    %p63 = por %p61, %p62
    %p64 = scmp.ne.s32.totalorder %s53, %s54
    %p65 = scmp.eq.s32.totalorder %s19, 0
    %p66 = por %p64, %p65
    %p67 = scmp.ne.s32.totalorder %s53, %s54
    %p68 = scmp.eq.s32.totalorder %s20, 1
    %p69 = por %p67, %p68
    %p71 = scmp.ne.s32.totalorder %s54, %s70
    %p72 = scmp.eq.s32.totalorder %s20, 0
    %p73 = por %p71, %p72
    %s75 = sadd.s32 %s74, 1
    %p78 = scmp.eq.s32.totalorder %s14, 1
    %p79 = scmp.ne.s32.totalorder %s74, %s76
    %p80 = scmp.eq.s32.totalorder %s14, 0
    %p81 = por %p79, %p80
    %p82 = scmp.ne.s32.totalorder %s74, %s76
    %p83 = scmp.eq.s32.totalorder %s19, 1
    %p84 = por %p82, %p83
    %p85 = scmp.ne.s32.totalorder %s76, %s77
    %p86 = scmp.eq.s32.totalorder %s19, 0
    %p87 = por %p85, %p86
    %p88 = scmp.ne.s32.totalorder %s76, %s77
    %p89 = scmp.eq.s32.totalorder %s20, 1
    %p90 = por %p88, %p89
    %p92 = scmp.ne.s32.totalorder %s77, %s91
    %p93 = scmp.eq.s32.totalorder %s20, 0
    %p94 = por %p92, %p93
    %s96 = sadd.s32 %s95, 1
    %p99 = scmp.eq.s32.totalorder %s14, 1
    %p100 = scmp.ne.s32.totalorder %s95, %s97
    %p101 = scmp.eq.s32.totalorder %s14, 0
    %p102 = por %p100, %p101
    %p103 = scmp.ne.s32.totalorder %s95, %s97
    %p104 = scmp.eq.s32.totalorder %s19, 1
    %p105 = por %p103, %p104
    %p106 = scmp.ne.s32.totalorder %s97, %s98
    %p107 = scmp.eq.s32.totalorder %s19, 0
    %p108 = por %p106, %p107
    %p109 = scmp.ne.s32.totalorder %s97, %s98
    %p110 = scmp.eq.s32.totalorder %s20, 1
    %p111 = por %p109, %p110
    %p113 = scmp.ne.s32.totalorder %s98, %s112
    %p114 = scmp.eq.s32.totalorder %s20, 0
    %p115 = por %p113, %p114
    %s117 = sadd.s32 %s116, 1
    %p120 = scmp.eq.s32.totalorder %s14, 1
    %p121 = scmp.ne.s32.totalorder %s116, %s118
    %p122 = scmp.eq.s32.totalorder %s14, 0
    %p123 = por %p121, %p122
    %p124 = scmp.ne.s32.totalorder %s116, %s118
    %p125 = scmp.eq.s32.totalorder %s19, 1
    %p126 = por %p124, %p125
    %p127 = scmp.ne.s32.totalorder %s118, %s119
    %p128 = scmp.eq.s32.totalorder %s19, 0
    %p129 = por %p127, %p128
    %p130 = scmp.ne.s32.totalorder %s118, %s119
    %p131 = scmp.eq.s32.totalorder %s20, 1
    %p132 = por %p130, %p131
    %p134 = scmp.ne.s32.totalorder %s119, %s133
    %p135 = scmp.eq.s32.totalorder %s20, 0
    %p136 = por %p134, %p135
    %s138 = sadd.s32 %s137, 1
    %p141 = scmp.eq.s32.totalorder %s14, 1
    %p142 = scmp.ne.s32.totalorder %s137, %s139
    %p143 = scmp.eq.s32.totalorder %s14, 0
    %p144 = por %p142, %p143
    %p145 = scmp.ne.s32.totalorder %s137, %s139
    %p146 = scmp.eq.s32.totalorder %s19, 1
    %p147 = por %p145, %p146
    %p148 = scmp.ne.s32.totalorder %s139, %s140
    %p149 = scmp.eq.s32.totalorder %s19, 0
    %p150 = por %p148, %p149
    %p151 = scmp.ne.s32.totalorder %s139, %s140
    %p152 = scmp.eq.s32.totalorder %s20, 1
    %p153 = por %p151, %p152
    %p155 = scmp.ne.s32.totalorder %s140, %s154
    %p156 = scmp.eq.s32.totalorder %s20, 0
    %p157 = por %p155, %p156
    %s159 = sadd.s32 %s158, 1
    %p162 = scmp.eq.s32.totalorder %s14, 1
    %p163 = scmp.ne.s32.totalorder %s158, %s160
    %p164 = scmp.eq.s32.totalorder %s14, 0
    %p165 = por %p163, %p164
    %p166 = scmp.ne.s32.totalorder %s158, %s160
    %p167 = scmp.eq.s32.totalorder %s19, 1
    %p168 = por %p166, %p167
    %p169 = scmp.ne.s32.totalorder %s160, %s161
    %p170 = scmp.eq.s32.totalorder %s19, 0
    %p171 = por %p169, %p170
    %p172 = scmp.ne.s32.totalorder %s160, %s161
    %p173 = scmp.eq.s32.totalorder %s20, 1
    %p174 = por %p172, %p173
    %p176 = scmp.ne.s32.totalorder %s161, %s175
    %p177 = scmp.eq.s32.totalorder %s20, 0
    %p178 = por %p176, %p177
    %s180 = sadd.s32 %s179, 1
    %p183 = scmp.eq.s32.totalorder %s14, 1
    %p184 = scmp.ne.s32.totalorder %s179, %s181
    %p185 = scmp.eq.s32.totalorder %s14, 0
    %p186 = por %p184, %p185
    %p187 = scmp.ne.s32.totalorder %s179, %s181
    %p188 = scmp.eq.s32.totalorder %s19, 1
    %p189 = por %p187, %p188
    %p190 = scmp.ne.s32.totalorder %s181, %s182
    %p191 = scmp.eq.s32.totalorder %s19, 0
    %p192 = por %p190, %p191
    %p193 = scmp.ne.s32.totalorder %s181, %s182
    %p194 = scmp.eq.s32.totalorder %s20, 1
    %p195 = por %p193, %p194
    %p197 = scmp.ne.s32.totalorder %s182, %s196
    %p198 = scmp.eq.s32.totalorder %s20, 0
    %p199 = por %p197, %p198
    %s200 = ssub.s32 %s14, %s21
    %p201 = scmp.eq.s32.totalorder %s200, 0
    %s203 = sadd.s32 %s202, 1
    %s204 = scalar_select %p201, %s202, %s203
    %p207 = pneg %p201
    %p208 = scmp.eq.s32.totalorder %s14, 1
    %p209 = por %p207, %p208
    %p210 = scmp.ne.s32.totalorder %s202, %s205
    %p211 = scmp.eq.s32.totalorder %s14, 0
    %p212 = por %p210, %p211
    %p213 = scmp.ne.s32.totalorder %s202, %s205
    %p214 = scmp.eq.s32.totalorder %s19, 1
    %p215 = por %p213, %p214
    %p216 = scmp.ne.s32.totalorder %s205, %s206
    %p217 = scmp.eq.s32.totalorder %s19, 0
    %p218 = por %p216, %p217
    %p219 = scmp.ne.s32.totalorder %s205, %s206
    %p220 = scmp.eq.s32.totalorder %s20, 1
    %p221 = por %p219, %p220
    %p223 = scmp.ne.s32.totalorder %s206, %s222
    %p224 = scmp.eq.s32.totalorder %s20, 0
    %p225 = por %p223, %p224
    %p226 = scmp.le.s32.totalorder 1, %s14
    %p227 = scmp.lt.s32.totalorder %s14, 3
    %p228 = pnand %p226, %p227
    %p229 = pneg %p228
    // Predicated region
    $region9: #{unet_up_block.1} parent=5 // pred_check
      _
    $region10: #{unet_up_block.1} parent=5 // pred_check_branch
      %231 = sbr.rel (%p228) target = $region12
    $region11: #{unet_up_block.1} parent=5 // pred_region
      %s232 = ssub.s32 %s14, 1
      // Predicated region
      $region13: #{unet_up_block.1} parent=11 // pred_check
        %p233 = pneg %p87
      $region14: #{unet_up_block.1} parent=11 // pred_check_branch
        %235 = sbr.rel (%p233) target = $region16
      $region15: #{unet_up_block.1} parent=11 // pred_region
        _
      $region16: #{unet_up_block.1} parent=11 // pred_fallthru
        _
      // Predicated region
      $region17: #{unet_up_block.1} parent=11 // pred_check
        %p236 = pneg %p108
      $region18: #{unet_up_block.1} parent=11 // pred_check_branch
        %238 = sbr.rel (%p236) target = $region20
      $region19: #{unet_up_block.1} parent=11 // pred_region
        _
      $region20: #{unet_up_block.1} parent=11 // pred_fallthru
        _
      // Predicated region
      $region21: #{unet_up_block.1} parent=11 // pred_check
        %p239 = pneg %p129
      $region22: #{unet_up_block.1} parent=11 // pred_check_branch
        %241 = sbr.rel (%p239) target = $region24
      $region23: #{unet_up_block.1} parent=11 // pred_region
        _
      $region24: #{unet_up_block.1} parent=11 // pred_fallthru
        _
      // Predicated region
      $region25: #{unet_up_block.1} parent=11 // pred_check
        %p242 = pneg %p150
      $region26: #{unet_up_block.1} parent=11 // pred_check_branch
        %244 = sbr.rel (%p242) target = $region28
      $region27: #{unet_up_block.1} parent=11 // pred_region
        _
      $region28: #{unet_up_block.1} parent=11 // pred_fallthru
        _
      // Predicated region
      $region29: #{unet_up_block.1} parent=11 // pred_check
        %p245 = pneg %p171
      $region30: #{unet_up_block.1} parent=11 // pred_check_branch
        %247 = sbr.rel (%p245) target = $region32
      $region31: #{unet_up_block.1} parent=11 // pred_region
        _
      $region32: #{unet_up_block.1} parent=11 // pred_fallthru
        _
      // Predicated region
      $region33: #{unet_up_block.1} parent=11 // pred_check
        %p248 = pneg %p192
      $region34: #{unet_up_block.1} parent=11 // pred_check_branch
        %250 = sbr.rel (%p248) target = $region36
      $region35: #{unet_up_block.1} parent=11 // pred_region
        _
      $region36: #{unet_up_block.1} parent=11 // pred_fallthru
        _
    $region12: #{unet_up_block.1} parent=5 // pred_fallthru
      _
    %p251 = scmp.lt.s32.totalorder %s14, 2
    // Predicated region
    $region37: #{unet_up_block.1} parent=5 // pred_check
      %p252 = pneg %p251
    $region38: #{unet_up_block.1} parent=5 // pred_check_branch
      %254 = sbr.rel (%p252) target = $region40
    $region39: #{unet_up_block.1} parent=5 // pred_region
      // Predicated region
      $region41: #{unet_up_block.1} parent=39 // pred_check
        %p255 = pneg %p34
      $region42: #{unet_up_block.1} parent=39 // pred_check_branch
        %257 = sbr.rel (%p255) target = $region44
      $region43: #{unet_up_block.1} parent=39 // pred_region
        %p258 = scmp.lt.s32.totalorder %s14, 1
        %s259 = scalar_select %p258, %s14, 1
        %s260 = smul.addr %s259, 8
        %s261 = smul.addr %s260, 8
        %s262 = scalar_lea.vmem %s0, %s261
      $region44: #{unet_up_block.1} parent=39 // pred_fallthru
        _
      // Predicated region
      $region45: #{unet_up_block.1} parent=39 // pred_check
        %p263 = pneg %p60
      $region46: #{unet_up_block.1} parent=39 // pred_check_branch
        %265 = sbr.rel (%p263) target = $region48
      $region47: #{unet_up_block.1} parent=39 // pred_region
        %p266 = scmp.lt.s32.totalorder %s14, 1
        %s267 = scalar_select %p266, %s14, 1
        %s268 = smul.addr %s267, 16
        %s269 = smul.addr %s268, 8
        %s270 = scalar_lea.vmem %s1, %s269
      $region48: #{unet_up_block.1} parent=39 // pred_fallthru
        _
    $region40: #{unet_up_block.1} parent=5 // pred_fallthru
      _
    %p271 = scmp.le.s32.totalorder 1, %s14
    %p272 = scmp.lt.s32.totalorder %s14, 3
    %p273 = pnand %p271, %p272
    %p274 = pneg %p273
    // Predicated region
    $region49: #{unet_up_block.1} parent=5 // pred_check
      _
    $region50: #{unet_up_block.1} parent=5 // pred_check_branch
      %276 = sbr.rel (%p273) target = $region52
    $region51: #{unet_up_block.1} parent=5 // pred_region
      %s277 = ssub.s32 %s14, 1
      %p278 = scmp.lt.s32.totalorder %s19, 1
      %s279 = scalar_select %p278, %s19, 1
      %s280 = smul.addr %s279, 8
      %s281 = smul.addr %s280, 8
      %s282 = scalar_lea.vmem %s0, %s281
      %p283 = pneg %p40
      %p284 = pneg %p37
      %p285 = scmp.lt.s32.totalorder %s19, 1
      %s286 = scalar_select %p285, %s19, 1
      %s287 = smul.addr %s286, 16
      %s288 = smul.addr %s287, 8
      %s289 = scalar_lea.vmem %s1, %s288
      %p290 = pneg %p66
      %p291 = pneg %p63
      %p292 = pneg %p87
      %p293 = pneg %p84
      %p294 = pneg %p108
      %p295 = pneg %p105
      %p296 = pneg %p129
      %p297 = pneg %p126
      %p298 = pneg %p150
      %p299 = pneg %p147
      %p300 = pneg %p171
      %p301 = pneg %p168
      %p302 = pneg %p192
      %p303 = pneg %p189
      %p304 = pneg %p218
      %p305 = pneg %p215
      %p306 = scmp.lt.s32.totalorder %s19, 1
      %s307 = scalar_select %p306, %s19, 1
      %s308 = smul.addr %s307, 16
      %s309 = smul.addr %s308, 8
      %s310 = scalar_lea.vmem %s8, %s309
      %p311 = scmp.lt.s32.totalorder %s19, 1
      %s312 = scalar_select %p311, %s19, 1
      %s313 = smul.addr %s312, 8
      %s314 = smul.addr %s313, 8
      %s315 = scalar_lea.vmem %s0, %s314
      %p316 = scmp.lt.s32.totalorder %s19, 1
      %s317 = scalar_select %p316, %s19, 1
      %s318 = smul.addr %s317, 16
      %s319 = smul.addr %s318, 8
      %s320 = scalar_lea.vmem %s1, %s319
      %p321 = scmp.lt.s32.totalorder %s19, 1
      %s322 = scalar_select %p321, %s19, 1
      %s323 = smul.addr %s322, 16
      %s324 = smul.addr %s323, 8
      %s325 = scalar_lea.vmem %s8, %s324
      %326 = vst [vmem:[#allocation2] sm:$0xff] 0.0
      %327 = vst [vmem:[#allocation2 + $0x8] sm:$0xff] 0.0
      %328 = vst [vmem:[#allocation2 + $0x10] sm:$0x3] 0.0
      %329 = vst [vmem:[#allocation2 + $0x18] sm:$0x3] 0.0
      %330 = vst [vmem:[#allocation2 + $0x20] sm:$0xff] 0.0
      %331 = vst [vmem:[#allocation2 + $0x28] sm:$0xff] 0.0
      %332 = vst [vmem:[#allocation2 + $0x30] sm:$0x3] 0.0
      %333 = vst [vmem:[#allocation2 + $0x38] sm:$0x3] 0.0
      %334 = vst [vmem:[#allocation2 + $0x40] sm:$0xff] 0.0
      %335 = vst [vmem:[#allocation2 + $0x48] sm:$0xff] 0.0
      %336 = vst [vmem:[#allocation2 + $0x50] sm:$0x3] 0.0
      %337 = vst [vmem:[#allocation2 + $0x58] sm:$0x3] 0.0
      %338 = vst [vmem:[#allocation2 + $0x60] sm:$0xff] 0.0
      %339 = vst [vmem:[#allocation2 + $0x68] sm:$0xff] 0.0
      %340 = vst [vmem:[#allocation2 + $0x70] sm:$0x3] 0.0
      %341 = vst [vmem:[#allocation2 + $0x78] sm:$0x3] 0.0
      %342 = vst [vmem:[#allocation2 + $0x80] sm:$0xff] 0.0
      %343 = vst [vmem:[#allocation2 + $0x88] sm:$0xff] 0.0
      %344 = vst [vmem:[#allocation2 + $0x90] sm:$0x3] 0.0
      %345 = vst [vmem:[#allocation2 + $0x98] sm:$0x3] 0.0
      %346 = vst [vmem:[#allocation2 + $0xa0] sm:$0xff] 0.0
      %347 = vst [vmem:[#allocation2 + $0xa8] sm:$0xff] 0.0
      %348 = vst [vmem:[#allocation2 + $0xb0] sm:$0x3] 0.0
      %349 = vst [vmem:[#allocation2 + $0xb8] sm:$0x3] 0.0
      %350 = vst [vmem:[#allocation2 + $0xc0] sm:$0xff] 0.0
      %351 = vst [vmem:[#allocation2 + $0xc8] sm:$0xff] 0.0
      %352 = vst [vmem:[#allocation2 + $0xd0] sm:$0x3] 0.0
      %353 = vst [vmem:[#allocation2 + $0xd8] sm:$0x3] 0.0
      %354 = vst [vmem:[#allocation2 + $0xe0] sm:$0xff] 0.0
      %355 = vst [vmem:[#allocation2 + $0xe8] sm:$0xff] 0.0
      %356 = vst [vmem:[#allocation2 + $0xf0] sm:$0x3] 0.0
      %357 = vst [vmem:[#allocation2 + $0xf8] sm:$0x3] 0.0
      %358 = vst [vmem:[#allocation2 + $0x100] sm:$0xff] 0.0
      %359 = vst [vmem:[#allocation2 + $0x108] sm:$0xff] 0.0
      %360 = vst [vmem:[#allocation2 + $0x110] sm:$0x3] 0.0
      %361 = vst [vmem:[#allocation2 + $0x118] sm:$0x3] 0.0
      %362 = vst [vmem:[#allocation2 + $0x120] sm:$0xff] 0.0
      %363 = vst [vmem:[#allocation2 + $0x128] sm:$0xff] 0.0
      %364 = vst [vmem:[#allocation2 + $0x130] sm:$0x3] 0.0
      %365 = vst [vmem:[#allocation2 + $0x138] sm:$0x3] 0.0
      %366 = vst [vmem:[#allocation2 + $0x140] sm:$0xff] 0.0
      %367 = vst [vmem:[#allocation2 + $0x148] sm:$0xff] 0.0
      %368 = vst [vmem:[#allocation2 + $0x150] sm:$0x3] 0.0
      %369 = vst [vmem:[#allocation2 + $0x158] sm:$0x3] 0.0
      %370 = vst [vmem:[#allocation2 + $0x160] sm:$0xff] 0.0
      %371 = vst [vmem:[#allocation2 + $0x168] sm:$0xff] 0.0
      %372 = vst [vmem:[#allocation2 + $0x170] sm:$0x3] 0.0
      %373 = vst [vmem:[#allocation2 + $0x178] sm:$0x3] 0.0
      %374 = vst [vmem:[#allocation2 + $0x180] sm:$0xff] 0.0
      %375 = vst [vmem:[#allocation2 + $0x188] sm:$0xff] 0.0
      %376 = vst [vmem:[#allocation2 + $0x190] sm:$0x3] 0.0
      %377 = vst [vmem:[#allocation2 + $0x198] sm:$0x3] 0.0
      %378 = vst [vmem:[#allocation2 + $0x1a0] sm:$0xff] 0.0
      %379 = vst [vmem:[#allocation2 + $0x1a8] sm:$0xff] 0.0
      %380 = vst [vmem:[#allocation2 + $0x1b0] sm:$0x3] 0.0
      %381 = vst [vmem:[#allocation2 + $0x1b8] sm:$0x3] 0.0
      %382 = vst [vmem:[#allocation2 + $0x1c0] sm:$0xff] 0.0
      %383 = vst [vmem:[#allocation2 + $0x1c8] sm:$0xff] 0.0
      %384 = vst [vmem:[#allocation2 + $0x1d0] sm:$0x3] 0.0
      %385 = vst [vmem:[#allocation2 + $0x1d8] sm:$0x3] 0.0
      %386 = vst [vmem:[#allocation2 + $0x1e0] sm:$0xff] 0.0
      %387 = vst [vmem:[#allocation2 + $0x1e8] sm:$0xff] 0.0
      %388 = vst [vmem:[#allocation2 + $0x1f0] sm:$0x3] 0.0
      %389 = vst [vmem:[#allocation2 + $0x1f8] sm:$0x3] 0.0
      %390 = vst [vmem:[#allocation2 + $0x200] sm:$0xff] 0.0
      %391 = vst [vmem:[#allocation2 + $0x208] sm:$0xff] 0.0
      %392 = vst [vmem:[#allocation2 + $0x210] sm:$0x3] 0.0
      %393 = vst [vmem:[#allocation2 + $0x218] sm:$0x3] 0.0
      %394 = vst [vmem:[#allocation2 + $0x220] sm:$0xff] 0.0
      %395 = vst [vmem:[#allocation2 + $0x228] sm:$0xff] 0.0
      %396 = vst [vmem:[#allocation2 + $0x230] sm:$0x3] 0.0
      %397 = vst [vmem:[#allocation2 + $0x238] sm:$0x3] 0.0
      %398 = vst [vmem:[#allocation3] sm:$0xff] 0.0
      %399 = vst [vmem:[#allocation3 + $0x8] sm:$0xff] 0.0
      %400 = vst [vmem:[#allocation3 + $0x10] sm:$0x3] 0.0
      %401 = vst [vmem:[#allocation3 + $0x18] sm:$0x3] 0.0
      %402 = vst [vmem:[#allocation3 + $0x20] sm:$0xff] 0.0
      %403 = vst [vmem:[#allocation3 + $0x28] sm:$0xff] 0.0
      %404 = vst [vmem:[#allocation3 + $0x30] sm:$0x3] 0.0
      %405 = vst [vmem:[#allocation3 + $0x38] sm:$0x3] 0.0
      %406 = vst [vmem:[#allocation3 + $0x40] sm:$0xff] 0.0
      %407 = vst [vmem:[#allocation3 + $0x48] sm:$0xff] 0.0
      %408 = vst [vmem:[#allocation3 + $0x50] sm:$0x3] 0.0
      %409 = vst [vmem:[#allocation3 + $0x58] sm:$0x3] 0.0
      %410 = vst [vmem:[#allocation3 + $0x60] sm:$0xff] 0.0
      %411 = vst [vmem:[#allocation3 + $0x68] sm:$0xff] 0.0
      %412 = vst [vmem:[#allocation3 + $0x70] sm:$0x3] 0.0
      %413 = vst [vmem:[#allocation3 + $0x78] sm:$0x3] 0.0
      %414 = vst [vmem:[#allocation3 + $0x80] sm:$0xff] 0.0
      %415 = vst [vmem:[#allocation3 + $0x88] sm:$0xff] 0.0
      %416 = vst [vmem:[#allocation3 + $0x90] sm:$0x3] 0.0
      %417 = vst [vmem:[#allocation3 + $0x98] sm:$0x3] 0.0
      %418 = vst [vmem:[#allocation3 + $0xa0] sm:$0xff] 0.0
      %419 = vst [vmem:[#allocation3 + $0xa8] sm:$0xff] 0.0
      %420 = vst [vmem:[#allocation3 + $0xb0] sm:$0x3] 0.0
      %421 = vst [vmem:[#allocation3 + $0xb8] sm:$0x3] 0.0
      %422 = vst [vmem:[#allocation3 + $0xc0] sm:$0xff] 0.0
      %423 = vst [vmem:[#allocation3 + $0xc8] sm:$0xff] 0.0
      %424 = vst [vmem:[#allocation3 + $0xd0] sm:$0x3] 0.0
      %425 = vst [vmem:[#allocation3 + $0xd8] sm:$0x3] 0.0
      %426 = vst [vmem:[#allocation3 + $0xe0] sm:$0xff] 0.0
      %427 = vst [vmem:[#allocation3 + $0xe8] sm:$0xff] 0.0
      %428 = vst [vmem:[#allocation3 + $0xf0] sm:$0x3] 0.0
      %429 = vst [vmem:[#allocation3 + $0xf8] sm:$0x3] 0.0
      %430 = vst [vmem:[#allocation3 + $0x100] sm:$0xff] 0.0
      %431 = vst [vmem:[#allocation3 + $0x108] sm:$0xff] 0.0
      %432 = vst [vmem:[#allocation3 + $0x110] sm:$0x3] 0.0
      %433 = vst [vmem:[#allocation3 + $0x118] sm:$0x3] 0.0
      %434 = vst [vmem:[#allocation3 + $0x120] sm:$0xff] 0.0
      %435 = vst [vmem:[#allocation3 + $0x128] sm:$0xff] 0.0
      %436 = vst [vmem:[#allocation3 + $0x130] sm:$0x3] 0.0
      %437 = vst [vmem:[#allocation3 + $0x138] sm:$0x3] 0.0
      %438 = vst [vmem:[#allocation3 + $0x140] sm:$0xff] 0.0
      %439 = vst [vmem:[#allocation3 + $0x148] sm:$0xff] 0.0
      %440 = vst [vmem:[#allocation3 + $0x150] sm:$0x3] 0.0
      %441 = vst [vmem:[#allocation3 + $0x158] sm:$0x3] 0.0
      %442 = vst [vmem:[#allocation3 + $0x160] sm:$0xff] 0.0
      %443 = vst [vmem:[#allocation3 + $0x168] sm:$0xff] 0.0
      %444 = vst [vmem:[#allocation3 + $0x170] sm:$0x3] 0.0
      %445 = vst [vmem:[#allocation3 + $0x178] sm:$0x3] 0.0
      %446 = vst [vmem:[#allocation3 + $0x180] sm:$0xff] 0.0
      %447 = vst [vmem:[#allocation3 + $0x188] sm:$0xff] 0.0
      %448 = vst [vmem:[#allocation3 + $0x190] sm:$0x3] 0.0
      %449 = vst [vmem:[#allocation3 + $0x198] sm:$0x3] 0.0
      %450 = vst [vmem:[#allocation3 + $0x1a0] sm:$0xff] 0.0
      %451 = vst [vmem:[#allocation3 + $0x1a8] sm:$0xff] 0.0
      %452 = vst [vmem:[#allocation3 + $0x1b0] sm:$0x3] 0.0
      %453 = vst [vmem:[#allocation3 + $0x1b8] sm:$0x3] 0.0
      %454 = vst [vmem:[#allocation3 + $0x1c0] sm:$0xff] 0.0
      %455 = vst [vmem:[#allocation3 + $0x1c8] sm:$0xff] 0.0
      %456 = vst [vmem:[#allocation3 + $0x1d0] sm:$0x3] 0.0
      %457 = vst [vmem:[#allocation3 + $0x1d8] sm:$0x3] 0.0
      %458 = vst [vmem:[#allocation3 + $0x1e0] sm:$0xff] 0.0
      %459 = vst [vmem:[#allocation3 + $0x1e8] sm:$0xff] 0.0
      %460 = vst [vmem:[#allocation3 + $0x1f0] sm:$0x3] 0.0
      %461 = vst [vmem:[#allocation3 + $0x1f8] sm:$0x3] 0.0
      %462 = vst [vmem:[#allocation3 + $0x200] sm:$0xff] 0.0
      %463 = vst [vmem:[#allocation3 + $0x208] sm:$0xff] 0.0
      %464 = vst [vmem:[#allocation3 + $0x210] sm:$0x3] 0.0
      %465 = vst [vmem:[#allocation3 + $0x218] sm:$0x3] 0.0
      %466 = vst [vmem:[#allocation3 + $0x220] sm:$0xff] 0.0
      %467 = vst [vmem:[#allocation3 + $0x228] sm:$0xff] 0.0
      %468 = vst [vmem:[#allocation3 + $0x230] sm:$0x3] 0.0
      %469 = vst [vmem:[#allocation3 + $0x238] sm:$0x3] 0.0
      %470 = vst [vmem:[#allocation4] sm:$0xff] 0.0
      %471 = vst [vmem:[#allocation4 + $0x8] sm:$0x3] 0.0
      %472 = vst [vmem:[#allocation4 + $0x10] sm:$0xff] 0.0
      %473 = vst [vmem:[#allocation4 + $0x18] sm:$0x3] 0.0
      %474 = vst [vmem:[#allocation4 + $0x20] sm:$0xff] 0.0
      %475 = vst [vmem:[#allocation4 + $0x28] sm:$0x3] 0.0
      %476 = vst [vmem:[#allocation4 + $0x30] sm:$0xff] 0.0
      %477 = vst [vmem:[#allocation4 + $0x38] sm:$0x3] 0.0
      %478 = vst [vmem:[#allocation4 + $0x40] sm:$0xff] 0.0
      %479 = vst [vmem:[#allocation4 + $0x48] sm:$0x3] 0.0
      %480 = vst [vmem:[#allocation4 + $0x50] sm:$0xff] 0.0
      %481 = vst [vmem:[#allocation4 + $0x58] sm:$0x3] 0.0
      %482 = vst [vmem:[#allocation4 + $0x60] sm:$0xff] 0.0
      %483 = vst [vmem:[#allocation4 + $0x68] sm:$0x3] 0.0
      %484 = vst [vmem:[#allocation4 + $0x70] sm:$0xff] 0.0
      %485 = vst [vmem:[#allocation4 + $0x78] sm:$0x3] 0.0
      %486 = vst [vmem:[#allocation4 + $0x80] sm:$0xff] 0.0
      %487 = vst [vmem:[#allocation4 + $0x88] sm:$0x3] 0.0
      %488 = vst [vmem:[#allocation4 + $0x90] sm:$0xff] 0.0
      %489 = vst [vmem:[#allocation4 + $0x98] sm:$0x3] 0.0
      %490 = vst [vmem:[#allocation4 + $0xa0] sm:$0xff] 0.0
      %491 = vst [vmem:[#allocation4 + $0xa8] sm:$0x3] 0.0
      %492 = vst [vmem:[#allocation4 + $0xb0] sm:$0xff] 0.0
      %493 = vst [vmem:[#allocation4 + $0xb8] sm:$0x3] 0.0
      %494 = vst [vmem:[#allocation4 + $0xc0] sm:$0xff] 0.0
      %495 = vst [vmem:[#allocation4 + $0xc8] sm:$0x3] 0.0
      %496 = vst [vmem:[#allocation4 + $0xd0] sm:$0xff] 0.0
      %497 = vst [vmem:[#allocation4 + $0xd8] sm:$0x3] 0.0
      %498 = vst [vmem:[#allocation4 + $0xe0] sm:$0xff] 0.0
      %499 = vst [vmem:[#allocation4 + $0xe8] sm:$0x3] 0.0
      %500 = vst [vmem:[#allocation4 + $0xf0] sm:$0xff] 0.0
      %501 = vst [vmem:[#allocation4 + $0xf8] sm:$0x3] 0.0
      %502 = vst [vmem:[#allocation4 + $0x100] sm:$0xff] 0.0
      %503 = vst [vmem:[#allocation4 + $0x108] sm:$0x3] 0.0
      %504 = vst [vmem:[#allocation4 + $0x110] sm:$0xff] 0.0
      %505 = vst [vmem:[#allocation4 + $0x118] sm:$0x3] 0.0
      %506 = vst [vmem:[#allocation5] sm:$0xff] 0.0
      %507 = vst [vmem:[#allocation5 + $0x8] sm:$0x3] 0.0
      %508 = vst [vmem:[#allocation5 + $0x10] sm:$0xff] 0.0
      %509 = vst [vmem:[#allocation5 + $0x18] sm:$0x3] 0.0
      %510 = vst [vmem:[#allocation5 + $0x20] sm:$0xff] 0.0
      %511 = vst [vmem:[#allocation5 + $0x28] sm:$0x3] 0.0
      %512 = vst [vmem:[#allocation5 + $0x30] sm:$0xff] 0.0
      %513 = vst [vmem:[#allocation5 + $0x38] sm:$0x3] 0.0
      %514 = vst [vmem:[#allocation5 + $0x40] sm:$0xff] 0.0
      %515 = vst [vmem:[#allocation5 + $0x48] sm:$0x3] 0.0
      %516 = vst [vmem:[#allocation5 + $0x50] sm:$0xff] 0.0
      %517 = vst [vmem:[#allocation5 + $0x58] sm:$0x3] 0.0
      %518 = vst [vmem:[#allocation5 + $0x60] sm:$0xff] 0.0
      %519 = vst [vmem:[#allocation5 + $0x68] sm:$0x3] 0.0
      %520 = vst [vmem:[#allocation5 + $0x70] sm:$0xff] 0.0
      %521 = vst [vmem:[#allocation5 + $0x78] sm:$0x3] 0.0
      %522 = vst [vmem:[#allocation5 + $0x80] sm:$0xff] 0.0
      %523 = vst [vmem:[#allocation5 + $0x88] sm:$0x3] 0.0
      %524 = vst [vmem:[#allocation5 + $0x90] sm:$0xff] 0.0
      %525 = vst [vmem:[#allocation5 + $0x98] sm:$0x3] 0.0
      %526 = vst [vmem:[#allocation5 + $0xa0] sm:$0xff] 0.0
      %527 = vst [vmem:[#allocation5 + $0xa8] sm:$0x3] 0.0
      %528 = vst [vmem:[#allocation5 + $0xb0] sm:$0xff] 0.0
      %529 = vst [vmem:[#allocation5 + $0xb8] sm:$0x3] 0.0
      %530 = vst [vmem:[#allocation5 + $0xc0] sm:$0xff] 0.0
      %531 = vst [vmem:[#allocation5 + $0xc8] sm:$0x3] 0.0
      %532 = vst [vmem:[#allocation5 + $0xd0] sm:$0xff] 0.0
      %533 = vst [vmem:[#allocation5 + $0xd8] sm:$0x3] 0.0
      %534 = vst [vmem:[#allocation5 + $0xe0] sm:$0xff] 0.0
      %535 = vst [vmem:[#allocation5 + $0xe8] sm:$0x3] 0.0
      %536 = vst [vmem:[#allocation5 + $0xf0] sm:$0xff] 0.0
      %537 = vst [vmem:[#allocation5 + $0xf8] sm:$0x3] 0.0
      %538 = vst [vmem:[#allocation5 + $0x100] sm:$0xff] 0.0
      %539 = vst [vmem:[#allocation5 + $0x108] sm:$0x3] 0.0
      %540 = vst [vmem:[#allocation5 + $0x110] sm:$0xff] 0.0
      %541 = vst [vmem:[#allocation5 + $0x118] sm:$0x3] 0.0
      %v542 = vld [vmem:[%s315] sm:$0xff]
      %v543 = vld [vmem:[%s315 + $0x8] sm:$0xff]
      %v544 = vld [vmem:[%s315 + $0x10] sm:$0xff]
      %v545 = vld [vmem:[%s315 + $0x18] sm:$0xff]
      %v546 = vld [vmem:[%s315 + $0x20] sm:$0xff]
      %v547 = vld [vmem:[%s315 + $0x28] sm:$0xff]
      %v548 = vld [vmem:[%s315 + $0x30] sm:$0xff]
      %v549 = vld [vmem:[%s315 + $0x38] sm:$0xff]
      %v550 = vld [vmem:[%s2] sm:$0xff]
      %v551 = vld [vmem:[%s2 + $0x8] sm:$0xff]
      %v552 = vld [vmem:[%s2 + $0x10] sm:$0xff]
      %v553 = vld [vmem:[%s2 + $0x18] sm:$0xff]
      %v554 = vld [vmem:[%s3] sm:$0xf]
      %v556 = vlaneseq
      %v557 = vshrl.u32 %v556, 7
      %v558 = vsub.s32 0, %v557
      %v559 = vrot.slane %v554, %v558
      %v560 = vlaneseq
      %v561 = vshrl.u32 %v560, 7
      %v562 = vsub.s32 1, %v561
      %v563 = vrot.slane %v554, %v562
      %v564 = vlaneseq
      %v565 = vshrl.u32 %v564, 7
      %v566 = vsub.s32 2, %v565
      %v567 = vrot.slane %v554, %v566
      %v568 = vlaneseq
      %v569 = vshrl.u32 %v568, 7
      %v570 = vsub.s32 3, %v569
      %v571 = vrot.slane %v554, %v570
      %vm576 = vcmask 64512
      %v578 = vsel %vm576, %v542, 0
      %v581 = vsel %vm576, %v543, 0
      %v584 = vsel %vm576, %v544, 0
      %v587 = vsel %vm576, %v545, 0
      %v590 = vsel %vm576, %v546, 0
      %v593 = vsel %vm576, %v547, 0
      %v596 = vsel %vm576, %v548, 0
      %v599 = vsel %vm576, %v549, 0
      %601 = vmatprep.subr.mxu0 %v551
      %602 = vmatpush1.msra.mxu0 %v550
      %603 = vmatprep.subr.mxu0 0.0
      %604 = vmatpush1.msra.mxu0 0.0
      %605 = vmatprep.subr.mxu0 0.0
      %606 = vmatpush1.msra.mxu0 0.0
      %607 = vmatprep.subr.mxu0 0.0
      %608 = vmatpush1.msra.mxu0 0.0
      %609 = vmatprep.subr.mxu0 0.0
      %610 = vmatpush1.msra.mxu0 0.0
      %611 = vmatprep.subr.mxu0 0.0
      %612 = vmatpush1.msra.mxu0 0.0
      %613 = vmatprep.subr.mxu0 0.0
      %614 = vmatpush1.msra.mxu0 0.0
      %615 = vmatprep.subr.mxu0 0.0
      %616 = vmatpush1.msra.mxu0 0.0
      %617 = vmatprep.subr.mxu0 0.0
      %618 = vmatpush1.msra.mxu0 0.0
      %619 = vmatprep.subr.mxu0 0.0
      %620 = vmatpush1.msra.mxu0 0.0
      %621 = vmatprep.subr.mxu0 0.0
      %622 = vmatpush1.msra.mxu0 0.0
      %623 = vmatprep.subr.mxu0 0.0
      %624 = vmatpush1.msra.mxu0 0.0
      %625 = vmatprep.subr.mxu0 0.0
      %626 = vmatpush1.msra.mxu0 0.0
      %627 = vmatprep.subr.mxu0 0.0
      %628 = vmatpush1.msra.mxu0 0.0
      %629 = vmatprep.subr.mxu0 0.0
      %630 = vmatpush1.msra.mxu0 0.0
      %631 = vmatprep.subr.mxu0 0.0
      %632 = vmatpush1.msra.mxu0 0.0
      %633 = vmatprep.subr.mxu0 0.0
      %634 = vmatpush1.msra.mxu0 0.0
      %635 = vmatprep.subr.mxu0 0.0
      %636 = vmatpush1.msra.mxu0 0.0
      %637 = vmatprep.subr.mxu0 0.0
      %638 = vmatpush1.msra.mxu0 0.0
      %639 = vmatprep.subr.mxu0 0.0
      %640 = vmatpush1.msra.mxu0 0.0
      %641 = vmatprep.subr.mxu0 0.0
      %642 = vmatpush1.msra.mxu0 0.0
      %643 = vmatprep.subr.mxu0 0.0
      %644 = vmatpush1.msra.mxu0 0.0
      %645 = vmatprep.subr.mxu0 0.0
      %646 = vmatpush1.msra.mxu0 0.0
      %647 = vmatprep.subr.mxu0 0.0
      %648 = vmatpush1.msra.mxu0 0.0
      %649 = vmatprep.subr.mxu0 0.0
      %650 = vmatpush1.msra.mxu0 0.0
      %651 = vmatprep.subr.mxu0 0.0
      %652 = vmatpush1.msra.mxu0 0.0
      %653 = vmatprep.subr.mxu0 0.0
      %654 = vmatpush1.msra.mxu0 0.0
      %655 = vmatprep.subr.mxu0 0.0
      %656 = vmatpush1.msra.mxu0 0.0
      %657 = vmatprep.subr.mxu0 0.0
      %658 = vmatpush1.msra.mxu0 0.0
      %659 = vmatprep.subr.mxu0 0.0
      %660 = vmatpush1.msra.mxu0 0.0
      %661 = vmatprep.subr.mxu0 0.0
      %662 = vmatpush1.msra.mxu0 0.0
      %663 = vmatprep.subr.mxu0 0.0
      %664 = vmatpush1.msra.mxu0 0.0
      %665 = vmatprep.mubr.f32.mxu0 0.0
      %666 = vmatmul.mubr.f32.gmra.mrb[0].mxu0 %v578
      %v667 = vpop.f32.mrb[0].mxu0
      %v668 = vadd.f32 %v559, %v667
      %v669 = vpop.f32.mrb[0].mxu0
      %v670 = vadd.f32 %v563, %v669
      %671 = vmatprep.mubr.f32.mxu0 0.0
      %672 = vmatmul.mubr.f32.gmra.mrb[0].mxu0 %v581
      %v673 = vpop.f32.mrb[0].mxu0
      %v674 = vadd.f32 %v559, %v673
      %v675 = vpop.f32.mrb[0].mxu0
      %v676 = vadd.f32 %v563, %v675
      %677 = vmatprep.mubr.f32.mxu0 0.0
      %678 = vmatmul.mubr.f32.gmra.mrb[0].mxu0 %v584
      %v679 = vpop.f32.mrb[0].mxu0
      %v680 = vadd.f32 %v559, %v679
      %v681 = vpop.f32.mrb[0].mxu0
      %v682 = vadd.f32 %v563, %v681
      %683 = vmatprep.mubr.f32.mxu0 0.0
      %684 = vmatmul.mubr.f32.gmra.mrb[0].mxu0 %v587
      %v685 = vpop.f32.mrb[0].mxu0
      %v686 = vadd.f32 %v559, %v685
      %v687 = vpop.f32.mrb[0].mxu0
      %v688 = vadd.f32 %v563, %v687
      %689 = vmatprep.mubr.f32.mxu0 0.0
      %690 = vmatmul.mubr.f32.gmra.mrb[0].mxu0 %v590
      %v691 = vpop.f32.mrb[0].mxu0
      %v692 = vadd.f32 %v559, %v691
      %v693 = vpop.f32.mrb[0].mxu0
      %v694 = vadd.f32 %v563, %v693
      %695 = vmatprep.mubr.f32.mxu0 0.0
      %696 = vmatmul.mubr.f32.gmra.mrb[0].mxu0 %v593
      %v697 = vpop.f32.mrb[0].mxu0
      %v698 = vadd.f32 %v559, %v697
      %v699 = vpop.f32.mrb[0].mxu0
      %v700 = vadd.f32 %v563, %v699
      %701 = vmatprep.mubr.f32.mxu0 0.0
      %702 = vmatmul.mubr.f32.gmra.mrb[0].mxu0 %v596
      %v703 = vpop.f32.mrb[0].mxu0
      %v704 = vadd.f32 %v559, %v703
      %v705 = vpop.f32.mrb[0].mxu0
      %v706 = vadd.f32 %v563, %v705
      %707 = vmatprep.mubr.f32.mxu0 0.0
      %708 = vmatmul.mubr.f32.gmra.mrb[0].mxu0 %v599
      %v709 = vpop.f32.mrb[0].mxu0
      %v710 = vadd.f32 %v559, %v709
      %v711 = vpop.f32.mrb[0].mxu0
      %v712 = vadd.f32 %v563, %v711
      %713 = vdwg.mxu0
      %714 = vmatprep.subr.mxu0 %v553
      %715 = vmatpush1.msra.mxu0 %v552
      %716 = vmatprep.subr.mxu0 0.0
      %717 = vmatpush1.msra.mxu0 0.0
      %718 = vmatprep.subr.mxu0 0.0
      %719 = vmatpush1.msra.mxu0 0.0
      %720 = vmatprep.subr.mxu0 0.0
      %721 = vmatpush1.msra.mxu0 0.0
      %722 = vmatprep.subr.mxu0 0.0
      %723 = vmatpush1.msra.mxu0 0.0
      %724 = vmatprep.subr.mxu0 0.0
      %725 = vmatpush1.msra.mxu0 0.0
      %726 = vmatprep.subr.mxu0 0.0
      %727 = vmatpush1.msra.mxu0 0.0
      %728 = vmatprep.subr.mxu0 0.0
      %729 = vmatpush1.msra.mxu0 0.0
      %730 = vmatprep.subr.mxu0 0.0
      %731 = vmatpush1.msra.mxu0 0.0
      %732 = vmatprep.subr.mxu0 0.0
      %733 = vmatpush1.msra.mxu0 0.0
      %734 = vmatprep.subr.mxu0 0.0
      %735 = vmatpush1.msra.mxu0 0.0
      %736 = vmatprep.subr.mxu0 0.0
      %737 = vmatpush1.msra.mxu0 0.0
      %738 = vmatprep.subr.mxu0 0.0
      %739 = vmatpush1.msra.mxu0 0.0
      %740 = vmatprep.subr.mxu0 0.0
      %741 = vmatpush1.msra.mxu0 0.0
      %742 = vmatprep.subr.mxu0 0.0
      %743 = vmatpush1.msra.mxu0 0.0
      %744 = vmatprep.subr.mxu0 0.0
      %745 = vmatpush1.msra.mxu0 0.0
      %746 = vmatprep.subr.mxu0 0.0
      %747 = vmatpush1.msra.mxu0 0.0
      %748 = vmatprep.subr.mxu0 0.0
      %749 = vmatpush1.msra.mxu0 0.0
      %750 = vmatprep.subr.mxu0 0.0
      %751 = vmatpush1.msra.mxu0 0.0
      %752 = vmatprep.subr.mxu0 0.0
      %753 = vmatpush1.msra.mxu0 0.0
      %754 = vmatprep.subr.mxu0 0.0
      %755 = vmatpush1.msra.mxu0 0.0
      %756 = vmatprep.subr.mxu0 0.0
      %757 = vmatpush1.msra.mxu0 0.0
      %758 = vmatprep.subr.mxu0 0.0
      %759 = vmatpush1.msra.mxu0 0.0
      %760 = vmatprep.subr.mxu0 0.0
      %761 = vmatpush1.msra.mxu0 0.0
      %762 = vmatprep.subr.mxu0 0.0
      %763 = vmatpush1.msra.mxu0 0.0
      %764 = vmatprep.subr.mxu0 0.0
      %765 = vmatpush1.msra.mxu0 0.0
      %766 = vmatprep.subr.mxu0 0.0
      %767 = vmatpush1.msra.mxu0 0.0
      %768 = vmatprep.subr.mxu0 0.0
      %769 = vmatpush1.msra.mxu0 0.0
      %770 = vmatprep.subr.mxu0 0.0
      %771 = vmatpush1.msra.mxu0 0.0
      %772 = vmatprep.subr.mxu0 0.0
      %773 = vmatpush1.msra.mxu0 0.0
      %774 = vmatprep.subr.mxu0 0.0
      %775 = vmatpush1.msra.mxu0 0.0
      %776 = vmatprep.subr.mxu0 0.0
      %777 = vmatpush1.msra.mxu0 0.0
      %778 = vmatprep.mubr.f32.mxu0 0.0
      %779 = vmatmul.mubr.f32.gmra.mrb[0].mxu0 %v578
      %v780 = vpop.f32.mrb[0].mxu0
      %v781 = vadd.f32 %v567, %v780
      %v782 = vpop.f32.mrb[0].mxu0
      %v783 = vadd.f32 %v571, %v782
      %784 = vmatprep.mubr.f32.mxu0 0.0
      %785 = vmatmul.mubr.f32.gmra.mrb[0].mxu0 %v581
      %v786 = vpop.f32.mrb[0].mxu0
      %v787 = vadd.f32 %v567, %v786
      %v788 = vpop.f32.mrb[0].mxu0
      %v789 = vadd.f32 %v571, %v788
      %790 = vmatprep.mubr.f32.mxu0 0.0
      %791 = vmatmul.mubr.f32.gmra.mrb[0].mxu0 %v584
      %v792 = vpop.f32.mrb[0].mxu0
      %v793 = vadd.f32 %v567, %v792
      %v794 = vpop.f32.mrb[0].mxu0
      %v795 = vadd.f32 %v571, %v794
      %796 = vmatprep.mubr.f32.mxu0 0.0
      %797 = vmatmul.mubr.f32.gmra.mrb[0].mxu0 %v587
      %v798 = vpop.f32.mrb[0].mxu0
      %v799 = vadd.f32 %v567, %v798
      %v800 = vpop.f32.mrb[0].mxu0
      %v801 = vadd.f32 %v571, %v800
      %802 = vmatprep.mubr.f32.mxu0 0.0
      %803 = vmatmul.mubr.f32.gmra.mrb[0].mxu0 %v590
      %v804 = vpop.f32.mrb[0].mxu0
      %v805 = vadd.f32 %v567, %v804
      %v806 = vpop.f32.mrb[0].mxu0
      %v807 = vadd.f32 %v571, %v806
      %808 = vmatprep.mubr.f32.mxu0 0.0
      %809 = vmatmul.mubr.f32.gmra.mrb[0].mxu0 %v593
      %v810 = vpop.f32.mrb[0].mxu0
      %v811 = vadd.f32 %v567, %v810
      %v812 = vpop.f32.mrb[0].mxu0
      %v813 = vadd.f32 %v571, %v812
      %814 = vmatprep.mubr.f32.mxu0 0.0
      %815 = vmatmul.mubr.f32.gmra.mrb[0].mxu0 %v596
      %v816 = vpop.f32.mrb[0].mxu0
      %v817 = vadd.f32 %v567, %v816
      %v818 = vpop.f32.mrb[0].mxu0
      %v819 = vadd.f32 %v571, %v818
      %820 = vmatprep.mubr.f32.mxu0 0.0
      %821 = vmatmul.mubr.f32.gmra.mrb[0].mxu0 %v599
      %v822 = vpop.f32.mrb[0].mxu0
      %v823 = vadd.f32 %v567, %v822
      %v824 = vpop.f32.mrb[0].mxu0
      %v825 = vadd.f32 %v571, %v824
      %826 = vdwg.mxu0
      %v843 = vrot.slane %v668, 7
      %v844 = vrot.slane %v781, 7
      %v845 = vrot.slane %v674, 7
      %v846 = vrot.slane %v787, 7
      %v847 = vrot.slane %v680, 7
      %v848 = vrot.slane %v793, 7
      %v849 = vrot.slane %v686, 7
      %v850 = vrot.slane %v799, 7
      %v851 = vrot.slane %v692, 7
      %v852 = vrot.slane %v805, 7
      %v853 = vrot.slane %v698, 7
      %v854 = vrot.slane %v811, 7
      %v855 = vrot.slane %v704, 7
      %v856 = vrot.slane %v817, 7
      %v857 = vrot.slane %v710, 7
      %v858 = vrot.slane %v823, 7
      %s875 = scalar_lea.vmem [#allocation2], 32
      %876 = vst [vmem:[%s875] sm:$0xfe] %v843
      %877 = vst [vmem:[%s875 + $0x10] sm:$0x1] %v843
      %878 = vst [vmem:[%s875 + $0x20] sm:$0xfe] %v844
      %879 = vst [vmem:[%s875 + $0x30] sm:$0x1] %v844
      %880 = vst [vmem:[%s875 + $0x40] sm:$0xfe] %v845
      %881 = vst [vmem:[%s875 + $0x50] sm:$0x1] %v845
      %882 = vst [vmem:[%s875 + $0x60] sm:$0xfe] %v846
      %883 = vst [vmem:[%s875 + $0x70] sm:$0x1] %v846
      %884 = vst [vmem:[%s875 + $0x80] sm:$0xfe] %v847
      %885 = vst [vmem:[%s875 + $0x90] sm:$0x1] %v847
      %886 = vst [vmem:[%s875 + $0xa0] sm:$0xfe] %v848
      %887 = vst [vmem:[%s875 + $0xb0] sm:$0x1] %v848
      %888 = vst [vmem:[%s875 + $0xc0] sm:$0xfe] %v849
      %889 = vst [vmem:[%s875 + $0xd0] sm:$0x1] %v849
      %890 = vst [vmem:[%s875 + $0xe0] sm:$0xfe] %v850
      %891 = vst [vmem:[%s875 + $0xf0] sm:$0x1] %v850
      %892 = vst [vmem:[%s875 + $0x100] sm:$0xfe] %v851
      %893 = vst [vmem:[%s875 + $0x110] sm:$0x1] %v851
      %894 = vst [vmem:[%s875 + $0x120] sm:$0xfe] %v852
      %895 = vst [vmem:[%s875 + $0x130] sm:$0x1] %v852
      %896 = vst [vmem:[%s875 + $0x140] sm:$0xfe] %v853
      %897 = vst [vmem:[%s875 + $0x150] sm:$0x1] %v853
      %898 = vst [vmem:[%s875 + $0x160] sm:$0xfe] %v854
      %899 = vst [vmem:[%s875 + $0x170] sm:$0x1] %v854
      %900 = vst [vmem:[%s875 + $0x180] sm:$0xfe] %v855
      %901 = vst [vmem:[%s875 + $0x190] sm:$0x1] %v855
      %902 = vst [vmem:[%s875 + $0x1a0] sm:$0xfe] %v856
      %903 = vst [vmem:[%s875 + $0x1b0] sm:$0x1] %v856
      %904 = vst [vmem:[%s875 + $0x1c0] sm:$0xfe] %v857
      %905 = vst [vmem:[%s875 + $0x1d0] sm:$0x1] %v857
      %906 = vst [vmem:[%s875 + $0x1e0] sm:$0xfe] %v858
      %907 = vst [vmem:[%s875 + $0x1f0] sm:$0x1] %v858
      %v924 = vrot.slane %v670, 7
      %v925 = vrot.slane %v783, 7
      %v926 = vrot.slane %v676, 7
      %v927 = vrot.slane %v789, 7
      %v928 = vrot.slane %v682, 7
      %v929 = vrot.slane %v795, 7
      %v930 = vrot.slane %v688, 7
      %v931 = vrot.slane %v801, 7
      %v932 = vrot.slane %v694, 7
      %v933 = vrot.slane %v807, 7
      %v934 = vrot.slane %v700, 7
      %v935 = vrot.slane %v813, 7
      %v936 = vrot.slane %v706, 7
      %v937 = vrot.slane %v819, 7
      %v938 = vrot.slane %v712, 7
      %v939 = vrot.slane %v825, 7
      %s956 = scalar_lea.vmem [#allocation3], 32
      %957 = vst [vmem:[%s956] sm:$0xfe] %v924
      %958 = vst [vmem:[%s956 + $0x10] sm:$0x1] %v924
      %959 = vst [vmem:[%s956 + $0x20] sm:$0xfe] %v925
      %960 = vst [vmem:[%s956 + $0x30] sm:$0x1] %v925
      %961 = vst [vmem:[%s956 + $0x40] sm:$0xfe] %v926
      %962 = vst [vmem:[%s956 + $0x50] sm:$0x1] %v926
      %963 = vst [vmem:[%s956 + $0x60] sm:$0xfe] %v927
      %964 = vst [vmem:[%s956 + $0x70] sm:$0x1] %v927
      %965 = vst [vmem:[%s956 + $0x80] sm:$0xfe] %v928
      %966 = vst [vmem:[%s956 + $0x90] sm:$0x1] %v928
      %967 = vst [vmem:[%s956 + $0xa0] sm:$0xfe] %v929
      %968 = vst [vmem:[%s956 + $0xb0] sm:$0x1] %v929
      %969 = vst [vmem:[%s956 + $0xc0] sm:$0xfe] %v930
      %970 = vst [vmem:[%s956 + $0xd0] sm:$0x1] %v930
      %971 = vst [vmem:[%s956 + $0xe0] sm:$0xfe] %v931
      %972 = vst [vmem:[%s956 + $0xf0] sm:$0x1] %v931
      %973 = vst [vmem:[%s956 + $0x100] sm:$0xfe] %v932
      %974 = vst [vmem:[%s956 + $0x110] sm:$0x1] %v932
      %975 = vst [vmem:[%s956 + $0x120] sm:$0xfe] %v933
      %976 = vst [vmem:[%s956 + $0x130] sm:$0x1] %v933
      %977 = vst [vmem:[%s956 + $0x140] sm:$0xfe] %v934
      %978 = vst [vmem:[%s956 + $0x150] sm:$0x1] %v934
      %979 = vst [vmem:[%s956 + $0x160] sm:$0xfe] %v935
      %980 = vst [vmem:[%s956 + $0x170] sm:$0x1] %v935
      %981 = vst [vmem:[%s956 + $0x180] sm:$0xfe] %v936
      %982 = vst [vmem:[%s956 + $0x190] sm:$0x1] %v936
      %983 = vst [vmem:[%s956 + $0x1a0] sm:$0xfe] %v937
      %984 = vst [vmem:[%s956 + $0x1b0] sm:$0x1] %v937
      %985 = vst [vmem:[%s956 + $0x1c0] sm:$0xfe] %v938
      %986 = vst [vmem:[%s956 + $0x1d0] sm:$0x1] %v938
      %987 = vst [vmem:[%s956 + $0x1e0] sm:$0xfe] %v939
      %988 = vst [vmem:[%s956 + $0x1f0] sm:$0x1] %v939
      %v989 = vld [vmem:[%s320] sm:$0xff]
      %v990 = vld [vmem:[%s320 + $0x8] sm:$0xff]
      %v991 = vld [vmem:[%s320 + $0x10] sm:$0xff]
      %v992 = vld [vmem:[%s320 + $0x18] sm:$0xff]
      %v993 = vld [vmem:[%s320 + $0x20] sm:$0xff]
      %v994 = vld [vmem:[%s320 + $0x28] sm:$0xff]
      %v995 = vld [vmem:[%s320 + $0x30] sm:$0xff]
      %v996 = vld [vmem:[%s320 + $0x38] sm:$0xff]
      %v997 = vld [vmem:[%s320 + $0x40] sm:$0xff]
      %v998 = vld [vmem:[%s320 + $0x48] sm:$0xff]
      %v999 = vld [vmem:[%s320 + $0x50] sm:$0xff]
      %v1000 = vld [vmem:[%s320 + $0x58] sm:$0xff]
      %v1001 = vld [vmem:[%s320 + $0x60] sm:$0xff]
      %v1002 = vld [vmem:[%s320 + $0x68] sm:$0xff]
      %v1003 = vld [vmem:[%s320 + $0x70] sm:$0xff]
      %v1004 = vld [vmem:[%s320 + $0x78] sm:$0xff]
      %v1021 = vrot.slane %v989, 7
      %v1022 = vrot.slane %v990, 7
      %v1023 = vrot.slane %v991, 7
      %v1024 = vrot.slane %v992, 7
      %v1025 = vrot.slane %v993, 7
      %v1026 = vrot.slane %v994, 7
      %v1027 = vrot.slane %v995, 7
      %v1028 = vrot.slane %v996, 7
      %v1029 = vrot.slane %v997, 7
      %v1030 = vrot.slane %v998, 7
      %v1031 = vrot.slane %v999, 7
      %v1032 = vrot.slane %v1000, 7
      %v1033 = vrot.slane %v1001, 7
      %v1034 = vrot.slane %v1002, 7
      %v1035 = vrot.slane %v1003, 7
      %v1036 = vrot.slane %v1004, 7
      %vm1053 = vcmask 31745
      %1054 = vst.msk [vmem:[%s875 + $0x8] sm:$0xfe] %vm1053, %v1021
      %vm1055 = vcmask 24576
      %1056 = vst.msk [vmem:[%s875 + $0x18] sm:$0x1] %vm1055, %v1021
      %1057 = vst.msk [vmem:[%s875 + $0x28] sm:$0xfe] %vm1053, %v1022
      %1058 = vst.msk [vmem:[%s875 + $0x38] sm:$0x1] %vm1055, %v1022
      %1059 = vst.msk [vmem:[%s875 + $0x48] sm:$0xfe] %vm1053, %v1023
      %1060 = vst.msk [vmem:[%s875 + $0x58] sm:$0x1] %vm1055, %v1023
      %1061 = vst.msk [vmem:[%s875 + $0x68] sm:$0xfe] %vm1053, %v1024
      %1062 = vst.msk [vmem:[%s875 + $0x78] sm:$0x1] %vm1055, %v1024
      %1063 = vst.msk [vmem:[%s875 + $0x88] sm:$0xfe] %vm1053, %v1025
      %1064 = vst.msk [vmem:[%s875 + $0x98] sm:$0x1] %vm1055, %v1025
      %1065 = vst.msk [vmem:[%s875 + $0xa8] sm:$0xfe] %vm1053, %v1026
      %1066 = vst.msk [vmem:[%s875 + $0xb8] sm:$0x1] %vm1055, %v1026
      %1067 = vst.msk [vmem:[%s875 + $0xc8] sm:$0xfe] %vm1053, %v1027
      %1068 = vst.msk [vmem:[%s875 + $0xd8] sm:$0x1] %vm1055, %v1027
      %1069 = vst.msk [vmem:[%s875 + $0xe8] sm:$0xfe] %vm1053, %v1028
      %1070 = vst.msk [vmem:[%s875 + $0xf8] sm:$0x1] %vm1055, %v1028
      %1071 = vst.msk [vmem:[%s875 + $0x108] sm:$0xfe] %vm1053, %v1029
      %1072 = vst.msk [vmem:[%s875 + $0x118] sm:$0x1] %vm1055, %v1029
      %1073 = vst.msk [vmem:[%s875 + $0x128] sm:$0xfe] %vm1053, %v1030
      %1074 = vst.msk [vmem:[%s875 + $0x138] sm:$0x1] %vm1055, %v1030
      %1075 = vst.msk [vmem:[%s875 + $0x148] sm:$0xfe] %vm1053, %v1031
      %1076 = vst.msk [vmem:[%s875 + $0x158] sm:$0x1] %vm1055, %v1031
      %1077 = vst.msk [vmem:[%s875 + $0x168] sm:$0xfe] %vm1053, %v1032
      %1078 = vst.msk [vmem:[%s875 + $0x178] sm:$0x1] %vm1055, %v1032
      %1079 = vst.msk [vmem:[%s875 + $0x188] sm:$0xfe] %vm1053, %v1033
      %1080 = vst.msk [vmem:[%s875 + $0x198] sm:$0x1] %vm1055, %v1033
      %1081 = vst.msk [vmem:[%s875 + $0x1a8] sm:$0xfe] %vm1053, %v1034
      %1082 = vst.msk [vmem:[%s875 + $0x1b8] sm:$0x1] %vm1055, %v1034
      %1083 = vst.msk [vmem:[%s875 + $0x1c8] sm:$0xfe] %vm1053, %v1035
      %1084 = vst.msk [vmem:[%s875 + $0x1d8] sm:$0x1] %vm1055, %v1035
      %1085 = vst.msk [vmem:[%s875 + $0x1e8] sm:$0xfe] %vm1053, %v1036
      %1086 = vst.msk [vmem:[%s875 + $0x1f8] sm:$0x1] %vm1055, %v1036
      %1087 = vrot.lane.b32.xlu0 %v1021, 124
      %v1088 = vpop.permute.xlu0 %1087
      %1089 = vrot.lane.b32.xlu0 %v1022, 124
      %v1090 = vpop.permute.xlu0 %1089
      %1091 = vrot.lane.b32.xlu0 %v1023, 124
      %v1092 = vpop.permute.xlu0 %1091
      %1093 = vrot.lane.b32.xlu0 %v1024, 124
      %v1094 = vpop.permute.xlu0 %1093
      %1095 = vrot.lane.b32.xlu0 %v1025, 124
      %v1096 = vpop.permute.xlu0 %1095
      %1097 = vrot.lane.b32.xlu0 %v1026, 124
      %v1098 = vpop.permute.xlu0 %1097
      %1099 = vrot.lane.b32.xlu0 %v1027, 124
      %v1100 = vpop.permute.xlu0 %1099
      %1101 = vrot.lane.b32.xlu0 %v1028, 124
      %v1102 = vpop.permute.xlu0 %1101
      %1103 = vrot.lane.b32.xlu0 %v1029, 124
      %v1104 = vpop.permute.xlu0 %1103
      %1105 = vrot.lane.b32.xlu0 %v1030, 124
      %v1106 = vpop.permute.xlu0 %1105
      %1107 = vrot.lane.b32.xlu0 %v1031, 124
      %v1108 = vpop.permute.xlu0 %1107
      %1109 = vrot.lane.b32.xlu0 %v1032, 124
      %v1110 = vpop.permute.xlu0 %1109
      %1111 = vrot.lane.b32.xlu0 %v1033, 124
      %v1112 = vpop.permute.xlu0 %1111
      %1113 = vrot.lane.b32.xlu0 %v1034, 124
      %v1114 = vpop.permute.xlu0 %1113
      %1115 = vrot.lane.b32.xlu0 %v1035, 124
      %v1116 = vpop.permute.xlu0 %1115
      %1117 = vrot.lane.b32.xlu0 %v1036, 124
      %v1118 = vpop.permute.xlu0 %1117
      %1135 = vst.msk [vmem:[%s956 + $0x8] sm:$0xfe] %vm1053, %v1088
      %1136 = vst.msk [vmem:[%s956 + $0x18] sm:$0x1] %vm1055, %v1088
      %1137 = vst.msk [vmem:[%s956 + $0x28] sm:$0xfe] %vm1053, %v1090
      %1138 = vst.msk [vmem:[%s956 + $0x38] sm:$0x1] %vm1055, %v1090
      %1139 = vst.msk [vmem:[%s956 + $0x48] sm:$0xfe] %vm1053, %v1092
      %1140 = vst.msk [vmem:[%s956 + $0x58] sm:$0x1] %vm1055, %v1092
      %1141 = vst.msk [vmem:[%s956 + $0x68] sm:$0xfe] %vm1053, %v1094
      %1142 = vst.msk [vmem:[%s956 + $0x78] sm:$0x1] %vm1055, %v1094
      %1143 = vst.msk [vmem:[%s956 + $0x88] sm:$0xfe] %vm1053, %v1096
      %1144 = vst.msk [vmem:[%s956 + $0x98] sm:$0x1] %vm1055, %v1096
      %1145 = vst.msk [vmem:[%s956 + $0xa8] sm:$0xfe] %vm1053, %v1098
      %1146 = vst.msk [vmem:[%s956 + $0xb8] sm:$0x1] %vm1055, %v1098
      %1147 = vst.msk [vmem:[%s956 + $0xc8] sm:$0xfe] %vm1053, %v1100
      %1148 = vst.msk [vmem:[%s956 + $0xd8] sm:$0x1] %vm1055, %v1100
      %1149 = vst.msk [vmem:[%s956 + $0xe8] sm:$0xfe] %vm1053, %v1102
      %1150 = vst.msk [vmem:[%s956 + $0xf8] sm:$0x1] %vm1055, %v1102
      %1151 = vst.msk [vmem:[%s956 + $0x108] sm:$0xfe] %vm1053, %v1104
      %1152 = vst.msk [vmem:[%s956 + $0x118] sm:$0x1] %vm1055, %v1104
      %1153 = vst.msk [vmem:[%s956 + $0x128] sm:$0xfe] %vm1053, %v1106
      %1154 = vst.msk [vmem:[%s956 + $0x138] sm:$0x1] %vm1055, %v1106
      %1155 = vst.msk [vmem:[%s956 + $0x148] sm:$0xfe] %vm1053, %v1108
      %1156 = vst.msk [vmem:[%s956 + $0x158] sm:$0x1] %vm1055, %v1108
      %1157 = vst.msk [vmem:[%s956 + $0x168] sm:$0xfe] %vm1053, %v1110
      %1158 = vst.msk [vmem:[%s956 + $0x178] sm:$0x1] %vm1055, %v1110
      %1159 = vst.msk [vmem:[%s956 + $0x188] sm:$0xfe] %vm1053, %v1112
      %1160 = vst.msk [vmem:[%s956 + $0x198] sm:$0x1] %vm1055, %v1112
      %1161 = vst.msk [vmem:[%s956 + $0x1a8] sm:$0xfe] %vm1053, %v1114
      %1162 = vst.msk [vmem:[%s956 + $0x1b8] sm:$0x1] %vm1055, %v1114
      %1163 = vst.msk [vmem:[%s956 + $0x1c8] sm:$0xfe] %vm1053, %v1116
      %1164 = vst.msk [vmem:[%s956 + $0x1d8] sm:$0x1] %vm1055, %v1116
      %1165 = vst.msk [vmem:[%s956 + $0x1e8] sm:$0xfe] %vm1053, %v1118
      %1166 = vst.msk [vmem:[%s956 + $0x1f8] sm:$0x1] %vm1055, %v1118
      %v1167 = vld [vmem:[%s5] sm:$0x1]
      %v1169 = vlaneseq
      %v1170 = vshrl.u32 %v1169, 7
      %v1171 = vsub.s32 0, %v1170
      %v1172 = vrot.slane %v1167, %v1171
      %v1174 = vld [vmem:[#allocation2] sm:$0xff]
      %v1175 = vld [vmem:[#allocation2 + $0x8] sm:$0xff]
      %v1176 = vld [vmem:[#allocation2 + $0x10] sm:$0x3]
      %v1177 = vld [vmem:[#allocation2 + $0x18] sm:$0x3]
      %v1178 = vld [vmem:[#allocation2 + $0x20] sm:$0xff]
      %v1179 = vld [vmem:[#allocation2 + $0x28] sm:$0xff]
      %v1180 = vld [vmem:[#allocation2 + $0x30] sm:$0x3]
      %v1181 = vld [vmem:[#allocation2 + $0x38] sm:$0x3]
      %v1182 = vld [vmem:[#allocation2 + $0x40] sm:$0xff]
      %v1183 = vld [vmem:[#allocation2 + $0x48] sm:$0xff]
      %v1184 = vld [vmem:[#allocation2 + $0x50] sm:$0x3]
      %v1185 = vld [vmem:[#allocation2 + $0x58] sm:$0x3]
      %v1186 = vld [vmem:[#allocation2 + $0x60] sm:$0xff]
      %v1187 = vld [vmem:[#allocation2 + $0x68] sm:$0xff]
      %v1188 = vld [vmem:[#allocation2 + $0x70] sm:$0x3]
      %v1189 = vld [vmem:[#allocation2 + $0x78] sm:$0x3]
      %v1190 = vld [vmem:[#allocation2 + $0x80] sm:$0xff]
      %v1191 = vld [vmem:[#allocation2 + $0x88] sm:$0xff]
      %v1192 = vld [vmem:[#allocation2 + $0x90] sm:$0x3]
      %v1193 = vld [vmem:[#allocation2 + $0x98] sm:$0x3]
      %v1194 = vld [vmem:[#allocation2 + $0xa0] sm:$0xff]
      %v1195 = vld [vmem:[#allocation2 + $0xa8] sm:$0xff]
      %v1196 = vld [vmem:[#allocation2 + $0xb0] sm:$0x3]
      %v1197 = vld [vmem:[#allocation2 + $0xb8] sm:$0x3]
      %v1198 = vld [vmem:[#allocation2 + $0xc0] sm:$0xff]
      %v1199 = vld [vmem:[#allocation2 + $0xc8] sm:$0xff]
      %v1200 = vld [vmem:[#allocation2 + $0xd0] sm:$0x3]
      %v1201 = vld [vmem:[#allocation2 + $0xd8] sm:$0x3]
      %v1202 = vld [vmem:[#allocation2 + $0xe0] sm:$0xff]
      %v1203 = vld [vmem:[#allocation2 + $0xe8] sm:$0xff]
      %v1204 = vld [vmem:[#allocation2 + $0xf0] sm:$0x3]
      %v1205 = vld [vmem:[#allocation2 + $0xf8] sm:$0x3]
      %v1206 = vld [vmem:[#allocation2 + $0x100] sm:$0xff]
      %v1207 = vld [vmem:[#allocation2 + $0x108] sm:$0xff]
      %v1208 = vld [vmem:[#allocation2 + $0x110] sm:$0x3]
      %v1209 = vld [vmem:[#allocation2 + $0x118] sm:$0x3]
      %v1210 = vld [vmem:[#allocation2 + $0x120] sm:$0xff]
      %v1211 = vld [vmem:[#allocation2 + $0x128] sm:$0xff]
      %v1212 = vld [vmem:[#allocation2 + $0x130] sm:$0x3]
      %v1213 = vld [vmem:[#allocation2 + $0x138] sm:$0x3]
      %v1214 = vld [vmem:[#allocation2 + $0x140] sm:$0xff]
      %v1215 = vld [vmem:[#allocation2 + $0x148] sm:$0xff]
      %v1216 = vld [vmem:[#allocation2 + $0x150] sm:$0x3]
      %v1217 = vld [vmem:[#allocation2 + $0x158] sm:$0x3]
      %v1218 = vld [vmem:[#allocation2 + $0x160] sm:$0xff]
      %v1219 = vld [vmem:[#allocation2 + $0x168] sm:$0xff]
      %v1220 = vld [vmem:[#allocation2 + $0x170] sm:$0x3]
      %v1221 = vld [vmem:[#allocation2 + $0x178] sm:$0x3]
      %v1222 = vld [vmem:[#allocation2 + $0x180] sm:$0xff]
      %v1223 = vld [vmem:[#allocation2 + $0x188] sm:$0xff]
      %v1224 = vld [vmem:[#allocation2 + $0x190] sm:$0x3]
      %v1225 = vld [vmem:[#allocation2 + $0x198] sm:$0x3]
      %v1226 = vld [vmem:[#allocation2 + $0x1a0] sm:$0xff]
      %v1227 = vld [vmem:[#allocation2 + $0x1a8] sm:$0xff]
      %v1228 = vld [vmem:[#allocation2 + $0x1b0] sm:$0x3]
      %v1229 = vld [vmem:[#allocation2 + $0x1b8] sm:$0x3]
      %v1230 = vld [vmem:[#allocation2 + $0x1c0] sm:$0xff]
      %v1231 = vld [vmem:[#allocation2 + $0x1c8] sm:$0xff]
      %v1232 = vld [vmem:[#allocation2 + $0x1d0] sm:$0x3]
      %v1233 = vld [vmem:[#allocation2 + $0x1d8] sm:$0x3]
      %v1234 = vld [vmem:[#allocation2 + $0x1e0] sm:$0xff]
      %v1235 = vld [vmem:[#allocation2 + $0x1e8] sm:$0xff]
      %v1236 = vld [vmem:[#allocation2 + $0x1f0] sm:$0x3]
      %v1237 = vld [vmem:[#allocation2 + $0x1f8] sm:$0x3]
      %v1238 = vld [vmem:[#allocation3] sm:$0xff]
      %v1239 = vld [vmem:[#allocation3 + $0x8] sm:$0xff]
      %v1240 = vld [vmem:[#allocation3 + $0x10] sm:$0x3]
      %v1241 = vld [vmem:[#allocation3 + $0x18] sm:$0x3]
      %v1242 = vld [vmem:[#allocation3 + $0x20] sm:$0xff]
      %v1243 = vld [vmem:[#allocation3 + $0x28] sm:$0xff]
      %v1244 = vld [vmem:[#allocation3 + $0x30] sm:$0x3]
      %v1245 = vld [vmem:[#allocation3 + $0x38] sm:$0x3]
      %v1246 = vld [vmem:[#allocation3 + $0x40] sm:$0xff]
      %v1247 = vld [vmem:[#allocation3 + $0x48] sm:$0xff]
      %v1248 = vld [vmem:[#allocation3 + $0x50] sm:$0x3]
      %v1249 = vld [vmem:[#allocation3 + $0x58] sm:$0x3]
      %v1250 = vld [vmem:[#allocation3 + $0x60] sm:$0xff]
      %v1251 = vld [vmem:[#allocation3 + $0x68] sm:$0xff]
      %v1252 = vld [vmem:[#allocation3 + $0x70] sm:$0x3]
      %v1253 = vld [vmem:[#allocation3 + $0x78] sm:$0x3]
      %v1254 = vld [vmem:[#allocation3 + $0x80] sm:$0xff]
      %v1255 = vld [vmem:[#allocation3 + $0x88] sm:$0xff]
      %v1256 = vld [vmem:[#allocation3 + $0x90] sm:$0x3]
      %v1257 = vld [vmem:[#allocation3 + $0x98] sm:$0x3]
      %v1258 = vld [vmem:[#allocation3 + $0xa0] sm:$0xff]
      %v1259 = vld [vmem:[#allocation3 + $0xa8] sm:$0xff]
      %v1260 = vld [vmem:[#allocation3 + $0xb0] sm:$0x3]
      %v1261 = vld [vmem:[#allocation3 + $0xb8] sm:$0x3]
      %v1262 = vld [vmem:[#allocation3 + $0xc0] sm:$0xff]
      %v1263 = vld [vmem:[#allocation3 + $0xc8] sm:$0xff]
      %v1264 = vld [vmem:[#allocation3 + $0xd0] sm:$0x3]
      %v1265 = vld [vmem:[#allocation3 + $0xd8] sm:$0x3]
      %v1266 = vld [vmem:[#allocation3 + $0xe0] sm:$0xff]
      %v1267 = vld [vmem:[#allocation3 + $0xe8] sm:$0xff]
      %v1268 = vld [vmem:[#allocation3 + $0xf0] sm:$0x3]
      %v1269 = vld [vmem:[#allocation3 + $0xf8] sm:$0x3]
      %v1270 = vld [vmem:[#allocation3 + $0x100] sm:$0xff]
      %v1271 = vld [vmem:[#allocation3 + $0x108] sm:$0xff]
      %v1272 = vld [vmem:[#allocation3 + $0x110] sm:$0x3]
      %v1273 = vld [vmem:[#allocation3 + $0x118] sm:$0x3]
      %v1274 = vld [vmem:[#allocation3 + $0x120] sm:$0xff]
      %v1275 = vld [vmem:[#allocation3 + $0x128] sm:$0xff]
      %v1276 = vld [vmem:[#allocation3 + $0x130] sm:$0x3]
      %v1277 = vld [vmem:[#allocation3 + $0x138] sm:$0x3]
      %v1278 = vld [vmem:[#allocation3 + $0x140] sm:$0xff]
      %v1279 = vld [vmem:[#allocation3 + $0x148] sm:$0xff]
      %v1280 = vld [vmem:[#allocation3 + $0x150] sm:$0x3]
      %v1281 = vld [vmem:[#allocation3 + $0x158] sm:$0x3]
      %v1282 = vld [vmem:[#allocation3 + $0x160] sm:$0xff]
      %v1283 = vld [vmem:[#allocation3 + $0x168] sm:$0xff]
      %v1284 = vld [vmem:[#allocation3 + $0x170] sm:$0x3]
      %v1285 = vld [vmem:[#allocation3 + $0x178] sm:$0x3]
      %v1286 = vld [vmem:[#allocation3 + $0x180] sm:$0xff]
      %v1287 = vld [vmem:[#allocation3 + $0x188] sm:$0xff]
      %v1288 = vld [vmem:[#allocation3 + $0x190] sm:$0x3]
      %v1289 = vld [vmem:[#allocation3 + $0x198] sm:$0x3]
      %v1290 = vld [vmem:[#allocation3 + $0x1a0] sm:$0xff]
      %v1291 = vld [vmem:[#allocation3 + $0x1a8] sm:$0xff]
      %v1292 = vld [vmem:[#allocation3 + $0x1b0] sm:$0x3]
      %v1293 = vld [vmem:[#allocation3 + $0x1b8] sm:$0x3]
      %v1294 = vld [vmem:[#allocation3 + $0x1c0] sm:$0xff]
      %v1295 = vld [vmem:[#allocation3 + $0x1c8] sm:$0xff]
      %v1296 = vld [vmem:[#allocation3 + $0x1d0] sm:$0x3]
      %v1297 = vld [vmem:[#allocation3 + $0x1d8] sm:$0x3]
      %v1298 = vld [vmem:[#allocation3 + $0x1e0] sm:$0xff]
      %v1299 = vld [vmem:[#allocation3 + $0x1e8] sm:$0xff]
      %v1300 = vld [vmem:[#allocation3 + $0x1f0] sm:$0x3]
      %v1301 = vld [vmem:[#allocation3 + $0x1f8] sm:$0x3]
      %v1302 = vld [vmem:[%s4] sm:$0xff]
      %v1303 = vld [vmem:[%s4 + $0x8] sm:$0xff]
      %v1304 = vld [vmem:[%s4 + $0x10] sm:$0xff]
      %v1305 = vld [vmem:[%s4 + $0x18] sm:$0xff]
      %v1306 = vld [vmem:[%s4 + $0x20] sm:$0xff]
      %v1307 = vld [vmem:[%s4 + $0x28] sm:$0xff]
      %v1308 = vld [vmem:[%s4 + $0x30] sm:$0xff]
      %v1309 = vld [vmem:[%s4 + $0x38] sm:$0xff]
      %v1310 = vld [vmem:[%s4 + $0x40] sm:$0xff]
      %v1311 = vld [vmem:[%s4 + $0x48] sm:$0xff]
      %v1312 = vld [vmem:[%s4 + $0x50] sm:$0xff]
      %v1313 = vld [vmem:[%s4 + $0x58] sm:$0xff]
      %v1314 = vld [vmem:[%s4 + $0x60] sm:$0xff]
      %v1315 = vld [vmem:[%s4 + $0x68] sm:$0xff]
      %v1316 = vld [vmem:[%s4 + $0x70] sm:$0xff]
      %v1317 = vld [vmem:[%s4 + $0x78] sm:$0xff]
      %v1318 = vld [vmem:[%s4 + $0x80] sm:$0xff]
      %v1319 = vld [vmem:[%s4 + $0x88] sm:$0xff]
      %v1320 = vld [vmem:[%s4 + $0x90] sm:$0xff]
      %v1321 = vld [vmem:[%s4 + $0x98] sm:$0xff]
      %v1322 = vld [vmem:[%s4 + $0xa0] sm:$0xff]
      %v1323 = vld [vmem:[%s4 + $0xa8] sm:$0xff]
      %v1324 = vld [vmem:[%s4 + $0xb0] sm:$0xff]
      %v1325 = vld [vmem:[%s4 + $0xb8] sm:$0xff]
      %v1326 = vld [vmem:[%s4 + $0xc0] sm:$0xff]
      %v1327 = vld [vmem:[%s4 + $0xc8] sm:$0xff]
      %v1328 = vld [vmem:[%s4 + $0xd0] sm:$0xff]
      %v1329 = vld [vmem:[%s4 + $0xd8] sm:$0xff]
      %v1330 = vld [vmem:[%s4 + $0xe0] sm:$0xff]
      %v1331 = vld [vmem:[%s4 + $0xe8] sm:$0xff]
      %v1332 = vld [vmem:[%s4 + $0xf0] sm:$0xff]
      %v1333 = vld [vmem:[%s4 + $0xf8] sm:$0xff]
      %s1334 = scalar_lea.vmem %s4, 256
      %v1335 = vld [vmem:[%s1334] sm:$0xff]
      %v1336 = vld [vmem:[%s1334 + $0x8] sm:$0xff]
      %v1337 = vld [vmem:[%s1334 + $0x10] sm:$0xff]
      %v1338 = vld [vmem:[%s1334 + $0x18] sm:$0xff]
      %v1339 = vld [vmem:[%s1334 + $0x20] sm:$0xff]
      %v1340 = vld [vmem:[%s1334 + $0x28] sm:$0xff]
      %v1341 = vld [vmem:[%s1334 + $0x30] sm:$0xff]
      %v1342 = vld [vmem:[%s1334 + $0x38] sm:$0xff]
      %v1343 = vld [vmem:[%s1334 + $0x40] sm:$0xff]
      %v1344 = vld [vmem:[%s1334 + $0x48] sm:$0xff]
      %v1345 = vld [vmem:[%s1334 + $0x50] sm:$0xff]
      %v1346 = vld [vmem:[%s1334 + $0x58] sm:$0xff]
      %v1347 = vld [vmem:[%s1334 + $0x60] sm:$0xff]
      %v1348 = vld [vmem:[%s1334 + $0x68] sm:$0xff]
      %v1349 = vld [vmem:[%s1334 + $0x70] sm:$0xff]
      %v1350 = vld [vmem:[%s1334 + $0x78] sm:$0xff]
      %v1351 = vld [vmem:[%s1334 + $0x80] sm:$0xff]
      %v1352 = vld [vmem:[%s1334 + $0x88] sm:$0xff]
      %v1353 = vld [vmem:[%s1334 + $0x90] sm:$0xff]
      %v1354 = vld [vmem:[%s1334 + $0x98] sm:$0xff]
      %v1355 = vld [vmem:[%s1334 + $0xa0] sm:$0xff]
      %v1356 = vld [vmem:[%s1334 + $0xa8] sm:$0xff]
      %v1357 = vld [vmem:[%s1334 + $0xb0] sm:$0xff]
      %v1358 = vld [vmem:[%s1334 + $0xb8] sm:$0xff]
      %v1359 = vld [vmem:[%s1334 + $0xc0] sm:$0xff]
      %v1360 = vld [vmem:[%s1334 + $0xc8] sm:$0xff]
      %v1361 = vld [vmem:[%s1334 + $0xd0] sm:$0xff]
      %v1362 = vld [vmem:[%s1334 + $0xd8] sm:$0xff]
      %v1363 = vld [vmem:[%s1334 + $0xe0] sm:$0xff]
      %v1364 = vld [vmem:[%s1334 + $0xe8] sm:$0xff]
      %v1365 = vld [vmem:[%s1334 + $0xf0] sm:$0xff]
      %v1366 = vld [vmem:[%s1334 + $0xf8] sm:$0xff]
      %s1367 = scalar_lea.vmem %s4, 512
      %v1368 = vld [vmem:[%s1367] sm:$0xff]
      %v1369 = vld [vmem:[%s1367 + $0x8] sm:$0xff]
      %v1370 = vld [vmem:[%s1367 + $0x10] sm:$0xff]
      %v1371 = vld [vmem:[%s1367 + $0x18] sm:$0xff]
      %v1372 = vld [vmem:[%s1367 + $0x20] sm:$0xff]
      %v1373 = vld [vmem:[%s1367 + $0x28] sm:$0xff]
      %v1374 = vld [vmem:[%s1367 + $0x30] sm:$0xff]
      %v1375 = vld [vmem:[%s1367 + $0x38] sm:$0xff]
      %v1376 = vld [vmem:[%s1367 + $0x40] sm:$0xff]
      %v1377 = vld [vmem:[%s1367 + $0x48] sm:$0xff]
      %v1378 = vld [vmem:[%s1367 + $0x50] sm:$0xff]
      %v1379 = vld [vmem:[%s1367 + $0x58] sm:$0xff]
      %v1380 = vld [vmem:[%s1367 + $0x60] sm:$0xff]
      %v1381 = vld [vmem:[%s1367 + $0x68] sm:$0xff]
      %v1382 = vld [vmem:[%s1367 + $0x70] sm:$0xff]
      %v1383 = vld [vmem:[%s1367 + $0x78] sm:$0xff]
      %v1384 = vld [vmem:[%s1367 + $0x80] sm:$0xff]
      %v1385 = vld [vmem:[%s1367 + $0x88] sm:$0xff]
      %v1386 = vld [vmem:[%s1367 + $0x90] sm:$0xff]
      %v1387 = vld [vmem:[%s1367 + $0x98] sm:$0xff]
      %v1388 = vld [vmem:[%s1367 + $0xa0] sm:$0xff]
      %v1389 = vld [vmem:[%s1367 + $0xa8] sm:$0xff]
      %v1390 = vld [vmem:[%s1367 + $0xb0] sm:$0xff]
      %v1391 = vld [vmem:[%s1367 + $0xb8] sm:$0xff]
      %v1392 = vld [vmem:[%s1367 + $0xc0] sm:$0xff]
      %v1393 = vld [vmem:[%s1367 + $0xc8] sm:$0xff]
      %v1394 = vld [vmem:[%s1367 + $0xd0] sm:$0xff]
      %v1395 = vld [vmem:[%s1367 + $0xd8] sm:$0xff]
      %v1396 = vld [vmem:[%s1367 + $0xe0] sm:$0xff]
      %v1397 = vld [vmem:[%s1367 + $0xe8] sm:$0xff]
      %v1398 = vld [vmem:[%s1367 + $0xf0] sm:$0xff]
      %v1399 = vld [vmem:[%s1367 + $0xf8] sm:$0xff]
      %1400 = vmatprep.subr.mxu0 0.0
      %1401 = vmatpush1.msra.mxu0 %v1302
      %1402 = vmatprep.subr.mxu0 0.0
      %1403 = vmatpush1.msra.mxu0 %v1303
      %1404 = vmatprep.subr.mxu0 0.0
      %1405 = vmatpush1.msra.mxu0 %v1304
      %1406 = vmatprep.subr.mxu0 0.0
      %1407 = vmatpush1.msra.mxu0 %v1305
      %1408 = vmatprep.subr.mxu0 0.0
      %1409 = vmatpush1.msra.mxu0 %v1306
      %1410 = vmatprep.subr.mxu0 0.0
      %1411 = vmatpush1.msra.mxu0 %v1307
      %1412 = vmatprep.subr.mxu0 0.0
      %1413 = vmatpush1.msra.mxu0 %v1308
      %1414 = vmatprep.subr.mxu0 0.0
      %1415 = vmatpush1.msra.mxu0 %v1309
      %1416 = vmatprep.subr.mxu0 0.0
      %1417 = vmatpush1.msra.mxu0 %v1310
      %1418 = vmatprep.subr.mxu0 0.0
      %1419 = vmatpush1.msra.mxu0 %v1311
      %1420 = vmatprep.subr.mxu0 0.0
      %1421 = vmatpush1.msra.mxu0 %v1312
      %1422 = vmatprep.subr.mxu0 0.0
      %1423 = vmatpush1.msra.mxu0 %v1313
      %1424 = vmatprep.subr.mxu0 0.0
      %1425 = vmatpush1.msra.mxu0 %v1314
      %1426 = vmatprep.subr.mxu0 0.0
      %1427 = vmatpush1.msra.mxu0 %v1315
      %1428 = vmatprep.subr.mxu0 0.0
      %1429 = vmatpush1.msra.mxu0 %v1316
      %1430 = vmatprep.subr.mxu0 0.0
      %1431 = vmatpush1.msra.mxu0 %v1317
      %1432 = vmatprep.subr.mxu0 0.0
      %1433 = vmatpush1.msra.mxu0 %v1318
      %1434 = vmatprep.subr.mxu0 0.0
      %1435 = vmatpush1.msra.mxu0 %v1319
      %1436 = vmatprep.subr.mxu0 0.0
      %1437 = vmatpush1.msra.mxu0 %v1320
      %1438 = vmatprep.subr.mxu0 0.0
      %1439 = vmatpush1.msra.mxu0 %v1321
      %1440 = vmatprep.subr.mxu0 0.0
      %1441 = vmatpush1.msra.mxu0 %v1322
      %1442 = vmatprep.subr.mxu0 0.0
      %1443 = vmatpush1.msra.mxu0 %v1323
      %1444 = vmatprep.subr.mxu0 0.0
      %1445 = vmatpush1.msra.mxu0 %v1324
      %1446 = vmatprep.subr.mxu0 0.0
      %1447 = vmatpush1.msra.mxu0 %v1325
      %1448 = vmatprep.subr.mxu0 0.0
      %1449 = vmatpush1.msra.mxu0 %v1326
      %1450 = vmatprep.subr.mxu0 0.0
      %1451 = vmatpush1.msra.mxu0 %v1327
      %1452 = vmatprep.subr.mxu0 0.0
      %1453 = vmatpush1.msra.mxu0 %v1328
      %1454 = vmatprep.subr.mxu0 0.0
      %1455 = vmatpush1.msra.mxu0 %v1329
      %1456 = vmatprep.subr.mxu0 0.0
      %1457 = vmatpush1.msra.mxu0 %v1330
      %1458 = vmatprep.subr.mxu0 0.0
      %1459 = vmatpush1.msra.mxu0 %v1331
      %1460 = vmatprep.subr.mxu0 0.0
      %1461 = vmatpush1.msra.mxu0 %v1332
      %1462 = vmatprep.subr.mxu0 0.0
      %1463 = vmatpush1.msra.mxu0 %v1333
      %1464 = vmatprep.mubr.f32.mxu0 %v1239
      %1465 = vmatmul.mubr.f32.gmra.mrb[0].mxu0 %v1238
      %v1466 = vpop.f32.mrb[0].mxu0
      %v1467 = vadd.f32 0.0, %v1466
      %v1468 = vpop.f32.mrb[0].mxu0
      %1469 = vmatprep.mubr.f32.mxu0 %v1243
      %1470 = vmatmul.mubr.f32.gmra.mrb[0].mxu0 %v1242
      %v1471 = vpop.f32.mrb[0].mxu0
      %v1472 = vadd.f32 0.0, %v1471
      %v1473 = vpop.f32.mrb[0].mxu0
      %1474 = vmatprep.mubr.f32.mxu0 %v1247
      %1475 = vmatmul.mubr.f32.gmra.mrb[0].mxu0 %v1246
      %v1476 = vpop.f32.mrb[0].mxu0
      %v1477 = vadd.f32 0.0, %v1476
      %v1478 = vpop.f32.mrb[0].mxu0
      %1479 = vmatprep.mubr.f32.mxu0 %v1251
      %1480 = vmatmul.mubr.f32.gmra.mrb[0].mxu0 %v1250
      %v1481 = vpop.f32.mrb[0].mxu0
      %v1482 = vadd.f32 0.0, %v1481
      %v1483 = vpop.f32.mrb[0].mxu0
      %1484 = vmatprep.mubr.f32.mxu0 %v1255
      %1485 = vmatmul.mubr.f32.gmra.mrb[0].mxu0 %v1254
      %v1486 = vpop.f32.mrb[0].mxu0
      %v1487 = vadd.f32 0.0, %v1486
      %v1488 = vpop.f32.mrb[0].mxu0
      %1489 = vmatprep.mubr.f32.mxu0 %v1259
      %1490 = vmatmul.mubr.f32.gmra.mrb[0].mxu0 %v1258
      %v1491 = vpop.f32.mrb[0].mxu0
      %v1492 = vadd.f32 0.0, %v1491
      %v1493 = vpop.f32.mrb[0].mxu0
      %1494 = vmatprep.mubr.f32.mxu0 %v1263
      %1495 = vmatmul.mubr.f32.gmra.mrb[0].mxu0 %v1262
      %v1496 = vpop.f32.mrb[0].mxu0
      %v1497 = vadd.f32 0.0, %v1496
      %v1498 = vpop.f32.mrb[0].mxu0
      %1499 = vmatprep.mubr.f32.mxu0 %v1267
      %1500 = vmatmul.mubr.f32.gmra.mrb[0].mxu0 %v1266
      %v1501 = vpop.f32.mrb[0].mxu0
      %v1502 = vadd.f32 0.0, %v1501
      %v1503 = vpop.f32.mrb[0].mxu0
      %1504 = vmatprep.mubr.f32.mxu0 %v1271
      %1505 = vmatmul.mubr.f32.gmra.mrb[0].mxu0 %v1270
      %v1506 = vpop.f32.mrb[0].mxu0
      %v1507 = vadd.f32 0.0, %v1506
      %v1508 = vpop.f32.mrb[0].mxu0
      %1509 = vmatprep.mubr.f32.mxu0 %v1275
      %1510 = vmatmul.mubr.f32.gmra.mrb[0].mxu0 %v1274
      %v1511 = vpop.f32.mrb[0].mxu0
      %v1512 = vadd.f32 0.0, %v1511
      %v1513 = vpop.f32.mrb[0].mxu0
      %1514 = vmatprep.mubr.f32.mxu0 %v1279
      %1515 = vmatmul.mubr.f32.gmra.mrb[0].mxu0 %v1278
      %v1516 = vpop.f32.mrb[0].mxu0
      %v1517 = vadd.f32 0.0, %v1516
      %v1518 = vpop.f32.mrb[0].mxu0
      %1519 = vmatprep.mubr.f32.mxu0 %v1283
      %1520 = vmatmul.mubr.f32.gmra.mrb[0].mxu0 %v1282
      %v1521 = vpop.f32.mrb[0].mxu0
      %v1522 = vadd.f32 0.0, %v1521
      %v1523 = vpop.f32.mrb[0].mxu0
      %1524 = vmatprep.mubr.f32.mxu0 %v1287
      %1525 = vmatmul.mubr.f32.gmra.mrb[0].mxu0 %v1286
      %v1526 = vpop.f32.mrb[0].mxu0
      %v1527 = vadd.f32 0.0, %v1526
      %v1528 = vpop.f32.mrb[0].mxu0
      %1529 = vmatprep.mubr.f32.mxu0 %v1291
      %1530 = vmatmul.mubr.f32.gmra.mrb[0].mxu0 %v1290
      %v1531 = vpop.f32.mrb[0].mxu0
      %v1532 = vadd.f32 0.0, %v1531
      %v1533 = vpop.f32.mrb[0].mxu0
      %1534 = vmatprep.mubr.f32.mxu0 %v1295
      %1535 = vmatmul.mubr.f32.gmra.mrb[0].mxu0 %v1294
      %v1536 = vpop.f32.mrb[0].mxu0
      %v1537 = vadd.f32 0.0, %v1536
      %v1538 = vpop.f32.mrb[0].mxu0
      %1539 = vmatprep.mubr.f32.mxu0 %v1299
      %1540 = vmatmul.mubr.f32.gmra.mrb[0].mxu0 %v1298
      %v1541 = vpop.f32.mrb[0].mxu0
      %v1542 = vadd.f32 0.0, %v1541
      %v1543 = vpop.f32.mrb[0].mxu0
      %1544 = vdwg.mxu0
      %v1545 = vadd.f32 %v1172, %v1467
      %v1546 = vadd.f32 %v1172, %v1472
      %v1547 = vadd.f32 %v1172, %v1477
      %v1548 = vadd.f32 %v1172, %v1482
      %v1549 = vadd.f32 %v1172, %v1487
      %v1550 = vadd.f32 %v1172, %v1492
      %v1551 = vadd.f32 %v1172, %v1497
      %v1552 = vadd.f32 %v1172, %v1502
      %v1553 = vadd.f32 %v1172, %v1507
      %v1554 = vadd.f32 %v1172, %v1512
      %v1555 = vadd.f32 %v1172, %v1517
      %v1556 = vadd.f32 %v1172, %v1522
      %v1557 = vadd.f32 %v1172, %v1527
      %v1558 = vadd.f32 %v1172, %v1532
      %v1559 = vadd.f32 %v1172, %v1537
      %v1560 = vadd.f32 %v1172, %v1542
      %vm1625 = vcmask 1046528
      %v1626 = vrot.slane %v1174, 1
      %v1627 = vrot.slane %v1176, 1
      %v1628 = vsel %vm1625, %v1626, %v1627
      %v1629 = vrot.slane %v1175, 1
      %v1630 = vrot.slane %v1177, 1
      %v1631 = vsel %vm1625, %v1629, %v1630
      %v1632 = vrot.slane %v1178, 1
      %v1633 = vrot.slane %v1180, 1
      %v1634 = vsel %vm1625, %v1632, %v1633
      %v1635 = vrot.slane %v1179, 1
      %v1636 = vrot.slane %v1181, 1
      %v1637 = vsel %vm1625, %v1635, %v1636
      %v1638 = vrot.slane %v1182, 1
      %v1639 = vrot.slane %v1184, 1
      %v1640 = vsel %vm1625, %v1638, %v1639
      %v1641 = vrot.slane %v1183, 1
      %v1642 = vrot.slane %v1185, 1
      %v1643 = vsel %vm1625, %v1641, %v1642
      %v1644 = vrot.slane %v1186, 1
      %v1645 = vrot.slane %v1188, 1
      %v1646 = vsel %vm1625, %v1644, %v1645
      %v1647 = vrot.slane %v1187, 1
      %v1648 = vrot.slane %v1189, 1
      %v1649 = vsel %vm1625, %v1647, %v1648
      %v1650 = vrot.slane %v1190, 1
      %v1651 = vrot.slane %v1192, 1
      %v1652 = vsel %vm1625, %v1650, %v1651
      %v1653 = vrot.slane %v1191, 1
      %v1654 = vrot.slane %v1193, 1
      %v1655 = vsel %vm1625, %v1653, %v1654
      %v1656 = vrot.slane %v1194, 1
      %v1657 = vrot.slane %v1196, 1
      %v1658 = vsel %vm1625, %v1656, %v1657
      %v1659 = vrot.slane %v1195, 1
      %v1660 = vrot.slane %v1197, 1
      %v1661 = vsel %vm1625, %v1659, %v1660
      %v1662 = vrot.slane %v1198, 1
      %v1663 = vrot.slane %v1200, 1
      %v1664 = vsel %vm1625, %v1662, %v1663
      %v1665 = vrot.slane %v1199, 1
      %v1666 = vrot.slane %v1201, 1
      %v1667 = vsel %vm1625, %v1665, %v1666
      %v1668 = vrot.slane %v1202, 1
      %v1669 = vrot.slane %v1204, 1
      %v1670 = vsel %vm1625, %v1668, %v1669
      %v1671 = vrot.slane %v1203, 1
      %v1672 = vrot.slane %v1205, 1
      %v1673 = vsel %vm1625, %v1671, %v1672
      %v1674 = vrot.slane %v1206, 1
      %v1675 = vrot.slane %v1208, 1
      %v1676 = vsel %vm1625, %v1674, %v1675
      %v1677 = vrot.slane %v1207, 1
      %v1678 = vrot.slane %v1209, 1
      %v1679 = vsel %vm1625, %v1677, %v1678
      %v1680 = vrot.slane %v1210, 1
      %v1681 = vrot.slane %v1212, 1
      %v1682 = vsel %vm1625, %v1680, %v1681
      %v1683 = vrot.slane %v1211, 1
      %v1684 = vrot.slane %v1213, 1
      %v1685 = vsel %vm1625, %v1683, %v1684
      %v1686 = vrot.slane %v1214, 1
      %v1687 = vrot.slane %v1216, 1
      %v1688 = vsel %vm1625, %v1686, %v1687
      %v1689 = vrot.slane %v1215, 1
      %v1690 = vrot.slane %v1217, 1
      %v1691 = vsel %vm1625, %v1689, %v1690
      %v1692 = vrot.slane %v1218, 1
      %v1693 = vrot.slane %v1220, 1
      %v1694 = vsel %vm1625, %v1692, %v1693
      %v1695 = vrot.slane %v1219, 1
      %v1696 = vrot.slane %v1221, 1
      %v1697 = vsel %vm1625, %v1695, %v1696
      %v1698 = vrot.slane %v1222, 1
      %v1699 = vrot.slane %v1224, 1
      %v1700 = vsel %vm1625, %v1698, %v1699
      %v1701 = vrot.slane %v1223, 1
      %v1702 = vrot.slane %v1225, 1
      %v1703 = vsel %vm1625, %v1701, %v1702
      %v1704 = vrot.slane %v1226, 1
      %v1705 = vrot.slane %v1228, 1
      %v1706 = vsel %vm1625, %v1704, %v1705
      %v1707 = vrot.slane %v1227, 1
      %v1708 = vrot.slane %v1229, 1
      %v1709 = vsel %vm1625, %v1707, %v1708
      %v1710 = vrot.slane %v1230, 1
      %v1711 = vrot.slane %v1232, 1
      %v1712 = vsel %vm1625, %v1710, %v1711
      %v1713 = vrot.slane %v1231, 1
      %v1714 = vrot.slane %v1233, 1
      %v1715 = vsel %vm1625, %v1713, %v1714
      %v1716 = vrot.slane %v1234, 1
      %v1717 = vrot.slane %v1236, 1
      %v1718 = vsel %vm1625, %v1716, %v1717
      %v1719 = vrot.slane %v1235, 1
      %v1720 = vrot.slane %v1237, 1
      %v1721 = vsel %vm1625, %v1719, %v1720
      %1754 = vmatprep.subr.mxu0 0.0
      %1755 = vmatpush1.msra.mxu0 %v1335
      %1756 = vmatprep.subr.mxu0 0.0
      %1757 = vmatpush1.msra.mxu0 %v1336
      %1758 = vmatprep.subr.mxu0 0.0
      %1759 = vmatpush1.msra.mxu0 %v1337
      %1760 = vmatprep.subr.mxu0 0.0
      %1761 = vmatpush1.msra.mxu0 %v1338
      %1762 = vmatprep.subr.mxu0 0.0
      %1763 = vmatpush1.msra.mxu0 %v1339
      %1764 = vmatprep.subr.mxu0 0.0
      %1765 = vmatpush1.msra.mxu0 %v1340
      %1766 = vmatprep.subr.mxu0 0.0
      %1767 = vmatpush1.msra.mxu0 %v1341
      %1768 = vmatprep.subr.mxu0 0.0
      %1769 = vmatpush1.msra.mxu0 %v1342
      %1770 = vmatprep.subr.mxu0 0.0
      %1771 = vmatpush1.msra.mxu0 %v1343
      %1772 = vmatprep.subr.mxu0 0.0
      %1773 = vmatpush1.msra.mxu0 %v1344
      %1774 = vmatprep.subr.mxu0 0.0
      %1775 = vmatpush1.msra.mxu0 %v1345
      %1776 = vmatprep.subr.mxu0 0.0
      %1777 = vmatpush1.msra.mxu0 %v1346
      %1778 = vmatprep.subr.mxu0 0.0
      %1779 = vmatpush1.msra.mxu0 %v1347
      %1780 = vmatprep.subr.mxu0 0.0
      %1781 = vmatpush1.msra.mxu0 %v1348
      %1782 = vmatprep.subr.mxu0 0.0
      %1783 = vmatpush1.msra.mxu0 %v1349
      %1784 = vmatprep.subr.mxu0 0.0
      %1785 = vmatpush1.msra.mxu0 %v1350
      %1786 = vmatprep.subr.mxu0 0.0
      %1787 = vmatpush1.msra.mxu0 %v1351
      %1788 = vmatprep.subr.mxu0 0.0
      %1789 = vmatpush1.msra.mxu0 %v1352
      %1790 = vmatprep.subr.mxu0 0.0
      %1791 = vmatpush1.msra.mxu0 %v1353
      %1792 = vmatprep.subr.mxu0 0.0
      %1793 = vmatpush1.msra.mxu0 %v1354
      %1794 = vmatprep.subr.mxu0 0.0
      %1795 = vmatpush1.msra.mxu0 %v1355
      %1796 = vmatprep.subr.mxu0 0.0
      %1797 = vmatpush1.msra.mxu0 %v1356
      %1798 = vmatprep.subr.mxu0 0.0
      %1799 = vmatpush1.msra.mxu0 %v1357
      %1800 = vmatprep.subr.mxu0 0.0
      %1801 = vmatpush1.msra.mxu0 %v1358
      %1802 = vmatprep.subr.mxu0 0.0
      %1803 = vmatpush1.msra.mxu0 %v1359
      %1804 = vmatprep.subr.mxu0 0.0
      %1805 = vmatpush1.msra.mxu0 %v1360
      %1806 = vmatprep.subr.mxu0 0.0
      %1807 = vmatpush1.msra.mxu0 %v1361
      %1808 = vmatprep.subr.mxu0 0.0
      %1809 = vmatpush1.msra.mxu0 %v1362
      %1810 = vmatprep.subr.mxu0 0.0
      %1811 = vmatpush1.msra.mxu0 %v1363
      %1812 = vmatprep.subr.mxu0 0.0
      %1813 = vmatpush1.msra.mxu0 %v1364
      %1814 = vmatprep.subr.mxu0 0.0
      %1815 = vmatpush1.msra.mxu0 %v1365
      %1816 = vmatprep.subr.mxu0 0.0
      %1817 = vmatpush1.msra.mxu0 %v1366
      %1818 = vmatprep.mubr.f32.mxu0 %v1631
      %1819 = vmatmul.mubr.f32.gmra.mrb[0].mxu0 %v1628
      %v1820 = vpop.f32.mrb[0].mxu0
      %v1821 = vadd.f32 0.0, %v1820
      %v1822 = vpop.f32.mrb[0].mxu0
      %1823 = vmatprep.mubr.f32.mxu0 %v1637
      %1824 = vmatmul.mubr.f32.gmra.mrb[0].mxu0 %v1634
      %v1825 = vpop.f32.mrb[0].mxu0
      %v1826 = vadd.f32 0.0, %v1825
      %v1827 = vpop.f32.mrb[0].mxu0
      %1828 = vmatprep.mubr.f32.mxu0 %v1643
      %1829 = vmatmul.mubr.f32.gmra.mrb[0].mxu0 %v1640
      %v1830 = vpop.f32.mrb[0].mxu0
      %v1831 = vadd.f32 0.0, %v1830
      %v1832 = vpop.f32.mrb[0].mxu0
      %1833 = vmatprep.mubr.f32.mxu0 %v1649
      %1834 = vmatmul.mubr.f32.gmra.mrb[0].mxu0 %v1646
      %v1835 = vpop.f32.mrb[0].mxu0
      %v1836 = vadd.f32 0.0, %v1835
      %v1837 = vpop.f32.mrb[0].mxu0
      %1838 = vmatprep.mubr.f32.mxu0 %v1655
      %1839 = vmatmul.mubr.f32.gmra.mrb[0].mxu0 %v1652
      %v1840 = vpop.f32.mrb[0].mxu0
      %v1841 = vadd.f32 0.0, %v1840
      %v1842 = vpop.f32.mrb[0].mxu0
      %1843 = vmatprep.mubr.f32.mxu0 %v1661
      %1844 = vmatmul.mubr.f32.gmra.mrb[0].mxu0 %v1658
      %v1845 = vpop.f32.mrb[0].mxu0
      %v1846 = vadd.f32 0.0, %v1845
      %v1847 = vpop.f32.mrb[0].mxu0
      %1848 = vmatprep.mubr.f32.mxu0 %v1667
      %1849 = vmatmul.mubr.f32.gmra.mrb[0].mxu0 %v1664
      %v1850 = vpop.f32.mrb[0].mxu0
      %v1851 = vadd.f32 0.0, %v1850
      %v1852 = vpop.f32.mrb[0].mxu0
      %1853 = vmatprep.mubr.f32.mxu0 %v1673
      %1854 = vmatmul.mubr.f32.gmra.mrb[0].mxu0 %v1670
      %v1855 = vpop.f32.mrb[0].mxu0
      %v1856 = vadd.f32 0.0, %v1855
      %v1857 = vpop.f32.mrb[0].mxu0
      %1858 = vmatprep.mubr.f32.mxu0 %v1679
      %1859 = vmatmul.mubr.f32.gmra.mrb[0].mxu0 %v1676
      %v1860 = vpop.f32.mrb[0].mxu0
      %v1861 = vadd.f32 0.0, %v1860
      %v1862 = vpop.f32.mrb[0].mxu0
      %1863 = vmatprep.mubr.f32.mxu0 %v1685
      %1864 = vmatmul.mubr.f32.gmra.mrb[0].mxu0 %v1682
      %v1865 = vpop.f32.mrb[0].mxu0
      %v1866 = vadd.f32 0.0, %v1865
      %v1867 = vpop.f32.mrb[0].mxu0
      %1868 = vmatprep.mubr.f32.mxu0 %v1691
      %1869 = vmatmul.mubr.f32.gmra.mrb[0].mxu0 %v1688
      %v1870 = vpop.f32.mrb[0].mxu0
      %v1871 = vadd.f32 0.0, %v1870
      %v1872 = vpop.f32.mrb[0].mxu0
      %1873 = vmatprep.mubr.f32.mxu0 %v1697
      %1874 = vmatmul.mubr.f32.gmra.mrb[0].mxu0 %v1694
      %v1875 = vpop.f32.mrb[0].mxu0
      %v1876 = vadd.f32 0.0, %v1875
      %v1877 = vpop.f32.mrb[0].mxu0
      %1878 = vmatprep.mubr.f32.mxu0 %v1703
      %1879 = vmatmul.mubr.f32.gmra.mrb[0].mxu0 %v1700
      %v1880 = vpop.f32.mrb[0].mxu0
      %v1881 = vadd.f32 0.0, %v1880
      %v1882 = vpop.f32.mrb[0].mxu0
      %1883 = vmatprep.mubr.f32.mxu0 %v1709
      %1884 = vmatmul.mubr.f32.gmra.mrb[0].mxu0 %v1706
      %v1885 = vpop.f32.mrb[0].mxu0
      %v1886 = vadd.f32 0.0, %v1885
      %v1887 = vpop.f32.mrb[0].mxu0
      %1888 = vmatprep.mubr.f32.mxu0 %v1715
      %1889 = vmatmul.mubr.f32.gmra.mrb[0].mxu0 %v1712
      %v1890 = vpop.f32.mrb[0].mxu0
      %v1891 = vadd.f32 0.0, %v1890
      %v1892 = vpop.f32.mrb[0].mxu0
      %1893 = vmatprep.mubr.f32.mxu0 %v1721
      %1894 = vmatmul.mubr.f32.gmra.mrb[0].mxu0 %v1718
      %v1895 = vpop.f32.mrb[0].mxu0
      %v1896 = vadd.f32 0.0, %v1895
      %v1897 = vpop.f32.mrb[0].mxu0
      %1898 = vdwg.mxu0
      %v1899 = vadd.f32 %v1545, %v1821
      %v1900 = vadd.f32 %v1546, %v1826
      %v1901 = vadd.f32 %v1547, %v1831
      %v1902 = vadd.f32 %v1548, %v1836
      %v1903 = vadd.f32 %v1549, %v1841
      %v1904 = vadd.f32 %v1550, %v1846
      %v1905 = vadd.f32 %v1551, %v1851
      %v1906 = vadd.f32 %v1552, %v1856
      %v1907 = vadd.f32 %v1553, %v1861
      %v1908 = vadd.f32 %v1554, %v1866
      %v1909 = vadd.f32 %v1555, %v1871
      %v1910 = vadd.f32 %v1556, %v1876
      %v1911 = vadd.f32 %v1557, %v1881
      %v1912 = vadd.f32 %v1558, %v1886
      %v1913 = vadd.f32 %v1559, %v1891
      %v1914 = vadd.f32 %v1560, %v1896
      %v1979 = vrot.slane %v1238, 1
      %v1980 = vrot.slane %v1240, 1
      %v1981 = vsel %vm1625, %v1979, %v1980
      %v1982 = vrot.slane %v1239, 1
      %v1983 = vrot.slane %v1241, 1
      %v1984 = vsel %vm1625, %v1982, %v1983
      %v1985 = vrot.slane %v1242, 1
      %v1986 = vrot.slane %v1244, 1
      %v1987 = vsel %vm1625, %v1985, %v1986
      %v1988 = vrot.slane %v1243, 1
      %v1989 = vrot.slane %v1245, 1
      %v1990 = vsel %vm1625, %v1988, %v1989
      %v1991 = vrot.slane %v1246, 1
      %v1992 = vrot.slane %v1248, 1
      %v1993 = vsel %vm1625, %v1991, %v1992
      %v1994 = vrot.slane %v1247, 1
      %v1995 = vrot.slane %v1249, 1
      %v1996 = vsel %vm1625, %v1994, %v1995
      %v1997 = vrot.slane %v1250, 1
      %v1998 = vrot.slane %v1252, 1
      %v1999 = vsel %vm1625, %v1997, %v1998
      %v2000 = vrot.slane %v1251, 1
      %v2001 = vrot.slane %v1253, 1
      %v2002 = vsel %vm1625, %v2000, %v2001
      %v2003 = vrot.slane %v1254, 1
      %v2004 = vrot.slane %v1256, 1
      %v2005 = vsel %vm1625, %v2003, %v2004
      %v2006 = vrot.slane %v1255, 1
      %v2007 = vrot.slane %v1257, 1
      %v2008 = vsel %vm1625, %v2006, %v2007
      %v2009 = vrot.slane %v1258, 1
      %v2010 = vrot.slane %v1260, 1
      %v2011 = vsel %vm1625, %v2009, %v2010
      %v2012 = vrot.slane %v1259, 1
      %v2013 = vrot.slane %v1261, 1
      %v2014 = vsel %vm1625, %v2012, %v2013
      %v2015 = vrot.slane %v1262, 1
      %v2016 = vrot.slane %v1264, 1
      %v2017 = vsel %vm1625, %v2015, %v2016
      %v2018 = vrot.slane %v1263, 1
      %v2019 = vrot.slane %v1265, 1
      %v2020 = vsel %vm1625, %v2018, %v2019
      %v2021 = vrot.slane %v1266, 1
      %v2022 = vrot.slane %v1268, 1
      %v2023 = vsel %vm1625, %v2021, %v2022
      %v2024 = vrot.slane %v1267, 1
      %v2025 = vrot.slane %v1269, 1
      %v2026 = vsel %vm1625, %v2024, %v2025
      %v2027 = vrot.slane %v1270, 1
      %v2028 = vrot.slane %v1272, 1
      %v2029 = vsel %vm1625, %v2027, %v2028
      %v2030 = vrot.slane %v1271, 1
      %v2031 = vrot.slane %v1273, 1
      %v2032 = vsel %vm1625, %v2030, %v2031
      %v2033 = vrot.slane %v1274, 1
      %v2034 = vrot.slane %v1276, 1
      %v2035 = vsel %vm1625, %v2033, %v2034
      %v2036 = vrot.slane %v1275, 1
      %v2037 = vrot.slane %v1277, 1
      %v2038 = vsel %vm1625, %v2036, %v2037
      %v2039 = vrot.slane %v1278, 1
      %v2040 = vrot.slane %v1280, 1
      %v2041 = vsel %vm1625, %v2039, %v2040
      %v2042 = vrot.slane %v1279, 1
      %v2043 = vrot.slane %v1281, 1
      %v2044 = vsel %vm1625, %v2042, %v2043
      %v2045 = vrot.slane %v1282, 1
      %v2046 = vrot.slane %v1284, 1
      %v2047 = vsel %vm1625, %v2045, %v2046
      %v2048 = vrot.slane %v1283, 1
      %v2049 = vrot.slane %v1285, 1
      %v2050 = vsel %vm1625, %v2048, %v2049
      %v2051 = vrot.slane %v1286, 1
      %v2052 = vrot.slane %v1288, 1
      %v2053 = vsel %vm1625, %v2051, %v2052
      %v2054 = vrot.slane %v1287, 1
      %v2055 = vrot.slane %v1289, 1
      %v2056 = vsel %vm1625, %v2054, %v2055
      %v2057 = vrot.slane %v1290, 1
      %v2058 = vrot.slane %v1292, 1
      %v2059 = vsel %vm1625, %v2057, %v2058
      %v2060 = vrot.slane %v1291, 1
      %v2061 = vrot.slane %v1293, 1
      %v2062 = vsel %vm1625, %v2060, %v2061
      %v2063 = vrot.slane %v1294, 1
      %v2064 = vrot.slane %v1296, 1
      %v2065 = vsel %vm1625, %v2063, %v2064
      %v2066 = vrot.slane %v1295, 1
      %v2067 = vrot.slane %v1297, 1
      %v2068 = vsel %vm1625, %v2066, %v2067
      %v2069 = vrot.slane %v1298, 1
      %v2070 = vrot.slane %v1300, 1
      %v2071 = vsel %vm1625, %v2069, %v2070
      %v2072 = vrot.slane %v1299, 1
      %v2073 = vrot.slane %v1301, 1
      %v2074 = vsel %vm1625, %v2072, %v2073
      %2107 = vmatprep.subr.mxu0 0.0
      %2108 = vmatpush1.msra.mxu0 %v1368
      %2109 = vmatprep.subr.mxu0 0.0
      %2110 = vmatpush1.msra.mxu0 %v1369
      %2111 = vmatprep.subr.mxu0 0.0
      %2112 = vmatpush1.msra.mxu0 %v1370
      %2113 = vmatprep.subr.mxu0 0.0
      %2114 = vmatpush1.msra.mxu0 %v1371
      %2115 = vmatprep.subr.mxu0 0.0
      %2116 = vmatpush1.msra.mxu0 %v1372
      %2117 = vmatprep.subr.mxu0 0.0
      %2118 = vmatpush1.msra.mxu0 %v1373
      %2119 = vmatprep.subr.mxu0 0.0
      %2120 = vmatpush1.msra.mxu0 %v1374
      %2121 = vmatprep.subr.mxu0 0.0
      %2122 = vmatpush1.msra.mxu0 %v1375
      %2123 = vmatprep.subr.mxu0 0.0
      %2124 = vmatpush1.msra.mxu0 %v1376
      %2125 = vmatprep.subr.mxu0 0.0
      %2126 = vmatpush1.msra.mxu0 %v1377
      %2127 = vmatprep.subr.mxu0 0.0
      %2128 = vmatpush1.msra.mxu0 %v1378
      %2129 = vmatprep.subr.mxu0 0.0
      %2130 = vmatpush1.msra.mxu0 %v1379
      %2131 = vmatprep.subr.mxu0 0.0
      %2132 = vmatpush1.msra.mxu0 %v1380
      %2133 = vmatprep.subr.mxu0 0.0
      %2134 = vmatpush1.msra.mxu0 %v1381
      %2135 = vmatprep.subr.mxu0 0.0
      %2136 = vmatpush1.msra.mxu0 %v1382
      %2137 = vmatprep.subr.mxu0 0.0
      %2138 = vmatpush1.msra.mxu0 %v1383
      %2139 = vmatprep.subr.mxu0 0.0
      %2140 = vmatpush1.msra.mxu0 %v1384
      %2141 = vmatprep.subr.mxu0 0.0
      %2142 = vmatpush1.msra.mxu0 %v1385
      %2143 = vmatprep.subr.mxu0 0.0
      %2144 = vmatpush1.msra.mxu0 %v1386
      %2145 = vmatprep.subr.mxu0 0.0
      %2146 = vmatpush1.msra.mxu0 %v1387
      %2147 = vmatprep.subr.mxu0 0.0
      %2148 = vmatpush1.msra.mxu0 %v1388
      %2149 = vmatprep.subr.mxu0 0.0
      %2150 = vmatpush1.msra.mxu0 %v1389
      %2151 = vmatprep.subr.mxu0 0.0
      %2152 = vmatpush1.msra.mxu0 %v1390
      %2153 = vmatprep.subr.mxu0 0.0
      %2154 = vmatpush1.msra.mxu0 %v1391
      %2155 = vmatprep.subr.mxu0 0.0
      %2156 = vmatpush1.msra.mxu0 %v1392
      %2157 = vmatprep.subr.mxu0 0.0
      %2158 = vmatpush1.msra.mxu0 %v1393
      %2159 = vmatprep.subr.mxu0 0.0
      %2160 = vmatpush1.msra.mxu0 %v1394
      %2161 = vmatprep.subr.mxu0 0.0
      %2162 = vmatpush1.msra.mxu0 %v1395
      %2163 = vmatprep.subr.mxu0 0.0
      %2164 = vmatpush1.msra.mxu0 %v1396
      %2165 = vmatprep.subr.mxu0 0.0
      %2166 = vmatpush1.msra.mxu0 %v1397
      %2167 = vmatprep.subr.mxu0 0.0
      %2168 = vmatpush1.msra.mxu0 %v1398
      %2169 = vmatprep.subr.mxu0 0.0
      %2170 = vmatpush1.msra.mxu0 %v1399
      %2171 = vmatprep.mubr.f32.mxu0 %v1984
      %2172 = vmatmul.mubr.f32.gmra.mrb[0].mxu0 %v1981
      %v2173 = vpop.f32.mrb[0].mxu0
      %v2174 = vadd.f32 0.0, %v2173
      %v2175 = vpop.f32.mrb[0].mxu0
      %2176 = vmatprep.mubr.f32.mxu0 %v1990
      %2177 = vmatmul.mubr.f32.gmra.mrb[0].mxu0 %v1987
      %v2178 = vpop.f32.mrb[0].mxu0
      %v2179 = vadd.f32 0.0, %v2178
      %v2180 = vpop.f32.mrb[0].mxu0
      %2181 = vmatprep.mubr.f32.mxu0 %v1996
      %2182 = vmatmul.mubr.f32.gmra.mrb[0].mxu0 %v1993
      %v2183 = vpop.f32.mrb[0].mxu0
      %v2184 = vadd.f32 0.0, %v2183
      %v2185 = vpop.f32.mrb[0].mxu0
      %2186 = vmatprep.mubr.f32.mxu0 %v2002
      %2187 = vmatmul.mubr.f32.gmra.mrb[0].mxu0 %v1999
      %v2188 = vpop.f32.mrb[0].mxu0
      %v2189 = vadd.f32 0.0, %v2188
      %v2190 = vpop.f32.mrb[0].mxu0
      %2191 = vmatprep.mubr.f32.mxu0 %v2008
      %2192 = vmatmul.mubr.f32.gmra.mrb[0].mxu0 %v2005
      %v2193 = vpop.f32.mrb[0].mxu0
      %v2194 = vadd.f32 0.0, %v2193
      %v2195 = vpop.f32.mrb[0].mxu0
      %2196 = vmatprep.mubr.f32.mxu0 %v2014
      %2197 = vmatmul.mubr.f32.gmra.mrb[0].mxu0 %v2011
      %v2198 = vpop.f32.mrb[0].mxu0
      %v2199 = vadd.f32 0.0, %v2198
      %v2200 = vpop.f32.mrb[0].mxu0
      %2201 = vmatprep.mubr.f32.mxu0 %v2020
      %2202 = vmatmul.mubr.f32.gmra.mrb[0].mxu0 %v2017
      %v2203 = vpop.f32.mrb[0].mxu0
      %v2204 = vadd.f32 0.0, %v2203
      %v2205 = vpop.f32.mrb[0].mxu0
      %2206 = vmatprep.mubr.f32.mxu0 %v2026
      %2207 = vmatmul.mubr.f32.gmra.mrb[0].mxu0 %v2023
      %v2208 = vpop.f32.mrb[0].mxu0
      %v2209 = vadd.f32 0.0, %v2208
      %v2210 = vpop.f32.mrb[0].mxu0
      %2211 = vmatprep.mubr.f32.mxu0 %v2032
      %2212 = vmatmul.mubr.f32.gmra.mrb[0].mxu0 %v2029
      %v2213 = vpop.f32.mrb[0].mxu0
      %v2214 = vadd.f32 0.0, %v2213
      %v2215 = vpop.f32.mrb[0].mxu0
      %2216 = vmatprep.mubr.f32.mxu0 %v2038
      %2217 = vmatmul.mubr.f32.gmra.mrb[0].mxu0 %v2035
      %v2218 = vpop.f32.mrb[0].mxu0
      %v2219 = vadd.f32 0.0, %v2218
      %v2220 = vpop.f32.mrb[0].mxu0
      %2221 = vmatprep.mubr.f32.mxu0 %v2044
      %2222 = vmatmul.mubr.f32.gmra.mrb[0].mxu0 %v2041
      %v2223 = vpop.f32.mrb[0].mxu0
      %v2224 = vadd.f32 0.0, %v2223
      %v2225 = vpop.f32.mrb[0].mxu0
      %2226 = vmatprep.mubr.f32.mxu0 %v2050
      %2227 = vmatmul.mubr.f32.gmra.mrb[0].mxu0 %v2047
      %v2228 = vpop.f32.mrb[0].mxu0
      %v2229 = vadd.f32 0.0, %v2228
      %v2230 = vpop.f32.mrb[0].mxu0
      %2231 = vmatprep.mubr.f32.mxu0 %v2056
      %2232 = vmatmul.mubr.f32.gmra.mrb[0].mxu0 %v2053
      %v2233 = vpop.f32.mrb[0].mxu0
      %v2234 = vadd.f32 0.0, %v2233
      %v2235 = vpop.f32.mrb[0].mxu0
      %2236 = vmatprep.mubr.f32.mxu0 %v2062
      %2237 = vmatmul.mubr.f32.gmra.mrb[0].mxu0 %v2059
      %v2238 = vpop.f32.mrb[0].mxu0
      %v2239 = vadd.f32 0.0, %v2238
      %v2240 = vpop.f32.mrb[0].mxu0
      %2241 = vmatprep.mubr.f32.mxu0 %v2068
      %2242 = vmatmul.mubr.f32.gmra.mrb[0].mxu0 %v2065
      %v2243 = vpop.f32.mrb[0].mxu0
      %v2244 = vadd.f32 0.0, %v2243
      %v2245 = vpop.f32.mrb[0].mxu0
      %2246 = vmatprep.mubr.f32.mxu0 %v2074
      %2247 = vmatmul.mubr.f32.gmra.mrb[0].mxu0 %v2071
      %v2248 = vpop.f32.mrb[0].mxu0
      %v2249 = vadd.f32 0.0, %v2248
      %v2250 = vpop.f32.mrb[0].mxu0
      %2251 = vdwg.mxu0
      %v2252 = vadd.f32 %v1899, %v2174
      %v2253 = vadd.f32 %v1900, %v2179
      %v2254 = vadd.f32 %v1901, %v2184
      %v2255 = vadd.f32 %v1902, %v2189
      %v2256 = vadd.f32 %v1903, %v2194
      %v2257 = vadd.f32 %v1904, %v2199
      %v2258 = vadd.f32 %v1905, %v2204
      %v2259 = vadd.f32 %v1906, %v2209
      %v2260 = vadd.f32 %v1907, %v2214
      %v2261 = vadd.f32 %v1908, %v2219
      %v2262 = vadd.f32 %v1909, %v2224
      %v2263 = vadd.f32 %v1910, %v2229
      %v2264 = vadd.f32 %v1911, %v2234
      %v2265 = vadd.f32 %v1912, %v2239
      %v2266 = vadd.f32 %v1913, %v2244
      %v2267 = vadd.f32 %v1914, %v2249
      %2268 = vmatprep.subr.mxu0 0.0
      %2269 = vmatpush1.msra.mxu0 %v1302
      %2270 = vmatprep.subr.mxu0 0.0
      %2271 = vmatpush1.msra.mxu0 %v1303
      %2272 = vmatprep.subr.mxu0 0.0
      %2273 = vmatpush1.msra.mxu0 %v1304
      %2274 = vmatprep.subr.mxu0 0.0
      %2275 = vmatpush1.msra.mxu0 %v1305
      %2276 = vmatprep.subr.mxu0 0.0
      %2277 = vmatpush1.msra.mxu0 %v1306
      %2278 = vmatprep.subr.mxu0 0.0
      %2279 = vmatpush1.msra.mxu0 %v1307
      %2280 = vmatprep.subr.mxu0 0.0
      %2281 = vmatpush1.msra.mxu0 %v1308
      %2282 = vmatprep.subr.mxu0 0.0
      %2283 = vmatpush1.msra.mxu0 %v1309
      %2284 = vmatprep.subr.mxu0 0.0
      %2285 = vmatpush1.msra.mxu0 %v1310
      %2286 = vmatprep.subr.mxu0 0.0
      %2287 = vmatpush1.msra.mxu0 %v1311
      %2288 = vmatprep.subr.mxu0 0.0
      %2289 = vmatpush1.msra.mxu0 %v1312
      %2290 = vmatprep.subr.mxu0 0.0
      %2291 = vmatpush1.msra.mxu0 %v1313
      %2292 = vmatprep.subr.mxu0 0.0
      %2293 = vmatpush1.msra.mxu0 %v1314
      %2294 = vmatprep.subr.mxu0 0.0
      %2295 = vmatpush1.msra.mxu0 %v1315
      %2296 = vmatprep.subr.mxu0 0.0
      %2297 = vmatpush1.msra.mxu0 %v1316
      %2298 = vmatprep.subr.mxu0 0.0
      %2299 = vmatpush1.msra.mxu0 %v1317
      %2300 = vmatprep.subr.mxu0 0.0
      %2301 = vmatpush1.msra.mxu0 %v1318
      %2302 = vmatprep.subr.mxu0 0.0
      %2303 = vmatpush1.msra.mxu0 %v1319
      %2304 = vmatprep.subr.mxu0 0.0
      %2305 = vmatpush1.msra.mxu0 %v1320
      %2306 = vmatprep.subr.mxu0 0.0
      %2307 = vmatpush1.msra.mxu0 %v1321
      %2308 = vmatprep.subr.mxu0 0.0
      %2309 = vmatpush1.msra.mxu0 %v1322
      %2310 = vmatprep.subr.mxu0 0.0
      %2311 = vmatpush1.msra.mxu0 %v1323
      %2312 = vmatprep.subr.mxu0 0.0
      %2313 = vmatpush1.msra.mxu0 %v1324
      %2314 = vmatprep.subr.mxu0 0.0
      %2315 = vmatpush1.msra.mxu0 %v1325
      %2316 = vmatprep.subr.mxu0 0.0
      %2317 = vmatpush1.msra.mxu0 %v1326
      %2318 = vmatprep.subr.mxu0 0.0
      %2319 = vmatpush1.msra.mxu0 %v1327
      %2320 = vmatprep.subr.mxu0 0.0
      %2321 = vmatpush1.msra.mxu0 %v1328
      %2322 = vmatprep.subr.mxu0 0.0
      %2323 = vmatpush1.msra.mxu0 %v1329
      %2324 = vmatprep.subr.mxu0 0.0
      %2325 = vmatpush1.msra.mxu0 %v1330
      %2326 = vmatprep.subr.mxu0 0.0
      %2327 = vmatpush1.msra.mxu0 %v1331
      %2328 = vmatprep.subr.mxu0 0.0
      %2329 = vmatpush1.msra.mxu0 %v1332
      %2330 = vmatprep.subr.mxu0 0.0
      %2331 = vmatpush1.msra.mxu0 %v1333
      %2332 = vmatprep.mubr.f32.mxu0 %v1631
      %2333 = vmatmul.mubr.f32.gmra.mrb[0].mxu0 %v1628
      %v2334 = vpop.f32.mrb[0].mxu0
      %v2335 = vadd.f32 0.0, %v2334
      %v2336 = vpop.f32.mrb[0].mxu0
      %2337 = vmatprep.mubr.f32.mxu0 %v1637
      %2338 = vmatmul.mubr.f32.gmra.mrb[0].mxu0 %v1634
      %v2339 = vpop.f32.mrb[0].mxu0
      %v2340 = vadd.f32 0.0, %v2339
      %v2341 = vpop.f32.mrb[0].mxu0
      %2342 = vmatprep.mubr.f32.mxu0 %v1643
      %2343 = vmatmul.mubr.f32.gmra.mrb[0].mxu0 %v1640
      %v2344 = vpop.f32.mrb[0].mxu0
      %v2345 = vadd.f32 0.0, %v2344
      %v2346 = vpop.f32.mrb[0].mxu0
      %2347 = vmatprep.mubr.f32.mxu0 %v1649
      %2348 = vmatmul.mubr.f32.gmra.mrb[0].mxu0 %v1646
      %v2349 = vpop.f32.mrb[0].mxu0
      %v2350 = vadd.f32 0.0, %v2349
      %v2351 = vpop.f32.mrb[0].mxu0
      %2352 = vmatprep.mubr.f32.mxu0 %v1655
      %2353 = vmatmul.mubr.f32.gmra.mrb[0].mxu0 %v1652
      %v2354 = vpop.f32.mrb[0].mxu0
      %v2355 = vadd.f32 0.0, %v2354
      %v2356 = vpop.f32.mrb[0].mxu0
      %2357 = vmatprep.mubr.f32.mxu0 %v1661
      %2358 = vmatmul.mubr.f32.gmra.mrb[0].mxu0 %v1658
      %v2359 = vpop.f32.mrb[0].mxu0
      %v2360 = vadd.f32 0.0, %v2359
      %v2361 = vpop.f32.mrb[0].mxu0
      %2362 = vmatprep.mubr.f32.mxu0 %v1667
      %2363 = vmatmul.mubr.f32.gmra.mrb[0].mxu0 %v1664
      %v2364 = vpop.f32.mrb[0].mxu0
      %v2365 = vadd.f32 0.0, %v2364
      %v2366 = vpop.f32.mrb[0].mxu0
      %2367 = vmatprep.mubr.f32.mxu0 %v1673
      %2368 = vmatmul.mubr.f32.gmra.mrb[0].mxu0 %v1670
      %v2369 = vpop.f32.mrb[0].mxu0
      %v2370 = vadd.f32 0.0, %v2369
      %v2371 = vpop.f32.mrb[0].mxu0
      %2372 = vmatprep.mubr.f32.mxu0 %v1679
      %2373 = vmatmul.mubr.f32.gmra.mrb[0].mxu0 %v1676
      %v2374 = vpop.f32.mrb[0].mxu0
      %v2375 = vadd.f32 0.0, %v2374
      %v2376 = vpop.f32.mrb[0].mxu0
      %2377 = vmatprep.mubr.f32.mxu0 %v1685
      %2378 = vmatmul.mubr.f32.gmra.mrb[0].mxu0 %v1682
      %v2379 = vpop.f32.mrb[0].mxu0
      %v2380 = vadd.f32 0.0, %v2379
      %v2381 = vpop.f32.mrb[0].mxu0
      %2382 = vmatprep.mubr.f32.mxu0 %v1691
      %2383 = vmatmul.mubr.f32.gmra.mrb[0].mxu0 %v1688
      %v2384 = vpop.f32.mrb[0].mxu0
      %v2385 = vadd.f32 0.0, %v2384
      %v2386 = vpop.f32.mrb[0].mxu0
      %2387 = vmatprep.mubr.f32.mxu0 %v1697
      %2388 = vmatmul.mubr.f32.gmra.mrb[0].mxu0 %v1694
      %v2389 = vpop.f32.mrb[0].mxu0
      %v2390 = vadd.f32 0.0, %v2389
      %v2391 = vpop.f32.mrb[0].mxu0
      %2392 = vmatprep.mubr.f32.mxu0 %v1703
      %2393 = vmatmul.mubr.f32.gmra.mrb[0].mxu0 %v1700
      %v2394 = vpop.f32.mrb[0].mxu0
      %v2395 = vadd.f32 0.0, %v2394
      %v2396 = vpop.f32.mrb[0].mxu0
      %2397 = vmatprep.mubr.f32.mxu0 %v1709
      %2398 = vmatmul.mubr.f32.gmra.mrb[0].mxu0 %v1706
      %v2399 = vpop.f32.mrb[0].mxu0
      %v2400 = vadd.f32 0.0, %v2399
      %v2401 = vpop.f32.mrb[0].mxu0
      %2402 = vmatprep.mubr.f32.mxu0 %v1715
      %2403 = vmatmul.mubr.f32.gmra.mrb[0].mxu0 %v1712
      %v2404 = vpop.f32.mrb[0].mxu0
      %v2405 = vadd.f32 0.0, %v2404
      %v2406 = vpop.f32.mrb[0].mxu0
      %2407 = vmatprep.mubr.f32.mxu0 %v1721
      %2408 = vmatmul.mubr.f32.gmra.mrb[0].mxu0 %v1718
      %v2409 = vpop.f32.mrb[0].mxu0
      %v2410 = vadd.f32 0.0, %v2409
      %v2411 = vpop.f32.mrb[0].mxu0
      %2412 = vdwg.mxu0
      %v2413 = vadd.f32 %v1172, %v2335
      %v2414 = vadd.f32 %v1172, %v2340
      %v2415 = vadd.f32 %v1172, %v2345
      %v2416 = vadd.f32 %v1172, %v2350
      %v2417 = vadd.f32 %v1172, %v2355
      %v2418 = vadd.f32 %v1172, %v2360
      %v2419 = vadd.f32 %v1172, %v2365
      %v2420 = vadd.f32 %v1172, %v2370
      %v2421 = vadd.f32 %v1172, %v2375
      %v2422 = vadd.f32 %v1172, %v2380
      %v2423 = vadd.f32 %v1172, %v2385
      %v2424 = vadd.f32 %v1172, %v2390
      %v2425 = vadd.f32 %v1172, %v2395
      %v2426 = vadd.f32 %v1172, %v2400
      %v2427 = vadd.f32 %v1172, %v2405
      %v2428 = vadd.f32 %v1172, %v2410
      %2429 = vmatprep.subr.mxu0 0.0
      %2430 = vmatpush1.msra.mxu0 %v1335
      %2431 = vmatprep.subr.mxu0 0.0
      %2432 = vmatpush1.msra.mxu0 %v1336
      %2433 = vmatprep.subr.mxu0 0.0
      %2434 = vmatpush1.msra.mxu0 %v1337
      %2435 = vmatprep.subr.mxu0 0.0
      %2436 = vmatpush1.msra.mxu0 %v1338
      %2437 = vmatprep.subr.mxu0 0.0
      %2438 = vmatpush1.msra.mxu0 %v1339
      %2439 = vmatprep.subr.mxu0 0.0
      %2440 = vmatpush1.msra.mxu0 %v1340
      %2441 = vmatprep.subr.mxu0 0.0
      %2442 = vmatpush1.msra.mxu0 %v1341
      %2443 = vmatprep.subr.mxu0 0.0
      %2444 = vmatpush1.msra.mxu0 %v1342
      %2445 = vmatprep.subr.mxu0 0.0
      %2446 = vmatpush1.msra.mxu0 %v1343
      %2447 = vmatprep.subr.mxu0 0.0
      %2448 = vmatpush1.msra.mxu0 %v1344
      %2449 = vmatprep.subr.mxu0 0.0
      %2450 = vmatpush1.msra.mxu0 %v1345
      %2451 = vmatprep.subr.mxu0 0.0
      %2452 = vmatpush1.msra.mxu0 %v1346
      %2453 = vmatprep.subr.mxu0 0.0
      %2454 = vmatpush1.msra.mxu0 %v1347
      %2455 = vmatprep.subr.mxu0 0.0
      %2456 = vmatpush1.msra.mxu0 %v1348
      %2457 = vmatprep.subr.mxu0 0.0
      %2458 = vmatpush1.msra.mxu0 %v1349
      %2459 = vmatprep.subr.mxu0 0.0
      %2460 = vmatpush1.msra.mxu0 %v1350
      %2461 = vmatprep.subr.mxu0 0.0
      %2462 = vmatpush1.msra.mxu0 %v1351
      %2463 = vmatprep.subr.mxu0 0.0
      %2464 = vmatpush1.msra.mxu0 %v1352
      %2465 = vmatprep.subr.mxu0 0.0
      %2466 = vmatpush1.msra.mxu0 %v1353
      %2467 = vmatprep.subr.mxu0 0.0
      %2468 = vmatpush1.msra.mxu0 %v1354
      %2469 = vmatprep.subr.mxu0 0.0
      %2470 = vmatpush1.msra.mxu0 %v1355
      %2471 = vmatprep.subr.mxu0 0.0
      %2472 = vmatpush1.msra.mxu0 %v1356
      %2473 = vmatprep.subr.mxu0 0.0
      %2474 = vmatpush1.msra.mxu0 %v1357
      %2475 = vmatprep.subr.mxu0 0.0
      %2476 = vmatpush1.msra.mxu0 %v1358
      %2477 = vmatprep.subr.mxu0 0.0
      %2478 = vmatpush1.msra.mxu0 %v1359
      %2479 = vmatprep.subr.mxu0 0.0
      %2480 = vmatpush1.msra.mxu0 %v1360
      %2481 = vmatprep.subr.mxu0 0.0
      %2482 = vmatpush1.msra.mxu0 %v1361
      %2483 = vmatprep.subr.mxu0 0.0
      %2484 = vmatpush1.msra.mxu0 %v1362
      %2485 = vmatprep.subr.mxu0 0.0
      %2486 = vmatpush1.msra.mxu0 %v1363
      %2487 = vmatprep.subr.mxu0 0.0
      %2488 = vmatpush1.msra.mxu0 %v1364
      %2489 = vmatprep.subr.mxu0 0.0
      %2490 = vmatpush1.msra.mxu0 %v1365
      %2491 = vmatprep.subr.mxu0 0.0
      %2492 = vmatpush1.msra.mxu0 %v1366
      %2493 = vmatprep.mubr.f32.mxu0 %v1984
      %2494 = vmatmul.mubr.f32.gmra.mrb[0].mxu0 %v1981
      %v2495 = vpop.f32.mrb[0].mxu0
      %v2496 = vadd.f32 0.0, %v2495
      %v2497 = vpop.f32.mrb[0].mxu0
      %2498 = vmatprep.mubr.f32.mxu0 %v1990
      %2499 = vmatmul.mubr.f32.gmra.mrb[0].mxu0 %v1987
      %v2500 = vpop.f32.mrb[0].mxu0
      %v2501 = vadd.f32 0.0, %v2500
      %v2502 = vpop.f32.mrb[0].mxu0
      %2503 = vmatprep.mubr.f32.mxu0 %v1996
      %2504 = vmatmul.mubr.f32.gmra.mrb[0].mxu0 %v1993
      %v2505 = vpop.f32.mrb[0].mxu0
      %v2506 = vadd.f32 0.0, %v2505
      %v2507 = vpop.f32.mrb[0].mxu0
      %2508 = vmatprep.mubr.f32.mxu0 %v2002
      %2509 = vmatmul.mubr.f32.gmra.mrb[0].mxu0 %v1999
      %v2510 = vpop.f32.mrb[0].mxu0
      %v2511 = vadd.f32 0.0, %v2510
      %v2512 = vpop.f32.mrb[0].mxu0
      %2513 = vmatprep.mubr.f32.mxu0 %v2008
      %2514 = vmatmul.mubr.f32.gmra.mrb[0].mxu0 %v2005
      %v2515 = vpop.f32.mrb[0].mxu0
      %v2516 = vadd.f32 0.0, %v2515
      %v2517 = vpop.f32.mrb[0].mxu0
      %2518 = vmatprep.mubr.f32.mxu0 %v2014
      %2519 = vmatmul.mubr.f32.gmra.mrb[0].mxu0 %v2011
      %v2520 = vpop.f32.mrb[0].mxu0
      %v2521 = vadd.f32 0.0, %v2520
      %v2522 = vpop.f32.mrb[0].mxu0
      %2523 = vmatprep.mubr.f32.mxu0 %v2020
      %2524 = vmatmul.mubr.f32.gmra.mrb[0].mxu0 %v2017
      %v2525 = vpop.f32.mrb[0].mxu0
      %v2526 = vadd.f32 0.0, %v2525
      %v2527 = vpop.f32.mrb[0].mxu0
      %2528 = vmatprep.mubr.f32.mxu0 %v2026
      %2529 = vmatmul.mubr.f32.gmra.mrb[0].mxu0 %v2023
      %v2530 = vpop.f32.mrb[0].mxu0
      %v2531 = vadd.f32 0.0, %v2530
      %v2532 = vpop.f32.mrb[0].mxu0
      %2533 = vmatprep.mubr.f32.mxu0 %v2032
      %2534 = vmatmul.mubr.f32.gmra.mrb[0].mxu0 %v2029
      %v2535 = vpop.f32.mrb[0].mxu0
      %v2536 = vadd.f32 0.0, %v2535
      %v2537 = vpop.f32.mrb[0].mxu0
      %2538 = vmatprep.mubr.f32.mxu0 %v2038
      %2539 = vmatmul.mubr.f32.gmra.mrb[0].mxu0 %v2035
      %v2540 = vpop.f32.mrb[0].mxu0
      %v2541 = vadd.f32 0.0, %v2540
      %v2542 = vpop.f32.mrb[0].mxu0
      %2543 = vmatprep.mubr.f32.mxu0 %v2044
      %2544 = vmatmul.mubr.f32.gmra.mrb[0].mxu0 %v2041
      %v2545 = vpop.f32.mrb[0].mxu0
      %v2546 = vadd.f32 0.0, %v2545
      %v2547 = vpop.f32.mrb[0].mxu0
      %2548 = vmatprep.mubr.f32.mxu0 %v2050
      %2549 = vmatmul.mubr.f32.gmra.mrb[0].mxu0 %v2047
      %v2550 = vpop.f32.mrb[0].mxu0
      %v2551 = vadd.f32 0.0, %v2550
      %v2552 = vpop.f32.mrb[0].mxu0
      %2553 = vmatprep.mubr.f32.mxu0 %v2056
      %2554 = vmatmul.mubr.f32.gmra.mrb[0].mxu0 %v2053
      %v2555 = vpop.f32.mrb[0].mxu0
      %v2556 = vadd.f32 0.0, %v2555
      %v2557 = vpop.f32.mrb[0].mxu0
      %2558 = vmatprep.mubr.f32.mxu0 %v2062
      %2559 = vmatmul.mubr.f32.gmra.mrb[0].mxu0 %v2059
      %v2560 = vpop.f32.mrb[0].mxu0
      %v2561 = vadd.f32 0.0, %v2560
      %v2562 = vpop.f32.mrb[0].mxu0
      %2563 = vmatprep.mubr.f32.mxu0 %v2068
      %2564 = vmatmul.mubr.f32.gmra.mrb[0].mxu0 %v2065
      %v2565 = vpop.f32.mrb[0].mxu0
      %v2566 = vadd.f32 0.0, %v2565
      %v2567 = vpop.f32.mrb[0].mxu0
      %2568 = vmatprep.mubr.f32.mxu0 %v2074
      %2569 = vmatmul.mubr.f32.gmra.mrb[0].mxu0 %v2071
      %v2570 = vpop.f32.mrb[0].mxu0
      %v2571 = vadd.f32 0.0, %v2570
      %v2572 = vpop.f32.mrb[0].mxu0
      %2573 = vdwg.mxu0
      %v2574 = vadd.f32 %v2413, %v2496
      %v2575 = vadd.f32 %v2414, %v2501
      %v2576 = vadd.f32 %v2415, %v2506
      %v2577 = vadd.f32 %v2416, %v2511
      %v2578 = vadd.f32 %v2417, %v2516
      %v2579 = vadd.f32 %v2418, %v2521
      %v2580 = vadd.f32 %v2419, %v2526
      %v2581 = vadd.f32 %v2420, %v2531
      %v2582 = vadd.f32 %v2421, %v2536
      %v2583 = vadd.f32 %v2422, %v2541
      %v2584 = vadd.f32 %v2423, %v2546
      %v2585 = vadd.f32 %v2424, %v2551
      %v2586 = vadd.f32 %v2425, %v2556
      %v2587 = vadd.f32 %v2426, %v2561
      %v2588 = vadd.f32 %v2427, %v2566
      %v2589 = vadd.f32 %v2428, %v2571
      %vm2590 = vcmask 1045504
      %v2591 = vrot.slane %v1174, 2
      %v2592 = vrot.slane %v1176, 2
      %v2593 = vsel %vm2590, %v2591, %v2592
      %v2594 = vrot.slane %v1175, 2
      %v2595 = vrot.slane %v1177, 2
      %v2596 = vsel %vm2590, %v2594, %v2595
      %v2597 = vrot.slane %v1178, 2
      %v2598 = vrot.slane %v1180, 2
      %v2599 = vsel %vm2590, %v2597, %v2598
      %v2600 = vrot.slane %v1179, 2
      %v2601 = vrot.slane %v1181, 2
      %v2602 = vsel %vm2590, %v2600, %v2601
      %v2603 = vrot.slane %v1182, 2
      %v2604 = vrot.slane %v1184, 2
      %v2605 = vsel %vm2590, %v2603, %v2604
      %v2606 = vrot.slane %v1183, 2
      %v2607 = vrot.slane %v1185, 2
      %v2608 = vsel %vm2590, %v2606, %v2607
      %v2609 = vrot.slane %v1186, 2
      %v2610 = vrot.slane %v1188, 2
      %v2611 = vsel %vm2590, %v2609, %v2610
      %v2612 = vrot.slane %v1187, 2
      %v2613 = vrot.slane %v1189, 2
      %v2614 = vsel %vm2590, %v2612, %v2613
      %v2615 = vrot.slane %v1190, 2
      %v2616 = vrot.slane %v1192, 2
      %v2617 = vsel %vm2590, %v2615, %v2616
      %v2618 = vrot.slane %v1191, 2
      %v2619 = vrot.slane %v1193, 2
      %v2620 = vsel %vm2590, %v2618, %v2619
      %v2621 = vrot.slane %v1194, 2
      %v2622 = vrot.slane %v1196, 2
      %v2623 = vsel %vm2590, %v2621, %v2622
      %v2624 = vrot.slane %v1195, 2
      %v2625 = vrot.slane %v1197, 2
      %v2626 = vsel %vm2590, %v2624, %v2625
      %v2627 = vrot.slane %v1198, 2
      %v2628 = vrot.slane %v1200, 2
      %v2629 = vsel %vm2590, %v2627, %v2628
      %v2630 = vrot.slane %v1199, 2
      %v2631 = vrot.slane %v1201, 2
      %v2632 = vsel %vm2590, %v2630, %v2631
      %v2633 = vrot.slane %v1202, 2
      %v2634 = vrot.slane %v1204, 2
      %v2635 = vsel %vm2590, %v2633, %v2634
      %v2636 = vrot.slane %v1203, 2
      %v2637 = vrot.slane %v1205, 2
      %v2638 = vsel %vm2590, %v2636, %v2637
      %v2639 = vrot.slane %v1206, 2
      %v2640 = vrot.slane %v1208, 2
      %v2641 = vsel %vm2590, %v2639, %v2640
      %v2642 = vrot.slane %v1207, 2
      %v2643 = vrot.slane %v1209, 2
      %v2644 = vsel %vm2590, %v2642, %v2643
      %v2645 = vrot.slane %v1210, 2
      %v2646 = vrot.slane %v1212, 2
      %v2647 = vsel %vm2590, %v2645, %v2646
      %v2648 = vrot.slane %v1211, 2
      %v2649 = vrot.slane %v1213, 2
      %v2650 = vsel %vm2590, %v2648, %v2649
      %v2651 = vrot.slane %v1214, 2
      %v2652 = vrot.slane %v1216, 2
      %v2653 = vsel %vm2590, %v2651, %v2652
      %v2654 = vrot.slane %v1215, 2
      %v2655 = vrot.slane %v1217, 2
      %v2656 = vsel %vm2590, %v2654, %v2655
      %v2657 = vrot.slane %v1218, 2
      %v2658 = vrot.slane %v1220, 2
      %v2659 = vsel %vm2590, %v2657, %v2658
      %v2660 = vrot.slane %v1219, 2
      %v2661 = vrot.slane %v1221, 2
      %v2662 = vsel %vm2590, %v2660, %v2661
      %v2663 = vrot.slane %v1222, 2
      %v2664 = vrot.slane %v1224, 2
      %v2665 = vsel %vm2590, %v2663, %v2664
      %v2666 = vrot.slane %v1223, 2
      %v2667 = vrot.slane %v1225, 2
      %v2668 = vsel %vm2590, %v2666, %v2667
      %v2669 = vrot.slane %v1226, 2
      %v2670 = vrot.slane %v1228, 2
      %v2671 = vsel %vm2590, %v2669, %v2670
      %v2672 = vrot.slane %v1227, 2
      %v2673 = vrot.slane %v1229, 2
      %v2674 = vsel %vm2590, %v2672, %v2673
      %v2675 = vrot.slane %v1230, 2
      %v2676 = vrot.slane %v1232, 2
      %v2677 = vsel %vm2590, %v2675, %v2676
      %v2678 = vrot.slane %v1231, 2
      %v2679 = vrot.slane %v1233, 2
      %v2680 = vsel %vm2590, %v2678, %v2679
      %v2681 = vrot.slane %v1234, 2
      %v2682 = vrot.slane %v1236, 2
      %v2683 = vsel %vm2590, %v2681, %v2682
      %v2684 = vrot.slane %v1235, 2
      %v2685 = vrot.slane %v1237, 2
      %v2686 = vsel %vm2590, %v2684, %v2685
      %2719 = vmatprep.subr.mxu0 0.0
      %2720 = vmatpush1.msra.mxu0 %v1368
      %2721 = vmatprep.subr.mxu0 0.0
      %2722 = vmatpush1.msra.mxu0 %v1369
      %2723 = vmatprep.subr.mxu0 0.0
      %2724 = vmatpush1.msra.mxu0 %v1370
      %2725 = vmatprep.subr.mxu0 0.0
      %2726 = vmatpush1.msra.mxu0 %v1371
      %2727 = vmatprep.subr.mxu0 0.0
      %2728 = vmatpush1.msra.mxu0 %v1372
      %2729 = vmatprep.subr.mxu0 0.0
      %2730 = vmatpush1.msra.mxu0 %v1373
      %2731 = vmatprep.subr.mxu0 0.0
      %2732 = vmatpush1.msra.mxu0 %v1374
      %2733 = vmatprep.subr.mxu0 0.0
      %2734 = vmatpush1.msra.mxu0 %v1375
      %2735 = vmatprep.subr.mxu0 0.0
      %2736 = vmatpush1.msra.mxu0 %v1376
      %2737 = vmatprep.subr.mxu0 0.0
      %2738 = vmatpush1.msra.mxu0 %v1377
      %2739 = vmatprep.subr.mxu0 0.0
      %2740 = vmatpush1.msra.mxu0 %v1378
      %2741 = vmatprep.subr.mxu0 0.0
      %2742 = vmatpush1.msra.mxu0 %v1379
      %2743 = vmatprep.subr.mxu0 0.0
      %2744 = vmatpush1.msra.mxu0 %v1380
      %2745 = vmatprep.subr.mxu0 0.0
      %2746 = vmatpush1.msra.mxu0 %v1381
      %2747 = vmatprep.subr.mxu0 0.0
      %2748 = vmatpush1.msra.mxu0 %v1382
      %2749 = vmatprep.subr.mxu0 0.0
      %2750 = vmatpush1.msra.mxu0 %v1383
      %2751 = vmatprep.subr.mxu0 0.0
      %2752 = vmatpush1.msra.mxu0 %v1384
      %2753 = vmatprep.subr.mxu0 0.0
      %2754 = vmatpush1.msra.mxu0 %v1385
      %2755 = vmatprep.subr.mxu0 0.0
      %2756 = vmatpush1.msra.mxu0 %v1386
      %2757 = vmatprep.subr.mxu0 0.0
      %2758 = vmatpush1.msra.mxu0 %v1387
      %2759 = vmatprep.subr.mxu0 0.0
      %2760 = vmatpush1.msra.mxu0 %v1388
      %2761 = vmatprep.subr.mxu0 0.0
      %2762 = vmatpush1.msra.mxu0 %v1389
      %2763 = vmatprep.subr.mxu0 0.0
      %2764 = vmatpush1.msra.mxu0 %v1390
      %2765 = vmatprep.subr.mxu0 0.0
      %2766 = vmatpush1.msra.mxu0 %v1391
      %2767 = vmatprep.subr.mxu0 0.0
      %2768 = vmatpush1.msra.mxu0 %v1392
      %2769 = vmatprep.subr.mxu0 0.0
      %2770 = vmatpush1.msra.mxu0 %v1393
      %2771 = vmatprep.subr.mxu0 0.0
      %2772 = vmatpush1.msra.mxu0 %v1394
      %2773 = vmatprep.subr.mxu0 0.0
      %2774 = vmatpush1.msra.mxu0 %v1395
      %2775 = vmatprep.subr.mxu0 0.0
      %2776 = vmatpush1.msra.mxu0 %v1396
      %2777 = vmatprep.subr.mxu0 0.0
      %2778 = vmatpush1.msra.mxu0 %v1397
      %2779 = vmatprep.subr.mxu0 0.0
      %2780 = vmatpush1.msra.mxu0 %v1398
      %2781 = vmatprep.subr.mxu0 0.0
      %2782 = vmatpush1.msra.mxu0 %v1399
      %2783 = vmatprep.mubr.f32.mxu0 %v2596
      %2784 = vmatmul.mubr.f32.gmra.mrb[0].mxu0 %v2593
      %v2785 = vpop.f32.mrb[0].mxu0
      %v2786 = vadd.f32 0.0, %v2785
      %v2787 = vpop.f32.mrb[0].mxu0
      %2788 = vmatprep.mubr.f32.mxu0 %v2602
      %2789 = vmatmul.mubr.f32.gmra.mrb[0].mxu0 %v2599
      %v2790 = vpop.f32.mrb[0].mxu0
      %v2791 = vadd.f32 0.0, %v2790
      %v2792 = vpop.f32.mrb[0].mxu0
      %2793 = vmatprep.mubr.f32.mxu0 %v2608
      %2794 = vmatmul.mubr.f32.gmra.mrb[0].mxu0 %v2605
      %v2795 = vpop.f32.mrb[0].mxu0
      %v2796 = vadd.f32 0.0, %v2795
      %v2797 = vpop.f32.mrb[0].mxu0
      %2798 = vmatprep.mubr.f32.mxu0 %v2614
      %2799 = vmatmul.mubr.f32.gmra.mrb[0].mxu0 %v2611
      %v2800 = vpop.f32.mrb[0].mxu0
      %v2801 = vadd.f32 0.0, %v2800
      %v2802 = vpop.f32.mrb[0].mxu0
      %2803 = vmatprep.mubr.f32.mxu0 %v2620
      %2804 = vmatmul.mubr.f32.gmra.mrb[0].mxu0 %v2617
      %v2805 = vpop.f32.mrb[0].mxu0
      %v2806 = vadd.f32 0.0, %v2805
      %v2807 = vpop.f32.mrb[0].mxu0
      %2808 = vmatprep.mubr.f32.mxu0 %v2626
      %2809 = vmatmul.mubr.f32.gmra.mrb[0].mxu0 %v2623
      %v2810 = vpop.f32.mrb[0].mxu0
      %v2811 = vadd.f32 0.0, %v2810
      %v2812 = vpop.f32.mrb[0].mxu0
      %2813 = vmatprep.mubr.f32.mxu0 %v2632
      %2814 = vmatmul.mubr.f32.gmra.mrb[0].mxu0 %v2629
      %v2815 = vpop.f32.mrb[0].mxu0
      %v2816 = vadd.f32 0.0, %v2815
      %v2817 = vpop.f32.mrb[0].mxu0
      %2818 = vmatprep.mubr.f32.mxu0 %v2638
      %2819 = vmatmul.mubr.f32.gmra.mrb[0].mxu0 %v2635
      %v2820 = vpop.f32.mrb[0].mxu0
      %v2821 = vadd.f32 0.0, %v2820
      %v2822 = vpop.f32.mrb[0].mxu0
      %2823 = vmatprep.mubr.f32.mxu0 %v2644
      %2824 = vmatmul.mubr.f32.gmra.mrb[0].mxu0 %v2641
      %v2825 = vpop.f32.mrb[0].mxu0
      %v2826 = vadd.f32 0.0, %v2825
      %v2827 = vpop.f32.mrb[0].mxu0
      %2828 = vmatprep.mubr.f32.mxu0 %v2650
      %2829 = vmatmul.mubr.f32.gmra.mrb[0].mxu0 %v2647
      %v2830 = vpop.f32.mrb[0].mxu0
      %v2831 = vadd.f32 0.0, %v2830
      %v2832 = vpop.f32.mrb[0].mxu0
      %2833 = vmatprep.mubr.f32.mxu0 %v2656
      %2834 = vmatmul.mubr.f32.gmra.mrb[0].mxu0 %v2653
      %v2835 = vpop.f32.mrb[0].mxu0
      %v2836 = vadd.f32 0.0, %v2835
      %v2837 = vpop.f32.mrb[0].mxu0
      %2838 = vmatprep.mubr.f32.mxu0 %v2662
      %2839 = vmatmul.mubr.f32.gmra.mrb[0].mxu0 %v2659
      %v2840 = vpop.f32.mrb[0].mxu0
      %v2841 = vadd.f32 0.0, %v2840
      %v2842 = vpop.f32.mrb[0].mxu0
      %2843 = vmatprep.mubr.f32.mxu0 %v2668
      %2844 = vmatmul.mubr.f32.gmra.mrb[0].mxu0 %v2665
      %v2845 = vpop.f32.mrb[0].mxu0
      %v2846 = vadd.f32 0.0, %v2845
      %v2847 = vpop.f32.mrb[0].mxu0
      %2848 = vmatprep.mubr.f32.mxu0 %v2674
      %2849 = vmatmul.mubr.f32.gmra.mrb[0].mxu0 %v2671
      %v2850 = vpop.f32.mrb[0].mxu0
      %v2851 = vadd.f32 0.0, %v2850
      %v2852 = vpop.f32.mrb[0].mxu0
      %2853 = vmatprep.mubr.f32.mxu0 %v2680
      %2854 = vmatmul.mubr.f32.gmra.mrb[0].mxu0 %v2677
      %v2855 = vpop.f32.mrb[0].mxu0
      %v2856 = vadd.f32 0.0, %v2855
      %v2857 = vpop.f32.mrb[0].mxu0
      %2858 = vmatprep.mubr.f32.mxu0 %v2686
      %2859 = vmatmul.mubr.f32.gmra.mrb[0].mxu0 %v2683
      %v2860 = vpop.f32.mrb[0].mxu0
      %v2861 = vadd.f32 0.0, %v2860
      %v2862 = vpop.f32.mrb[0].mxu0
      %2863 = vdwg.mxu0
      %v2864 = vadd.f32 %v2574, %v2786
      %v2865 = vadd.f32 %v2575, %v2791
      %v2866 = vadd.f32 %v2576, %v2796
      %v2867 = vadd.f32 %v2577, %v2801
      %v2868 = vadd.f32 %v2578, %v2806
      %v2869 = vadd.f32 %v2579, %v2811
      %v2870 = vadd.f32 %v2580, %v2816
      %v2871 = vadd.f32 %v2581, %v2821
      %v2872 = vadd.f32 %v2582, %v2826
      %v2873 = vadd.f32 %v2583, %v2831
      %v2874 = vadd.f32 %v2584, %v2836
      %v2875 = vadd.f32 %v2585, %v2841
      %v2876 = vadd.f32 %v2586, %v2846
      %v2877 = vadd.f32 %v2587, %v2851
      %v2878 = vadd.f32 %v2588, %v2856
      %v2879 = vadd.f32 %v2589, %v2861
      %v2880 = vld [vmem:[%s875] sm:$0xff]
      %v2881 = vld [vmem:[%s875 + $0x8] sm:$0xff]
      %v2882 = vld [vmem:[%s875 + $0x10] sm:$0x3]
      %v2883 = vld [vmem:[%s875 + $0x18] sm:$0x3]
      %v2884 = vld [vmem:[%s875 + $0x20] sm:$0xff]
      %v2885 = vld [vmem:[%s875 + $0x28] sm:$0xff]
      %v2886 = vld [vmem:[%s875 + $0x30] sm:$0x3]
      %v2887 = vld [vmem:[%s875 + $0x38] sm:$0x3]
      %v2888 = vld [vmem:[%s875 + $0x40] sm:$0xff]
      %v2889 = vld [vmem:[%s875 + $0x48] sm:$0xff]
      %v2890 = vld [vmem:[%s875 + $0x50] sm:$0x3]
      %v2891 = vld [vmem:[%s875 + $0x58] sm:$0x3]
      %v2892 = vld [vmem:[%s875 + $0x60] sm:$0xff]
      %v2893 = vld [vmem:[%s875 + $0x68] sm:$0xff]
      %v2894 = vld [vmem:[%s875 + $0x70] sm:$0x3]
      %v2895 = vld [vmem:[%s875 + $0x78] sm:$0x3]
      %v2896 = vld [vmem:[%s875 + $0x80] sm:$0xff]
      %v2897 = vld [vmem:[%s875 + $0x88] sm:$0xff]
      %v2898 = vld [vmem:[%s875 + $0x90] sm:$0x3]
      %v2899 = vld [vmem:[%s875 + $0x98] sm:$0x3]
      %v2900 = vld [vmem:[%s875 + $0xa0] sm:$0xff]
      %v2901 = vld [vmem:[%s875 + $0xa8] sm:$0xff]
      %v2902 = vld [vmem:[%s875 + $0xb0] sm:$0x3]
      %v2903 = vld [vmem:[%s875 + $0xb8] sm:$0x3]
      %v2904 = vld [vmem:[%s875 + $0xc0] sm:$0xff]
      %v2905 = vld [vmem:[%s875 + $0xc8] sm:$0xff]
      %v2906 = vld [vmem:[%s875 + $0xd0] sm:$0x3]
      %v2907 = vld [vmem:[%s875 + $0xd8] sm:$0x3]
      %v2908 = vld [vmem:[%s875 + $0xe0] sm:$0xff]
      %v2909 = vld [vmem:[%s875 + $0xe8] sm:$0xff]
      %v2910 = vld [vmem:[%s875 + $0xf0] sm:$0x3]
      %v2911 = vld [vmem:[%s875 + $0xf8] sm:$0x3]
      %v2912 = vld [vmem:[%s875 + $0x100] sm:$0xff]
      %v2913 = vld [vmem:[%s875 + $0x108] sm:$0xff]
      %v2914 = vld [vmem:[%s875 + $0x110] sm:$0x3]
      %v2915 = vld [vmem:[%s875 + $0x118] sm:$0x3]
      %v2916 = vld [vmem:[%s875 + $0x120] sm:$0xff]
      %v2917 = vld [vmem:[%s875 + $0x128] sm:$0xff]
      %v2918 = vld [vmem:[%s875 + $0x130] sm:$0x3]
      %v2919 = vld [vmem:[%s875 + $0x138] sm:$0x3]
      %v2920 = vld [vmem:[%s875 + $0x140] sm:$0xff]
      %v2921 = vld [vmem:[%s875 + $0x148] sm:$0xff]
      %v2922 = vld [vmem:[%s875 + $0x150] sm:$0x3]
      %v2923 = vld [vmem:[%s875 + $0x158] sm:$0x3]
      %v2924 = vld [vmem:[%s875 + $0x160] sm:$0xff]
      %v2925 = vld [vmem:[%s875 + $0x168] sm:$0xff]
      %v2926 = vld [vmem:[%s875 + $0x170] sm:$0x3]
      %v2927 = vld [vmem:[%s875 + $0x178] sm:$0x3]
      %v2928 = vld [vmem:[%s875 + $0x180] sm:$0xff]
      %v2929 = vld [vmem:[%s875 + $0x188] sm:$0xff]
      %v2930 = vld [vmem:[%s875 + $0x190] sm:$0x3]
      %v2931 = vld [vmem:[%s875 + $0x198] sm:$0x3]
      %v2932 = vld [vmem:[%s875 + $0x1a0] sm:$0xff]
      %v2933 = vld [vmem:[%s875 + $0x1a8] sm:$0xff]
      %v2934 = vld [vmem:[%s875 + $0x1b0] sm:$0x3]
      %v2935 = vld [vmem:[%s875 + $0x1b8] sm:$0x3]
      %v2936 = vld [vmem:[%s875 + $0x1c0] sm:$0xff]
      %v2937 = vld [vmem:[%s875 + $0x1c8] sm:$0xff]
      %v2938 = vld [vmem:[%s875 + $0x1d0] sm:$0x3]
      %v2939 = vld [vmem:[%s875 + $0x1d8] sm:$0x3]
      %v2940 = vld [vmem:[%s875 + $0x1e0] sm:$0xff]
      %v2941 = vld [vmem:[%s875 + $0x1e8] sm:$0xff]
      %v2942 = vld [vmem:[%s875 + $0x1f0] sm:$0x3]
      %v2943 = vld [vmem:[%s875 + $0x1f8] sm:$0x3]
      %v2944 = vld [vmem:[%s956] sm:$0xff]
      %v2945 = vld [vmem:[%s956 + $0x8] sm:$0xff]
      %v2946 = vld [vmem:[%s956 + $0x10] sm:$0x3]
      %v2947 = vld [vmem:[%s956 + $0x18] sm:$0x3]
      %v2948 = vld [vmem:[%s956 + $0x20] sm:$0xff]
      %v2949 = vld [vmem:[%s956 + $0x28] sm:$0xff]
      %v2950 = vld [vmem:[%s956 + $0x30] sm:$0x3]
      %v2951 = vld [vmem:[%s956 + $0x38] sm:$0x3]
      %v2952 = vld [vmem:[%s956 + $0x40] sm:$0xff]
      %v2953 = vld [vmem:[%s956 + $0x48] sm:$0xff]
      %v2954 = vld [vmem:[%s956 + $0x50] sm:$0x3]
      %v2955 = vld [vmem:[%s956 + $0x58] sm:$0x3]
      %v2956 = vld [vmem:[%s956 + $0x60] sm:$0xff]
      %v2957 = vld [vmem:[%s956 + $0x68] sm:$0xff]
      %v2958 = vld [vmem:[%s956 + $0x70] sm:$0x3]
      %v2959 = vld [vmem:[%s956 + $0x78] sm:$0x3]
      %v2960 = vld [vmem:[%s956 + $0x80] sm:$0xff]
      %v2961 = vld [vmem:[%s956 + $0x88] sm:$0xff]
      %v2962 = vld [vmem:[%s956 + $0x90] sm:$0x3]
      %v2963 = vld [vmem:[%s956 + $0x98] sm:$0x3]
      %v2964 = vld [vmem:[%s956 + $0xa0] sm:$0xff]
      %v2965 = vld [vmem:[%s956 + $0xa8] sm:$0xff]
      %v2966 = vld [vmem:[%s956 + $0xb0] sm:$0x3]
      %v2967 = vld [vmem:[%s956 + $0xb8] sm:$0x3]
      %v2968 = vld [vmem:[%s956 + $0xc0] sm:$0xff]
      %v2969 = vld [vmem:[%s956 + $0xc8] sm:$0xff]
      %v2970 = vld [vmem:[%s956 + $0xd0] sm:$0x3]
      %v2971 = vld [vmem:[%s956 + $0xd8] sm:$0x3]
      %v2972 = vld [vmem:[%s956 + $0xe0] sm:$0xff]
      %v2973 = vld [vmem:[%s956 + $0xe8] sm:$0xff]
      %v2974 = vld [vmem:[%s956 + $0xf0] sm:$0x3]
      %v2975 = vld [vmem:[%s956 + $0xf8] sm:$0x3]
      %v2976 = vld [vmem:[%s956 + $0x100] sm:$0xff]
      %v2977 = vld [vmem:[%s956 + $0x108] sm:$0xff]
      %v2978 = vld [vmem:[%s956 + $0x110] sm:$0x3]
      %v2979 = vld [vmem:[%s956 + $0x118] sm:$0x3]
      %v2980 = vld [vmem:[%s956 + $0x120] sm:$0xff]
      %v2981 = vld [vmem:[%s956 + $0x128] sm:$0xff]
      %v2982 = vld [vmem:[%s956 + $0x130] sm:$0x3]
      %v2983 = vld [vmem:[%s956 + $0x138] sm:$0x3]
      %v2984 = vld [vmem:[%s956 + $0x140] sm:$0xff]
      %v2985 = vld [vmem:[%s956 + $0x148] sm:$0xff]
      %v2986 = vld [vmem:[%s956 + $0x150] sm:$0x3]
      %v2987 = vld [vmem:[%s956 + $0x158] sm:$0x3]
      %v2988 = vld [vmem:[%s956 + $0x160] sm:$0xff]
      %v2989 = vld [vmem:[%s956 + $0x168] sm:$0xff]
      %v2990 = vld [vmem:[%s956 + $0x170] sm:$0x3]
      %v2991 = vld [vmem:[%s956 + $0x178] sm:$0x3]
      %v2992 = vld [vmem:[%s956 + $0x180] sm:$0xff]
      %v2993 = vld [vmem:[%s956 + $0x188] sm:$0xff]
      %v2994 = vld [vmem:[%s956 + $0x190] sm:$0x3]
      %v2995 = vld [vmem:[%s956 + $0x198] sm:$0x3]
      %v2996 = vld [vmem:[%s956 + $0x1a0] sm:$0xff]
      %v2997 = vld [vmem:[%s956 + $0x1a8] sm:$0xff]
      %v2998 = vld [vmem:[%s956 + $0x1b0] sm:$0x3]
      %v2999 = vld [vmem:[%s956 + $0x1b8] sm:$0x3]
      %v3000 = vld [vmem:[%s956 + $0x1c0] sm:$0xff]
      %v3001 = vld [vmem:[%s956 + $0x1c8] sm:$0xff]
      %v3002 = vld [vmem:[%s956 + $0x1d0] sm:$0x3]
      %v3003 = vld [vmem:[%s956 + $0x1d8] sm:$0x3]
      %v3004 = vld [vmem:[%s956 + $0x1e0] sm:$0xff]
      %v3005 = vld [vmem:[%s956 + $0x1e8] sm:$0xff]
      %v3006 = vld [vmem:[%s956 + $0x1f0] sm:$0x3]
      %v3007 = vld [vmem:[%s956 + $0x1f8] sm:$0x3]
      %s3008 = scalar_lea.vmem %s4, 768
      %v3009 = vld [vmem:[%s3008] sm:$0xff]
      %v3010 = vld [vmem:[%s3008 + $0x8] sm:$0xff]
      %v3011 = vld [vmem:[%s3008 + $0x10] sm:$0xff]
      %v3012 = vld [vmem:[%s3008 + $0x18] sm:$0xff]
      %v3013 = vld [vmem:[%s3008 + $0x20] sm:$0xff]
      %v3014 = vld [vmem:[%s3008 + $0x28] sm:$0xff]
      %v3015 = vld [vmem:[%s3008 + $0x30] sm:$0xff]
      %v3016 = vld [vmem:[%s3008 + $0x38] sm:$0xff]
      %v3017 = vld [vmem:[%s3008 + $0x40] sm:$0xff]
      %v3018 = vld [vmem:[%s3008 + $0x48] sm:$0xff]
      %v3019 = vld [vmem:[%s3008 + $0x50] sm:$0xff]
      %v3020 = vld [vmem:[%s3008 + $0x58] sm:$0xff]
      %v3021 = vld [vmem:[%s3008 + $0x60] sm:$0xff]
      %v3022 = vld [vmem:[%s3008 + $0x68] sm:$0xff]
      %v3023 = vld [vmem:[%s3008 + $0x70] sm:$0xff]
      %v3024 = vld [vmem:[%s3008 + $0x78] sm:$0xff]
      %v3025 = vld [vmem:[%s3008 + $0x80] sm:$0xff]
      %v3026 = vld [vmem:[%s3008 + $0x88] sm:$0xff]
      %v3027 = vld [vmem:[%s3008 + $0x90] sm:$0xff]
      %v3028 = vld [vmem:[%s3008 + $0x98] sm:$0xff]
      %v3029 = vld [vmem:[%s3008 + $0xa0] sm:$0xff]
      %v3030 = vld [vmem:[%s3008 + $0xa8] sm:$0xff]
      %v3031 = vld [vmem:[%s3008 + $0xb0] sm:$0xff]
      %v3032 = vld [vmem:[%s3008 + $0xb8] sm:$0xff]
      %v3033 = vld [vmem:[%s3008 + $0xc0] sm:$0xff]
      %v3034 = vld [vmem:[%s3008 + $0xc8] sm:$0xff]
      %v3035 = vld [vmem:[%s3008 + $0xd0] sm:$0xff]
      %v3036 = vld [vmem:[%s3008 + $0xd8] sm:$0xff]
      %v3037 = vld [vmem:[%s3008 + $0xe0] sm:$0xff]
      %v3038 = vld [vmem:[%s3008 + $0xe8] sm:$0xff]
      %v3039 = vld [vmem:[%s3008 + $0xf0] sm:$0xff]
      %v3040 = vld [vmem:[%s3008 + $0xf8] sm:$0xff]
      %s3041 = scalar_lea.vmem %s4, 1024
      %v3042 = vld [vmem:[%s3041] sm:$0xff]
      %v3043 = vld [vmem:[%s3041 + $0x8] sm:$0xff]
      %v3044 = vld [vmem:[%s3041 + $0x10] sm:$0xff]
      %v3045 = vld [vmem:[%s3041 + $0x18] sm:$0xff]
      %v3046 = vld [vmem:[%s3041 + $0x20] sm:$0xff]
      %v3047 = vld [vmem:[%s3041 + $0x28] sm:$0xff]
      %v3048 = vld [vmem:[%s3041 + $0x30] sm:$0xff]
      %v3049 = vld [vmem:[%s3041 + $0x38] sm:$0xff]
      %v3050 = vld [vmem:[%s3041 + $0x40] sm:$0xff]
      %v3051 = vld [vmem:[%s3041 + $0x48] sm:$0xff]
      %v3052 = vld [vmem:[%s3041 + $0x50] sm:$0xff]
      %v3053 = vld [vmem:[%s3041 + $0x58] sm:$0xff]
      %v3054 = vld [vmem:[%s3041 + $0x60] sm:$0xff]
      %v3055 = vld [vmem:[%s3041 + $0x68] sm:$0xff]
      %v3056 = vld [vmem:[%s3041 + $0x70] sm:$0xff]
      %v3057 = vld [vmem:[%s3041 + $0x78] sm:$0xff]
      %v3058 = vld [vmem:[%s3041 + $0x80] sm:$0xff]
      %v3059 = vld [vmem:[%s3041 + $0x88] sm:$0xff]
      %v3060 = vld [vmem:[%s3041 + $0x90] sm:$0xff]
      %v3061 = vld [vmem:[%s3041 + $0x98] sm:$0xff]
      %v3062 = vld [vmem:[%s3041 + $0xa0] sm:$0xff]
      %v3063 = vld [vmem:[%s3041 + $0xa8] sm:$0xff]
      %v3064 = vld [vmem:[%s3041 + $0xb0] sm:$0xff]
      %v3065 = vld [vmem:[%s3041 + $0xb8] sm:$0xff]
      %v3066 = vld [vmem:[%s3041 + $0xc0] sm:$0xff]
      %v3067 = vld [vmem:[%s3041 + $0xc8] sm:$0xff]
      %v3068 = vld [vmem:[%s3041 + $0xd0] sm:$0xff]
      %v3069 = vld [vmem:[%s3041 + $0xd8] sm:$0xff]
      %v3070 = vld [vmem:[%s3041 + $0xe0] sm:$0xff]
      %v3071 = vld [vmem:[%s3041 + $0xe8] sm:$0xff]
      %v3072 = vld [vmem:[%s3041 + $0xf0] sm:$0xff]
      %v3073 = vld [vmem:[%s3041 + $0xf8] sm:$0xff]
      %s3074 = scalar_lea.vmem %s4, 1280
      %v3075 = vld [vmem:[%s3074] sm:$0xff]
      %v3076 = vld [vmem:[%s3074 + $0x8] sm:$0xff]
      %v3077 = vld [vmem:[%s3074 + $0x10] sm:$0xff]
      %v3078 = vld [vmem:[%s3074 + $0x18] sm:$0xff]
      %v3079 = vld [vmem:[%s3074 + $0x20] sm:$0xff]
      %v3080 = vld [vmem:[%s3074 + $0x28] sm:$0xff]
      %v3081 = vld [vmem:[%s3074 + $0x30] sm:$0xff]
      %v3082 = vld [vmem:[%s3074 + $0x38] sm:$0xff]
      %v3083 = vld [vmem:[%s3074 + $0x40] sm:$0xff]
      %v3084 = vld [vmem:[%s3074 + $0x48] sm:$0xff]
      %v3085 = vld [vmem:[%s3074 + $0x50] sm:$0xff]
      %v3086 = vld [vmem:[%s3074 + $0x58] sm:$0xff]
      %v3087 = vld [vmem:[%s3074 + $0x60] sm:$0xff]
      %v3088 = vld [vmem:[%s3074 + $0x68] sm:$0xff]
      %v3089 = vld [vmem:[%s3074 + $0x70] sm:$0xff]
      %v3090 = vld [vmem:[%s3074 + $0x78] sm:$0xff]
      %v3091 = vld [vmem:[%s3074 + $0x80] sm:$0xff]
      %v3092 = vld [vmem:[%s3074 + $0x88] sm:$0xff]
      %v3093 = vld [vmem:[%s3074 + $0x90] sm:$0xff]
      %v3094 = vld [vmem:[%s3074 + $0x98] sm:$0xff]
      %v3095 = vld [vmem:[%s3074 + $0xa0] sm:$0xff]
      %v3096 = vld [vmem:[%s3074 + $0xa8] sm:$0xff]
      %v3097 = vld [vmem:[%s3074 + $0xb0] sm:$0xff]
      %v3098 = vld [vmem:[%s3074 + $0xb8] sm:$0xff]
      %v3099 = vld [vmem:[%s3074 + $0xc0] sm:$0xff]
      %v3100 = vld [vmem:[%s3074 + $0xc8] sm:$0xff]
      %v3101 = vld [vmem:[%s3074 + $0xd0] sm:$0xff]
      %v3102 = vld [vmem:[%s3074 + $0xd8] sm:$0xff]
      %v3103 = vld [vmem:[%s3074 + $0xe0] sm:$0xff]
      %v3104 = vld [vmem:[%s3074 + $0xe8] sm:$0xff]
      %v3105 = vld [vmem:[%s3074 + $0xf0] sm:$0xff]
      %v3106 = vld [vmem:[%s3074 + $0xf8] sm:$0xff]
      %3107 = vmatprep.subr.mxu0 0.0
      %3108 = vmatpush1.msra.mxu0 %v3009
      %3109 = vmatprep.subr.mxu0 0.0
      %3110 = vmatpush1.msra.mxu0 %v3010
      %3111 = vmatprep.subr.mxu0 0.0
      %3112 = vmatpush1.msra.mxu0 %v3011
      %3113 = vmatprep.subr.mxu0 0.0
      %3114 = vmatpush1.msra.mxu0 %v3012
      %3115 = vmatprep.subr.mxu0 0.0
      %3116 = vmatpush1.msra.mxu0 %v3013
      %3117 = vmatprep.subr.mxu0 0.0
      %3118 = vmatpush1.msra.mxu0 %v3014
      %3119 = vmatprep.subr.mxu0 0.0
      %3120 = vmatpush1.msra.mxu0 %v3015
      %3121 = vmatprep.subr.mxu0 0.0
      %3122 = vmatpush1.msra.mxu0 %v3016
      %3123 = vmatprep.subr.mxu0 0.0
      %3124 = vmatpush1.msra.mxu0 %v3017
      %3125 = vmatprep.subr.mxu0 0.0
      %3126 = vmatpush1.msra.mxu0 %v3018
      %3127 = vmatprep.subr.mxu0 0.0
      %3128 = vmatpush1.msra.mxu0 %v3019
      %3129 = vmatprep.subr.mxu0 0.0
      %3130 = vmatpush1.msra.mxu0 %v3020
      %3131 = vmatprep.subr.mxu0 0.0
      %3132 = vmatpush1.msra.mxu0 %v3021
      %3133 = vmatprep.subr.mxu0 0.0
      %3134 = vmatpush1.msra.mxu0 %v3022
      %3135 = vmatprep.subr.mxu0 0.0
      %3136 = vmatpush1.msra.mxu0 %v3023
      %3137 = vmatprep.subr.mxu0 0.0
      %3138 = vmatpush1.msra.mxu0 %v3024
      %3139 = vmatprep.subr.mxu0 0.0
      %3140 = vmatpush1.msra.mxu0 %v3025
      %3141 = vmatprep.subr.mxu0 0.0
      %3142 = vmatpush1.msra.mxu0 %v3026
      %3143 = vmatprep.subr.mxu0 0.0
      %3144 = vmatpush1.msra.mxu0 %v3027
      %3145 = vmatprep.subr.mxu0 0.0
      %3146 = vmatpush1.msra.mxu0 %v3028
      %3147 = vmatprep.subr.mxu0 0.0
      %3148 = vmatpush1.msra.mxu0 %v3029
      %3149 = vmatprep.subr.mxu0 0.0
      %3150 = vmatpush1.msra.mxu0 %v3030
      %3151 = vmatprep.subr.mxu0 0.0
      %3152 = vmatpush1.msra.mxu0 %v3031
      %3153 = vmatprep.subr.mxu0 0.0
      %3154 = vmatpush1.msra.mxu0 %v3032
      %3155 = vmatprep.subr.mxu0 0.0
      %3156 = vmatpush1.msra.mxu0 %v3033
      %3157 = vmatprep.subr.mxu0 0.0
      %3158 = vmatpush1.msra.mxu0 %v3034
      %3159 = vmatprep.subr.mxu0 0.0
      %3160 = vmatpush1.msra.mxu0 %v3035
      %3161 = vmatprep.subr.mxu0 0.0
      %3162 = vmatpush1.msra.mxu0 %v3036
      %3163 = vmatprep.subr.mxu0 0.0
      %3164 = vmatpush1.msra.mxu0 %v3037
      %3165 = vmatprep.subr.mxu0 0.0
      %3166 = vmatpush1.msra.mxu0 %v3038
      %3167 = vmatprep.subr.mxu0 0.0
      %3168 = vmatpush1.msra.mxu0 %v3039
      %3169 = vmatprep.subr.mxu0 0.0
      %3170 = vmatpush1.msra.mxu0 %v3040
      %3171 = vmatprep.mubr.f32.mxu0 %v2945
      %3172 = vmatmul.mubr.f32.gmra.mrb[0].mxu0 %v2944
      %v3173 = vpop.f32.mrb[0].mxu0
      %v3174 = vadd.f32 0.0, %v3173
      %v3175 = vpop.f32.mrb[0].mxu0
      %3176 = vmatprep.mubr.f32.mxu0 %v2949
      %3177 = vmatmul.mubr.f32.gmra.mrb[0].mxu0 %v2948
      %v3178 = vpop.f32.mrb[0].mxu0
      %v3179 = vadd.f32 0.0, %v3178
      %v3180 = vpop.f32.mrb[0].mxu0
      %3181 = vmatprep.mubr.f32.mxu0 %v2953
      %3182 = vmatmul.mubr.f32.gmra.mrb[0].mxu0 %v2952
      %v3183 = vpop.f32.mrb[0].mxu0
      %v3184 = vadd.f32 0.0, %v3183
      %v3185 = vpop.f32.mrb[0].mxu0
      %3186 = vmatprep.mubr.f32.mxu0 %v2957
      %3187 = vmatmul.mubr.f32.gmra.mrb[0].mxu0 %v2956
      %v3188 = vpop.f32.mrb[0].mxu0
      %v3189 = vadd.f32 0.0, %v3188
      %v3190 = vpop.f32.mrb[0].mxu0
      %3191 = vmatprep.mubr.f32.mxu0 %v2961
      %3192 = vmatmul.mubr.f32.gmra.mrb[0].mxu0 %v2960
      %v3193 = vpop.f32.mrb[0].mxu0
      %v3194 = vadd.f32 0.0, %v3193
      %v3195 = vpop.f32.mrb[0].mxu0
      %3196 = vmatprep.mubr.f32.mxu0 %v2965
      %3197 = vmatmul.mubr.f32.gmra.mrb[0].mxu0 %v2964
      %v3198 = vpop.f32.mrb[0].mxu0
      %v3199 = vadd.f32 0.0, %v3198
      %v3200 = vpop.f32.mrb[0].mxu0
      %3201 = vmatprep.mubr.f32.mxu0 %v2969
      %3202 = vmatmul.mubr.f32.gmra.mrb[0].mxu0 %v2968
      %v3203 = vpop.f32.mrb[0].mxu0
      %v3204 = vadd.f32 0.0, %v3203
      %v3205 = vpop.f32.mrb[0].mxu0
      %3206 = vmatprep.mubr.f32.mxu0 %v2973
      %3207 = vmatmul.mubr.f32.gmra.mrb[0].mxu0 %v2972
      %v3208 = vpop.f32.mrb[0].mxu0
      %v3209 = vadd.f32 0.0, %v3208
      %v3210 = vpop.f32.mrb[0].mxu0
      %3211 = vmatprep.mubr.f32.mxu0 %v2977
      %3212 = vmatmul.mubr.f32.gmra.mrb[0].mxu0 %v2976
      %v3213 = vpop.f32.mrb[0].mxu0
      %v3214 = vadd.f32 0.0, %v3213
      %v3215 = vpop.f32.mrb[0].mxu0
      %3216 = vmatprep.mubr.f32.mxu0 %v2981
      %3217 = vmatmul.mubr.f32.gmra.mrb[0].mxu0 %v2980
      %v3218 = vpop.f32.mrb[0].mxu0
      %v3219 = vadd.f32 0.0, %v3218
      %v3220 = vpop.f32.mrb[0].mxu0
      %3221 = vmatprep.mubr.f32.mxu0 %v2985
      %3222 = vmatmul.mubr.f32.gmra.mrb[0].mxu0 %v2984
      %v3223 = vpop.f32.mrb[0].mxu0
      %v3224 = vadd.f32 0.0, %v3223
      %v3225 = vpop.f32.mrb[0].mxu0
      %3226 = vmatprep.mubr.f32.mxu0 %v2989
      %3227 = vmatmul.mubr.f32.gmra.mrb[0].mxu0 %v2988
      %v3228 = vpop.f32.mrb[0].mxu0
      %v3229 = vadd.f32 0.0, %v3228
      %v3230 = vpop.f32.mrb[0].mxu0
      %3231 = vmatprep.mubr.f32.mxu0 %v2993
      %3232 = vmatmul.mubr.f32.gmra.mrb[0].mxu0 %v2992
      %v3233 = vpop.f32.mrb[0].mxu0
      %v3234 = vadd.f32 0.0, %v3233
      %v3235 = vpop.f32.mrb[0].mxu0
      %3236 = vmatprep.mubr.f32.mxu0 %v2997
      %3237 = vmatmul.mubr.f32.gmra.mrb[0].mxu0 %v2996
      %v3238 = vpop.f32.mrb[0].mxu0
      %v3239 = vadd.f32 0.0, %v3238
      %v3240 = vpop.f32.mrb[0].mxu0
      %3241 = vmatprep.mubr.f32.mxu0 %v3001
      %3242 = vmatmul.mubr.f32.gmra.mrb[0].mxu0 %v3000
      %v3243 = vpop.f32.mrb[0].mxu0
      %v3244 = vadd.f32 0.0, %v3243
      %v3245 = vpop.f32.mrb[0].mxu0
      %3246 = vmatprep.mubr.f32.mxu0 %v3005
      %3247 = vmatmul.mubr.f32.gmra.mrb[0].mxu0 %v3004
      %v3248 = vpop.f32.mrb[0].mxu0
      %v3249 = vadd.f32 0.0, %v3248
      %v3250 = vpop.f32.mrb[0].mxu0
      %3251 = vdwg.mxu0
      %v3252 = vadd.f32 %v2252, %v3174
      %v3253 = vadd.f32 %v2253, %v3179
      %v3254 = vadd.f32 %v2254, %v3184
      %v3255 = vadd.f32 %v2255, %v3189
      %v3256 = vadd.f32 %v2256, %v3194
      %v3257 = vadd.f32 %v2257, %v3199
      %v3258 = vadd.f32 %v2258, %v3204
      %v3259 = vadd.f32 %v2259, %v3209
      %v3260 = vadd.f32 %v2260, %v3214
      %v3261 = vadd.f32 %v2261, %v3219
      %v3262 = vadd.f32 %v2262, %v3224
      %v3263 = vadd.f32 %v2263, %v3229
      %v3264 = vadd.f32 %v2264, %v3234
      %v3265 = vadd.f32 %v2265, %v3239
      %v3266 = vadd.f32 %v2266, %v3244
      %v3267 = vadd.f32 %v2267, %v3249
      %v3332 = vrot.slane %v2880, 1
      %v3333 = vrot.slane %v2882, 1
      %v3334 = vsel %vm1625, %v3332, %v3333
      %v3335 = vrot.slane %v2881, 1
      %v3336 = vrot.slane %v2883, 1
      %v3337 = vsel %vm1625, %v3335, %v3336
      %v3338 = vrot.slane %v2884, 1
      %v3339 = vrot.slane %v2886, 1
      %v3340 = vsel %vm1625, %v3338, %v3339
      %v3341 = vrot.slane %v2885, 1
      %v3342 = vrot.slane %v2887, 1
      %v3343 = vsel %vm1625, %v3341, %v3342
      %v3344 = vrot.slane %v2888, 1
      %v3345 = vrot.slane %v2890, 1
      %v3346 = vsel %vm1625, %v3344, %v3345
      %v3347 = vrot.slane %v2889, 1
      %v3348 = vrot.slane %v2891, 1
      %v3349 = vsel %vm1625, %v3347, %v3348
      %v3350 = vrot.slane %v2892, 1
      %v3351 = vrot.slane %v2894, 1
      %v3352 = vsel %vm1625, %v3350, %v3351
      %v3353 = vrot.slane %v2893, 1
      %v3354 = vrot.slane %v2895, 1
      %v3355 = vsel %vm1625, %v3353, %v3354
      %v3356 = vrot.slane %v2896, 1
      %v3357 = vrot.slane %v2898, 1
      %v3358 = vsel %vm1625, %v3356, %v3357
      %v3359 = vrot.slane %v2897, 1
      %v3360 = vrot.slane %v2899, 1
      %v3361 = vsel %vm1625, %v3359, %v3360
      %v3362 = vrot.slane %v2900, 1
      %v3363 = vrot.slane %v2902, 1
      %v3364 = vsel %vm1625, %v3362, %v3363
      %v3365 = vrot.slane %v2901, 1
      %v3366 = vrot.slane %v2903, 1
      %v3367 = vsel %vm1625, %v3365, %v3366
      %v3368 = vrot.slane %v2904, 1
      %v3369 = vrot.slane %v2906, 1
      %v3370 = vsel %vm1625, %v3368, %v3369
      %v3371 = vrot.slane %v2905, 1
      %v3372 = vrot.slane %v2907, 1
      %v3373 = vsel %vm1625, %v3371, %v3372
      %v3374 = vrot.slane %v2908, 1
      %v3375 = vrot.slane %v2910, 1
      %v3376 = vsel %vm1625, %v3374, %v3375
      %v3377 = vrot.slane %v2909, 1
      %v3378 = vrot.slane %v2911, 1
      %v3379 = vsel %vm1625, %v3377, %v3378
      %v3380 = vrot.slane %v2912, 1
      %v3381 = vrot.slane %v2914, 1
      %v3382 = vsel %vm1625, %v3380, %v3381
      %v3383 = vrot.slane %v2913, 1
      %v3384 = vrot.slane %v2915, 1
      %v3385 = vsel %vm1625, %v3383, %v3384
      %v3386 = vrot.slane %v2916, 1
      %v3387 = vrot.slane %v2918, 1
      %v3388 = vsel %vm1625, %v3386, %v3387
      %v3389 = vrot.slane %v2917, 1
      %v3390 = vrot.slane %v2919, 1
      %v3391 = vsel %vm1625, %v3389, %v3390
      %v3392 = vrot.slane %v2920, 1
      %v3393 = vrot.slane %v2922, 1
      %v3394 = vsel %vm1625, %v3392, %v3393
      %v3395 = vrot.slane %v2921, 1
      %v3396 = vrot.slane %v2923, 1
      %v3397 = vsel %vm1625, %v3395, %v3396
      %v3398 = vrot.slane %v2924, 1
      %v3399 = vrot.slane %v2926, 1
      %v3400 = vsel %vm1625, %v3398, %v3399
      %v3401 = vrot.slane %v2925, 1
      %v3402 = vrot.slane %v2927, 1
      %v3403 = vsel %vm1625, %v3401, %v3402
      %v3404 = vrot.slane %v2928, 1
      %v3405 = vrot.slane %v2930, 1
      %v3406 = vsel %vm1625, %v3404, %v3405
      %v3407 = vrot.slane %v2929, 1
      %v3408 = vrot.slane %v2931, 1
      %v3409 = vsel %vm1625, %v3407, %v3408
      %v3410 = vrot.slane %v2932, 1
      %v3411 = vrot.slane %v2934, 1
      %v3412 = vsel %vm1625, %v3410, %v3411
      %v3413 = vrot.slane %v2933, 1
      %v3414 = vrot.slane %v2935, 1
      %v3415 = vsel %vm1625, %v3413, %v3414
      %v3416 = vrot.slane %v2936, 1
      %v3417 = vrot.slane %v2938, 1
      %v3418 = vsel %vm1625, %v3416, %v3417
      %v3419 = vrot.slane %v2937, 1
      %v3420 = vrot.slane %v2939, 1
      %v3421 = vsel %vm1625, %v3419, %v3420
      %v3422 = vrot.slane %v2940, 1
      %v3423 = vrot.slane %v2942, 1
      %v3424 = vsel %vm1625, %v3422, %v3423
      %v3425 = vrot.slane %v2941, 1
      %v3426 = vrot.slane %v2943, 1
      %v3427 = vsel %vm1625, %v3425, %v3426
      %3460 = vmatprep.subr.mxu0 0.0
      %3461 = vmatpush1.msra.mxu0 %v3042
      %3462 = vmatprep.subr.mxu0 0.0
      %3463 = vmatpush1.msra.mxu0 %v3043
      %3464 = vmatprep.subr.mxu0 0.0
      %3465 = vmatpush1.msra.mxu0 %v3044
      %3466 = vmatprep.subr.mxu0 0.0
      %3467 = vmatpush1.msra.mxu0 %v3045
      %3468 = vmatprep.subr.mxu0 0.0
      %3469 = vmatpush1.msra.mxu0 %v3046
      %3470 = vmatprep.subr.mxu0 0.0
      %3471 = vmatpush1.msra.mxu0 %v3047
      %3472 = vmatprep.subr.mxu0 0.0
      %3473 = vmatpush1.msra.mxu0 %v3048
      %3474 = vmatprep.subr.mxu0 0.0
      %3475 = vmatpush1.msra.mxu0 %v3049
      %3476 = vmatprep.subr.mxu0 0.0
      %3477 = vmatpush1.msra.mxu0 %v3050
      %3478 = vmatprep.subr.mxu0 0.0
      %3479 = vmatpush1.msra.mxu0 %v3051
      %3480 = vmatprep.subr.mxu0 0.0
      %3481 = vmatpush1.msra.mxu0 %v3052
      %3482 = vmatprep.subr.mxu0 0.0
      %3483 = vmatpush1.msra.mxu0 %v3053
      %3484 = vmatprep.subr.mxu0 0.0
      %3485 = vmatpush1.msra.mxu0 %v3054
      %3486 = vmatprep.subr.mxu0 0.0
      %3487 = vmatpush1.msra.mxu0 %v3055
      %3488 = vmatprep.subr.mxu0 0.0
      %3489 = vmatpush1.msra.mxu0 %v3056
      %3490 = vmatprep.subr.mxu0 0.0
      %3491 = vmatpush1.msra.mxu0 %v3057
      %3492 = vmatprep.subr.mxu0 0.0
      %3493 = vmatpush1.msra.mxu0 %v3058
      %3494 = vmatprep.subr.mxu0 0.0
      %3495 = vmatpush1.msra.mxu0 %v3059
      %3496 = vmatprep.subr.mxu0 0.0
      %3497 = vmatpush1.msra.mxu0 %v3060
      %3498 = vmatprep.subr.mxu0 0.0
      %3499 = vmatpush1.msra.mxu0 %v3061
      %3500 = vmatprep.subr.mxu0 0.0
      %3501 = vmatpush1.msra.mxu0 %v3062
      %3502 = vmatprep.subr.mxu0 0.0
      %3503 = vmatpush1.msra.mxu0 %v3063
      %3504 = vmatprep.subr.mxu0 0.0
      %3505 = vmatpush1.msra.mxu0 %v3064
      %3506 = vmatprep.subr.mxu0 0.0
      %3507 = vmatpush1.msra.mxu0 %v3065
      %3508 = vmatprep.subr.mxu0 0.0
      %3509 = vmatpush1.msra.mxu0 %v3066
      %3510 = vmatprep.subr.mxu0 0.0
      %3511 = vmatpush1.msra.mxu0 %v3067
      %3512 = vmatprep.subr.mxu0 0.0
      %3513 = vmatpush1.msra.mxu0 %v3068
      %3514 = vmatprep.subr.mxu0 0.0
      %3515 = vmatpush1.msra.mxu0 %v3069
      %3516 = vmatprep.subr.mxu0 0.0
      %3517 = vmatpush1.msra.mxu0 %v3070
      %3518 = vmatprep.subr.mxu0 0.0
      %3519 = vmatpush1.msra.mxu0 %v3071
      %3520 = vmatprep.subr.mxu0 0.0
      %3521 = vmatpush1.msra.mxu0 %v3072
      %3522 = vmatprep.subr.mxu0 0.0
      %3523 = vmatpush1.msra.mxu0 %v3073
      %3524 = vmatprep.mubr.f32.mxu0 %v3337
      %3525 = vmatmul.mubr.f32.gmra.mrb[0].mxu0 %v3334
      %v3526 = vpop.f32.mrb[0].mxu0
      %v3527 = vadd.f32 0.0, %v3526
      %v3528 = vpop.f32.mrb[0].mxu0
      %3529 = vmatprep.mubr.f32.mxu0 %v3343
      %3530 = vmatmul.mubr.f32.gmra.mrb[0].mxu0 %v3340
      %v3531 = vpop.f32.mrb[0].mxu0
      %v3532 = vadd.f32 0.0, %v3531
      %v3533 = vpop.f32.mrb[0].mxu0
      %3534 = vmatprep.mubr.f32.mxu0 %v3349
      %3535 = vmatmul.mubr.f32.gmra.mrb[0].mxu0 %v3346
      %v3536 = vpop.f32.mrb[0].mxu0
      %v3537 = vadd.f32 0.0, %v3536
      %v3538 = vpop.f32.mrb[0].mxu0
      %3539 = vmatprep.mubr.f32.mxu0 %v3355
      %3540 = vmatmul.mubr.f32.gmra.mrb[0].mxu0 %v3352
      %v3541 = vpop.f32.mrb[0].mxu0
      %v3542 = vadd.f32 0.0, %v3541
      %v3543 = vpop.f32.mrb[0].mxu0
      %3544 = vmatprep.mubr.f32.mxu0 %v3361
      %3545 = vmatmul.mubr.f32.gmra.mrb[0].mxu0 %v3358
      %v3546 = vpop.f32.mrb[0].mxu0
      %v3547 = vadd.f32 0.0, %v3546
      %v3548 = vpop.f32.mrb[0].mxu0
      %3549 = vmatprep.mubr.f32.mxu0 %v3367
      %3550 = vmatmul.mubr.f32.gmra.mrb[0].mxu0 %v3364
      %v3551 = vpop.f32.mrb[0].mxu0
      %v3552 = vadd.f32 0.0, %v3551
      %v3553 = vpop.f32.mrb[0].mxu0
      %3554 = vmatprep.mubr.f32.mxu0 %v3373
      %3555 = vmatmul.mubr.f32.gmra.mrb[0].mxu0 %v3370
      %v3556 = vpop.f32.mrb[0].mxu0
      %v3557 = vadd.f32 0.0, %v3556
      %v3558 = vpop.f32.mrb[0].mxu0
      %3559 = vmatprep.mubr.f32.mxu0 %v3379
      %3560 = vmatmul.mubr.f32.gmra.mrb[0].mxu0 %v3376
      %v3561 = vpop.f32.mrb[0].mxu0
      %v3562 = vadd.f32 0.0, %v3561
      %v3563 = vpop.f32.mrb[0].mxu0
      %3564 = vmatprep.mubr.f32.mxu0 %v3385
      %3565 = vmatmul.mubr.f32.gmra.mrb[0].mxu0 %v3382
      %v3566 = vpop.f32.mrb[0].mxu0
      %v3567 = vadd.f32 0.0, %v3566
      %v3568 = vpop.f32.mrb[0].mxu0
      %3569 = vmatprep.mubr.f32.mxu0 %v3391
      %3570 = vmatmul.mubr.f32.gmra.mrb[0].mxu0 %v3388
      %v3571 = vpop.f32.mrb[0].mxu0
      %v3572 = vadd.f32 0.0, %v3571
      %v3573 = vpop.f32.mrb[0].mxu0
      %3574 = vmatprep.mubr.f32.mxu0 %v3397
      %3575 = vmatmul.mubr.f32.gmra.mrb[0].mxu0 %v3394
      %v3576 = vpop.f32.mrb[0].mxu0
      %v3577 = vadd.f32 0.0, %v3576
      %v3578 = vpop.f32.mrb[0].mxu0
      %3579 = vmatprep.mubr.f32.mxu0 %v3403
      %3580 = vmatmul.mubr.f32.gmra.mrb[0].mxu0 %v3400
      %v3581 = vpop.f32.mrb[0].mxu0
      %v3582 = vadd.f32 0.0, %v3581
      %v3583 = vpop.f32.mrb[0].mxu0
      %3584 = vmatprep.mubr.f32.mxu0 %v3409
      %3585 = vmatmul.mubr.f32.gmra.mrb[0].mxu0 %v3406
      %v3586 = vpop.f32.mrb[0].mxu0
      %v3587 = vadd.f32 0.0, %v3586
      %v3588 = vpop.f32.mrb[0].mxu0
      %3589 = vmatprep.mubr.f32.mxu0 %v3415
      %3590 = vmatmul.mubr.f32.gmra.mrb[0].mxu0 %v3412
      %v3591 = vpop.f32.mrb[0].mxu0
      %v3592 = vadd.f32 0.0, %v3591
      %v3593 = vpop.f32.mrb[0].mxu0
      %3594 = vmatprep.mubr.f32.mxu0 %v3421
      %3595 = vmatmul.mubr.f32.gmra.mrb[0].mxu0 %v3418
      %v3596 = vpop.f32.mrb[0].mxu0
      %v3597 = vadd.f32 0.0, %v3596
      %v3598 = vpop.f32.mrb[0].mxu0
      %3599 = vmatprep.mubr.f32.mxu0 %v3427
      %3600 = vmatmul.mubr.f32.gmra.mrb[0].mxu0 %v3424
      %v3601 = vpop.f32.mrb[0].mxu0
      %v3602 = vadd.f32 0.0, %v3601
      %v3603 = vpop.f32.mrb[0].mxu0
      %3604 = vdwg.mxu0
      %v3605 = vadd.f32 %v3252, %v3527
      %v3606 = vadd.f32 %v3253, %v3532
      %v3607 = vadd.f32 %v3254, %v3537
      %v3608 = vadd.f32 %v3255, %v3542
      %v3609 = vadd.f32 %v3256, %v3547
      %v3610 = vadd.f32 %v3257, %v3552
      %v3611 = vadd.f32 %v3258, %v3557
      %v3612 = vadd.f32 %v3259, %v3562
      %v3613 = vadd.f32 %v3260, %v3567
      %v3614 = vadd.f32 %v3261, %v3572
      %v3615 = vadd.f32 %v3262, %v3577
      %v3616 = vadd.f32 %v3263, %v3582
      %v3617 = vadd.f32 %v3264, %v3587
      %v3618 = vadd.f32 %v3265, %v3592
      %v3619 = vadd.f32 %v3266, %v3597
      %v3620 = vadd.f32 %v3267, %v3602
      %v3685 = vrot.slane %v2944, 1
      %v3686 = vrot.slane %v2946, 1
      %v3687 = vsel %vm1625, %v3685, %v3686
      %v3688 = vrot.slane %v2945, 1
      %v3689 = vrot.slane %v2947, 1
      %v3690 = vsel %vm1625, %v3688, %v3689
      %v3691 = vrot.slane %v2948, 1
      %v3692 = vrot.slane %v2950, 1
      %v3693 = vsel %vm1625, %v3691, %v3692
      %v3694 = vrot.slane %v2949, 1
      %v3695 = vrot.slane %v2951, 1
      %v3696 = vsel %vm1625, %v3694, %v3695
      %v3697 = vrot.slane %v2952, 1
      %v3698 = vrot.slane %v2954, 1
      %v3699 = vsel %vm1625, %v3697, %v3698
      %v3700 = vrot.slane %v2953, 1
      %v3701 = vrot.slane %v2955, 1
      %v3702 = vsel %vm1625, %v3700, %v3701
      %v3703 = vrot.slane %v2956, 1
      %v3704 = vrot.slane %v2958, 1
      %v3705 = vsel %vm1625, %v3703, %v3704
      %v3706 = vrot.slane %v2957, 1
      %v3707 = vrot.slane %v2959, 1
      %v3708 = vsel %vm1625, %v3706, %v3707
      %v3709 = vrot.slane %v2960, 1
      %v3710 = vrot.slane %v2962, 1
      %v3711 = vsel %vm1625, %v3709, %v3710
      %v3712 = vrot.slane %v2961, 1
      %v3713 = vrot.slane %v2963, 1
      %v3714 = vsel %vm1625, %v3712, %v3713
      %v3715 = vrot.slane %v2964, 1
      %v3716 = vrot.slane %v2966, 1
      %v3717 = vsel %vm1625, %v3715, %v3716
      %v3718 = vrot.slane %v2965, 1
      %v3719 = vrot.slane %v2967, 1
      %v3720 = vsel %vm1625, %v3718, %v3719
      %v3721 = vrot.slane %v2968, 1
      %v3722 = vrot.slane %v2970, 1
      %v3723 = vsel %vm1625, %v3721, %v3722
      %v3724 = vrot.slane %v2969, 1
      %v3725 = vrot.slane %v2971, 1
      %v3726 = vsel %vm1625, %v3724, %v3725
      %v3727 = vrot.slane %v2972, 1
      %v3728 = vrot.slane %v2974, 1
      %v3729 = vsel %vm1625, %v3727, %v3728
      %v3730 = vrot.slane %v2973, 1
      %v3731 = vrot.slane %v2975, 1
      %v3732 = vsel %vm1625, %v3730, %v3731
      %v3733 = vrot.slane %v2976, 1
      %v3734 = vrot.slane %v2978, 1
      %v3735 = vsel %vm1625, %v3733, %v3734
      %v3736 = vrot.slane %v2977, 1
      %v3737 = vrot.slane %v2979, 1
      %v3738 = vsel %vm1625, %v3736, %v3737
      %v3739 = vrot.slane %v2980, 1
      %v3740 = vrot.slane %v2982, 1
      %v3741 = vsel %vm1625, %v3739, %v3740
      %v3742 = vrot.slane %v2981, 1
      %v3743 = vrot.slane %v2983, 1
      %v3744 = vsel %vm1625, %v3742, %v3743
      %v3745 = vrot.slane %v2984, 1
      %v3746 = vrot.slane %v2986, 1
      %v3747 = vsel %vm1625, %v3745, %v3746
      %v3748 = vrot.slane %v2985, 1
      %v3749 = vrot.slane %v2987, 1
      %v3750 = vsel %vm1625, %v3748, %v3749
      %v3751 = vrot.slane %v2988, 1
      %v3752 = vrot.slane %v2990, 1
      %v3753 = vsel %vm1625, %v3751, %v3752
      %v3754 = vrot.slane %v2989, 1
      %v3755 = vrot.slane %v2991, 1
      %v3756 = vsel %vm1625, %v3754, %v3755
      %v3757 = vrot.slane %v2992, 1
      %v3758 = vrot.slane %v2994, 1
      %v3759 = vsel %vm1625, %v3757, %v3758
      %v3760 = vrot.slane %v2993, 1
      %v3761 = vrot.slane %v2995, 1
      %v3762 = vsel %vm1625, %v3760, %v3761
      %v3763 = vrot.slane %v2996, 1
      %v3764 = vrot.slane %v2998, 1
      %v3765 = vsel %vm1625, %v3763, %v3764
      %v3766 = vrot.slane %v2997, 1
      %v3767 = vrot.slane %v2999, 1
      %v3768 = vsel %vm1625, %v3766, %v3767
      %v3769 = vrot.slane %v3000, 1
      %v3770 = vrot.slane %v3002, 1
      %v3771 = vsel %vm1625, %v3769, %v3770
      %v3772 = vrot.slane %v3001, 1
      %v3773 = vrot.slane %v3003, 1
      %v3774 = vsel %vm1625, %v3772, %v3773
      %v3775 = vrot.slane %v3004, 1
      %v3776 = vrot.slane %v3006, 1
      %v3777 = vsel %vm1625, %v3775, %v3776
      %v3778 = vrot.slane %v3005, 1
      %v3779 = vrot.slane %v3007, 1
      %v3780 = vsel %vm1625, %v3778, %v3779
      %3813 = vmatprep.subr.mxu0 0.0
      %3814 = vmatpush1.msra.mxu0 %v3075
      %3815 = vmatprep.subr.mxu0 0.0
      %3816 = vmatpush1.msra.mxu0 %v3076
      %3817 = vmatprep.subr.mxu0 0.0
      %3818 = vmatpush1.msra.mxu0 %v3077
      %3819 = vmatprep.subr.mxu0 0.0
      %3820 = vmatpush1.msra.mxu0 %v3078
      %3821 = vmatprep.subr.mxu0 0.0
      %3822 = vmatpush1.msra.mxu0 %v3079
      %3823 = vmatprep.subr.mxu0 0.0
      %3824 = vmatpush1.msra.mxu0 %v3080
      %3825 = vmatprep.subr.mxu0 0.0
      %3826 = vmatpush1.msra.mxu0 %v3081
      %3827 = vmatprep.subr.mxu0 0.0
      %3828 = vmatpush1.msra.mxu0 %v3082
      %3829 = vmatprep.subr.mxu0 0.0
      %3830 = vmatpush1.msra.mxu0 %v3083
      %3831 = vmatprep.subr.mxu0 0.0
      %3832 = vmatpush1.msra.mxu0 %v3084
      %3833 = vmatprep.subr.mxu0 0.0
      %3834 = vmatpush1.msra.mxu0 %v3085
      %3835 = vmatprep.subr.mxu0 0.0
      %3836 = vmatpush1.msra.mxu0 %v3086
      %3837 = vmatprep.subr.mxu0 0.0
      %3838 = vmatpush1.msra.mxu0 %v3087
      %3839 = vmatprep.subr.mxu0 0.0
      %3840 = vmatpush1.msra.mxu0 %v3088
      %3841 = vmatprep.subr.mxu0 0.0
      %3842 = vmatpush1.msra.mxu0 %v3089
      %3843 = vmatprep.subr.mxu0 0.0
      %3844 = vmatpush1.msra.mxu0 %v3090
      %3845 = vmatprep.subr.mxu0 0.0
      %3846 = vmatpush1.msra.mxu0 %v3091
      %3847 = vmatprep.subr.mxu0 0.0
      %3848 = vmatpush1.msra.mxu0 %v3092
      %3849 = vmatprep.subr.mxu0 0.0
      %3850 = vmatpush1.msra.mxu0 %v3093
      %3851 = vmatprep.subr.mxu0 0.0
      %3852 = vmatpush1.msra.mxu0 %v3094
      %3853 = vmatprep.subr.mxu0 0.0
      %3854 = vmatpush1.msra.mxu0 %v3095
      %3855 = vmatprep.subr.mxu0 0.0
      %3856 = vmatpush1.msra.mxu0 %v3096
      %3857 = vmatprep.subr.mxu0 0.0
      %3858 = vmatpush1.msra.mxu0 %v3097
      %3859 = vmatprep.subr.mxu0 0.0
      %3860 = vmatpush1.msra.mxu0 %v3098
      %3861 = vmatprep.subr.mxu0 0.0
      %3862 = vmatpush1.msra.mxu0 %v3099
      %3863 = vmatprep.subr.mxu0 0.0
      %3864 = vmatpush1.msra.mxu0 %v3100
      %3865 = vmatprep.subr.mxu0 0.0
      %3866 = vmatpush1.msra.mxu0 %v3101
      %3867 = vmatprep.subr.mxu0 0.0
      %3868 = vmatpush1.msra.mxu0 %v3102
      %3869 = vmatprep.subr.mxu0 0.0
      %3870 = vmatpush1.msra.mxu0 %v3103
      %3871 = vmatprep.subr.mxu0 0.0
      %3872 = vmatpush1.msra.mxu0 %v3104
      %3873 = vmatprep.subr.mxu0 0.0
      %3874 = vmatpush1.msra.mxu0 %v3105
      %3875 = vmatprep.subr.mxu0 0.0
      %3876 = vmatpush1.msra.mxu0 %v3106
      %3877 = vmatprep.mubr.f32.mxu0 %v3690
      %3878 = vmatmul.mubr.f32.gmra.mrb[0].mxu0 %v3687
      %v3879 = vpop.f32.mrb[0].mxu0
      %v3880 = vadd.f32 0.0, %v3879
      %v3881 = vpop.f32.mrb[0].mxu0
      %3882 = vmatprep.mubr.f32.mxu0 %v3696
      %3883 = vmatmul.mubr.f32.gmra.mrb[0].mxu0 %v3693
      %v3884 = vpop.f32.mrb[0].mxu0
      %v3885 = vadd.f32 0.0, %v3884
      %v3886 = vpop.f32.mrb[0].mxu0
      %3887 = vmatprep.mubr.f32.mxu0 %v3702
      %3888 = vmatmul.mubr.f32.gmra.mrb[0].mxu0 %v3699
      %v3889 = vpop.f32.mrb[0].mxu0
      %v3890 = vadd.f32 0.0, %v3889
      %v3891 = vpop.f32.mrb[0].mxu0
      %3892 = vmatprep.mubr.f32.mxu0 %v3708
      %3893 = vmatmul.mubr.f32.gmra.mrb[0].mxu0 %v3705
      %v3894 = vpop.f32.mrb[0].mxu0
      %v3895 = vadd.f32 0.0, %v3894
      %v3896 = vpop.f32.mrb[0].mxu0
      %3897 = vmatprep.mubr.f32.mxu0 %v3714
      %3898 = vmatmul.mubr.f32.gmra.mrb[0].mxu0 %v3711
      %v3899 = vpop.f32.mrb[0].mxu0
      %v3900 = vadd.f32 0.0, %v3899
      %v3901 = vpop.f32.mrb[0].mxu0
      %3902 = vmatprep.mubr.f32.mxu0 %v3720
      %3903 = vmatmul.mubr.f32.gmra.mrb[0].mxu0 %v3717
      %v3904 = vpop.f32.mrb[0].mxu0
      %v3905 = vadd.f32 0.0, %v3904
      %v3906 = vpop.f32.mrb[0].mxu0
      %3907 = vmatprep.mubr.f32.mxu0 %v3726
      %3908 = vmatmul.mubr.f32.gmra.mrb[0].mxu0 %v3723
      %v3909 = vpop.f32.mrb[0].mxu0
      %v3910 = vadd.f32 0.0, %v3909
      %v3911 = vpop.f32.mrb[0].mxu0
      %3912 = vmatprep.mubr.f32.mxu0 %v3732
      %3913 = vmatmul.mubr.f32.gmra.mrb[0].mxu0 %v3729
      %v3914 = vpop.f32.mrb[0].mxu0
      %v3915 = vadd.f32 0.0, %v3914
      %v3916 = vpop.f32.mrb[0].mxu0
      %3917 = vmatprep.mubr.f32.mxu0 %v3738
      %3918 = vmatmul.mubr.f32.gmra.mrb[0].mxu0 %v3735
      %v3919 = vpop.f32.mrb[0].mxu0
      %v3920 = vadd.f32 0.0, %v3919
      %v3921 = vpop.f32.mrb[0].mxu0
      %3922 = vmatprep.mubr.f32.mxu0 %v3744
      %3923 = vmatmul.mubr.f32.gmra.mrb[0].mxu0 %v3741
      %v3924 = vpop.f32.mrb[0].mxu0
      %v3925 = vadd.f32 0.0, %v3924
      %v3926 = vpop.f32.mrb[0].mxu0
      %3927 = vmatprep.mubr.f32.mxu0 %v3750
      %3928 = vmatmul.mubr.f32.gmra.mrb[0].mxu0 %v3747
      %v3929 = vpop.f32.mrb[0].mxu0
      %v3930 = vadd.f32 0.0, %v3929
      %v3931 = vpop.f32.mrb[0].mxu0
      %3932 = vmatprep.mubr.f32.mxu0 %v3756
      %3933 = vmatmul.mubr.f32.gmra.mrb[0].mxu0 %v3753
      %v3934 = vpop.f32.mrb[0].mxu0
      %v3935 = vadd.f32 0.0, %v3934
      %v3936 = vpop.f32.mrb[0].mxu0
      %3937 = vmatprep.mubr.f32.mxu0 %v3762
      %3938 = vmatmul.mubr.f32.gmra.mrb[0].mxu0 %v3759
      %v3939 = vpop.f32.mrb[0].mxu0
      %v3940 = vadd.f32 0.0, %v3939
      %v3941 = vpop.f32.mrb[0].mxu0
      %3942 = vmatprep.mubr.f32.mxu0 %v3768
      %3943 = vmatmul.mubr.f32.gmra.mrb[0].mxu0 %v3765
      %v3944 = vpop.f32.mrb[0].mxu0
      %v3945 = vadd.f32 0.0, %v3944
      %v3946 = vpop.f32.mrb[0].mxu0
      %3947 = vmatprep.mubr.f32.mxu0 %v3774
      %3948 = vmatmul.mubr.f32.gmra.mrb[0].mxu0 %v3771
      %v3949 = vpop.f32.mrb[0].mxu0
      %v3950 = vadd.f32 0.0, %v3949
      %v3951 = vpop.f32.mrb[0].mxu0
      %3952 = vmatprep.mubr.f32.mxu0 %v3780
      %3953 = vmatmul.mubr.f32.gmra.mrb[0].mxu0 %v3777
      %v3954 = vpop.f32.mrb[0].mxu0
      %v3955 = vadd.f32 0.0, %v3954
      %v3956 = vpop.f32.mrb[0].mxu0
      %3957 = vdwg.mxu0
      %v3958 = vadd.f32 %v3605, %v3880
      %v3959 = vadd.f32 %v3606, %v3885
      %v3960 = vadd.f32 %v3607, %v3890
      %v3961 = vadd.f32 %v3608, %v3895
      %v3962 = vadd.f32 %v3609, %v3900
      %v3963 = vadd.f32 %v3610, %v3905
      %v3964 = vadd.f32 %v3611, %v3910
      %v3965 = vadd.f32 %v3612, %v3915
      %v3966 = vadd.f32 %v3613, %v3920
      %v3967 = vadd.f32 %v3614, %v3925
      %v3968 = vadd.f32 %v3615, %v3930
      %v3969 = vadd.f32 %v3616, %v3935
      %v3970 = vadd.f32 %v3617, %v3940
      %v3971 = vadd.f32 %v3618, %v3945
      %v3972 = vadd.f32 %v3619, %v3950
      %v3973 = vadd.f32 %v3620, %v3955
      %3974 = vmatprep.subr.mxu0 0.0
      %3975 = vmatpush1.msra.mxu0 %v3009
      %3976 = vmatprep.subr.mxu0 0.0
      %3977 = vmatpush1.msra.mxu0 %v3010
      %3978 = vmatprep.subr.mxu0 0.0
      %3979 = vmatpush1.msra.mxu0 %v3011
      %3980 = vmatprep.subr.mxu0 0.0
      %3981 = vmatpush1.msra.mxu0 %v3012
      %3982 = vmatprep.subr.mxu0 0.0
      %3983 = vmatpush1.msra.mxu0 %v3013
      %3984 = vmatprep.subr.mxu0 0.0
      %3985 = vmatpush1.msra.mxu0 %v3014
      %3986 = vmatprep.subr.mxu0 0.0
      %3987 = vmatpush1.msra.mxu0 %v3015
      %3988 = vmatprep.subr.mxu0 0.0
      %3989 = vmatpush1.msra.mxu0 %v3016
      %3990 = vmatprep.subr.mxu0 0.0
      %3991 = vmatpush1.msra.mxu0 %v3017
      %3992 = vmatprep.subr.mxu0 0.0
      %3993 = vmatpush1.msra.mxu0 %v3018
      %3994 = vmatprep.subr.mxu0 0.0
      %3995 = vmatpush1.msra.mxu0 %v3019
      %3996 = vmatprep.subr.mxu0 0.0
      %3997 = vmatpush1.msra.mxu0 %v3020
      %3998 = vmatprep.subr.mxu0 0.0
      %3999 = vmatpush1.msra.mxu0 %v3021
      %4000 = vmatprep.subr.mxu0 0.0
      %4001 = vmatpush1.msra.mxu0 %v3022
      %4002 = vmatprep.subr.mxu0 0.0
      %4003 = vmatpush1.msra.mxu0 %v3023
      %4004 = vmatprep.subr.mxu0 0.0
      %4005 = vmatpush1.msra.mxu0 %v3024
      %4006 = vmatprep.subr.mxu0 0.0
      %4007 = vmatpush1.msra.mxu0 %v3025
      %4008 = vmatprep.subr.mxu0 0.0
      %4009 = vmatpush1.msra.mxu0 %v3026
      %4010 = vmatprep.subr.mxu0 0.0
      %4011 = vmatpush1.msra.mxu0 %v3027
      %4012 = vmatprep.subr.mxu0 0.0
      %4013 = vmatpush1.msra.mxu0 %v3028
      %4014 = vmatprep.subr.mxu0 0.0
      %4015 = vmatpush1.msra.mxu0 %v3029
      %4016 = vmatprep.subr.mxu0 0.0
      %4017 = vmatpush1.msra.mxu0 %v3030
      %4018 = vmatprep.subr.mxu0 0.0
      %4019 = vmatpush1.msra.mxu0 %v3031
      %4020 = vmatprep.subr.mxu0 0.0
      %4021 = vmatpush1.msra.mxu0 %v3032
      %4022 = vmatprep.subr.mxu0 0.0
      %4023 = vmatpush1.msra.mxu0 %v3033
      %4024 = vmatprep.subr.mxu0 0.0
      %4025 = vmatpush1.msra.mxu0 %v3034
      %4026 = vmatprep.subr.mxu0 0.0
      %4027 = vmatpush1.msra.mxu0 %v3035
      %4028 = vmatprep.subr.mxu0 0.0
      %4029 = vmatpush1.msra.mxu0 %v3036
      %4030 = vmatprep.subr.mxu0 0.0
      %4031 = vmatpush1.msra.mxu0 %v3037
      %4032 = vmatprep.subr.mxu0 0.0
      %4033 = vmatpush1.msra.mxu0 %v3038
      %4034 = vmatprep.subr.mxu0 0.0
      %4035 = vmatpush1.msra.mxu0 %v3039
      %4036 = vmatprep.subr.mxu0 0.0
      %4037 = vmatpush1.msra.mxu0 %v3040
      %4038 = vmatprep.mubr.f32.mxu0 %v3337
      %4039 = vmatmul.mubr.f32.gmra.mrb[0].mxu0 %v3334
      %v4040 = vpop.f32.mrb[0].mxu0
      %v4041 = vadd.f32 0.0, %v4040
      %v4042 = vpop.f32.mrb[0].mxu0
      %4043 = vmatprep.mubr.f32.mxu0 %v3343
      %4044 = vmatmul.mubr.f32.gmra.mrb[0].mxu0 %v3340
      %v4045 = vpop.f32.mrb[0].mxu0
      %v4046 = vadd.f32 0.0, %v4045
      %v4047 = vpop.f32.mrb[0].mxu0
      %4048 = vmatprep.mubr.f32.mxu0 %v3349
      %4049 = vmatmul.mubr.f32.gmra.mrb[0].mxu0 %v3346
      %v4050 = vpop.f32.mrb[0].mxu0
      %v4051 = vadd.f32 0.0, %v4050
      %v4052 = vpop.f32.mrb[0].mxu0
      %4053 = vmatprep.mubr.f32.mxu0 %v3355
      %4054 = vmatmul.mubr.f32.gmra.mrb[0].mxu0 %v3352
      %v4055 = vpop.f32.mrb[0].mxu0
      %v4056 = vadd.f32 0.0, %v4055
      %v4057 = vpop.f32.mrb[0].mxu0
      %4058 = vmatprep.mubr.f32.mxu0 %v3361
      %4059 = vmatmul.mubr.f32.gmra.mrb[0].mxu0 %v3358
      %v4060 = vpop.f32.mrb[0].mxu0
      %v4061 = vadd.f32 0.0, %v4060
      %v4062 = vpop.f32.mrb[0].mxu0
      %4063 = vmatprep.mubr.f32.mxu0 %v3367
      %4064 = vmatmul.mubr.f32.gmra.mrb[0].mxu0 %v3364
      %v4065 = vpop.f32.mrb[0].mxu0
      %v4066 = vadd.f32 0.0, %v4065
      %v4067 = vpop.f32.mrb[0].mxu0
      %4068 = vmatprep.mubr.f32.mxu0 %v3373
      %4069 = vmatmul.mubr.f32.gmra.mrb[0].mxu0 %v3370
      %v4070 = vpop.f32.mrb[0].mxu0
      %v4071 = vadd.f32 0.0, %v4070
      %v4072 = vpop.f32.mrb[0].mxu0
      %4073 = vmatprep.mubr.f32.mxu0 %v3379
      %4074 = vmatmul.mubr.f32.gmra.mrb[0].mxu0 %v3376
      %v4075 = vpop.f32.mrb[0].mxu0
      %v4076 = vadd.f32 0.0, %v4075
      %v4077 = vpop.f32.mrb[0].mxu0
      %4078 = vmatprep.mubr.f32.mxu0 %v3385
      %4079 = vmatmul.mubr.f32.gmra.mrb[0].mxu0 %v3382
      %v4080 = vpop.f32.mrb[0].mxu0
      %v4081 = vadd.f32 0.0, %v4080
      %v4082 = vpop.f32.mrb[0].mxu0
      %4083 = vmatprep.mubr.f32.mxu0 %v3391
      %4084 = vmatmul.mubr.f32.gmra.mrb[0].mxu0 %v3388
      %v4085 = vpop.f32.mrb[0].mxu0
      %v4086 = vadd.f32 0.0, %v4085
      %v4087 = vpop.f32.mrb[0].mxu0
      %4088 = vmatprep.mubr.f32.mxu0 %v3397
      %4089 = vmatmul.mubr.f32.gmra.mrb[0].mxu0 %v3394
      %v4090 = vpop.f32.mrb[0].mxu0
      %v4091 = vadd.f32 0.0, %v4090
      %v4092 = vpop.f32.mrb[0].mxu0
      %4093 = vmatprep.mubr.f32.mxu0 %v3403
      %4094 = vmatmul.mubr.f32.gmra.mrb[0].mxu0 %v3400
      %v4095 = vpop.f32.mrb[0].mxu0
      %v4096 = vadd.f32 0.0, %v4095
      %v4097 = vpop.f32.mrb[0].mxu0
      %4098 = vmatprep.mubr.f32.mxu0 %v3409
      %4099 = vmatmul.mubr.f32.gmra.mrb[0].mxu0 %v3406
      %v4100 = vpop.f32.mrb[0].mxu0
      %v4101 = vadd.f32 0.0, %v4100
      %v4102 = vpop.f32.mrb[0].mxu0
      %4103 = vmatprep.mubr.f32.mxu0 %v3415
      %4104 = vmatmul.mubr.f32.gmra.mrb[0].mxu0 %v3412
      %v4105 = vpop.f32.mrb[0].mxu0
      %v4106 = vadd.f32 0.0, %v4105
      %v4107 = vpop.f32.mrb[0].mxu0
      %4108 = vmatprep.mubr.f32.mxu0 %v3421
      %4109 = vmatmul.mubr.f32.gmra.mrb[0].mxu0 %v3418
      %v4110 = vpop.f32.mrb[0].mxu0
      %v4111 = vadd.f32 0.0, %v4110
      %v4112 = vpop.f32.mrb[0].mxu0
      %4113 = vmatprep.mubr.f32.mxu0 %v3427
      %4114 = vmatmul.mubr.f32.gmra.mrb[0].mxu0 %v3424
      %v4115 = vpop.f32.mrb[0].mxu0
      %v4116 = vadd.f32 0.0, %v4115
      %v4117 = vpop.f32.mrb[0].mxu0
      %4118 = vdwg.mxu0
      %v4119 = vadd.f32 %v2864, %v4041
      %v4120 = vadd.f32 %v2865, %v4046
      %v4121 = vadd.f32 %v2866, %v4051
      %v4122 = vadd.f32 %v2867, %v4056
      %v4123 = vadd.f32 %v2868, %v4061
      %v4124 = vadd.f32 %v2869, %v4066
      %v4125 = vadd.f32 %v2870, %v4071
      %v4126 = vadd.f32 %v2871, %v4076
      %v4127 = vadd.f32 %v2872, %v4081
      %v4128 = vadd.f32 %v2873, %v4086
      %v4129 = vadd.f32 %v2874, %v4091
      %v4130 = vadd.f32 %v2875, %v4096
      %v4131 = vadd.f32 %v2876, %v4101
      %v4132 = vadd.f32 %v2877, %v4106
      %v4133 = vadd.f32 %v2878, %v4111
      %v4134 = vadd.f32 %v2879, %v4116
      %4135 = vmatprep.subr.mxu0 0.0
      %4136 = vmatpush1.msra.mxu0 %v3042
      %4137 = vmatprep.subr.mxu0 0.0
      %4138 = vmatpush1.msra.mxu0 %v3043
      %4139 = vmatprep.subr.mxu0 0.0
      %4140 = vmatpush1.msra.mxu0 %v3044
      %4141 = vmatprep.subr.mxu0 0.0
      %4142 = vmatpush1.msra.mxu0 %v3045
      %4143 = vmatprep.subr.mxu0 0.0
      %4144 = vmatpush1.msra.mxu0 %v3046
      %4145 = vmatprep.subr.mxu0 0.0
      %4146 = vmatpush1.msra.mxu0 %v3047
      %4147 = vmatprep.subr.mxu0 0.0
      %4148 = vmatpush1.msra.mxu0 %v3048
      %4149 = vmatprep.subr.mxu0 0.0
      %4150 = vmatpush1.msra.mxu0 %v3049
      %4151 = vmatprep.subr.mxu0 0.0
      %4152 = vmatpush1.msra.mxu0 %v3050
      %4153 = vmatprep.subr.mxu0 0.0
      %4154 = vmatpush1.msra.mxu0 %v3051
      %4155 = vmatprep.subr.mxu0 0.0
      %4156 = vmatpush1.msra.mxu0 %v3052
      %4157 = vmatprep.subr.mxu0 0.0
      %4158 = vmatpush1.msra.mxu0 %v3053
      %4159 = vmatprep.subr.mxu0 0.0
      %4160 = vmatpush1.msra.mxu0 %v3054
      %4161 = vmatprep.subr.mxu0 0.0
      %4162 = vmatpush1.msra.mxu0 %v3055
      %4163 = vmatprep.subr.mxu0 0.0
      %4164 = vmatpush1.msra.mxu0 %v3056
      %4165 = vmatprep.subr.mxu0 0.0
      %4166 = vmatpush1.msra.mxu0 %v3057
      %4167 = vmatprep.subr.mxu0 0.0
      %4168 = vmatpush1.msra.mxu0 %v3058
      %4169 = vmatprep.subr.mxu0 0.0
      %4170 = vmatpush1.msra.mxu0 %v3059
      %4171 = vmatprep.subr.mxu0 0.0
      %4172 = vmatpush1.msra.mxu0 %v3060
      %4173 = vmatprep.subr.mxu0 0.0
      %4174 = vmatpush1.msra.mxu0 %v3061
      %4175 = vmatprep.subr.mxu0 0.0
      %4176 = vmatpush1.msra.mxu0 %v3062
      %4177 = vmatprep.subr.mxu0 0.0
      %4178 = vmatpush1.msra.mxu0 %v3063
      %4179 = vmatprep.subr.mxu0 0.0
      %4180 = vmatpush1.msra.mxu0 %v3064
      %4181 = vmatprep.subr.mxu0 0.0
      %4182 = vmatpush1.msra.mxu0 %v3065
      %4183 = vmatprep.subr.mxu0 0.0
      %4184 = vmatpush1.msra.mxu0 %v3066
      %4185 = vmatprep.subr.mxu0 0.0
      %4186 = vmatpush1.msra.mxu0 %v3067
      %4187 = vmatprep.subr.mxu0 0.0
      %4188 = vmatpush1.msra.mxu0 %v3068
      %4189 = vmatprep.subr.mxu0 0.0
      %4190 = vmatpush1.msra.mxu0 %v3069
      %4191 = vmatprep.subr.mxu0 0.0
      %4192 = vmatpush1.msra.mxu0 %v3070
      %4193 = vmatprep.subr.mxu0 0.0
      %4194 = vmatpush1.msra.mxu0 %v3071
      %4195 = vmatprep.subr.mxu0 0.0
      %4196 = vmatpush1.msra.mxu0 %v3072
      %4197 = vmatprep.subr.mxu0 0.0
      %4198 = vmatpush1.msra.mxu0 %v3073
      %4199 = vmatprep.mubr.f32.mxu0 %v3690
      %4200 = vmatmul.mubr.f32.gmra.mrb[0].mxu0 %v3687
      %v4201 = vpop.f32.mrb[0].mxu0
      %v4202 = vadd.f32 0.0, %v4201
      %v4203 = vpop.f32.mrb[0].mxu0
      %4204 = vmatprep.mubr.f32.mxu0 %v3696
      %4205 = vmatmul.mubr.f32.gmra.mrb[0].mxu0 %v3693
      %v4206 = vpop.f32.mrb[0].mxu0
      %v4207 = vadd.f32 0.0, %v4206
      %v4208 = vpop.f32.mrb[0].mxu0
      %4209 = vmatprep.mubr.f32.mxu0 %v3702
      %4210 = vmatmul.mubr.f32.gmra.mrb[0].mxu0 %v3699
      %v4211 = vpop.f32.mrb[0].mxu0
      %v4212 = vadd.f32 0.0, %v4211
      %v4213 = vpop.f32.mrb[0].mxu0
      %4214 = vmatprep.mubr.f32.mxu0 %v3708
      %4215 = vmatmul.mubr.f32.gmra.mrb[0].mxu0 %v3705
      %v4216 = vpop.f32.mrb[0].mxu0
      %v4217 = vadd.f32 0.0, %v4216
      %v4218 = vpop.f32.mrb[0].mxu0
      %4219 = vmatprep.mubr.f32.mxu0 %v3714
      %4220 = vmatmul.mubr.f32.gmra.mrb[0].mxu0 %v3711
      %v4221 = vpop.f32.mrb[0].mxu0
      %v4222 = vadd.f32 0.0, %v4221
      %v4223 = vpop.f32.mrb[0].mxu0
      %4224 = vmatprep.mubr.f32.mxu0 %v3720
      %4225 = vmatmul.mubr.f32.gmra.mrb[0].mxu0 %v3717
      %v4226 = vpop.f32.mrb[0].mxu0
      %v4227 = vadd.f32 0.0, %v4226
      %v4228 = vpop.f32.mrb[0].mxu0
      %4229 = vmatprep.mubr.f32.mxu0 %v3726
      %4230 = vmatmul.mubr.f32.gmra.mrb[0].mxu0 %v3723
      %v4231 = vpop.f32.mrb[0].mxu0
      %v4232 = vadd.f32 0.0, %v4231
      %v4233 = vpop.f32.mrb[0].mxu0
      %4234 = vmatprep.mubr.f32.mxu0 %v3732
      %4235 = vmatmul.mubr.f32.gmra.mrb[0].mxu0 %v3729
      %v4236 = vpop.f32.mrb[0].mxu0
      %v4237 = vadd.f32 0.0, %v4236
      %v4238 = vpop.f32.mrb[0].mxu0
      %4239 = vmatprep.mubr.f32.mxu0 %v3738
      %4240 = vmatmul.mubr.f32.gmra.mrb[0].mxu0 %v3735
      %v4241 = vpop.f32.mrb[0].mxu0
      %v4242 = vadd.f32 0.0, %v4241
      %v4243 = vpop.f32.mrb[0].mxu0
      %4244 = vmatprep.mubr.f32.mxu0 %v3744
      %4245 = vmatmul.mubr.f32.gmra.mrb[0].mxu0 %v3741
      %v4246 = vpop.f32.mrb[0].mxu0
      %v4247 = vadd.f32 0.0, %v4246
      %v4248 = vpop.f32.mrb[0].mxu0
      %4249 = vmatprep.mubr.f32.mxu0 %v3750
      %4250 = vmatmul.mubr.f32.gmra.mrb[0].mxu0 %v3747
      %v4251 = vpop.f32.mrb[0].mxu0
      %v4252 = vadd.f32 0.0, %v4251
      %v4253 = vpop.f32.mrb[0].mxu0
      %4254 = vmatprep.mubr.f32.mxu0 %v3756
      %4255 = vmatmul.mubr.f32.gmra.mrb[0].mxu0 %v3753
      %v4256 = vpop.f32.mrb[0].mxu0
      %v4257 = vadd.f32 0.0, %v4256
      %v4258 = vpop.f32.mrb[0].mxu0
      %4259 = vmatprep.mubr.f32.mxu0 %v3762
      %4260 = vmatmul.mubr.f32.gmra.mrb[0].mxu0 %v3759
      %v4261 = vpop.f32.mrb[0].mxu0
      %v4262 = vadd.f32 0.0, %v4261
      %v4263 = vpop.f32.mrb[0].mxu0
      %4264 = vmatprep.mubr.f32.mxu0 %v3768
      %4265 = vmatmul.mubr.f32.gmra.mrb[0].mxu0 %v3765
      %v4266 = vpop.f32.mrb[0].mxu0
      %v4267 = vadd.f32 0.0, %v4266
      %v4268 = vpop.f32.mrb[0].mxu0
      %4269 = vmatprep.mubr.f32.mxu0 %v3774
      %4270 = vmatmul.mubr.f32.gmra.mrb[0].mxu0 %v3771
      %v4271 = vpop.f32.mrb[0].mxu0
      %v4272 = vadd.f32 0.0, %v4271
      %v4273 = vpop.f32.mrb[0].mxu0
      %4274 = vmatprep.mubr.f32.mxu0 %v3780
      %4275 = vmatmul.mubr.f32.gmra.mrb[0].mxu0 %v3777
      %v4276 = vpop.f32.mrb[0].mxu0
      %v4277 = vadd.f32 0.0, %v4276
      %v4278 = vpop.f32.mrb[0].mxu0
      %4279 = vdwg.mxu0
      %v4280 = vadd.f32 %v4119, %v4202
      %v4281 = vadd.f32 %v4120, %v4207
      %v4282 = vadd.f32 %v4121, %v4212
      %v4283 = vadd.f32 %v4122, %v4217
      %v4284 = vadd.f32 %v4123, %v4222
      %v4285 = vadd.f32 %v4124, %v4227
      %v4286 = vadd.f32 %v4125, %v4232
      %v4287 = vadd.f32 %v4126, %v4237
      %v4288 = vadd.f32 %v4127, %v4242
      %v4289 = vadd.f32 %v4128, %v4247
      %v4290 = vadd.f32 %v4129, %v4252
      %v4291 = vadd.f32 %v4130, %v4257
      %v4292 = vadd.f32 %v4131, %v4262
      %v4293 = vadd.f32 %v4132, %v4267
      %v4294 = vadd.f32 %v4133, %v4272
      %v4295 = vadd.f32 %v4134, %v4277
      %v4296 = vrot.slane %v2880, 2
      %v4297 = vrot.slane %v2882, 2
      %v4298 = vsel %vm2590, %v4296, %v4297
      %v4299 = vrot.slane %v2881, 2
      %v4300 = vrot.slane %v2883, 2
      %v4301 = vsel %vm2590, %v4299, %v4300
      %v4302 = vrot.slane %v2884, 2
      %v4303 = vrot.slane %v2886, 2
      %v4304 = vsel %vm2590, %v4302, %v4303
      %v4305 = vrot.slane %v2885, 2
      %v4306 = vrot.slane %v2887, 2
      %v4307 = vsel %vm2590, %v4305, %v4306
      %v4308 = vrot.slane %v2888, 2
      %v4309 = vrot.slane %v2890, 2
      %v4310 = vsel %vm2590, %v4308, %v4309
      %v4311 = vrot.slane %v2889, 2
      %v4312 = vrot.slane %v2891, 2
      %v4313 = vsel %vm2590, %v4311, %v4312
      %v4314 = vrot.slane %v2892, 2
      %v4315 = vrot.slane %v2894, 2
      %v4316 = vsel %vm2590, %v4314, %v4315
      %v4317 = vrot.slane %v2893, 2
      %v4318 = vrot.slane %v2895, 2
      %v4319 = vsel %vm2590, %v4317, %v4318
      %v4320 = vrot.slane %v2896, 2
      %v4321 = vrot.slane %v2898, 2
      %v4322 = vsel %vm2590, %v4320, %v4321
      %v4323 = vrot.slane %v2897, 2
      %v4324 = vrot.slane %v2899, 2
      %v4325 = vsel %vm2590, %v4323, %v4324
      %v4326 = vrot.slane %v2900, 2
      %v4327 = vrot.slane %v2902, 2
      %v4328 = vsel %vm2590, %v4326, %v4327
      %v4329 = vrot.slane %v2901, 2
      %v4330 = vrot.slane %v2903, 2
      %v4331 = vsel %vm2590, %v4329, %v4330
      %v4332 = vrot.slane %v2904, 2
      %v4333 = vrot.slane %v2906, 2
      %v4334 = vsel %vm2590, %v4332, %v4333
      %v4335 = vrot.slane %v2905, 2
      %v4336 = vrot.slane %v2907, 2
      %v4337 = vsel %vm2590, %v4335, %v4336
      %v4338 = vrot.slane %v2908, 2
      %v4339 = vrot.slane %v2910, 2
      %v4340 = vsel %vm2590, %v4338, %v4339
      %v4341 = vrot.slane %v2909, 2
      %v4342 = vrot.slane %v2911, 2
      %v4343 = vsel %vm2590, %v4341, %v4342
      %v4344 = vrot.slane %v2912, 2
      %v4345 = vrot.slane %v2914, 2
      %v4346 = vsel %vm2590, %v4344, %v4345
      %v4347 = vrot.slane %v2913, 2
      %v4348 = vrot.slane %v2915, 2
      %v4349 = vsel %vm2590, %v4347, %v4348
      %v4350 = vrot.slane %v2916, 2
      %v4351 = vrot.slane %v2918, 2
      %v4352 = vsel %vm2590, %v4350, %v4351
      %v4353 = vrot.slane %v2917, 2
      %v4354 = vrot.slane %v2919, 2
      %v4355 = vsel %vm2590, %v4353, %v4354
      %v4356 = vrot.slane %v2920, 2
      %v4357 = vrot.slane %v2922, 2
      %v4358 = vsel %vm2590, %v4356, %v4357
      %v4359 = vrot.slane %v2921, 2
      %v4360 = vrot.slane %v2923, 2
      %v4361 = vsel %vm2590, %v4359, %v4360
      %v4362 = vrot.slane %v2924, 2
      %v4363 = vrot.slane %v2926, 2
      %v4364 = vsel %vm2590, %v4362, %v4363
      %v4365 = vrot.slane %v2925, 2
      %v4366 = vrot.slane %v2927, 2
      %v4367 = vsel %vm2590, %v4365, %v4366
      %v4368 = vrot.slane %v2928, 2
      %v4369 = vrot.slane %v2930, 2
      %v4370 = vsel %vm2590, %v4368, %v4369
      %v4371 = vrot.slane %v2929, 2
      %v4372 = vrot.slane %v2931, 2
      %v4373 = vsel %vm2590, %v4371, %v4372
      %v4374 = vrot.slane %v2932, 2
      %v4375 = vrot.slane %v2934, 2
      %v4376 = vsel %vm2590, %v4374, %v4375
      %v4377 = vrot.slane %v2933, 2
      %v4378 = vrot.slane %v2935, 2
      %v4379 = vsel %vm2590, %v4377, %v4378
      %v4380 = vrot.slane %v2936, 2
      %v4381 = vrot.slane %v2938, 2
      %v4382 = vsel %vm2590, %v4380, %v4381
      %v4383 = vrot.slane %v2937, 2
      %v4384 = vrot.slane %v2939, 2
      %v4385 = vsel %vm2590, %v4383, %v4384
      %v4386 = vrot.slane %v2940, 2
      %v4387 = vrot.slane %v2942, 2
      %v4388 = vsel %vm2590, %v4386, %v4387
      %v4389 = vrot.slane %v2941, 2
      %v4390 = vrot.slane %v2943, 2
      %v4391 = vsel %vm2590, %v4389, %v4390
      %4424 = vmatprep.subr.mxu0 0.0
      %4425 = vmatpush1.msra.mxu0 %v3075
      %4426 = vmatprep.subr.mxu0 0.0
      %4427 = vmatpush1.msra.mxu0 %v3076
      %4428 = vmatprep.subr.mxu0 0.0
      %4429 = vmatpush1.msra.mxu0 %v3077
      %4430 = vmatprep.subr.mxu0 0.0
      %4431 = vmatpush1.msra.mxu0 %v3078
      %4432 = vmatprep.subr.mxu0 0.0
      %4433 = vmatpush1.msra.mxu0 %v3079
      %4434 = vmatprep.subr.mxu0 0.0
      %4435 = vmatpush1.msra.mxu0 %v3080
      %4436 = vmatprep.subr.mxu0 0.0
      %4437 = vmatpush1.msra.mxu0 %v3081
      %4438 = vmatprep.subr.mxu0 0.0
      %4439 = vmatpush1.msra.mxu0 %v3082
      %4440 = vmatprep.subr.mxu0 0.0
      %4441 = vmatpush1.msra.mxu0 %v3083
      %4442 = vmatprep.subr.mxu0 0.0
      %4443 = vmatpush1.msra.mxu0 %v3084
      %4444 = vmatprep.subr.mxu0 0.0
      %4445 = vmatpush1.msra.mxu0 %v3085
      %4446 = vmatprep.subr.mxu0 0.0
      %4447 = vmatpush1.msra.mxu0 %v3086
      %4448 = vmatprep.subr.mxu0 0.0
      %4449 = vmatpush1.msra.mxu0 %v3087
      %4450 = vmatprep.subr.mxu0 0.0
      %4451 = vmatpush1.msra.mxu0 %v3088
      %4452 = vmatprep.subr.mxu0 0.0
      %4453 = vmatpush1.msra.mxu0 %v3089
      %4454 = vmatprep.subr.mxu0 0.0
      %4455 = vmatpush1.msra.mxu0 %v3090
      %4456 = vmatprep.subr.mxu0 0.0
      %4457 = vmatpush1.msra.mxu0 %v3091
      %4458 = vmatprep.subr.mxu0 0.0
      %4459 = vmatpush1.msra.mxu0 %v3092
      %4460 = vmatprep.subr.mxu0 0.0
      %4461 = vmatpush1.msra.mxu0 %v3093
      %4462 = vmatprep.subr.mxu0 0.0
      %4463 = vmatpush1.msra.mxu0 %v3094
      %4464 = vmatprep.subr.mxu0 0.0
      %4465 = vmatpush1.msra.mxu0 %v3095
      %4466 = vmatprep.subr.mxu0 0.0
      %4467 = vmatpush1.msra.mxu0 %v3096
      %4468 = vmatprep.subr.mxu0 0.0
      %4469 = vmatpush1.msra.mxu0 %v3097
      %4470 = vmatprep.subr.mxu0 0.0
      %4471 = vmatpush1.msra.mxu0 %v3098
      %4472 = vmatprep.subr.mxu0 0.0
      %4473 = vmatpush1.msra.mxu0 %v3099
      %4474 = vmatprep.subr.mxu0 0.0
      %4475 = vmatpush1.msra.mxu0 %v3100
      %4476 = vmatprep.subr.mxu0 0.0
      %4477 = vmatpush1.msra.mxu0 %v3101
      %4478 = vmatprep.subr.mxu0 0.0
      %4479 = vmatpush1.msra.mxu0 %v3102
      %4480 = vmatprep.subr.mxu0 0.0
      %4481 = vmatpush1.msra.mxu0 %v3103
      %4482 = vmatprep.subr.mxu0 0.0
      %4483 = vmatpush1.msra.mxu0 %v3104
      %4484 = vmatprep.subr.mxu0 0.0
      %4485 = vmatpush1.msra.mxu0 %v3105
      %4486 = vmatprep.subr.mxu0 0.0
      %4487 = vmatpush1.msra.mxu0 %v3106
      %4488 = vmatprep.mubr.f32.mxu0 %v4301
      %4489 = vmatmul.mubr.f32.gmra.mrb[0].mxu0 %v4298
      %v4490 = vpop.f32.mrb[0].mxu0
      %v4491 = vadd.f32 0.0, %v4490
      %v4492 = vpop.f32.mrb[0].mxu0
      %4493 = vmatprep.mubr.f32.mxu0 %v4307
      %4494 = vmatmul.mubr.f32.gmra.mrb[0].mxu0 %v4304
      %v4495 = vpop.f32.mrb[0].mxu0
      %v4496 = vadd.f32 0.0, %v4495
      %v4497 = vpop.f32.mrb[0].mxu0
      %4498 = vmatprep.mubr.f32.mxu0 %v4313
      %4499 = vmatmul.mubr.f32.gmra.mrb[0].mxu0 %v4310
      %v4500 = vpop.f32.mrb[0].mxu0
      %v4501 = vadd.f32 0.0, %v4500
      %v4502 = vpop.f32.mrb[0].mxu0
      %4503 = vmatprep.mubr.f32.mxu0 %v4319
      %4504 = vmatmul.mubr.f32.gmra.mrb[0].mxu0 %v4316
      %v4505 = vpop.f32.mrb[0].mxu0
      %v4506 = vadd.f32 0.0, %v4505
      %v4507 = vpop.f32.mrb[0].mxu0
      %4508 = vmatprep.mubr.f32.mxu0 %v4325
      %4509 = vmatmul.mubr.f32.gmra.mrb[0].mxu0 %v4322
      %v4510 = vpop.f32.mrb[0].mxu0
      %v4511 = vadd.f32 0.0, %v4510
      %v4512 = vpop.f32.mrb[0].mxu0
      %4513 = vmatprep.mubr.f32.mxu0 %v4331
      %4514 = vmatmul.mubr.f32.gmra.mrb[0].mxu0 %v4328
      %v4515 = vpop.f32.mrb[0].mxu0
      %v4516 = vadd.f32 0.0, %v4515
      %v4517 = vpop.f32.mrb[0].mxu0
      %4518 = vmatprep.mubr.f32.mxu0 %v4337
      %4519 = vmatmul.mubr.f32.gmra.mrb[0].mxu0 %v4334
      %v4520 = vpop.f32.mrb[0].mxu0
      %v4521 = vadd.f32 0.0, %v4520
      %v4522 = vpop.f32.mrb[0].mxu0
      %4523 = vmatprep.mubr.f32.mxu0 %v4343
      %4524 = vmatmul.mubr.f32.gmra.mrb[0].mxu0 %v4340
      %v4525 = vpop.f32.mrb[0].mxu0
      %v4526 = vadd.f32 0.0, %v4525
      %v4527 = vpop.f32.mrb[0].mxu0
      %4528 = vmatprep.mubr.f32.mxu0 %v4349
      %4529 = vmatmul.mubr.f32.gmra.mrb[0].mxu0 %v4346
      %v4530 = vpop.f32.mrb[0].mxu0
      %v4531 = vadd.f32 0.0, %v4530
      %v4532 = vpop.f32.mrb[0].mxu0
      %4533 = vmatprep.mubr.f32.mxu0 %v4355
      %4534 = vmatmul.mubr.f32.gmra.mrb[0].mxu0 %v4352
      %v4535 = vpop.f32.mrb[0].mxu0
      %v4536 = vadd.f32 0.0, %v4535
      %v4537 = vpop.f32.mrb[0].mxu0
      %4538 = vmatprep.mubr.f32.mxu0 %v4361
      %4539 = vmatmul.mubr.f32.gmra.mrb[0].mxu0 %v4358
      %v4540 = vpop.f32.mrb[0].mxu0
      %v4541 = vadd.f32 0.0, %v4540
      %v4542 = vpop.f32.mrb[0].mxu0
      %4543 = vmatprep.mubr.f32.mxu0 %v4367
      %4544 = vmatmul.mubr.f32.gmra.mrb[0].mxu0 %v4364
      %v4545 = vpop.f32.mrb[0].mxu0
      %v4546 = vadd.f32 0.0, %v4545
      %v4547 = vpop.f32.mrb[0].mxu0
      %4548 = vmatprep.mubr.f32.mxu0 %v4373
      %4549 = vmatmul.mubr.f32.gmra.mrb[0].mxu0 %v4370
      %v4550 = vpop.f32.mrb[0].mxu0
      %v4551 = vadd.f32 0.0, %v4550
      %v4552 = vpop.f32.mrb[0].mxu0
      %4553 = vmatprep.mubr.f32.mxu0 %v4379
      %4554 = vmatmul.mubr.f32.gmra.mrb[0].mxu0 %v4376
      %v4555 = vpop.f32.mrb[0].mxu0
      %v4556 = vadd.f32 0.0, %v4555
      %v4557 = vpop.f32.mrb[0].mxu0
      %4558 = vmatprep.mubr.f32.mxu0 %v4385
      %4559 = vmatmul.mubr.f32.gmra.mrb[0].mxu0 %v4382
      %v4560 = vpop.f32.mrb[0].mxu0
      %v4561 = vadd.f32 0.0, %v4560
      %v4562 = vpop.f32.mrb[0].mxu0
      %4563 = vmatprep.mubr.f32.mxu0 %v4391
      %4564 = vmatmul.mubr.f32.gmra.mrb[0].mxu0 %v4388
      %v4565 = vpop.f32.mrb[0].mxu0
      %v4566 = vadd.f32 0.0, %v4565
      %v4567 = vpop.f32.mrb[0].mxu0
      %4568 = vdwg.mxu0
      %v4569 = vadd.f32 %v4280, %v4491
      %v4570 = vadd.f32 %v4281, %v4496
      %v4571 = vadd.f32 %v4282, %v4501
      %v4572 = vadd.f32 %v4283, %v4506
      %v4573 = vadd.f32 %v4284, %v4511
      %v4574 = vadd.f32 %v4285, %v4516
      %v4575 = vadd.f32 %v4286, %v4521
      %v4576 = vadd.f32 %v4287, %v4526
      %v4577 = vadd.f32 %v4288, %v4531
      %v4578 = vadd.f32 %v4289, %v4536
      %v4579 = vadd.f32 %v4290, %v4541
      %v4580 = vadd.f32 %v4291, %v4546
      %v4581 = vadd.f32 %v4292, %v4551
      %v4582 = vadd.f32 %v4293, %v4556
      %v4583 = vadd.f32 %v4294, %v4561
      %v4584 = vadd.f32 %v4295, %v4566
      %s4585 = scalar_lea.vmem [#allocation2], 64
      %v4586 = vld [vmem:[%s4585] sm:$0xff]
      %v4587 = vld [vmem:[%s4585 + $0x8] sm:$0xff]
      %v4588 = vld [vmem:[%s4585 + $0x10] sm:$0x3]
      %v4589 = vld [vmem:[%s4585 + $0x18] sm:$0x3]
      %v4590 = vld [vmem:[%s4585 + $0x20] sm:$0xff]
      %v4591 = vld [vmem:[%s4585 + $0x28] sm:$0xff]
      %v4592 = vld [vmem:[%s4585 + $0x30] sm:$0x3]
      %v4593 = vld [vmem:[%s4585 + $0x38] sm:$0x3]
      %v4594 = vld [vmem:[%s4585 + $0x40] sm:$0xff]
      %v4595 = vld [vmem:[%s4585 + $0x48] sm:$0xff]
      %v4596 = vld [vmem:[%s4585 + $0x50] sm:$0x3]
      %v4597 = vld [vmem:[%s4585 + $0x58] sm:$0x3]
      %v4598 = vld [vmem:[%s4585 + $0x60] sm:$0xff]
      %v4599 = vld [vmem:[%s4585 + $0x68] sm:$0xff]
      %v4600 = vld [vmem:[%s4585 + $0x70] sm:$0x3]
      %v4601 = vld [vmem:[%s4585 + $0x78] sm:$0x3]
      %v4602 = vld [vmem:[%s4585 + $0x80] sm:$0xff]
      %v4603 = vld [vmem:[%s4585 + $0x88] sm:$0xff]
      %v4604 = vld [vmem:[%s4585 + $0x90] sm:$0x3]
      %v4605 = vld [vmem:[%s4585 + $0x98] sm:$0x3]
      %v4606 = vld [vmem:[%s4585 + $0xa0] sm:$0xff]
      %v4607 = vld [vmem:[%s4585 + $0xa8] sm:$0xff]
      %v4608 = vld [vmem:[%s4585 + $0xb0] sm:$0x3]
      %v4609 = vld [vmem:[%s4585 + $0xb8] sm:$0x3]
      %v4610 = vld [vmem:[%s4585 + $0xc0] sm:$0xff]
      %v4611 = vld [vmem:[%s4585 + $0xc8] sm:$0xff]
      %v4612 = vld [vmem:[%s4585 + $0xd0] sm:$0x3]
      %v4613 = vld [vmem:[%s4585 + $0xd8] sm:$0x3]
      %v4614 = vld [vmem:[%s4585 + $0xe0] sm:$0xff]
      %v4615 = vld [vmem:[%s4585 + $0xe8] sm:$0xff]
      %v4616 = vld [vmem:[%s4585 + $0xf0] sm:$0x3]
      %v4617 = vld [vmem:[%s4585 + $0xf8] sm:$0x3]
      %v4618 = vld [vmem:[%s4585 + $0x100] sm:$0xff]
      %v4619 = vld [vmem:[%s4585 + $0x108] sm:$0xff]
      %v4620 = vld [vmem:[%s4585 + $0x110] sm:$0x3]
      %v4621 = vld [vmem:[%s4585 + $0x118] sm:$0x3]
      %v4622 = vld [vmem:[%s4585 + $0x120] sm:$0xff]
      %v4623 = vld [vmem:[%s4585 + $0x128] sm:$0xff]
      %v4624 = vld [vmem:[%s4585 + $0x130] sm:$0x3]
      %v4625 = vld [vmem:[%s4585 + $0x138] sm:$0x3]
      %v4626 = vld [vmem:[%s4585 + $0x140] sm:$0xff]
      %v4627 = vld [vmem:[%s4585 + $0x148] sm:$0xff]
      %v4628 = vld [vmem:[%s4585 + $0x150] sm:$0x3]
      %v4629 = vld [vmem:[%s4585 + $0x158] sm:$0x3]
      %v4630 = vld [vmem:[%s4585 + $0x160] sm:$0xff]
      %v4631 = vld [vmem:[%s4585 + $0x168] sm:$0xff]
      %v4632 = vld [vmem:[%s4585 + $0x170] sm:$0x3]
      %v4633 = vld [vmem:[%s4585 + $0x178] sm:$0x3]
      %v4634 = vld [vmem:[%s4585 + $0x180] sm:$0xff]
      %v4635 = vld [vmem:[%s4585 + $0x188] sm:$0xff]
      %v4636 = vld [vmem:[%s4585 + $0x190] sm:$0x3]
      %v4637 = vld [vmem:[%s4585 + $0x198] sm:$0x3]
      %v4638 = vld [vmem:[%s4585 + $0x1a0] sm:$0xff]
      %v4639 = vld [vmem:[%s4585 + $0x1a8] sm:$0xff]
      %v4640 = vld [vmem:[%s4585 + $0x1b0] sm:$0x3]
      %v4641 = vld [vmem:[%s4585 + $0x1b8] sm:$0x3]
      %v4642 = vld [vmem:[%s4585 + $0x1c0] sm:$0xff]
      %v4643 = vld [vmem:[%s4585 + $0x1c8] sm:$0xff]
      %v4644 = vld [vmem:[%s4585 + $0x1d0] sm:$0x3]
      %v4645 = vld [vmem:[%s4585 + $0x1d8] sm:$0x3]
      %v4646 = vld [vmem:[%s4585 + $0x1e0] sm:$0xff]
      %v4647 = vld [vmem:[%s4585 + $0x1e8] sm:$0xff]
      %v4648 = vld [vmem:[%s4585 + $0x1f0] sm:$0x3]
      %v4649 = vld [vmem:[%s4585 + $0x1f8] sm:$0x3]
      %s4650 = scalar_lea.vmem [#allocation3], 64
      %v4651 = vld [vmem:[%s4650] sm:$0xff]
      %v4652 = vld [vmem:[%s4650 + $0x8] sm:$0xff]
      %v4653 = vld [vmem:[%s4650 + $0x10] sm:$0x3]
      %v4654 = vld [vmem:[%s4650 + $0x18] sm:$0x3]
      %v4655 = vld [vmem:[%s4650 + $0x20] sm:$0xff]
      %v4656 = vld [vmem:[%s4650 + $0x28] sm:$0xff]
      %v4657 = vld [vmem:[%s4650 + $0x30] sm:$0x3]
      %v4658 = vld [vmem:[%s4650 + $0x38] sm:$0x3]
      %v4659 = vld [vmem:[%s4650 + $0x40] sm:$0xff]
      %v4660 = vld [vmem:[%s4650 + $0x48] sm:$0xff]
      %v4661 = vld [vmem:[%s4650 + $0x50] sm:$0x3]
      %v4662 = vld [vmem:[%s4650 + $0x58] sm:$0x3]
      %v4663 = vld [vmem:[%s4650 + $0x60] sm:$0xff]
      %v4664 = vld [vmem:[%s4650 + $0x68] sm:$0xff]
      %v4665 = vld [vmem:[%s4650 + $0x70] sm:$0x3]
      %v4666 = vld [vmem:[%s4650 + $0x78] sm:$0x3]
      %v4667 = vld [vmem:[%s4650 + $0x80] sm:$0xff]
      %v4668 = vld [vmem:[%s4650 + $0x88] sm:$0xff]
      %v4669 = vld [vmem:[%s4650 + $0x90] sm:$0x3]
      %v4670 = vld [vmem:[%s4650 + $0x98] sm:$0x3]
      %v4671 = vld [vmem:[%s4650 + $0xa0] sm:$0xff]
      %v4672 = vld [vmem:[%s4650 + $0xa8] sm:$0xff]
      %v4673 = vld [vmem:[%s4650 + $0xb0] sm:$0x3]
      %v4674 = vld [vmem:[%s4650 + $0xb8] sm:$0x3]
      %v4675 = vld [vmem:[%s4650 + $0xc0] sm:$0xff]
      %v4676 = vld [vmem:[%s4650 + $0xc8] sm:$0xff]
      %v4677 = vld [vmem:[%s4650 + $0xd0] sm:$0x3]
      %v4678 = vld [vmem:[%s4650 + $0xd8] sm:$0x3]
      %v4679 = vld [vmem:[%s4650 + $0xe0] sm:$0xff]
      %v4680 = vld [vmem:[%s4650 + $0xe8] sm:$0xff]
      %v4681 = vld [vmem:[%s4650 + $0xf0] sm:$0x3]
      %v4682 = vld [vmem:[%s4650 + $0xf8] sm:$0x3]
      %v4683 = vld [vmem:[%s4650 + $0x100] sm:$0xff]
      %v4684 = vld [vmem:[%s4650 + $0x108] sm:$0xff]
      %v4685 = vld [vmem:[%s4650 + $0x110] sm:$0x3]
      %v4686 = vld [vmem:[%s4650 + $0x118] sm:$0x3]
      %v4687 = vld [vmem:[%s4650 + $0x120] sm:$0xff]
      %v4688 = vld [vmem:[%s4650 + $0x128] sm:$0xff]
      %v4689 = vld [vmem:[%s4650 + $0x130] sm:$0x3]
      %v4690 = vld [vmem:[%s4650 + $0x138] sm:$0x3]
      %v4691 = vld [vmem:[%s4650 + $0x140] sm:$0xff]
      %v4692 = vld [vmem:[%s4650 + $0x148] sm:$0xff]
      %v4693 = vld [vmem:[%s4650 + $0x150] sm:$0x3]
      %v4694 = vld [vmem:[%s4650 + $0x158] sm:$0x3]
      %v4695 = vld [vmem:[%s4650 + $0x160] sm:$0xff]
      %v4696 = vld [vmem:[%s4650 + $0x168] sm:$0xff]
      %v4697 = vld [vmem:[%s4650 + $0x170] sm:$0x3]
      %v4698 = vld [vmem:[%s4650 + $0x178] sm:$0x3]
      %v4699 = vld [vmem:[%s4650 + $0x180] sm:$0xff]
      %v4700 = vld [vmem:[%s4650 + $0x188] sm:$0xff]
      %v4701 = vld [vmem:[%s4650 + $0x190] sm:$0x3]
      %v4702 = vld [vmem:[%s4650 + $0x198] sm:$0x3]
      %v4703 = vld [vmem:[%s4650 + $0x1a0] sm:$0xff]
      %v4704 = vld [vmem:[%s4650 + $0x1a8] sm:$0xff]
      %v4705 = vld [vmem:[%s4650 + $0x1b0] sm:$0x3]
      %v4706 = vld [vmem:[%s4650 + $0x1b8] sm:$0x3]
      %v4707 = vld [vmem:[%s4650 + $0x1c0] sm:$0xff]
      %v4708 = vld [vmem:[%s4650 + $0x1c8] sm:$0xff]
      %v4709 = vld [vmem:[%s4650 + $0x1d0] sm:$0x3]
      %v4710 = vld [vmem:[%s4650 + $0x1d8] sm:$0x3]
      %v4711 = vld [vmem:[%s4650 + $0x1e0] sm:$0xff]
      %v4712 = vld [vmem:[%s4650 + $0x1e8] sm:$0xff]
      %v4713 = vld [vmem:[%s4650 + $0x1f0] sm:$0x3]
      %v4714 = vld [vmem:[%s4650 + $0x1f8] sm:$0x3]
      %s4715 = scalar_lea.vmem %s4, 1536
      %v4716 = vld [vmem:[%s4715] sm:$0xff]
      %v4717 = vld [vmem:[%s4715 + $0x8] sm:$0xff]
      %v4718 = vld [vmem:[%s4715 + $0x10] sm:$0xff]
      %v4719 = vld [vmem:[%s4715 + $0x18] sm:$0xff]
      %v4720 = vld [vmem:[%s4715 + $0x20] sm:$0xff]
      %v4721 = vld [vmem:[%s4715 + $0x28] sm:$0xff]
      %v4722 = vld [vmem:[%s4715 + $0x30] sm:$0xff]
      %v4723 = vld [vmem:[%s4715 + $0x38] sm:$0xff]
      %v4724 = vld [vmem:[%s4715 + $0x40] sm:$0xff]
      %v4725 = vld [vmem:[%s4715 + $0x48] sm:$0xff]
      %v4726 = vld [vmem:[%s4715 + $0x50] sm:$0xff]
      %v4727 = vld [vmem:[%s4715 + $0x58] sm:$0xff]
      %v4728 = vld [vmem:[%s4715 + $0x60] sm:$0xff]
      %v4729 = vld [vmem:[%s4715 + $0x68] sm:$0xff]
      %v4730 = vld [vmem:[%s4715 + $0x70] sm:$0xff]
      %v4731 = vld [vmem:[%s4715 + $0x78] sm:$0xff]
      %v4732 = vld [vmem:[%s4715 + $0x80] sm:$0xff]
      %v4733 = vld [vmem:[%s4715 + $0x88] sm:$0xff]
      %v4734 = vld [vmem:[%s4715 + $0x90] sm:$0xff]
      %v4735 = vld [vmem:[%s4715 + $0x98] sm:$0xff]
      %v4736 = vld [vmem:[%s4715 + $0xa0] sm:$0xff]
      %v4737 = vld [vmem:[%s4715 + $0xa8] sm:$0xff]
      %v4738 = vld [vmem:[%s4715 + $0xb0] sm:$0xff]
      %v4739 = vld [vmem:[%s4715 + $0xb8] sm:$0xff]
      %v4740 = vld [vmem:[%s4715 + $0xc0] sm:$0xff]
      %v4741 = vld [vmem:[%s4715 + $0xc8] sm:$0xff]
      %v4742 = vld [vmem:[%s4715 + $0xd0] sm:$0xff]
      %v4743 = vld [vmem:[%s4715 + $0xd8] sm:$0xff]
      %v4744 = vld [vmem:[%s4715 + $0xe0] sm:$0xff]
      %v4745 = vld [vmem:[%s4715 + $0xe8] sm:$0xff]
      %v4746 = vld [vmem:[%s4715 + $0xf0] sm:$0xff]
      %v4747 = vld [vmem:[%s4715 + $0xf8] sm:$0xff]
      %s4748 = scalar_lea.vmem %s4, 1792
      %v4749 = vld [vmem:[%s4748] sm:$0xff]
      %v4750 = vld [vmem:[%s4748 + $0x8] sm:$0xff]
      %v4751 = vld [vmem:[%s4748 + $0x10] sm:$0xff]
      %v4752 = vld [vmem:[%s4748 + $0x18] sm:$0xff]
      %v4753 = vld [vmem:[%s4748 + $0x20] sm:$0xff]
      %v4754 = vld [vmem:[%s4748 + $0x28] sm:$0xff]
      %v4755 = vld [vmem:[%s4748 + $0x30] sm:$0xff]
      %v4756 = vld [vmem:[%s4748 + $0x38] sm:$0xff]
      %v4757 = vld [vmem:[%s4748 + $0x40] sm:$0xff]
      %v4758 = vld [vmem:[%s4748 + $0x48] sm:$0xff]
      %v4759 = vld [vmem:[%s4748 + $0x50] sm:$0xff]
      %v4760 = vld [vmem:[%s4748 + $0x58] sm:$0xff]
      %v4761 = vld [vmem:[%s4748 + $0x60] sm:$0xff]
      %v4762 = vld [vmem:[%s4748 + $0x68] sm:$0xff]
      %v4763 = vld [vmem:[%s4748 + $0x70] sm:$0xff]
      %v4764 = vld [vmem:[%s4748 + $0x78] sm:$0xff]
      %v4765 = vld [vmem:[%s4748 + $0x80] sm:$0xff]
      %v4766 = vld [vmem:[%s4748 + $0x88] sm:$0xff]
      %v4767 = vld [vmem:[%s4748 + $0x90] sm:$0xff]
      %v4768 = vld [vmem:[%s4748 + $0x98] sm:$0xff]
      %v4769 = vld [vmem:[%s4748 + $0xa0] sm:$0xff]
      %v4770 = vld [vmem:[%s4748 + $0xa8] sm:$0xff]
      %v4771 = vld [vmem:[%s4748 + $0xb0] sm:$0xff]
      %v4772 = vld [vmem:[%s4748 + $0xb8] sm:$0xff]
      %v4773 = vld [vmem:[%s4748 + $0xc0] sm:$0xff]
      %v4774 = vld [vmem:[%s4748 + $0xc8] sm:$0xff]
      %v4775 = vld [vmem:[%s4748 + $0xd0] sm:$0xff]
      %v4776 = vld [vmem:[%s4748 + $0xd8] sm:$0xff]
      %v4777 = vld [vmem:[%s4748 + $0xe0] sm:$0xff]
      %v4778 = vld [vmem:[%s4748 + $0xe8] sm:$0xff]
      %v4779 = vld [vmem:[%s4748 + $0xf0] sm:$0xff]
      %v4780 = vld [vmem:[%s4748 + $0xf8] sm:$0xff]
      %s4781 = scalar_lea.vmem %s4, 2048
      %v4782 = vld [vmem:[%s4781] sm:$0xff]
      %v4783 = vld [vmem:[%s4781 + $0x8] sm:$0xff]
      %v4784 = vld [vmem:[%s4781 + $0x10] sm:$0xff]
      %v4785 = vld [vmem:[%s4781 + $0x18] sm:$0xff]
      %v4786 = vld [vmem:[%s4781 + $0x20] sm:$0xff]
      %v4787 = vld [vmem:[%s4781 + $0x28] sm:$0xff]
      %v4788 = vld [vmem:[%s4781 + $0x30] sm:$0xff]
      %v4789 = vld [vmem:[%s4781 + $0x38] sm:$0xff]
      %v4790 = vld [vmem:[%s4781 + $0x40] sm:$0xff]
      %v4791 = vld [vmem:[%s4781 + $0x48] sm:$0xff]
      %v4792 = vld [vmem:[%s4781 + $0x50] sm:$0xff]
      %v4793 = vld [vmem:[%s4781 + $0x58] sm:$0xff]
      %v4794 = vld [vmem:[%s4781 + $0x60] sm:$0xff]
      %v4795 = vld [vmem:[%s4781 + $0x68] sm:$0xff]
      %v4796 = vld [vmem:[%s4781 + $0x70] sm:$0xff]
      %v4797 = vld [vmem:[%s4781 + $0x78] sm:$0xff]
      %v4798 = vld [vmem:[%s4781 + $0x80] sm:$0xff]
      %v4799 = vld [vmem:[%s4781 + $0x88] sm:$0xff]
      %v4800 = vld [vmem:[%s4781 + $0x90] sm:$0xff]
      %v4801 = vld [vmem:[%s4781 + $0x98] sm:$0xff]
      %v4802 = vld [vmem:[%s4781 + $0xa0] sm:$0xff]
      %v4803 = vld [vmem:[%s4781 + $0xa8] sm:$0xff]
      %v4804 = vld [vmem:[%s4781 + $0xb0] sm:$0xff]
      %v4805 = vld [vmem:[%s4781 + $0xb8] sm:$0xff]
      %v4806 = vld [vmem:[%s4781 + $0xc0] sm:$0xff]
      %v4807 = vld [vmem:[%s4781 + $0xc8] sm:$0xff]
      %v4808 = vld [vmem:[%s4781 + $0xd0] sm:$0xff]
      %v4809 = vld [vmem:[%s4781 + $0xd8] sm:$0xff]
      %v4810 = vld [vmem:[%s4781 + $0xe0] sm:$0xff]
      %v4811 = vld [vmem:[%s4781 + $0xe8] sm:$0xff]
      %v4812 = vld [vmem:[%s4781 + $0xf0] sm:$0xff]
      %v4813 = vld [vmem:[%s4781 + $0xf8] sm:$0xff]
      %4814 = vmatprep.subr.mxu0 0.0
      %4815 = vmatpush1.msra.mxu0 %v4716
      %4816 = vmatprep.subr.mxu0 0.0
      %4817 = vmatpush1.msra.mxu0 %v4717
      %4818 = vmatprep.subr.mxu0 0.0
      %4819 = vmatpush1.msra.mxu0 %v4718
      %4820 = vmatprep.subr.mxu0 0.0
      %4821 = vmatpush1.msra.mxu0 %v4719
      %4822 = vmatprep.subr.mxu0 0.0
      %4823 = vmatpush1.msra.mxu0 %v4720
      %4824 = vmatprep.subr.mxu0 0.0
      %4825 = vmatpush1.msra.mxu0 %v4721
      %4826 = vmatprep.subr.mxu0 0.0
      %4827 = vmatpush1.msra.mxu0 %v4722
      %4828 = vmatprep.subr.mxu0 0.0
      %4829 = vmatpush1.msra.mxu0 %v4723
      %4830 = vmatprep.subr.mxu0 0.0
      %4831 = vmatpush1.msra.mxu0 %v4724
      %4832 = vmatprep.subr.mxu0 0.0
      %4833 = vmatpush1.msra.mxu0 %v4725
      %4834 = vmatprep.subr.mxu0 0.0
      %4835 = vmatpush1.msra.mxu0 %v4726
      %4836 = vmatprep.subr.mxu0 0.0
      %4837 = vmatpush1.msra.mxu0 %v4727
      %4838 = vmatprep.subr.mxu0 0.0
      %4839 = vmatpush1.msra.mxu0 %v4728
      %4840 = vmatprep.subr.mxu0 0.0
      %4841 = vmatpush1.msra.mxu0 %v4729
      %4842 = vmatprep.subr.mxu0 0.0
      %4843 = vmatpush1.msra.mxu0 %v4730
      %4844 = vmatprep.subr.mxu0 0.0
      %4845 = vmatpush1.msra.mxu0 %v4731
      %4846 = vmatprep.subr.mxu0 0.0
      %4847 = vmatpush1.msra.mxu0 %v4732
      %4848 = vmatprep.subr.mxu0 0.0
      %4849 = vmatpush1.msra.mxu0 %v4733
      %4850 = vmatprep.subr.mxu0 0.0
      %4851 = vmatpush1.msra.mxu0 %v4734
      %4852 = vmatprep.subr.mxu0 0.0
      %4853 = vmatpush1.msra.mxu0 %v4735
      %4854 = vmatprep.subr.mxu0 0.0
      %4855 = vmatpush1.msra.mxu0 %v4736
      %4856 = vmatprep.subr.mxu0 0.0
      %4857 = vmatpush1.msra.mxu0 %v4737
      %4858 = vmatprep.subr.mxu0 0.0
      %4859 = vmatpush1.msra.mxu0 %v4738
      %4860 = vmatprep.subr.mxu0 0.0
      %4861 = vmatpush1.msra.mxu0 %v4739
      %4862 = vmatprep.subr.mxu0 0.0
      %4863 = vmatpush1.msra.mxu0 %v4740
      %4864 = vmatprep.subr.mxu0 0.0
      %4865 = vmatpush1.msra.mxu0 %v4741
      %4866 = vmatprep.subr.mxu0 0.0
      %4867 = vmatpush1.msra.mxu0 %v4742
      %4868 = vmatprep.subr.mxu0 0.0
      %4869 = vmatpush1.msra.mxu0 %v4743
      %4870 = vmatprep.subr.mxu0 0.0
      %4871 = vmatpush1.msra.mxu0 %v4744
      %4872 = vmatprep.subr.mxu0 0.0
      %4873 = vmatpush1.msra.mxu0 %v4745
      %4874 = vmatprep.subr.mxu0 0.0
      %4875 = vmatpush1.msra.mxu0 %v4746
      %4876 = vmatprep.subr.mxu0 0.0
      %4877 = vmatpush1.msra.mxu0 %v4747
      %4878 = vmatprep.mubr.f32.mxu0 %v4652
      %4879 = vmatmul.mubr.f32.gmra.mrb[0].mxu0 %v4651
      %v4880 = vpop.f32.mrb[0].mxu0
      %v4881 = vadd.f32 0.0, %v4880
      %v4882 = vpop.f32.mrb[0].mxu0
      %4883 = vmatprep.mubr.f32.mxu0 %v4656
      %4884 = vmatmul.mubr.f32.gmra.mrb[0].mxu0 %v4655
      %v4885 = vpop.f32.mrb[0].mxu0
      %v4886 = vadd.f32 0.0, %v4885
      %v4887 = vpop.f32.mrb[0].mxu0
      %4888 = vmatprep.mubr.f32.mxu0 %v4660
      %4889 = vmatmul.mubr.f32.gmra.mrb[0].mxu0 %v4659
      %v4890 = vpop.f32.mrb[0].mxu0
      %v4891 = vadd.f32 0.0, %v4890
      %v4892 = vpop.f32.mrb[0].mxu0
      %4893 = vmatprep.mubr.f32.mxu0 %v4664
      %4894 = vmatmul.mubr.f32.gmra.mrb[0].mxu0 %v4663
      %v4895 = vpop.f32.mrb[0].mxu0
      %v4896 = vadd.f32 0.0, %v4895
      %v4897 = vpop.f32.mrb[0].mxu0
      %4898 = vmatprep.mubr.f32.mxu0 %v4668
      %4899 = vmatmul.mubr.f32.gmra.mrb[0].mxu0 %v4667
      %v4900 = vpop.f32.mrb[0].mxu0
      %v4901 = vadd.f32 0.0, %v4900
      %v4902 = vpop.f32.mrb[0].mxu0
      %4903 = vmatprep.mubr.f32.mxu0 %v4672
      %4904 = vmatmul.mubr.f32.gmra.mrb[0].mxu0 %v4671
      %v4905 = vpop.f32.mrb[0].mxu0
      %v4906 = vadd.f32 0.0, %v4905
      %v4907 = vpop.f32.mrb[0].mxu0
      %4908 = vmatprep.mubr.f32.mxu0 %v4676
      %4909 = vmatmul.mubr.f32.gmra.mrb[0].mxu0 %v4675
      %v4910 = vpop.f32.mrb[0].mxu0
      %v4911 = vadd.f32 0.0, %v4910
      %v4912 = vpop.f32.mrb[0].mxu0
      %4913 = vmatprep.mubr.f32.mxu0 %v4680
      %4914 = vmatmul.mubr.f32.gmra.mrb[0].mxu0 %v4679
      %v4915 = vpop.f32.mrb[0].mxu0
      %v4916 = vadd.f32 0.0, %v4915
      %v4917 = vpop.f32.mrb[0].mxu0
      %4918 = vmatprep.mubr.f32.mxu0 %v4684
      %4919 = vmatmul.mubr.f32.gmra.mrb[0].mxu0 %v4683
      %v4920 = vpop.f32.mrb[0].mxu0
      %v4921 = vadd.f32 0.0, %v4920
      %v4922 = vpop.f32.mrb[0].mxu0
      %4923 = vmatprep.mubr.f32.mxu0 %v4688
      %4924 = vmatmul.mubr.f32.gmra.mrb[0].mxu0 %v4687
      %v4925 = vpop.f32.mrb[0].mxu0
      %v4926 = vadd.f32 0.0, %v4925
      %v4927 = vpop.f32.mrb[0].mxu0
      %4928 = vmatprep.mubr.f32.mxu0 %v4692
      %4929 = vmatmul.mubr.f32.gmra.mrb[0].mxu0 %v4691
      %v4930 = vpop.f32.mrb[0].mxu0
      %v4931 = vadd.f32 0.0, %v4930
      %v4932 = vpop.f32.mrb[0].mxu0
      %4933 = vmatprep.mubr.f32.mxu0 %v4696
      %4934 = vmatmul.mubr.f32.gmra.mrb[0].mxu0 %v4695
      %v4935 = vpop.f32.mrb[0].mxu0
      %v4936 = vadd.f32 0.0, %v4935
      %v4937 = vpop.f32.mrb[0].mxu0
      %4938 = vmatprep.mubr.f32.mxu0 %v4700
      %4939 = vmatmul.mubr.f32.gmra.mrb[0].mxu0 %v4699
      %v4940 = vpop.f32.mrb[0].mxu0
      %v4941 = vadd.f32 0.0, %v4940
      %v4942 = vpop.f32.mrb[0].mxu0
      %4943 = vmatprep.mubr.f32.mxu0 %v4704
      %4944 = vmatmul.mubr.f32.gmra.mrb[0].mxu0 %v4703
      %v4945 = vpop.f32.mrb[0].mxu0
      %v4946 = vadd.f32 0.0, %v4945
      %v4947 = vpop.f32.mrb[0].mxu0
      %4948 = vmatprep.mubr.f32.mxu0 %v4708
      %4949 = vmatmul.mubr.f32.gmra.mrb[0].mxu0 %v4707
      %v4950 = vpop.f32.mrb[0].mxu0
      %v4951 = vadd.f32 0.0, %v4950
      %v4952 = vpop.f32.mrb[0].mxu0
      %4953 = vmatprep.mubr.f32.mxu0 %v4712
      %4954 = vmatmul.mubr.f32.gmra.mrb[0].mxu0 %v4711
      %v4955 = vpop.f32.mrb[0].mxu0
      %v4956 = vadd.f32 0.0, %v4955
      %v4957 = vpop.f32.mrb[0].mxu0
      %4958 = vdwg.mxu0
      %v4959 = vadd.f32 %v3958, %v4881
      %v4960 = vadd.f32 %v3959, %v4886
      %v4961 = vadd.f32 %v3960, %v4891
      %v4962 = vadd.f32 %v3961, %v4896
      %v4963 = vadd.f32 %v3962, %v4901
      %v4964 = vadd.f32 %v3963, %v4906
      %v4965 = vadd.f32 %v3964, %v4911
      %v4966 = vadd.f32 %v3965, %v4916
      %v4967 = vadd.f32 %v3966, %v4921
      %v4968 = vadd.f32 %v3967, %v4926
      %v4969 = vadd.f32 %v3968, %v4931
      %v4970 = vadd.f32 %v3969, %v4936
      %v4971 = vadd.f32 %v3970, %v4941
      %v4972 = vadd.f32 %v3971, %v4946
      %v4973 = vadd.f32 %v3972, %v4951
      %v4974 = vadd.f32 %v3973, %v4956
      %v5039 = vrot.slane %v4586, 1
      %v5040 = vrot.slane %v4588, 1
      %v5041 = vsel %vm1625, %v5039, %v5040
      %v5042 = vrot.slane %v4587, 1
      %v5043 = vrot.slane %v4589, 1
      %v5044 = vsel %vm1625, %v5042, %v5043
      %v5045 = vrot.slane %v4590, 1
      %v5046 = vrot.slane %v4592, 1
      %v5047 = vsel %vm1625, %v5045, %v5046
      %v5048 = vrot.slane %v4591, 1
      %v5049 = vrot.slane %v4593, 1
      %v5050 = vsel %vm1625, %v5048, %v5049
      %v5051 = vrot.slane %v4594, 1
      %v5052 = vrot.slane %v4596, 1
      %v5053 = vsel %vm1625, %v5051, %v5052
      %v5054 = vrot.slane %v4595, 1
      %v5055 = vrot.slane %v4597, 1
      %v5056 = vsel %vm1625, %v5054, %v5055
      %v5057 = vrot.slane %v4598, 1
      %v5058 = vrot.slane %v4600, 1
      %v5059 = vsel %vm1625, %v5057, %v5058
      %v5060 = vrot.slane %v4599, 1
      %v5061 = vrot.slane %v4601, 1
      %v5062 = vsel %vm1625, %v5060, %v5061
      %v5063 = vrot.slane %v4602, 1
      %v5064 = vrot.slane %v4604, 1
      %v5065 = vsel %vm1625, %v5063, %v5064
      %v5066 = vrot.slane %v4603, 1
      %v5067 = vrot.slane %v4605, 1
      %v5068 = vsel %vm1625, %v5066, %v5067
      %v5069 = vrot.slane %v4606, 1
      %v5070 = vrot.slane %v4608, 1
      %v5071 = vsel %vm1625, %v5069, %v5070
      %v5072 = vrot.slane %v4607, 1
      %v5073 = vrot.slane %v4609, 1
      %v5074 = vsel %vm1625, %v5072, %v5073
      %v5075 = vrot.slane %v4610, 1
      %v5076 = vrot.slane %v4612, 1
      %v5077 = vsel %vm1625, %v5075, %v5076
      %v5078 = vrot.slane %v4611, 1
      %v5079 = vrot.slane %v4613, 1
      %v5080 = vsel %vm1625, %v5078, %v5079
      %v5081 = vrot.slane %v4614, 1
      %v5082 = vrot.slane %v4616, 1
      %v5083 = vsel %vm1625, %v5081, %v5082
      %v5084 = vrot.slane %v4615, 1
      %v5085 = vrot.slane %v4617, 1
      %v5086 = vsel %vm1625, %v5084, %v5085
      %v5087 = vrot.slane %v4618, 1
      %v5088 = vrot.slane %v4620, 1
      %v5089 = vsel %vm1625, %v5087, %v5088
      %v5090 = vrot.slane %v4619, 1
      %v5091 = vrot.slane %v4621, 1
      %v5092 = vsel %vm1625, %v5090, %v5091
      %v5093 = vrot.slane %v4622, 1
      %v5094 = vrot.slane %v4624, 1
      %v5095 = vsel %vm1625, %v5093, %v5094
      %v5096 = vrot.slane %v4623, 1
      %v5097 = vrot.slane %v4625, 1
      %v5098 = vsel %vm1625, %v5096, %v5097
      %v5099 = vrot.slane %v4626, 1
      %v5100 = vrot.slane %v4628, 1
      %v5101 = vsel %vm1625, %v5099, %v5100
      %v5102 = vrot.slane %v4627, 1
      %v5103 = vrot.slane %v4629, 1
      %v5104 = vsel %vm1625, %v5102, %v5103
      %v5105 = vrot.slane %v4630, 1
      %v5106 = vrot.slane %v4632, 1
      %v5107 = vsel %vm1625, %v5105, %v5106
      %v5108 = vrot.slane %v4631, 1
      %v5109 = vrot.slane %v4633, 1
      %v5110 = vsel %vm1625, %v5108, %v5109
      %v5111 = vrot.slane %v4634, 1
      %v5112 = vrot.slane %v4636, 1
      %v5113 = vsel %vm1625, %v5111, %v5112
      %v5114 = vrot.slane %v4635, 1
      %v5115 = vrot.slane %v4637, 1
      %v5116 = vsel %vm1625, %v5114, %v5115
      %v5117 = vrot.slane %v4638, 1
      %v5118 = vrot.slane %v4640, 1
      %v5119 = vsel %vm1625, %v5117, %v5118
      %v5120 = vrot.slane %v4639, 1
      %v5121 = vrot.slane %v4641, 1
      %v5122 = vsel %vm1625, %v5120, %v5121
      %v5123 = vrot.slane %v4642, 1
      %v5124 = vrot.slane %v4644, 1
      %v5125 = vsel %vm1625, %v5123, %v5124
      %v5126 = vrot.slane %v4643, 1
      %v5127 = vrot.slane %v4645, 1
      %v5128 = vsel %vm1625, %v5126, %v5127
      %v5129 = vrot.slane %v4646, 1
      %v5130 = vrot.slane %v4648, 1
      %v5131 = vsel %vm1625, %v5129, %v5130
      %v5132 = vrot.slane %v4647, 1
      %v5133 = vrot.slane %v4649, 1
      %v5134 = vsel %vm1625, %v5132, %v5133
      %5167 = vmatprep.subr.mxu0 0.0
      %5168 = vmatpush1.msra.mxu0 %v4749
      %5169 = vmatprep.subr.mxu0 0.0
      %5170 = vmatpush1.msra.mxu0 %v4750
      %5171 = vmatprep.subr.mxu0 0.0
      %5172 = vmatpush1.msra.mxu0 %v4751
      %5173 = vmatprep.subr.mxu0 0.0
      %5174 = vmatpush1.msra.mxu0 %v4752
      %5175 = vmatprep.subr.mxu0 0.0
      %5176 = vmatpush1.msra.mxu0 %v4753
      %5177 = vmatprep.subr.mxu0 0.0
      %5178 = vmatpush1.msra.mxu0 %v4754
      %5179 = vmatprep.subr.mxu0 0.0
      %5180 = vmatpush1.msra.mxu0 %v4755
      %5181 = vmatprep.subr.mxu0 0.0
      %5182 = vmatpush1.msra.mxu0 %v4756
      %5183 = vmatprep.subr.mxu0 0.0
      %5184 = vmatpush1.msra.mxu0 %v4757
      %5185 = vmatprep.subr.mxu0 0.0
      %5186 = vmatpush1.msra.mxu0 %v4758
      %5187 = vmatprep.subr.mxu0 0.0
      %5188 = vmatpush1.msra.mxu0 %v4759
      %5189 = vmatprep.subr.mxu0 0.0
      %5190 = vmatpush1.msra.mxu0 %v4760
      %5191 = vmatprep.subr.mxu0 0.0
      %5192 = vmatpush1.msra.mxu0 %v4761
      %5193 = vmatprep.subr.mxu0 0.0
      %5194 = vmatpush1.msra.mxu0 %v4762
      %5195 = vmatprep.subr.mxu0 0.0
      %5196 = vmatpush1.msra.mxu0 %v4763
      %5197 = vmatprep.subr.mxu0 0.0
      %5198 = vmatpush1.msra.mxu0 %v4764
      %5199 = vmatprep.subr.mxu0 0.0
      %5200 = vmatpush1.msra.mxu0 %v4765
      %5201 = vmatprep.subr.mxu0 0.0
      %5202 = vmatpush1.msra.mxu0 %v4766
      %5203 = vmatprep.subr.mxu0 0.0
      %5204 = vmatpush1.msra.mxu0 %v4767
      %5205 = vmatprep.subr.mxu0 0.0
      %5206 = vmatpush1.msra.mxu0 %v4768
      %5207 = vmatprep.subr.mxu0 0.0
      %5208 = vmatpush1.msra.mxu0 %v4769
      %5209 = vmatprep.subr.mxu0 0.0
      %5210 = vmatpush1.msra.mxu0 %v4770
      %5211 = vmatprep.subr.mxu0 0.0
      %5212 = vmatpush1.msra.mxu0 %v4771
      %5213 = vmatprep.subr.mxu0 0.0
      %5214 = vmatpush1.msra.mxu0 %v4772
      %5215 = vmatprep.subr.mxu0 0.0
      %5216 = vmatpush1.msra.mxu0 %v4773
      %5217 = vmatprep.subr.mxu0 0.0
      %5218 = vmatpush1.msra.mxu0 %v4774
      %5219 = vmatprep.subr.mxu0 0.0
      %5220 = vmatpush1.msra.mxu0 %v4775
      %5221 = vmatprep.subr.mxu0 0.0
      %5222 = vmatpush1.msra.mxu0 %v4776
      %5223 = vmatprep.subr.mxu0 0.0
      %5224 = vmatpush1.msra.mxu0 %v4777
      %5225 = vmatprep.subr.mxu0 0.0
      %5226 = vmatpush1.msra.mxu0 %v4778
      %5227 = vmatprep.subr.mxu0 0.0
      %5228 = vmatpush1.msra.mxu0 %v4779
      %5229 = vmatprep.subr.mxu0 0.0
      %5230 = vmatpush1.msra.mxu0 %v4780
      %5231 = vmatprep.mubr.f32.mxu0 %v5044
      %5232 = vmatmul.mubr.f32.gmra.mrb[0].mxu0 %v5041
      %v5233 = vpop.f32.mrb[0].mxu0
      %v5234 = vadd.f32 0.0, %v5233
      %v5235 = vpop.f32.mrb[0].mxu0
      %5236 = vmatprep.mubr.f32.mxu0 %v5050
      %5237 = vmatmul.mubr.f32.gmra.mrb[0].mxu0 %v5047
      %v5238 = vpop.f32.mrb[0].mxu0
      %v5239 = vadd.f32 0.0, %v5238
      %v5240 = vpop.f32.mrb[0].mxu0
      %5241 = vmatprep.mubr.f32.mxu0 %v5056
      %5242 = vmatmul.mubr.f32.gmra.mrb[0].mxu0 %v5053
      %v5243 = vpop.f32.mrb[0].mxu0
      %v5244 = vadd.f32 0.0, %v5243
      %v5245 = vpop.f32.mrb[0].mxu0
      %5246 = vmatprep.mubr.f32.mxu0 %v5062
      %5247 = vmatmul.mubr.f32.gmra.mrb[0].mxu0 %v5059
      %v5248 = vpop.f32.mrb[0].mxu0
      %v5249 = vadd.f32 0.0, %v5248
      %v5250 = vpop.f32.mrb[0].mxu0
      %5251 = vmatprep.mubr.f32.mxu0 %v5068
      %5252 = vmatmul.mubr.f32.gmra.mrb[0].mxu0 %v5065
      %v5253 = vpop.f32.mrb[0].mxu0
      %v5254 = vadd.f32 0.0, %v5253
      %v5255 = vpop.f32.mrb[0].mxu0
      %5256 = vmatprep.mubr.f32.mxu0 %v5074
      %5257 = vmatmul.mubr.f32.gmra.mrb[0].mxu0 %v5071
      %v5258 = vpop.f32.mrb[0].mxu0
      %v5259 = vadd.f32 0.0, %v5258
      %v5260 = vpop.f32.mrb[0].mxu0
      %5261 = vmatprep.mubr.f32.mxu0 %v5080
      %5262 = vmatmul.mubr.f32.gmra.mrb[0].mxu0 %v5077
      %v5263 = vpop.f32.mrb[0].mxu0
      %v5264 = vadd.f32 0.0, %v5263
      %v5265 = vpop.f32.mrb[0].mxu0
      %5266 = vmatprep.mubr.f32.mxu0 %v5086
      %5267 = vmatmul.mubr.f32.gmra.mrb[0].mxu0 %v5083
      %v5268 = vpop.f32.mrb[0].mxu0
      %v5269 = vadd.f32 0.0, %v5268
      %v5270 = vpop.f32.mrb[0].mxu0
      %5271 = vmatprep.mubr.f32.mxu0 %v5092
      %5272 = vmatmul.mubr.f32.gmra.mrb[0].mxu0 %v5089
      %v5273 = vpop.f32.mrb[0].mxu0
      %v5274 = vadd.f32 0.0, %v5273
      %v5275 = vpop.f32.mrb[0].mxu0
      %5276 = vmatprep.mubr.f32.mxu0 %v5098
      %5277 = vmatmul.mubr.f32.gmra.mrb[0].mxu0 %v5095
      %v5278 = vpop.f32.mrb[0].mxu0
      %v5279 = vadd.f32 0.0, %v5278
      %v5280 = vpop.f32.mrb[0].mxu0
      %5281 = vmatprep.mubr.f32.mxu0 %v5104
      %5282 = vmatmul.mubr.f32.gmra.mrb[0].mxu0 %v5101
      %v5283 = vpop.f32.mrb[0].mxu0
      %v5284 = vadd.f32 0.0, %v5283
      %v5285 = vpop.f32.mrb[0].mxu0
      %5286 = vmatprep.mubr.f32.mxu0 %v5110
      %5287 = vmatmul.mubr.f32.gmra.mrb[0].mxu0 %v5107
      %v5288 = vpop.f32.mrb[0].mxu0
      %v5289 = vadd.f32 0.0, %v5288
      %v5290 = vpop.f32.mrb[0].mxu0
      %5291 = vmatprep.mubr.f32.mxu0 %v5116
      %5292 = vmatmul.mubr.f32.gmra.mrb[0].mxu0 %v5113
      %v5293 = vpop.f32.mrb[0].mxu0
      %v5294 = vadd.f32 0.0, %v5293
      %v5295 = vpop.f32.mrb[0].mxu0
      %5296 = vmatprep.mubr.f32.mxu0 %v5122
      %5297 = vmatmul.mubr.f32.gmra.mrb[0].mxu0 %v5119
      %v5298 = vpop.f32.mrb[0].mxu0
      %v5299 = vadd.f32 0.0, %v5298
      %v5300 = vpop.f32.mrb[0].mxu0
      %5301 = vmatprep.mubr.f32.mxu0 %v5128
      %5302 = vmatmul.mubr.f32.gmra.mrb[0].mxu0 %v5125
      %v5303 = vpop.f32.mrb[0].mxu0
      %v5304 = vadd.f32 0.0, %v5303
      %v5305 = vpop.f32.mrb[0].mxu0
      %5306 = vmatprep.mubr.f32.mxu0 %v5134
      %5307 = vmatmul.mubr.f32.gmra.mrb[0].mxu0 %v5131
      %v5308 = vpop.f32.mrb[0].mxu0
      %v5309 = vadd.f32 0.0, %v5308
      %v5310 = vpop.f32.mrb[0].mxu0
      %5311 = vdwg.mxu0
      %v5312 = vadd.f32 %v4959, %v5234
      %v5313 = vadd.f32 %v4960, %v5239
      %v5314 = vadd.f32 %v4961, %v5244
      %v5315 = vadd.f32 %v4962, %v5249
      %v5316 = vadd.f32 %v4963, %v5254
      %v5317 = vadd.f32 %v4964, %v5259
      %v5318 = vadd.f32 %v4965, %v5264
      %v5319 = vadd.f32 %v4966, %v5269
      %v5320 = vadd.f32 %v4967, %v5274
      %v5321 = vadd.f32 %v4968, %v5279
      %v5322 = vadd.f32 %v4969, %v5284
      %v5323 = vadd.f32 %v4970, %v5289
      %v5324 = vadd.f32 %v4971, %v5294
      %v5325 = vadd.f32 %v4972, %v5299
      %v5326 = vadd.f32 %v4973, %v5304
      %v5327 = vadd.f32 %v4974, %v5309
      %v5392 = vrot.slane %v4651, 1
      %v5393 = vrot.slane %v4653, 1
      %v5394 = vsel %vm1625, %v5392, %v5393
      %v5395 = vrot.slane %v4652, 1
      %v5396 = vrot.slane %v4654, 1
      %v5397 = vsel %vm1625, %v5395, %v5396
      %v5398 = vrot.slane %v4655, 1
      %v5399 = vrot.slane %v4657, 1
      %v5400 = vsel %vm1625, %v5398, %v5399
      %v5401 = vrot.slane %v4656, 1
      %v5402 = vrot.slane %v4658, 1
      %v5403 = vsel %vm1625, %v5401, %v5402
      %v5404 = vrot.slane %v4659, 1
      %v5405 = vrot.slane %v4661, 1
      %v5406 = vsel %vm1625, %v5404, %v5405
      %v5407 = vrot.slane %v4660, 1
      %v5408 = vrot.slane %v4662, 1
      %v5409 = vsel %vm1625, %v5407, %v5408
      %v5410 = vrot.slane %v4663, 1
      %v5411 = vrot.slane %v4665, 1
      %v5412 = vsel %vm1625, %v5410, %v5411
      %v5413 = vrot.slane %v4664, 1
      %v5414 = vrot.slane %v4666, 1
      %v5415 = vsel %vm1625, %v5413, %v5414
      %v5416 = vrot.slane %v4667, 1
      %v5417 = vrot.slane %v4669, 1
      %v5418 = vsel %vm1625, %v5416, %v5417
      %v5419 = vrot.slane %v4668, 1
      %v5420 = vrot.slane %v4670, 1
      %v5421 = vsel %vm1625, %v5419, %v5420
      %v5422 = vrot.slane %v4671, 1
      %v5423 = vrot.slane %v4673, 1
      %v5424 = vsel %vm1625, %v5422, %v5423
      %v5425 = vrot.slane %v4672, 1
      %v5426 = vrot.slane %v4674, 1
      %v5427 = vsel %vm1625, %v5425, %v5426
      %v5428 = vrot.slane %v4675, 1
      %v5429 = vrot.slane %v4677, 1
      %v5430 = vsel %vm1625, %v5428, %v5429
      %v5431 = vrot.slane %v4676, 1
      %v5432 = vrot.slane %v4678, 1
      %v5433 = vsel %vm1625, %v5431, %v5432
      %v5434 = vrot.slane %v4679, 1
      %v5435 = vrot.slane %v4681, 1
      %v5436 = vsel %vm1625, %v5434, %v5435
      %v5437 = vrot.slane %v4680, 1
      %v5438 = vrot.slane %v4682, 1
      %v5439 = vsel %vm1625, %v5437, %v5438
      %v5440 = vrot.slane %v4683, 1
      %v5441 = vrot.slane %v4685, 1
      %v5442 = vsel %vm1625, %v5440, %v5441
      %v5443 = vrot.slane %v4684, 1
      %v5444 = vrot.slane %v4686, 1
      %v5445 = vsel %vm1625, %v5443, %v5444
      %v5446 = vrot.slane %v4687, 1
      %v5447 = vrot.slane %v4689, 1
      %v5448 = vsel %vm1625, %v5446, %v5447
      %v5449 = vrot.slane %v4688, 1
      %v5450 = vrot.slane %v4690, 1
      %v5451 = vsel %vm1625, %v5449, %v5450
      %v5452 = vrot.slane %v4691, 1
      %v5453 = vrot.slane %v4693, 1
      %v5454 = vsel %vm1625, %v5452, %v5453
      %v5455 = vrot.slane %v4692, 1
      %v5456 = vrot.slane %v4694, 1
      %v5457 = vsel %vm1625, %v5455, %v5456
      %v5458 = vrot.slane %v4695, 1
      %v5459 = vrot.slane %v4697, 1
      %v5460 = vsel %vm1625, %v5458, %v5459
      %v5461 = vrot.slane %v4696, 1
      %v5462 = vrot.slane %v4698, 1
      %v5463 = vsel %vm1625, %v5461, %v5462
      %v5464 = vrot.slane %v4699, 1
      %v5465 = vrot.slane %v4701, 1
      %v5466 = vsel %vm1625, %v5464, %v5465
      %v5467 = vrot.slane %v4700, 1
      %v5468 = vrot.slane %v4702, 1
      %v5469 = vsel %vm1625, %v5467, %v5468
      %v5470 = vrot.slane %v4703, 1
      %v5471 = vrot.slane %v4705, 1
      %v5472 = vsel %vm1625, %v5470, %v5471
      %v5473 = vrot.slane %v4704, 1
      %v5474 = vrot.slane %v4706, 1
      %v5475 = vsel %vm1625, %v5473, %v5474
      %v5476 = vrot.slane %v4707, 1
      %v5477 = vrot.slane %v4709, 1
      %v5478 = vsel %vm1625, %v5476, %v5477
      %v5479 = vrot.slane %v4708, 1
      %v5480 = vrot.slane %v4710, 1
      %v5481 = vsel %vm1625, %v5479, %v5480
      %v5482 = vrot.slane %v4711, 1
      %v5483 = vrot.slane %v4713, 1
      %v5484 = vsel %vm1625, %v5482, %v5483
      %v5485 = vrot.slane %v4712, 1
      %v5486 = vrot.slane %v4714, 1
      %v5487 = vsel %vm1625, %v5485, %v5486
      %5520 = vmatprep.subr.mxu0 0.0
      %5521 = vmatpush1.msra.mxu0 %v4782
      %5522 = vmatprep.subr.mxu0 0.0
      %5523 = vmatpush1.msra.mxu0 %v4783
      %5524 = vmatprep.subr.mxu0 0.0
      %5525 = vmatpush1.msra.mxu0 %v4784
      %5526 = vmatprep.subr.mxu0 0.0
      %5527 = vmatpush1.msra.mxu0 %v4785
      %5528 = vmatprep.subr.mxu0 0.0
      %5529 = vmatpush1.msra.mxu0 %v4786
      %5530 = vmatprep.subr.mxu0 0.0
      %5531 = vmatpush1.msra.mxu0 %v4787
      %5532 = vmatprep.subr.mxu0 0.0
      %5533 = vmatpush1.msra.mxu0 %v4788
      %5534 = vmatprep.subr.mxu0 0.0
      %5535 = vmatpush1.msra.mxu0 %v4789
      %5536 = vmatprep.subr.mxu0 0.0
      %5537 = vmatpush1.msra.mxu0 %v4790
      %5538 = vmatprep.subr.mxu0 0.0
      %5539 = vmatpush1.msra.mxu0 %v4791
      %5540 = vmatprep.subr.mxu0 0.0
      %5541 = vmatpush1.msra.mxu0 %v4792
      %5542 = vmatprep.subr.mxu0 0.0
      %5543 = vmatpush1.msra.mxu0 %v4793
      %5544 = vmatprep.subr.mxu0 0.0
      %5545 = vmatpush1.msra.mxu0 %v4794
      %5546 = vmatprep.subr.mxu0 0.0
      %5547 = vmatpush1.msra.mxu0 %v4795
      %5548 = vmatprep.subr.mxu0 0.0
      %5549 = vmatpush1.msra.mxu0 %v4796
      %5550 = vmatprep.subr.mxu0 0.0
      %5551 = vmatpush1.msra.mxu0 %v4797
      %5552 = vmatprep.subr.mxu0 0.0
      %5553 = vmatpush1.msra.mxu0 %v4798
      %5554 = vmatprep.subr.mxu0 0.0
      %5555 = vmatpush1.msra.mxu0 %v4799
      %5556 = vmatprep.subr.mxu0 0.0
      %5557 = vmatpush1.msra.mxu0 %v4800
      %5558 = vmatprep.subr.mxu0 0.0
      %5559 = vmatpush1.msra.mxu0 %v4801
      %5560 = vmatprep.subr.mxu0 0.0
      %5561 = vmatpush1.msra.mxu0 %v4802
      %5562 = vmatprep.subr.mxu0 0.0
      %5563 = vmatpush1.msra.mxu0 %v4803
      %5564 = vmatprep.subr.mxu0 0.0
      %5565 = vmatpush1.msra.mxu0 %v4804
      %5566 = vmatprep.subr.mxu0 0.0
      %5567 = vmatpush1.msra.mxu0 %v4805
      %5568 = vmatprep.subr.mxu0 0.0
      %5569 = vmatpush1.msra.mxu0 %v4806
      %5570 = vmatprep.subr.mxu0 0.0
      %5571 = vmatpush1.msra.mxu0 %v4807
      %5572 = vmatprep.subr.mxu0 0.0
      %5573 = vmatpush1.msra.mxu0 %v4808
      %5574 = vmatprep.subr.mxu0 0.0
      %5575 = vmatpush1.msra.mxu0 %v4809
      %5576 = vmatprep.subr.mxu0 0.0
      %5577 = vmatpush1.msra.mxu0 %v4810
      %5578 = vmatprep.subr.mxu0 0.0
      %5579 = vmatpush1.msra.mxu0 %v4811
      %5580 = vmatprep.subr.mxu0 0.0
      %5581 = vmatpush1.msra.mxu0 %v4812
      %5582 = vmatprep.subr.mxu0 0.0
      %5583 = vmatpush1.msra.mxu0 %v4813
      %5584 = vmatprep.mubr.f32.mxu0 %v5397
      %5585 = vmatmul.mubr.f32.gmra.mrb[0].mxu0 %v5394
      %v5586 = vpop.f32.mrb[0].mxu0
      %v5587 = vadd.f32 0.0, %v5586
      %v5588 = vpop.f32.mrb[0].mxu0
      %5589 = vmatprep.mubr.f32.mxu0 %v5403
      %5590 = vmatmul.mubr.f32.gmra.mrb[0].mxu0 %v5400
      %v5591 = vpop.f32.mrb[0].mxu0
      %v5592 = vadd.f32 0.0, %v5591
      %v5593 = vpop.f32.mrb[0].mxu0
      %5594 = vmatprep.mubr.f32.mxu0 %v5409
      %5595 = vmatmul.mubr.f32.gmra.mrb[0].mxu0 %v5406
      %v5596 = vpop.f32.mrb[0].mxu0
      %v5597 = vadd.f32 0.0, %v5596
      %v5598 = vpop.f32.mrb[0].mxu0
      %5599 = vmatprep.mubr.f32.mxu0 %v5415
      %5600 = vmatmul.mubr.f32.gmra.mrb[0].mxu0 %v5412
      %v5601 = vpop.f32.mrb[0].mxu0
      %v5602 = vadd.f32 0.0, %v5601
      %v5603 = vpop.f32.mrb[0].mxu0
      %5604 = vmatprep.mubr.f32.mxu0 %v5421
      %5605 = vmatmul.mubr.f32.gmra.mrb[0].mxu0 %v5418
      %v5606 = vpop.f32.mrb[0].mxu0
      %v5607 = vadd.f32 0.0, %v5606
      %v5608 = vpop.f32.mrb[0].mxu0
      %5609 = vmatprep.mubr.f32.mxu0 %v5427
      %5610 = vmatmul.mubr.f32.gmra.mrb[0].mxu0 %v5424
      %v5611 = vpop.f32.mrb[0].mxu0
      %v5612 = vadd.f32 0.0, %v5611
      %v5613 = vpop.f32.mrb[0].mxu0
      %5614 = vmatprep.mubr.f32.mxu0 %v5433
      %5615 = vmatmul.mubr.f32.gmra.mrb[0].mxu0 %v5430
      %v5616 = vpop.f32.mrb[0].mxu0
      %v5617 = vadd.f32 0.0, %v5616
      %v5618 = vpop.f32.mrb[0].mxu0
      %5619 = vmatprep.mubr.f32.mxu0 %v5439
      %5620 = vmatmul.mubr.f32.gmra.mrb[0].mxu0 %v5436
      %v5621 = vpop.f32.mrb[0].mxu0
      %v5622 = vadd.f32 0.0, %v5621
      %v5623 = vpop.f32.mrb[0].mxu0
      %5624 = vmatprep.mubr.f32.mxu0 %v5445
      %5625 = vmatmul.mubr.f32.gmra.mrb[0].mxu0 %v5442
      %v5626 = vpop.f32.mrb[0].mxu0
      %v5627 = vadd.f32 0.0, %v5626
      %v5628 = vpop.f32.mrb[0].mxu0
      %5629 = vmatprep.mubr.f32.mxu0 %v5451
      %5630 = vmatmul.mubr.f32.gmra.mrb[0].mxu0 %v5448
      %v5631 = vpop.f32.mrb[0].mxu0
      %v5632 = vadd.f32 0.0, %v5631
      %v5633 = vpop.f32.mrb[0].mxu0
      %5634 = vmatprep.mubr.f32.mxu0 %v5457
      %5635 = vmatmul.mubr.f32.gmra.mrb[0].mxu0 %v5454
      %v5636 = vpop.f32.mrb[0].mxu0
      %v5637 = vadd.f32 0.0, %v5636
      %v5638 = vpop.f32.mrb[0].mxu0
      %5639 = vmatprep.mubr.f32.mxu0 %v5463
      %5640 = vmatmul.mubr.f32.gmra.mrb[0].mxu0 %v5460
      %v5641 = vpop.f32.mrb[0].mxu0
      %v5642 = vadd.f32 0.0, %v5641
      %v5643 = vpop.f32.mrb[0].mxu0
      %5644 = vmatprep.mubr.f32.mxu0 %v5469
      %5645 = vmatmul.mubr.f32.gmra.mrb[0].mxu0 %v5466
      %v5646 = vpop.f32.mrb[0].mxu0
      %v5647 = vadd.f32 0.0, %v5646
      %v5648 = vpop.f32.mrb[0].mxu0
      %5649 = vmatprep.mubr.f32.mxu0 %v5475
      %5650 = vmatmul.mubr.f32.gmra.mrb[0].mxu0 %v5472
      %v5651 = vpop.f32.mrb[0].mxu0
      %v5652 = vadd.f32 0.0, %v5651
      %v5653 = vpop.f32.mrb[0].mxu0
      %5654 = vmatprep.mubr.f32.mxu0 %v5481
      %5655 = vmatmul.mubr.f32.gmra.mrb[0].mxu0 %v5478
      %v5656 = vpop.f32.mrb[0].mxu0
      %v5657 = vadd.f32 0.0, %v5656
      %v5658 = vpop.f32.mrb[0].mxu0
      %5659 = vmatprep.mubr.f32.mxu0 %v5487
      %5660 = vmatmul.mubr.f32.gmra.mrb[0].mxu0 %v5484
      %v5661 = vpop.f32.mrb[0].mxu0
      %v5662 = vadd.f32 0.0, %v5661
      %v5663 = vpop.f32.mrb[0].mxu0
      %5664 = vdwg.mxu0
      %v5665 = vadd.f32 %v5312, %v5587
      %v5666 = vadd.f32 %v5313, %v5592
      %v5667 = vadd.f32 %v5314, %v5597
      %v5668 = vadd.f32 %v5315, %v5602
      %v5669 = vadd.f32 %v5316, %v5607
      %v5670 = vadd.f32 %v5317, %v5612
      %v5671 = vadd.f32 %v5318, %v5617
      %v5672 = vadd.f32 %v5319, %v5622
      %v5673 = vadd.f32 %v5320, %v5627
      %v5674 = vadd.f32 %v5321, %v5632
      %v5675 = vadd.f32 %v5322, %v5637
      %v5676 = vadd.f32 %v5323, %v5642
      %v5677 = vadd.f32 %v5324, %v5647
      %v5678 = vadd.f32 %v5325, %v5652
      %v5679 = vadd.f32 %v5326, %v5657
      %v5680 = vadd.f32 %v5327, %v5662
      %5681 = vmatprep.subr.mxu0 0.0
      %5682 = vmatpush1.msra.mxu0 %v4716
      %5683 = vmatprep.subr.mxu0 0.0
      %5684 = vmatpush1.msra.mxu0 %v4717
      %5685 = vmatprep.subr.mxu0 0.0
      %5686 = vmatpush1.msra.mxu0 %v4718
      %5687 = vmatprep.subr.mxu0 0.0
      %5688 = vmatpush1.msra.mxu0 %v4719
      %5689 = vmatprep.subr.mxu0 0.0
      %5690 = vmatpush1.msra.mxu0 %v4720
      %5691 = vmatprep.subr.mxu0 0.0
      %5692 = vmatpush1.msra.mxu0 %v4721
      %5693 = vmatprep.subr.mxu0 0.0
      %5694 = vmatpush1.msra.mxu0 %v4722
      %5695 = vmatprep.subr.mxu0 0.0
      %5696 = vmatpush1.msra.mxu0 %v4723
      %5697 = vmatprep.subr.mxu0 0.0
      %5698 = vmatpush1.msra.mxu0 %v4724
      %5699 = vmatprep.subr.mxu0 0.0
      %5700 = vmatpush1.msra.mxu0 %v4725
      %5701 = vmatprep.subr.mxu0 0.0
      %5702 = vmatpush1.msra.mxu0 %v4726
      %5703 = vmatprep.subr.mxu0 0.0
      %5704 = vmatpush1.msra.mxu0 %v4727
      %5705 = vmatprep.subr.mxu0 0.0
      %5706 = vmatpush1.msra.mxu0 %v4728
      %5707 = vmatprep.subr.mxu0 0.0
      %5708 = vmatpush1.msra.mxu0 %v4729
      %5709 = vmatprep.subr.mxu0 0.0
      %5710 = vmatpush1.msra.mxu0 %v4730
      %5711 = vmatprep.subr.mxu0 0.0
      %5712 = vmatpush1.msra.mxu0 %v4731
      %5713 = vmatprep.subr.mxu0 0.0
      %5714 = vmatpush1.msra.mxu0 %v4732
      %5715 = vmatprep.subr.mxu0 0.0
      %5716 = vmatpush1.msra.mxu0 %v4733
      %5717 = vmatprep.subr.mxu0 0.0
      %5718 = vmatpush1.msra.mxu0 %v4734
      %5719 = vmatprep.subr.mxu0 0.0
      %5720 = vmatpush1.msra.mxu0 %v4735
      %5721 = vmatprep.subr.mxu0 0.0
      %5722 = vmatpush1.msra.mxu0 %v4736
      %5723 = vmatprep.subr.mxu0 0.0
      %5724 = vmatpush1.msra.mxu0 %v4737
      %5725 = vmatprep.subr.mxu0 0.0
      %5726 = vmatpush1.msra.mxu0 %v4738
      %5727 = vmatprep.subr.mxu0 0.0
      %5728 = vmatpush1.msra.mxu0 %v4739
      %5729 = vmatprep.subr.mxu0 0.0
      %5730 = vmatpush1.msra.mxu0 %v4740
      %5731 = vmatprep.subr.mxu0 0.0
      %5732 = vmatpush1.msra.mxu0 %v4741
      %5733 = vmatprep.subr.mxu0 0.0
      %5734 = vmatpush1.msra.mxu0 %v4742
      %5735 = vmatprep.subr.mxu0 0.0
      %5736 = vmatpush1.msra.mxu0 %v4743
      %5737 = vmatprep.subr.mxu0 0.0
      %5738 = vmatpush1.msra.mxu0 %v4744
      %5739 = vmatprep.subr.mxu0 0.0
      %5740 = vmatpush1.msra.mxu0 %v4745
      %5741 = vmatprep.subr.mxu0 0.0
      %5742 = vmatpush1.msra.mxu0 %v4746
      %5743 = vmatprep.subr.mxu0 0.0
      %5744 = vmatpush1.msra.mxu0 %v4747
      %5745 = vmatprep.mubr.f32.mxu0 %v5044
      %5746 = vmatmul.mubr.f32.gmra.mrb[0].mxu0 %v5041
      %v5747 = vpop.f32.mrb[0].mxu0
      %v5748 = vadd.f32 0.0, %v5747
      %v5749 = vpop.f32.mrb[0].mxu0
      %5750 = vmatprep.mubr.f32.mxu0 %v5050
      %5751 = vmatmul.mubr.f32.gmra.mrb[0].mxu0 %v5047
      %v5752 = vpop.f32.mrb[0].mxu0
      %v5753 = vadd.f32 0.0, %v5752
      %v5754 = vpop.f32.mrb[0].mxu0
      %5755 = vmatprep.mubr.f32.mxu0 %v5056
      %5756 = vmatmul.mubr.f32.gmra.mrb[0].mxu0 %v5053
      %v5757 = vpop.f32.mrb[0].mxu0
      %v5758 = vadd.f32 0.0, %v5757
      %v5759 = vpop.f32.mrb[0].mxu0
      %5760 = vmatprep.mubr.f32.mxu0 %v5062
      %5761 = vmatmul.mubr.f32.gmra.mrb[0].mxu0 %v5059
      %v5762 = vpop.f32.mrb[0].mxu0
      %v5763 = vadd.f32 0.0, %v5762
      %v5764 = vpop.f32.mrb[0].mxu0
      %5765 = vmatprep.mubr.f32.mxu0 %v5068
      %5766 = vmatmul.mubr.f32.gmra.mrb[0].mxu0 %v5065
      %v5767 = vpop.f32.mrb[0].mxu0
      %v5768 = vadd.f32 0.0, %v5767
      %v5769 = vpop.f32.mrb[0].mxu0
      %5770 = vmatprep.mubr.f32.mxu0 %v5074
      %5771 = vmatmul.mubr.f32.gmra.mrb[0].mxu0 %v5071
      %v5772 = vpop.f32.mrb[0].mxu0
      %v5773 = vadd.f32 0.0, %v5772
      %v5774 = vpop.f32.mrb[0].mxu0
      %5775 = vmatprep.mubr.f32.mxu0 %v5080
      %5776 = vmatmul.mubr.f32.gmra.mrb[0].mxu0 %v5077
      %v5777 = vpop.f32.mrb[0].mxu0
      %v5778 = vadd.f32 0.0, %v5777
      %v5779 = vpop.f32.mrb[0].mxu0
      %5780 = vmatprep.mubr.f32.mxu0 %v5086
      %5781 = vmatmul.mubr.f32.gmra.mrb[0].mxu0 %v5083
      %v5782 = vpop.f32.mrb[0].mxu0
      %v5783 = vadd.f32 0.0, %v5782
      %v5784 = vpop.f32.mrb[0].mxu0
      %5785 = vmatprep.mubr.f32.mxu0 %v5092
      %5786 = vmatmul.mubr.f32.gmra.mrb[0].mxu0 %v5089
      %v5787 = vpop.f32.mrb[0].mxu0
      %v5788 = vadd.f32 0.0, %v5787
      %v5789 = vpop.f32.mrb[0].mxu0
      %5790 = vmatprep.mubr.f32.mxu0 %v5098
      %5791 = vmatmul.mubr.f32.gmra.mrb[0].mxu0 %v5095
      %v5792 = vpop.f32.mrb[0].mxu0
      %v5793 = vadd.f32 0.0, %v5792
      %v5794 = vpop.f32.mrb[0].mxu0
      %5795 = vmatprep.mubr.f32.mxu0 %v5104
      %5796 = vmatmul.mubr.f32.gmra.mrb[0].mxu0 %v5101
      %v5797 = vpop.f32.mrb[0].mxu0
      %v5798 = vadd.f32 0.0, %v5797
      %v5799 = vpop.f32.mrb[0].mxu0
      %5800 = vmatprep.mubr.f32.mxu0 %v5110
      %5801 = vmatmul.mubr.f32.gmra.mrb[0].mxu0 %v5107
      %v5802 = vpop.f32.mrb[0].mxu0
      %v5803 = vadd.f32 0.0, %v5802
      %v5804 = vpop.f32.mrb[0].mxu0
      %5805 = vmatprep.mubr.f32.mxu0 %v5116
      %5806 = vmatmul.mubr.f32.gmra.mrb[0].mxu0 %v5113
      %v5807 = vpop.f32.mrb[0].mxu0
      %v5808 = vadd.f32 0.0, %v5807
      %v5809 = vpop.f32.mrb[0].mxu0
      %5810 = vmatprep.mubr.f32.mxu0 %v5122
      %5811 = vmatmul.mubr.f32.gmra.mrb[0].mxu0 %v5119
      %v5812 = vpop.f32.mrb[0].mxu0
      %v5813 = vadd.f32 0.0, %v5812
      %v5814 = vpop.f32.mrb[0].mxu0
      %5815 = vmatprep.mubr.f32.mxu0 %v5128
      %5816 = vmatmul.mubr.f32.gmra.mrb[0].mxu0 %v5125
      %v5817 = vpop.f32.mrb[0].mxu0
      %v5818 = vadd.f32 0.0, %v5817
      %v5819 = vpop.f32.mrb[0].mxu0
      %5820 = vmatprep.mubr.f32.mxu0 %v5134
      %5821 = vmatmul.mubr.f32.gmra.mrb[0].mxu0 %v5131
      %v5822 = vpop.f32.mrb[0].mxu0
      %v5823 = vadd.f32 0.0, %v5822
      %v5824 = vpop.f32.mrb[0].mxu0
      %5825 = vdwg.mxu0
      %v5826 = vadd.f32 %v4569, %v5748
      %v5827 = vadd.f32 %v4570, %v5753
      %v5828 = vadd.f32 %v4571, %v5758
      %v5829 = vadd.f32 %v4572, %v5763
      %v5830 = vadd.f32 %v4573, %v5768
      %v5831 = vadd.f32 %v4574, %v5773
      %v5832 = vadd.f32 %v4575, %v5778
      %v5833 = vadd.f32 %v4576, %v5783
      %v5834 = vadd.f32 %v4577, %v5788
      %v5835 = vadd.f32 %v4578, %v5793
      %v5836 = vadd.f32 %v4579, %v5798
      %v5837 = vadd.f32 %v4580, %v5803
      %v5838 = vadd.f32 %v4581, %v5808
      %v5839 = vadd.f32 %v4582, %v5813
      %v5840 = vadd.f32 %v4583, %v5818
      %v5841 = vadd.f32 %v4584, %v5823
      %5842 = vmatprep.subr.mxu0 0.0
      %5843 = vmatpush1.msra.mxu0 %v4749
      %5844 = vmatprep.subr.mxu0 0.0
      %5845 = vmatpush1.msra.mxu0 %v4750
      %5846 = vmatprep.subr.mxu0 0.0
      %5847 = vmatpush1.msra.mxu0 %v4751
      %5848 = vmatprep.subr.mxu0 0.0
      %5849 = vmatpush1.msra.mxu0 %v4752
      %5850 = vmatprep.subr.mxu0 0.0
      %5851 = vmatpush1.msra.mxu0 %v4753
      %5852 = vmatprep.subr.mxu0 0.0
      %5853 = vmatpush1.msra.mxu0 %v4754
      %5854 = vmatprep.subr.mxu0 0.0
      %5855 = vmatpush1.msra.mxu0 %v4755
      %5856 = vmatprep.subr.mxu0 0.0
      %5857 = vmatpush1.msra.mxu0 %v4756
      %5858 = vmatprep.subr.mxu0 0.0
      %5859 = vmatpush1.msra.mxu0 %v4757
      %5860 = vmatprep.subr.mxu0 0.0
      %5861 = vmatpush1.msra.mxu0 %v4758
      %5862 = vmatprep.subr.mxu0 0.0
      %5863 = vmatpush1.msra.mxu0 %v4759
      %5864 = vmatprep.subr.mxu0 0.0
      %5865 = vmatpush1.msra.mxu0 %v4760
      %5866 = vmatprep.subr.mxu0 0.0
      %5867 = vmatpush1.msra.mxu0 %v4761
      %5868 = vmatprep.subr.mxu0 0.0
      %5869 = vmatpush1.msra.mxu0 %v4762
      %5870 = vmatprep.subr.mxu0 0.0
      %5871 = vmatpush1.msra.mxu0 %v4763
      %5872 = vmatprep.subr.mxu0 0.0
      %5873 = vmatpush1.msra.mxu0 %v4764
      %5874 = vmatprep.subr.mxu0 0.0
      %5875 = vmatpush1.msra.mxu0 %v4765
      %5876 = vmatprep.subr.mxu0 0.0
      %5877 = vmatpush1.msra.mxu0 %v4766
      %5878 = vmatprep.subr.mxu0 0.0
      %5879 = vmatpush1.msra.mxu0 %v4767
      %5880 = vmatprep.subr.mxu0 0.0
      %5881 = vmatpush1.msra.mxu0 %v4768
      %5882 = vmatprep.subr.mxu0 0.0
      %5883 = vmatpush1.msra.mxu0 %v4769
      %5884 = vmatprep.subr.mxu0 0.0
      %5885 = vmatpush1.msra.mxu0 %v4770
      %5886 = vmatprep.subr.mxu0 0.0
      %5887 = vmatpush1.msra.mxu0 %v4771
      %5888 = vmatprep.subr.mxu0 0.0
      %5889 = vmatpush1.msra.mxu0 %v4772
      %5890 = vmatprep.subr.mxu0 0.0
      %5891 = vmatpush1.msra.mxu0 %v4773
      %5892 = vmatprep.subr.mxu0 0.0
      %5893 = vmatpush1.msra.mxu0 %v4774
      %5894 = vmatprep.subr.mxu0 0.0
      %5895 = vmatpush1.msra.mxu0 %v4775
      %5896 = vmatprep.subr.mxu0 0.0
      %5897 = vmatpush1.msra.mxu0 %v4776
      %5898 = vmatprep.subr.mxu0 0.0
      %5899 = vmatpush1.msra.mxu0 %v4777
      %5900 = vmatprep.subr.mxu0 0.0
      %5901 = vmatpush1.msra.mxu0 %v4778
      %5902 = vmatprep.subr.mxu0 0.0
      %5903 = vmatpush1.msra.mxu0 %v4779
      %5904 = vmatprep.subr.mxu0 0.0
      %5905 = vmatpush1.msra.mxu0 %v4780
      %5906 = vmatprep.mubr.f32.mxu0 %v5397
      %5907 = vmatmul.mubr.f32.gmra.mrb[0].mxu0 %v5394
      %v5908 = vpop.f32.mrb[0].mxu0
      %v5909 = vadd.f32 0.0, %v5908
      %v5910 = vpop.f32.mrb[0].mxu0
      %5911 = vmatprep.mubr.f32.mxu0 %v5403
      %5912 = vmatmul.mubr.f32.gmra.mrb[0].mxu0 %v5400
      %v5913 = vpop.f32.mrb[0].mxu0
      %v5914 = vadd.f32 0.0, %v5913
      %v5915 = vpop.f32.mrb[0].mxu0
      %5916 = vmatprep.mubr.f32.mxu0 %v5409
      %5917 = vmatmul.mubr.f32.gmra.mrb[0].mxu0 %v5406
      %v5918 = vpop.f32.mrb[0].mxu0
      %v5919 = vadd.f32 0.0, %v5918
      %v5920 = vpop.f32.mrb[0].mxu0
      %5921 = vmatprep.mubr.f32.mxu0 %v5415
      %5922 = vmatmul.mubr.f32.gmra.mrb[0].mxu0 %v5412
      %v5923 = vpop.f32.mrb[0].mxu0
      %v5924 = vadd.f32 0.0, %v5923
      %v5925 = vpop.f32.mrb[0].mxu0
      %5926 = vmatprep.mubr.f32.mxu0 %v5421
      %5927 = vmatmul.mubr.f32.gmra.mrb[0].mxu0 %v5418
      %v5928 = vpop.f32.mrb[0].mxu0
      %v5929 = vadd.f32 0.0, %v5928
      %v5930 = vpop.f32.mrb[0].mxu0
      %5931 = vmatprep.mubr.f32.mxu0 %v5427
      %5932 = vmatmul.mubr.f32.gmra.mrb[0].mxu0 %v5424
      %v5933 = vpop.f32.mrb[0].mxu0
      %v5934 = vadd.f32 0.0, %v5933
      %v5935 = vpop.f32.mrb[0].mxu0
      %5936 = vmatprep.mubr.f32.mxu0 %v5433
      %5937 = vmatmul.mubr.f32.gmra.mrb[0].mxu0 %v5430
      %v5938 = vpop.f32.mrb[0].mxu0
      %v5939 = vadd.f32 0.0, %v5938
      %v5940 = vpop.f32.mrb[0].mxu0
      %5941 = vmatprep.mubr.f32.mxu0 %v5439
      %5942 = vmatmul.mubr.f32.gmra.mrb[0].mxu0 %v5436
      %v5943 = vpop.f32.mrb[0].mxu0
      %v5944 = vadd.f32 0.0, %v5943
      %v5945 = vpop.f32.mrb[0].mxu0
      %5946 = vmatprep.mubr.f32.mxu0 %v5445
      %5947 = vmatmul.mubr.f32.gmra.mrb[0].mxu0 %v5442
      %v5948 = vpop.f32.mrb[0].mxu0
      %v5949 = vadd.f32 0.0, %v5948
      %v5950 = vpop.f32.mrb[0].mxu0
      %5951 = vmatprep.mubr.f32.mxu0 %v5451
      %5952 = vmatmul.mubr.f32.gmra.mrb[0].mxu0 %v5448
      %v5953 = vpop.f32.mrb[0].mxu0
      %v5954 = vadd.f32 0.0, %v5953
      %v5955 = vpop.f32.mrb[0].mxu0
      %5956 = vmatprep.mubr.f32.mxu0 %v5457
      %5957 = vmatmul.mubr.f32.gmra.mrb[0].mxu0 %v5454
      %v5958 = vpop.f32.mrb[0].mxu0
      %v5959 = vadd.f32 0.0, %v5958
      %v5960 = vpop.f32.mrb[0].mxu0
      %5961 = vmatprep.mubr.f32.mxu0 %v5463
      %5962 = vmatmul.mubr.f32.gmra.mrb[0].mxu0 %v5460
      %v5963 = vpop.f32.mrb[0].mxu0
      %v5964 = vadd.f32 0.0, %v5963
      %v5965 = vpop.f32.mrb[0].mxu0
      %5966 = vmatprep.mubr.f32.mxu0 %v5469
      %5967 = vmatmul.mubr.f32.gmra.mrb[0].mxu0 %v5466
      %v5968 = vpop.f32.mrb[0].mxu0
      %v5969 = vadd.f32 0.0, %v5968
      %v5970 = vpop.f32.mrb[0].mxu0
      %5971 = vmatprep.mubr.f32.mxu0 %v5475
      %5972 = vmatmul.mubr.f32.gmra.mrb[0].mxu0 %v5472
      %v5973 = vpop.f32.mrb[0].mxu0
      %v5974 = vadd.f32 0.0, %v5973
      %v5975 = vpop.f32.mrb[0].mxu0
      %5976 = vmatprep.mubr.f32.mxu0 %v5481
      %5977 = vmatmul.mubr.f32.gmra.mrb[0].mxu0 %v5478
      %v5978 = vpop.f32.mrb[0].mxu0
      %v5979 = vadd.f32 0.0, %v5978
      %v5980 = vpop.f32.mrb[0].mxu0
      %5981 = vmatprep.mubr.f32.mxu0 %v5487
      %5982 = vmatmul.mubr.f32.gmra.mrb[0].mxu0 %v5484
      %v5983 = vpop.f32.mrb[0].mxu0
      %v5984 = vadd.f32 0.0, %v5983
      %v5985 = vpop.f32.mrb[0].mxu0
      %5986 = vdwg.mxu0
      %v5987 = vadd.f32 %v5826, %v5909
      %v5988 = vadd.f32 %v5827, %v5914
      %v5989 = vadd.f32 %v5828, %v5919
      %v5990 = vadd.f32 %v5829, %v5924
      %v5991 = vadd.f32 %v5830, %v5929
      %v5992 = vadd.f32 %v5831, %v5934
      %v5993 = vadd.f32 %v5832, %v5939
      %v5994 = vadd.f32 %v5833, %v5944
      %v5995 = vadd.f32 %v5834, %v5949
      %v5996 = vadd.f32 %v5835, %v5954
      %v5997 = vadd.f32 %v5836, %v5959
      %v5998 = vadd.f32 %v5837, %v5964
      %v5999 = vadd.f32 %v5838, %v5969
      %v6000 = vadd.f32 %v5839, %v5974
      %v6001 = vadd.f32 %v5840, %v5979
      %v6002 = vadd.f32 %v5841, %v5984
      %v6003 = vrot.slane %v4586, 2
      %v6004 = vrot.slane %v4588, 2
      %v6005 = vsel %vm2590, %v6003, %v6004
      %v6006 = vrot.slane %v4587, 2
      %v6007 = vrot.slane %v4589, 2
      %v6008 = vsel %vm2590, %v6006, %v6007
      %v6009 = vrot.slane %v4590, 2
      %v6010 = vrot.slane %v4592, 2
      %v6011 = vsel %vm2590, %v6009, %v6010
      %v6012 = vrot.slane %v4591, 2
      %v6013 = vrot.slane %v4593, 2
      %v6014 = vsel %vm2590, %v6012, %v6013
      %v6015 = vrot.slane %v4594, 2
      %v6016 = vrot.slane %v4596, 2
      %v6017 = vsel %vm2590, %v6015, %v6016
      %v6018 = vrot.slane %v4595, 2
      %v6019 = vrot.slane %v4597, 2
      %v6020 = vsel %vm2590, %v6018, %v6019
      %v6021 = vrot.slane %v4598, 2
      %v6022 = vrot.slane %v4600, 2
      %v6023 = vsel %vm2590, %v6021, %v6022
      %v6024 = vrot.slane %v4599, 2
      %v6025 = vrot.slane %v4601, 2
      %v6026 = vsel %vm2590, %v6024, %v6025
      %v6027 = vrot.slane %v4602, 2
      %v6028 = vrot.slane %v4604, 2
      %v6029 = vsel %vm2590, %v6027, %v6028
      %v6030 = vrot.slane %v4603, 2
      %v6031 = vrot.slane %v4605, 2
      %v6032 = vsel %vm2590, %v6030, %v6031
      %v6033 = vrot.slane %v4606, 2
      %v6034 = vrot.slane %v4608, 2
      %v6035 = vsel %vm2590, %v6033, %v6034
      %v6036 = vrot.slane %v4607, 2
      %v6037 = vrot.slane %v4609, 2
      %v6038 = vsel %vm2590, %v6036, %v6037
      %v6039 = vrot.slane %v4610, 2
      %v6040 = vrot.slane %v4612, 2
      %v6041 = vsel %vm2590, %v6039, %v6040
      %v6042 = vrot.slane %v4611, 2
      %v6043 = vrot.slane %v4613, 2
      %v6044 = vsel %vm2590, %v6042, %v6043
      %v6045 = vrot.slane %v4614, 2
      %v6046 = vrot.slane %v4616, 2
      %v6047 = vsel %vm2590, %v6045, %v6046
      %v6048 = vrot.slane %v4615, 2
      %v6049 = vrot.slane %v4617, 2
      %v6050 = vsel %vm2590, %v6048, %v6049
      %v6051 = vrot.slane %v4618, 2
      %v6052 = vrot.slane %v4620, 2
      %v6053 = vsel %vm2590, %v6051, %v6052
      %v6054 = vrot.slane %v4619, 2
      %v6055 = vrot.slane %v4621, 2
      %v6056 = vsel %vm2590, %v6054, %v6055
      %v6057 = vrot.slane %v4622, 2
      %v6058 = vrot.slane %v4624, 2
      %v6059 = vsel %vm2590, %v6057, %v6058
      %v6060 = vrot.slane %v4623, 2
      %v6061 = vrot.slane %v4625, 2
      %v6062 = vsel %vm2590, %v6060, %v6061
      %v6063 = vrot.slane %v4626, 2
      %v6064 = vrot.slane %v4628, 2
      %v6065 = vsel %vm2590, %v6063, %v6064
      %v6066 = vrot.slane %v4627, 2
      %v6067 = vrot.slane %v4629, 2
      %v6068 = vsel %vm2590, %v6066, %v6067
      %v6069 = vrot.slane %v4630, 2
      %v6070 = vrot.slane %v4632, 2
      %v6071 = vsel %vm2590, %v6069, %v6070
      %v6072 = vrot.slane %v4631, 2
      %v6073 = vrot.slane %v4633, 2
      %v6074 = vsel %vm2590, %v6072, %v6073
      %v6075 = vrot.slane %v4634, 2
      %v6076 = vrot.slane %v4636, 2
      %v6077 = vsel %vm2590, %v6075, %v6076
      %v6078 = vrot.slane %v4635, 2
      %v6079 = vrot.slane %v4637, 2
      %v6080 = vsel %vm2590, %v6078, %v6079
      %v6081 = vrot.slane %v4638, 2
      %v6082 = vrot.slane %v4640, 2
      %v6083 = vsel %vm2590, %v6081, %v6082
      %v6084 = vrot.slane %v4639, 2
      %v6085 = vrot.slane %v4641, 2
      %v6086 = vsel %vm2590, %v6084, %v6085
      %v6087 = vrot.slane %v4642, 2
      %v6088 = vrot.slane %v4644, 2
      %v6089 = vsel %vm2590, %v6087, %v6088
      %v6090 = vrot.slane %v4643, 2
      %v6091 = vrot.slane %v4645, 2
      %v6092 = vsel %vm2590, %v6090, %v6091
      %v6093 = vrot.slane %v4646, 2
      %v6094 = vrot.slane %v4648, 2
      %v6095 = vsel %vm2590, %v6093, %v6094
      %v6096 = vrot.slane %v4647, 2
      %v6097 = vrot.slane %v4649, 2
      %v6098 = vsel %vm2590, %v6096, %v6097
      %6131 = vmatprep.subr.mxu0 0.0
      %6132 = vmatpush1.msra.mxu0 %v4782
      %6133 = vmatprep.subr.mxu0 0.0
      %6134 = vmatpush1.msra.mxu0 %v4783
      %6135 = vmatprep.subr.mxu0 0.0
      %6136 = vmatpush1.msra.mxu0 %v4784
      %6137 = vmatprep.subr.mxu0 0.0
      %6138 = vmatpush1.msra.mxu0 %v4785
      %6139 = vmatprep.subr.mxu0 0.0
      %6140 = vmatpush1.msra.mxu0 %v4786
      %6141 = vmatprep.subr.mxu0 0.0
      %6142 = vmatpush1.msra.mxu0 %v4787
      %6143 = vmatprep.subr.mxu0 0.0
      %6144 = vmatpush1.msra.mxu0 %v4788
      %6145 = vmatprep.subr.mxu0 0.0
      %6146 = vmatpush1.msra.mxu0 %v4789
      %6147 = vmatprep.subr.mxu0 0.0
      %6148 = vmatpush1.msra.mxu0 %v4790
      %6149 = vmatprep.subr.mxu0 0.0
      %6150 = vmatpush1.msra.mxu0 %v4791
      %6151 = vmatprep.subr.mxu0 0.0
      %6152 = vmatpush1.msra.mxu0 %v4792
      %6153 = vmatprep.subr.mxu0 0.0
      %6154 = vmatpush1.msra.mxu0 %v4793
      %6155 = vmatprep.subr.mxu0 0.0
      %6156 = vmatpush1.msra.mxu0 %v4794
      %6157 = vmatprep.subr.mxu0 0.0
      %6158 = vmatpush1.msra.mxu0 %v4795
      %6159 = vmatprep.subr.mxu0 0.0
      %6160 = vmatpush1.msra.mxu0 %v4796
      %6161 = vmatprep.subr.mxu0 0.0
      %6162 = vmatpush1.msra.mxu0 %v4797
      %6163 = vmatprep.subr.mxu0 0.0
      %6164 = vmatpush1.msra.mxu0 %v4798
      %6165 = vmatprep.subr.mxu0 0.0
      %6166 = vmatpush1.msra.mxu0 %v4799
      %6167 = vmatprep.subr.mxu0 0.0
      %6168 = vmatpush1.msra.mxu0 %v4800
      %6169 = vmatprep.subr.mxu0 0.0
      %6170 = vmatpush1.msra.mxu0 %v4801
      %6171 = vmatprep.subr.mxu0 0.0
      %6172 = vmatpush1.msra.mxu0 %v4802
      %6173 = vmatprep.subr.mxu0 0.0
      %6174 = vmatpush1.msra.mxu0 %v4803
      %6175 = vmatprep.subr.mxu0 0.0
      %6176 = vmatpush1.msra.mxu0 %v4804
      %6177 = vmatprep.subr.mxu0 0.0
      %6178 = vmatpush1.msra.mxu0 %v4805
      %6179 = vmatprep.subr.mxu0 0.0
      %6180 = vmatpush1.msra.mxu0 %v4806
      %6181 = vmatprep.subr.mxu0 0.0
      %6182 = vmatpush1.msra.mxu0 %v4807
      %6183 = vmatprep.subr.mxu0 0.0
      %6184 = vmatpush1.msra.mxu0 %v4808
      %6185 = vmatprep.subr.mxu0 0.0
      %6186 = vmatpush1.msra.mxu0 %v4809
      %6187 = vmatprep.subr.mxu0 0.0
      %6188 = vmatpush1.msra.mxu0 %v4810
      %6189 = vmatprep.subr.mxu0 0.0
      %6190 = vmatpush1.msra.mxu0 %v4811
      %6191 = vmatprep.subr.mxu0 0.0
      %6192 = vmatpush1.msra.mxu0 %v4812
      %6193 = vmatprep.subr.mxu0 0.0
      %6194 = vmatpush1.msra.mxu0 %v4813
      %6195 = vmatprep.mubr.f32.mxu0 %v6008
      %6196 = vmatmul.mubr.f32.gmra.mrb[0].mxu0 %v6005
      %v6197 = vpop.f32.mrb[0].mxu0
      %v6198 = vadd.f32 0.0, %v6197
      %v6199 = vpop.f32.mrb[0].mxu0
      %6200 = vmatprep.mubr.f32.mxu0 %v6014
      %6201 = vmatmul.mubr.f32.gmra.mrb[0].mxu0 %v6011
      %v6202 = vpop.f32.mrb[0].mxu0
      %v6203 = vadd.f32 0.0, %v6202
      %v6204 = vpop.f32.mrb[0].mxu0
      %6205 = vmatprep.mubr.f32.mxu0 %v6020
      %6206 = vmatmul.mubr.f32.gmra.mrb[0].mxu0 %v6017
      %v6207 = vpop.f32.mrb[0].mxu0
      %v6208 = vadd.f32 0.0, %v6207
      %v6209 = vpop.f32.mrb[0].mxu0
      %6210 = vmatprep.mubr.f32.mxu0 %v6026
      %6211 = vmatmul.mubr.f32.gmra.mrb[0].mxu0 %v6023
      %v6212 = vpop.f32.mrb[0].mxu0
      %v6213 = vadd.f32 0.0, %v6212
      %v6214 = vpop.f32.mrb[0].mxu0
      %6215 = vmatprep.mubr.f32.mxu0 %v6032
      %6216 = vmatmul.mubr.f32.gmra.mrb[0].mxu0 %v6029
      %v6217 = vpop.f32.mrb[0].mxu0
      %v6218 = vadd.f32 0.0, %v6217
      %v6219 = vpop.f32.mrb[0].mxu0
      %6220 = vmatprep.mubr.f32.mxu0 %v6038
      %6221 = vmatmul.mubr.f32.gmra.mrb[0].mxu0 %v6035
      %v6222 = vpop.f32.mrb[0].mxu0
      %v6223 = vadd.f32 0.0, %v6222
      %v6224 = vpop.f32.mrb[0].mxu0
      %6225 = vmatprep.mubr.f32.mxu0 %v6044
      %6226 = vmatmul.mubr.f32.gmra.mrb[0].mxu0 %v6041
      %v6227 = vpop.f32.mrb[0].mxu0
      %v6228 = vadd.f32 0.0, %v6227
      %v6229 = vpop.f32.mrb[0].mxu0
      %6230 = vmatprep.mubr.f32.mxu0 %v6050
      %6231 = vmatmul.mubr.f32.gmra.mrb[0].mxu0 %v6047
      %v6232 = vpop.f32.mrb[0].mxu0
      %v6233 = vadd.f32 0.0, %v6232
      %v6234 = vpop.f32.mrb[0].mxu0
      %6235 = vmatprep.mubr.f32.mxu0 %v6056
      %6236 = vmatmul.mubr.f32.gmra.mrb[0].mxu0 %v6053
      %v6237 = vpop.f32.mrb[0].mxu0
      %v6238 = vadd.f32 0.0, %v6237
      %v6239 = vpop.f32.mrb[0].mxu0
      %6240 = vmatprep.mubr.f32.mxu0 %v6062
      %6241 = vmatmul.mubr.f32.gmra.mrb[0].mxu0 %v6059
      %v6242 = vpop.f32.mrb[0].mxu0
      %v6243 = vadd.f32 0.0, %v6242
      %v6244 = vpop.f32.mrb[0].mxu0
      %6245 = vmatprep.mubr.f32.mxu0 %v6068
      %6246 = vmatmul.mubr.f32.gmra.mrb[0].mxu0 %v6065
      %v6247 = vpop.f32.mrb[0].mxu0
      %v6248 = vadd.f32 0.0, %v6247
      %v6249 = vpop.f32.mrb[0].mxu0
      %6250 = vmatprep.mubr.f32.mxu0 %v6074
      %6251 = vmatmul.mubr.f32.gmra.mrb[0].mxu0 %v6071
      %v6252 = vpop.f32.mrb[0].mxu0
      %v6253 = vadd.f32 0.0, %v6252
      %v6254 = vpop.f32.mrb[0].mxu0
      %6255 = vmatprep.mubr.f32.mxu0 %v6080
      %6256 = vmatmul.mubr.f32.gmra.mrb[0].mxu0 %v6077
      %v6257 = vpop.f32.mrb[0].mxu0
      %v6258 = vadd.f32 0.0, %v6257
      %v6259 = vpop.f32.mrb[0].mxu0
      %6260 = vmatprep.mubr.f32.mxu0 %v6086
      %6261 = vmatmul.mubr.f32.gmra.mrb[0].mxu0 %v6083
      %v6262 = vpop.f32.mrb[0].mxu0
      %v6263 = vadd.f32 0.0, %v6262
      %v6264 = vpop.f32.mrb[0].mxu0
      %6265 = vmatprep.mubr.f32.mxu0 %v6092
      %6266 = vmatmul.mubr.f32.gmra.mrb[0].mxu0 %v6089
      %v6267 = vpop.f32.mrb[0].mxu0
      %v6268 = vadd.f32 0.0, %v6267
      %v6269 = vpop.f32.mrb[0].mxu0
      %6270 = vmatprep.mubr.f32.mxu0 %v6098
      %6271 = vmatmul.mubr.f32.gmra.mrb[0].mxu0 %v6095
      %v6272 = vpop.f32.mrb[0].mxu0
      %v6273 = vadd.f32 0.0, %v6272
      %v6274 = vpop.f32.mrb[0].mxu0
      %6275 = vdwg.mxu0
      %v6276 = vadd.f32 %v5987, %v6198
      %v6277 = vadd.f32 %v5988, %v6203
      %v6278 = vadd.f32 %v5989, %v6208
      %v6279 = vadd.f32 %v5990, %v6213
      %v6280 = vadd.f32 %v5991, %v6218
      %v6281 = vadd.f32 %v5992, %v6223
      %v6282 = vadd.f32 %v5993, %v6228
      %v6283 = vadd.f32 %v5994, %v6233
      %v6284 = vadd.f32 %v5995, %v6238
      %v6285 = vadd.f32 %v5996, %v6243
      %v6286 = vadd.f32 %v5997, %v6248
      %v6287 = vadd.f32 %v5998, %v6253
      %v6288 = vadd.f32 %v5999, %v6258
      %v6289 = vadd.f32 %v6000, %v6263
      %v6290 = vadd.f32 %v6001, %v6268
      %v6291 = vadd.f32 %v6002, %v6273
      %v6292 = vmax.f32 %v5665, 0.0
      %v6293 = vmax.f32 %v5666, 0.0
      %v6294 = vmax.f32 %v5667, 0.0
      %v6295 = vmax.f32 %v5668, 0.0
      %v6296 = vmax.f32 %v5669, 0.0
      %v6297 = vmax.f32 %v5670, 0.0
      %v6298 = vmax.f32 %v5671, 0.0
      %v6299 = vmax.f32 %v5672, 0.0
      %v6300 = vmax.f32 %v5673, 0.0
      %v6301 = vmax.f32 %v5674, 0.0
      %v6302 = vmax.f32 %v5675, 0.0
      %v6303 = vmax.f32 %v5676, 0.0
      %v6304 = vmax.f32 %v5677, 0.0
      %v6305 = vmax.f32 %v5678, 0.0
      %v6306 = vmax.f32 %v5679, 0.0
      %v6307 = vmax.f32 %v5680, 0.0
      %v6308 = vmax.f32 %v6276, 0.0
      %v6309 = vmax.f32 %v6277, 0.0
      %v6310 = vmax.f32 %v6278, 0.0
      %v6311 = vmax.f32 %v6279, 0.0
      %v6312 = vmax.f32 %v6280, 0.0
      %v6313 = vmax.f32 %v6281, 0.0
      %v6314 = vmax.f32 %v6282, 0.0
      %v6315 = vmax.f32 %v6283, 0.0
      %v6316 = vmax.f32 %v6284, 0.0
      %v6317 = vmax.f32 %v6285, 0.0
      %v6318 = vmax.f32 %v6286, 0.0
      %v6319 = vmax.f32 %v6287, 0.0
      %v6320 = vmax.f32 %v6288, 0.0
      %v6321 = vmax.f32 %v6289, 0.0
      %v6322 = vmax.f32 %v6290, 0.0
      %v6323 = vmax.f32 %v6291, 0.0
      %s6324 = scalar_lea.vmem [#allocation4], 16
      %6325 = vst [vmem:[%s6324 + $0x1] sm:$0xff] %v6292
      %6326 = vst [vmem:[%s6324 + $0x11] sm:$0xff] %v6293
      %6327 = vst [vmem:[%s6324 + $0x21] sm:$0xff] %v6294
      %6328 = vst [vmem:[%s6324 + $0x31] sm:$0xff] %v6295
      %6329 = vst [vmem:[%s6324 + $0x41] sm:$0xff] %v6296
      %6330 = vst [vmem:[%s6324 + $0x51] sm:$0xff] %v6297
      %6331 = vst [vmem:[%s6324 + $0x61] sm:$0xff] %v6298
      %6332 = vst [vmem:[%s6324 + $0x71] sm:$0xff] %v6299
      %6333 = vst [vmem:[%s6324 + $0x81] sm:$0xff] %v6300
      %6334 = vst [vmem:[%s6324 + $0x91] sm:$0xff] %v6301
      %6335 = vst [vmem:[%s6324 + $0xa1] sm:$0xff] %v6302
      %6336 = vst [vmem:[%s6324 + $0xb1] sm:$0xff] %v6303
      %6337 = vst [vmem:[%s6324 + $0xc1] sm:$0xff] %v6304
      %6338 = vst [vmem:[%s6324 + $0xd1] sm:$0xff] %v6305
      %6339 = vst [vmem:[%s6324 + $0xe1] sm:$0xff] %v6306
      %6340 = vst [vmem:[%s6324 + $0xf1] sm:$0xff] %v6307
      %s6341 = scalar_lea.vmem [#allocation5], 16
      %6342 = vst [vmem:[%s6341 + $0x1] sm:$0xff] %v6308
      %6343 = vst [vmem:[%s6341 + $0x11] sm:$0xff] %v6309
      %6344 = vst [vmem:[%s6341 + $0x21] sm:$0xff] %v6310
      %6345 = vst [vmem:[%s6341 + $0x31] sm:$0xff] %v6311
      %6346 = vst [vmem:[%s6341 + $0x41] sm:$0xff] %v6312
      %6347 = vst [vmem:[%s6341 + $0x51] sm:$0xff] %v6313
      %6348 = vst [vmem:[%s6341 + $0x61] sm:$0xff] %v6314
      %6349 = vst [vmem:[%s6341 + $0x71] sm:$0xff] %v6315
      %6350 = vst [vmem:[%s6341 + $0x81] sm:$0xff] %v6316
      %6351 = vst [vmem:[%s6341 + $0x91] sm:$0xff] %v6317
      %6352 = vst [vmem:[%s6341 + $0xa1] sm:$0xff] %v6318
      %6353 = vst [vmem:[%s6341 + $0xb1] sm:$0xff] %v6319
      %6354 = vst [vmem:[%s6341 + $0xc1] sm:$0xff] %v6320
      %6355 = vst [vmem:[%s6341 + $0xd1] sm:$0xff] %v6321
      %6356 = vst [vmem:[%s6341 + $0xe1] sm:$0xff] %v6322
      %6357 = vst [vmem:[%s6341 + $0xf1] sm:$0xff] %v6323
      %v6358 = vld [vmem:[%s7] sm:$0x1]
      %v6360 = vlaneseq
      %v6361 = vshrl.u32 %v6360, 7
      %v6362 = vsub.s32 0, %v6361
      %v6363 = vrot.slane %v6358, %v6362
      %v6365 = vld [vmem:[#allocation4] sm:$0xff]
      %v6366 = vld [vmem:[#allocation4 + $0x8] sm:$0x3]
      %v6367 = vld [vmem:[#allocation4 + $0x10] sm:$0xff]
      %v6368 = vld [vmem:[#allocation4 + $0x18] sm:$0x3]
      %v6369 = vld [vmem:[#allocation4 + $0x20] sm:$0xff]
      %v6370 = vld [vmem:[#allocation4 + $0x28] sm:$0x3]
      %v6371 = vld [vmem:[#allocation4 + $0x30] sm:$0xff]
      %v6372 = vld [vmem:[#allocation4 + $0x38] sm:$0x3]
      %v6373 = vld [vmem:[#allocation4 + $0x40] sm:$0xff]
      %v6374 = vld [vmem:[#allocation4 + $0x48] sm:$0x3]
      %v6375 = vld [vmem:[#allocation4 + $0x50] sm:$0xff]
      %v6376 = vld [vmem:[#allocation4 + $0x58] sm:$0x3]
      %v6377 = vld [vmem:[#allocation4 + $0x60] sm:$0xff]
      %v6378 = vld [vmem:[#allocation4 + $0x68] sm:$0x3]
      %v6379 = vld [vmem:[#allocation4 + $0x70] sm:$0xff]
      %v6380 = vld [vmem:[#allocation4 + $0x78] sm:$0x3]
      %v6381 = vld [vmem:[#allocation4 + $0x80] sm:$0xff]
      %v6382 = vld [vmem:[#allocation4 + $0x88] sm:$0x3]
      %v6383 = vld [vmem:[#allocation4 + $0x90] sm:$0xff]
      %v6384 = vld [vmem:[#allocation4 + $0x98] sm:$0x3]
      %v6385 = vld [vmem:[#allocation4 + $0xa0] sm:$0xff]
      %v6386 = vld [vmem:[#allocation4 + $0xa8] sm:$0x3]
      %v6387 = vld [vmem:[#allocation4 + $0xb0] sm:$0xff]
      %v6388 = vld [vmem:[#allocation4 + $0xb8] sm:$0x3]
      %v6389 = vld [vmem:[#allocation4 + $0xc0] sm:$0xff]
      %v6390 = vld [vmem:[#allocation4 + $0xc8] sm:$0x3]
      %v6391 = vld [vmem:[#allocation4 + $0xd0] sm:$0xff]
      %v6392 = vld [vmem:[#allocation4 + $0xd8] sm:$0x3]
      %v6393 = vld [vmem:[#allocation4 + $0xe0] sm:$0xff]
      %v6394 = vld [vmem:[#allocation4 + $0xe8] sm:$0x3]
      %v6395 = vld [vmem:[#allocation4 + $0xf0] sm:$0xff]
      %v6396 = vld [vmem:[#allocation4 + $0xf8] sm:$0x3]
      %v6397 = vld [vmem:[#allocation5] sm:$0xff]
      %v6398 = vld [vmem:[#allocation5 + $0x8] sm:$0x3]
      %v6399 = vld [vmem:[#allocation5 + $0x10] sm:$0xff]
      %v6400 = vld [vmem:[#allocation5 + $0x18] sm:$0x3]
      %v6401 = vld [vmem:[#allocation5 + $0x20] sm:$0xff]
      %v6402 = vld [vmem:[#allocation5 + $0x28] sm:$0x3]
      %v6403 = vld [vmem:[#allocation5 + $0x30] sm:$0xff]
      %v6404 = vld [vmem:[#allocation5 + $0x38] sm:$0x3]
      %v6405 = vld [vmem:[#allocation5 + $0x40] sm:$0xff]
      %v6406 = vld [vmem:[#allocation5 + $0x48] sm:$0x3]
      %v6407 = vld [vmem:[#allocation5 + $0x50] sm:$0xff]
      %v6408 = vld [vmem:[#allocation5 + $0x58] sm:$0x3]
      %v6409 = vld [vmem:[#allocation5 + $0x60] sm:$0xff]
      %v6410 = vld [vmem:[#allocation5 + $0x68] sm:$0x3]
      %v6411 = vld [vmem:[#allocation5 + $0x70] sm:$0xff]
      %v6412 = vld [vmem:[#allocation5 + $0x78] sm:$0x3]
      %v6413 = vld [vmem:[#allocation5 + $0x80] sm:$0xff]
      %v6414 = vld [vmem:[#allocation5 + $0x88] sm:$0x3]
      %v6415 = vld [vmem:[#allocation5 + $0x90] sm:$0xff]
      %v6416 = vld [vmem:[#allocation5 + $0x98] sm:$0x3]
      %v6417 = vld [vmem:[#allocation5 + $0xa0] sm:$0xff]
      %v6418 = vld [vmem:[#allocation5 + $0xa8] sm:$0x3]
      %v6419 = vld [vmem:[#allocation5 + $0xb0] sm:$0xff]
      %v6420 = vld [vmem:[#allocation5 + $0xb8] sm:$0x3]
      %v6421 = vld [vmem:[#allocation5 + $0xc0] sm:$0xff]
      %v6422 = vld [vmem:[#allocation5 + $0xc8] sm:$0x3]
      %v6423 = vld [vmem:[#allocation5 + $0xd0] sm:$0xff]
      %v6424 = vld [vmem:[#allocation5 + $0xd8] sm:$0x3]
      %v6425 = vld [vmem:[#allocation5 + $0xe0] sm:$0xff]
      %v6426 = vld [vmem:[#allocation5 + $0xe8] sm:$0x3]
      %v6427 = vld [vmem:[#allocation5 + $0xf0] sm:$0xff]
      %v6428 = vld [vmem:[#allocation5 + $0xf8] sm:$0x3]
      %v6429 = vld [vmem:[%s6] sm:$0xff]
      %v6430 = vld [vmem:[%s6 + $0x8] sm:$0xff]
      %v6431 = vld [vmem:[%s6 + $0x10] sm:$0xff]
      %v6432 = vld [vmem:[%s6 + $0x18] sm:$0xff]
      %v6433 = vld [vmem:[%s6 + $0x20] sm:$0xff]
      %v6434 = vld [vmem:[%s6 + $0x28] sm:$0xff]
      %v6435 = vld [vmem:[%s6 + $0x30] sm:$0xff]
      %v6436 = vld [vmem:[%s6 + $0x38] sm:$0xff]
      %v6437 = vld [vmem:[%s6 + $0x40] sm:$0xff]
      %v6438 = vld [vmem:[%s6 + $0x48] sm:$0xff]
      %v6439 = vld [vmem:[%s6 + $0x50] sm:$0xff]
      %v6440 = vld [vmem:[%s6 + $0x58] sm:$0xff]
      %v6441 = vld [vmem:[%s6 + $0x60] sm:$0xff]
      %v6442 = vld [vmem:[%s6 + $0x68] sm:$0xff]
      %v6443 = vld [vmem:[%s6 + $0x70] sm:$0xff]
      %v6444 = vld [vmem:[%s6 + $0x78] sm:$0xff]
      %s6445 = scalar_lea.vmem %s6, 128
      %v6446 = vld [vmem:[%s6445] sm:$0xff]
      %v6447 = vld [vmem:[%s6445 + $0x8] sm:$0xff]
      %v6448 = vld [vmem:[%s6445 + $0x10] sm:$0xff]
      %v6449 = vld [vmem:[%s6445 + $0x18] sm:$0xff]
      %v6450 = vld [vmem:[%s6445 + $0x20] sm:$0xff]
      %v6451 = vld [vmem:[%s6445 + $0x28] sm:$0xff]
      %v6452 = vld [vmem:[%s6445 + $0x30] sm:$0xff]
      %v6453 = vld [vmem:[%s6445 + $0x38] sm:$0xff]
      %v6454 = vld [vmem:[%s6445 + $0x40] sm:$0xff]
      %v6455 = vld [vmem:[%s6445 + $0x48] sm:$0xff]
      %v6456 = vld [vmem:[%s6445 + $0x50] sm:$0xff]
      %v6457 = vld [vmem:[%s6445 + $0x58] sm:$0xff]
      %v6458 = vld [vmem:[%s6445 + $0x60] sm:$0xff]
      %v6459 = vld [vmem:[%s6445 + $0x68] sm:$0xff]
      %v6460 = vld [vmem:[%s6445 + $0x70] sm:$0xff]
      %v6461 = vld [vmem:[%s6445 + $0x78] sm:$0xff]
      %s6462 = scalar_lea.vmem %s6, 256
      %v6463 = vld [vmem:[%s6462] sm:$0xff]
      %v6464 = vld [vmem:[%s6462 + $0x8] sm:$0xff]
      %v6465 = vld [vmem:[%s6462 + $0x10] sm:$0xff]
      %v6466 = vld [vmem:[%s6462 + $0x18] sm:$0xff]
      %v6467 = vld [vmem:[%s6462 + $0x20] sm:$0xff]
      %v6468 = vld [vmem:[%s6462 + $0x28] sm:$0xff]
      %v6469 = vld [vmem:[%s6462 + $0x30] sm:$0xff]
      %v6470 = vld [vmem:[%s6462 + $0x38] sm:$0xff]
      %v6471 = vld [vmem:[%s6462 + $0x40] sm:$0xff]
      %v6472 = vld [vmem:[%s6462 + $0x48] sm:$0xff]
      %v6473 = vld [vmem:[%s6462 + $0x50] sm:$0xff]
      %v6474 = vld [vmem:[%s6462 + $0x58] sm:$0xff]
      %v6475 = vld [vmem:[%s6462 + $0x60] sm:$0xff]
      %v6476 = vld [vmem:[%s6462 + $0x68] sm:$0xff]
      %v6477 = vld [vmem:[%s6462 + $0x70] sm:$0xff]
      %v6478 = vld [vmem:[%s6462 + $0x78] sm:$0xff]
      %6479 = vmatprep.subr.mxu0 0.0
      %6480 = vmatpush1.msra.mxu0 %v6429
      %6481 = vmatprep.subr.mxu0 0.0
      %6482 = vmatpush1.msra.mxu0 %v6430
      %6483 = vmatprep.subr.mxu0 0.0
      %6484 = vmatpush1.msra.mxu0 %v6431
      %6485 = vmatprep.subr.mxu0 0.0
      %6486 = vmatpush1.msra.mxu0 %v6432
      %6487 = vmatprep.subr.mxu0 0.0
      %6488 = vmatpush1.msra.mxu0 %v6433
      %6489 = vmatprep.subr.mxu0 0.0
      %6490 = vmatpush1.msra.mxu0 %v6434
      %6491 = vmatprep.subr.mxu0 0.0
      %6492 = vmatpush1.msra.mxu0 %v6435
      %6493 = vmatprep.subr.mxu0 0.0
      %6494 = vmatpush1.msra.mxu0 %v6436
      %6495 = vmatprep.subr.mxu0 0.0
      %6496 = vmatpush1.msra.mxu0 %v6437
      %6497 = vmatprep.subr.mxu0 0.0
      %6498 = vmatpush1.msra.mxu0 %v6438
      %6499 = vmatprep.subr.mxu0 0.0
      %6500 = vmatpush1.msra.mxu0 %v6439
      %6501 = vmatprep.subr.mxu0 0.0
      %6502 = vmatpush1.msra.mxu0 %v6440
      %6503 = vmatprep.subr.mxu0 0.0
      %6504 = vmatpush1.msra.mxu0 %v6441
      %6505 = vmatprep.subr.mxu0 0.0
      %6506 = vmatpush1.msra.mxu0 %v6442
      %6507 = vmatprep.subr.mxu0 0.0
      %6508 = vmatpush1.msra.mxu0 %v6443
      %6509 = vmatprep.subr.mxu0 0.0
      %6510 = vmatpush1.msra.mxu0 %v6444
      %6511 = vmatprep.subr.mxu0 0.0
      %6512 = vmatpush1.msra.mxu0 0.0
      %6513 = vmatprep.subr.mxu0 0.0
      %6514 = vmatpush1.msra.mxu0 0.0
      %6515 = vmatprep.subr.mxu0 0.0
      %6516 = vmatpush1.msra.mxu0 0.0
      %6517 = vmatprep.subr.mxu0 0.0
      %6518 = vmatpush1.msra.mxu0 0.0
      %6519 = vmatprep.subr.mxu0 0.0
      %6520 = vmatpush1.msra.mxu0 0.0
      %6521 = vmatprep.subr.mxu0 0.0
      %6522 = vmatpush1.msra.mxu0 0.0
      %6523 = vmatprep.subr.mxu0 0.0
      %6524 = vmatpush1.msra.mxu0 0.0
      %6525 = vmatprep.subr.mxu0 0.0
      %6526 = vmatpush1.msra.mxu0 0.0
      %6527 = vmatprep.subr.mxu0 0.0
      %6528 = vmatpush1.msra.mxu0 0.0
      %6529 = vmatprep.subr.mxu0 0.0
      %6530 = vmatpush1.msra.mxu0 0.0
      %6531 = vmatprep.subr.mxu0 0.0
      %6532 = vmatpush1.msra.mxu0 0.0
      %6533 = vmatprep.subr.mxu0 0.0
      %6534 = vmatpush1.msra.mxu0 0.0
      %6535 = vmatprep.subr.mxu0 0.0
      %6536 = vmatpush1.msra.mxu0 0.0
      %6537 = vmatprep.subr.mxu0 0.0
      %6538 = vmatpush1.msra.mxu0 0.0
      %6539 = vmatprep.subr.mxu0 0.0
      %6540 = vmatpush1.msra.mxu0 0.0
      %6541 = vmatprep.subr.mxu0 0.0
      %6542 = vmatpush1.msra.mxu0 0.0
      %6543 = vmatprep.mubr.f32.mxu0 0.0
      %6544 = vmatmul.mubr.f32.gmra.mrb[0].mxu0 %v6397
      %v6545 = vpop.f32.mrb[0].mxu0
      %v6546 = vadd.f32 0.0, %v6545
      %v6547 = vpop.f32.mrb[0].mxu0
      %6548 = vmatprep.mubr.f32.mxu0 0.0
      %6549 = vmatmul.mubr.f32.gmra.mrb[0].mxu0 %v6399
      %v6550 = vpop.f32.mrb[0].mxu0
      %v6551 = vadd.f32 0.0, %v6550
      %v6552 = vpop.f32.mrb[0].mxu0
      %6553 = vmatprep.mubr.f32.mxu0 0.0
      %6554 = vmatmul.mubr.f32.gmra.mrb[0].mxu0 %v6401
      %v6555 = vpop.f32.mrb[0].mxu0
      %v6556 = vadd.f32 0.0, %v6555
      %v6557 = vpop.f32.mrb[0].mxu0
      %6558 = vmatprep.mubr.f32.mxu0 0.0
      %6559 = vmatmul.mubr.f32.gmra.mrb[0].mxu0 %v6403
      %v6560 = vpop.f32.mrb[0].mxu0
      %v6561 = vadd.f32 0.0, %v6560
      %v6562 = vpop.f32.mrb[0].mxu0
      %6563 = vmatprep.mubr.f32.mxu0 0.0
      %6564 = vmatmul.mubr.f32.gmra.mrb[0].mxu0 %v6405
      %v6565 = vpop.f32.mrb[0].mxu0
      %v6566 = vadd.f32 0.0, %v6565
      %v6567 = vpop.f32.mrb[0].mxu0
      %6568 = vmatprep.mubr.f32.mxu0 0.0
      %6569 = vmatmul.mubr.f32.gmra.mrb[0].mxu0 %v6407
      %v6570 = vpop.f32.mrb[0].mxu0
      %v6571 = vadd.f32 0.0, %v6570
      %v6572 = vpop.f32.mrb[0].mxu0
      %6573 = vmatprep.mubr.f32.mxu0 0.0
      %6574 = vmatmul.mubr.f32.gmra.mrb[0].mxu0 %v6409
      %v6575 = vpop.f32.mrb[0].mxu0
      %v6576 = vadd.f32 0.0, %v6575
      %v6577 = vpop.f32.mrb[0].mxu0
      %6578 = vmatprep.mubr.f32.mxu0 0.0
      %6579 = vmatmul.mubr.f32.gmra.mrb[0].mxu0 %v6411
      %v6580 = vpop.f32.mrb[0].mxu0
      %v6581 = vadd.f32 0.0, %v6580
      %v6582 = vpop.f32.mrb[0].mxu0
      %6583 = vmatprep.mubr.f32.mxu0 0.0
      %6584 = vmatmul.mubr.f32.gmra.mrb[0].mxu0 %v6413
      %v6585 = vpop.f32.mrb[0].mxu0
      %v6586 = vadd.f32 0.0, %v6585
      %v6587 = vpop.f32.mrb[0].mxu0
      %6588 = vmatprep.mubr.f32.mxu0 0.0
      %6589 = vmatmul.mubr.f32.gmra.mrb[0].mxu0 %v6415
      %v6590 = vpop.f32.mrb[0].mxu0
      %v6591 = vadd.f32 0.0, %v6590
      %v6592 = vpop.f32.mrb[0].mxu0
      %6593 = vmatprep.mubr.f32.mxu0 0.0
      %6594 = vmatmul.mubr.f32.gmra.mrb[0].mxu0 %v6417
      %v6595 = vpop.f32.mrb[0].mxu0
      %v6596 = vadd.f32 0.0, %v6595
      %v6597 = vpop.f32.mrb[0].mxu0
      %6598 = vmatprep.mubr.f32.mxu0 0.0
      %6599 = vmatmul.mubr.f32.gmra.mrb[0].mxu0 %v6419
      %v6600 = vpop.f32.mrb[0].mxu0
      %v6601 = vadd.f32 0.0, %v6600
      %v6602 = vpop.f32.mrb[0].mxu0
      %6603 = vmatprep.mubr.f32.mxu0 0.0
      %6604 = vmatmul.mubr.f32.gmra.mrb[0].mxu0 %v6421
      %v6605 = vpop.f32.mrb[0].mxu0
      %v6606 = vadd.f32 0.0, %v6605
      %v6607 = vpop.f32.mrb[0].mxu0
      %6608 = vmatprep.mubr.f32.mxu0 0.0
      %6609 = vmatmul.mubr.f32.gmra.mrb[0].mxu0 %v6423
      %v6610 = vpop.f32.mrb[0].mxu0
      %v6611 = vadd.f32 0.0, %v6610
      %v6612 = vpop.f32.mrb[0].mxu0
      %6613 = vmatprep.mubr.f32.mxu0 0.0
      %6614 = vmatmul.mubr.f32.gmra.mrb[0].mxu0 %v6425
      %v6615 = vpop.f32.mrb[0].mxu0
      %v6616 = vadd.f32 0.0, %v6615
      %v6617 = vpop.f32.mrb[0].mxu0
      %6618 = vmatprep.mubr.f32.mxu0 0.0
      %6619 = vmatmul.mubr.f32.gmra.mrb[0].mxu0 %v6427
      %v6620 = vpop.f32.mrb[0].mxu0
      %v6621 = vadd.f32 0.0, %v6620
      %v6622 = vpop.f32.mrb[0].mxu0
      %6623 = vdwg.mxu0
      %v6624 = vadd.f32 %v6363, %v6546
      %v6625 = vadd.f32 %v6363, %v6551
      %v6626 = vadd.f32 %v6363, %v6556
      %v6627 = vadd.f32 %v6363, %v6561
      %v6628 = vadd.f32 %v6363, %v6566
      %v6629 = vadd.f32 %v6363, %v6571
      %v6630 = vadd.f32 %v6363, %v6576
      %v6631 = vadd.f32 %v6363, %v6581
      %v6632 = vadd.f32 %v6363, %v6586
      %v6633 = vadd.f32 %v6363, %v6591
      %v6634 = vadd.f32 %v6363, %v6596
      %v6635 = vadd.f32 %v6363, %v6601
      %v6636 = vadd.f32 %v6363, %v6606
      %v6637 = vadd.f32 %v6363, %v6611
      %v6638 = vadd.f32 %v6363, %v6616
      %v6639 = vadd.f32 %v6363, %v6621
      %v6672 = vrot.slane %v6365, 1
      %v6673 = vrot.slane %v6366, 1
      %v6674 = vsel %vm1625, %v6672, %v6673
      %v6675 = vrot.slane %v6367, 1
      %v6676 = vrot.slane %v6368, 1
      %v6677 = vsel %vm1625, %v6675, %v6676
      %v6678 = vrot.slane %v6369, 1
      %v6679 = vrot.slane %v6370, 1
      %v6680 = vsel %vm1625, %v6678, %v6679
      %v6681 = vrot.slane %v6371, 1
      %v6682 = vrot.slane %v6372, 1
      %v6683 = vsel %vm1625, %v6681, %v6682
      %v6684 = vrot.slane %v6373, 1
      %v6685 = vrot.slane %v6374, 1
      %v6686 = vsel %vm1625, %v6684, %v6685
      %v6687 = vrot.slane %v6375, 1
      %v6688 = vrot.slane %v6376, 1
      %v6689 = vsel %vm1625, %v6687, %v6688
      %v6690 = vrot.slane %v6377, 1
      %v6691 = vrot.slane %v6378, 1
      %v6692 = vsel %vm1625, %v6690, %v6691
      %v6693 = vrot.slane %v6379, 1
      %v6694 = vrot.slane %v6380, 1
      %v6695 = vsel %vm1625, %v6693, %v6694
      %v6696 = vrot.slane %v6381, 1
      %v6697 = vrot.slane %v6382, 1
      %v6698 = vsel %vm1625, %v6696, %v6697
      %v6699 = vrot.slane %v6383, 1
      %v6700 = vrot.slane %v6384, 1
      %v6701 = vsel %vm1625, %v6699, %v6700
      %v6702 = vrot.slane %v6385, 1
      %v6703 = vrot.slane %v6386, 1
      %v6704 = vsel %vm1625, %v6702, %v6703
      %v6705 = vrot.slane %v6387, 1
      %v6706 = vrot.slane %v6388, 1
      %v6707 = vsel %vm1625, %v6705, %v6706
      %v6708 = vrot.slane %v6389, 1
      %v6709 = vrot.slane %v6390, 1
      %v6710 = vsel %vm1625, %v6708, %v6709
      %v6711 = vrot.slane %v6391, 1
      %v6712 = vrot.slane %v6392, 1
      %v6713 = vsel %vm1625, %v6711, %v6712
      %v6714 = vrot.slane %v6393, 1
      %v6715 = vrot.slane %v6394, 1
      %v6716 = vsel %vm1625, %v6714, %v6715
      %v6717 = vrot.slane %v6395, 1
      %v6718 = vrot.slane %v6396, 1
      %v6719 = vsel %vm1625, %v6717, %v6718
      %6736 = vmatprep.subr.mxu0 0.0
      %6737 = vmatpush1.msra.mxu0 %v6446
      %6738 = vmatprep.subr.mxu0 0.0
      %6739 = vmatpush1.msra.mxu0 %v6447
      %6740 = vmatprep.subr.mxu0 0.0
      %6741 = vmatpush1.msra.mxu0 %v6448
      %6742 = vmatprep.subr.mxu0 0.0
      %6743 = vmatpush1.msra.mxu0 %v6449
      %6744 = vmatprep.subr.mxu0 0.0
      %6745 = vmatpush1.msra.mxu0 %v6450
      %6746 = vmatprep.subr.mxu0 0.0
      %6747 = vmatpush1.msra.mxu0 %v6451
      %6748 = vmatprep.subr.mxu0 0.0
      %6749 = vmatpush1.msra.mxu0 %v6452
      %6750 = vmatprep.subr.mxu0 0.0
      %6751 = vmatpush1.msra.mxu0 %v6453
      %6752 = vmatprep.subr.mxu0 0.0
      %6753 = vmatpush1.msra.mxu0 %v6454
      %6754 = vmatprep.subr.mxu0 0.0
      %6755 = vmatpush1.msra.mxu0 %v6455
      %6756 = vmatprep.subr.mxu0 0.0
      %6757 = vmatpush1.msra.mxu0 %v6456
      %6758 = vmatprep.subr.mxu0 0.0
      %6759 = vmatpush1.msra.mxu0 %v6457
      %6760 = vmatprep.subr.mxu0 0.0
      %6761 = vmatpush1.msra.mxu0 %v6458
      %6762 = vmatprep.subr.mxu0 0.0
      %6763 = vmatpush1.msra.mxu0 %v6459
      %6764 = vmatprep.subr.mxu0 0.0
      %6765 = vmatpush1.msra.mxu0 %v6460
      %6766 = vmatprep.subr.mxu0 0.0
      %6767 = vmatpush1.msra.mxu0 %v6461
      %6768 = vmatprep.subr.mxu0 0.0
      %6769 = vmatpush1.msra.mxu0 0.0
      %6770 = vmatprep.subr.mxu0 0.0
      %6771 = vmatpush1.msra.mxu0 0.0
      %6772 = vmatprep.subr.mxu0 0.0
      %6773 = vmatpush1.msra.mxu0 0.0
      %6774 = vmatprep.subr.mxu0 0.0
      %6775 = vmatpush1.msra.mxu0 0.0
      %6776 = vmatprep.subr.mxu0 0.0
      %6777 = vmatpush1.msra.mxu0 0.0
      %6778 = vmatprep.subr.mxu0 0.0
      %6779 = vmatpush1.msra.mxu0 0.0
      %6780 = vmatprep.subr.mxu0 0.0
      %6781 = vmatpush1.msra.mxu0 0.0
      %6782 = vmatprep.subr.mxu0 0.0
      %6783 = vmatpush1.msra.mxu0 0.0
      %6784 = vmatprep.subr.mxu0 0.0
      %6785 = vmatpush1.msra.mxu0 0.0
      %6786 = vmatprep.subr.mxu0 0.0
      %6787 = vmatpush1.msra.mxu0 0.0
      %6788 = vmatprep.subr.mxu0 0.0
      %6789 = vmatpush1.msra.mxu0 0.0
      %6790 = vmatprep.subr.mxu0 0.0
      %6791 = vmatpush1.msra.mxu0 0.0
      %6792 = vmatprep.subr.mxu0 0.0
      %6793 = vmatpush1.msra.mxu0 0.0
      %6794 = vmatprep.subr.mxu0 0.0
      %6795 = vmatpush1.msra.mxu0 0.0
      %6796 = vmatprep.subr.mxu0 0.0
      %6797 = vmatpush1.msra.mxu0 0.0
      %6798 = vmatprep.subr.mxu0 0.0
      %6799 = vmatpush1.msra.mxu0 0.0
      %6800 = vmatprep.mubr.f32.mxu0 0.0
      %6801 = vmatmul.mubr.f32.gmra.mrb[0].mxu0 %v6674
      %v6802 = vpop.f32.mrb[0].mxu0
      %v6803 = vadd.f32 0.0, %v6802
      %v6804 = vpop.f32.mrb[0].mxu0
      %6805 = vmatprep.mubr.f32.mxu0 0.0
      %6806 = vmatmul.mubr.f32.gmra.mrb[0].mxu0 %v6677
      %v6807 = vpop.f32.mrb[0].mxu0
      %v6808 = vadd.f32 0.0, %v6807
      %v6809 = vpop.f32.mrb[0].mxu0
      %6810 = vmatprep.mubr.f32.mxu0 0.0
      %6811 = vmatmul.mubr.f32.gmra.mrb[0].mxu0 %v6680
      %v6812 = vpop.f32.mrb[0].mxu0
      %v6813 = vadd.f32 0.0, %v6812
      %v6814 = vpop.f32.mrb[0].mxu0
      %6815 = vmatprep.mubr.f32.mxu0 0.0
      %6816 = vmatmul.mubr.f32.gmra.mrb[0].mxu0 %v6683
      %v6817 = vpop.f32.mrb[0].mxu0
      %v6818 = vadd.f32 0.0, %v6817
      %v6819 = vpop.f32.mrb[0].mxu0
      %6820 = vmatprep.mubr.f32.mxu0 0.0
      %6821 = vmatmul.mubr.f32.gmra.mrb[0].mxu0 %v6686
      %v6822 = vpop.f32.mrb[0].mxu0
      %v6823 = vadd.f32 0.0, %v6822
      %v6824 = vpop.f32.mrb[0].mxu0
      %6825 = vmatprep.mubr.f32.mxu0 0.0
      %6826 = vmatmul.mubr.f32.gmra.mrb[0].mxu0 %v6689
      %v6827 = vpop.f32.mrb[0].mxu0
      %v6828 = vadd.f32 0.0, %v6827
      %v6829 = vpop.f32.mrb[0].mxu0
      %6830 = vmatprep.mubr.f32.mxu0 0.0
      %6831 = vmatmul.mubr.f32.gmra.mrb[0].mxu0 %v6692
      %v6832 = vpop.f32.mrb[0].mxu0
      %v6833 = vadd.f32 0.0, %v6832
      %v6834 = vpop.f32.mrb[0].mxu0
      %6835 = vmatprep.mubr.f32.mxu0 0.0
      %6836 = vmatmul.mubr.f32.gmra.mrb[0].mxu0 %v6695
      %v6837 = vpop.f32.mrb[0].mxu0
      %v6838 = vadd.f32 0.0, %v6837
      %v6839 = vpop.f32.mrb[0].mxu0
      %6840 = vmatprep.mubr.f32.mxu0 0.0
      %6841 = vmatmul.mubr.f32.gmra.mrb[0].mxu0 %v6698
      %v6842 = vpop.f32.mrb[0].mxu0
      %v6843 = vadd.f32 0.0, %v6842
      %v6844 = vpop.f32.mrb[0].mxu0
      %6845 = vmatprep.mubr.f32.mxu0 0.0
      %6846 = vmatmul.mubr.f32.gmra.mrb[0].mxu0 %v6701
      %v6847 = vpop.f32.mrb[0].mxu0
      %v6848 = vadd.f32 0.0, %v6847
      %v6849 = vpop.f32.mrb[0].mxu0
      %6850 = vmatprep.mubr.f32.mxu0 0.0
      %6851 = vmatmul.mubr.f32.gmra.mrb[0].mxu0 %v6704
      %v6852 = vpop.f32.mrb[0].mxu0
      %v6853 = vadd.f32 0.0, %v6852
      %v6854 = vpop.f32.mrb[0].mxu0
      %6855 = vmatprep.mubr.f32.mxu0 0.0
      %6856 = vmatmul.mubr.f32.gmra.mrb[0].mxu0 %v6707
      %v6857 = vpop.f32.mrb[0].mxu0
      %v6858 = vadd.f32 0.0, %v6857
      %v6859 = vpop.f32.mrb[0].mxu0
      %6860 = vmatprep.mubr.f32.mxu0 0.0
      %6861 = vmatmul.mubr.f32.gmra.mrb[0].mxu0 %v6710
      %v6862 = vpop.f32.mrb[0].mxu0
      %v6863 = vadd.f32 0.0, %v6862
      %v6864 = vpop.f32.mrb[0].mxu0
      %6865 = vmatprep.mubr.f32.mxu0 0.0
      %6866 = vmatmul.mubr.f32.gmra.mrb[0].mxu0 %v6713
      %v6867 = vpop.f32.mrb[0].mxu0
      %v6868 = vadd.f32 0.0, %v6867
      %v6869 = vpop.f32.mrb[0].mxu0
      %6870 = vmatprep.mubr.f32.mxu0 0.0
      %6871 = vmatmul.mubr.f32.gmra.mrb[0].mxu0 %v6716
      %v6872 = vpop.f32.mrb[0].mxu0
      %v6873 = vadd.f32 0.0, %v6872
      %v6874 = vpop.f32.mrb[0].mxu0
      %6875 = vmatprep.mubr.f32.mxu0 0.0
      %6876 = vmatmul.mubr.f32.gmra.mrb[0].mxu0 %v6719
      %v6877 = vpop.f32.mrb[0].mxu0
      %v6878 = vadd.f32 0.0, %v6877
      %v6879 = vpop.f32.mrb[0].mxu0
      %6880 = vdwg.mxu0
      %v6881 = vadd.f32 %v6624, %v6803
      %v6882 = vadd.f32 %v6625, %v6808
      %v6883 = vadd.f32 %v6626, %v6813
      %v6884 = vadd.f32 %v6627, %v6818
      %v6885 = vadd.f32 %v6628, %v6823
      %v6886 = vadd.f32 %v6629, %v6828
      %v6887 = vadd.f32 %v6630, %v6833
      %v6888 = vadd.f32 %v6631, %v6838
      %v6889 = vadd.f32 %v6632, %v6843
      %v6890 = vadd.f32 %v6633, %v6848
      %v6891 = vadd.f32 %v6634, %v6853
      %v6892 = vadd.f32 %v6635, %v6858
      %v6893 = vadd.f32 %v6636, %v6863
      %v6894 = vadd.f32 %v6637, %v6868
      %v6895 = vadd.f32 %v6638, %v6873
      %v6896 = vadd.f32 %v6639, %v6878
      %v6929 = vrot.slane %v6397, 1
      %v6930 = vrot.slane %v6398, 1
      %v6931 = vsel %vm1625, %v6929, %v6930
      %v6932 = vrot.slane %v6399, 1
      %v6933 = vrot.slane %v6400, 1
      %v6934 = vsel %vm1625, %v6932, %v6933
      %v6935 = vrot.slane %v6401, 1
      %v6936 = vrot.slane %v6402, 1
      %v6937 = vsel %vm1625, %v6935, %v6936
      %v6938 = vrot.slane %v6403, 1
      %v6939 = vrot.slane %v6404, 1
      %v6940 = vsel %vm1625, %v6938, %v6939
      %v6941 = vrot.slane %v6405, 1
      %v6942 = vrot.slane %v6406, 1
      %v6943 = vsel %vm1625, %v6941, %v6942
      %v6944 = vrot.slane %v6407, 1
      %v6945 = vrot.slane %v6408, 1
      %v6946 = vsel %vm1625, %v6944, %v6945
      %v6947 = vrot.slane %v6409, 1
      %v6948 = vrot.slane %v6410, 1
      %v6949 = vsel %vm1625, %v6947, %v6948
      %v6950 = vrot.slane %v6411, 1
      %v6951 = vrot.slane %v6412, 1
      %v6952 = vsel %vm1625, %v6950, %v6951
      %v6953 = vrot.slane %v6413, 1
      %v6954 = vrot.slane %v6414, 1
      %v6955 = vsel %vm1625, %v6953, %v6954
      %v6956 = vrot.slane %v6415, 1
      %v6957 = vrot.slane %v6416, 1
      %v6958 = vsel %vm1625, %v6956, %v6957
      %v6959 = vrot.slane %v6417, 1
      %v6960 = vrot.slane %v6418, 1
      %v6961 = vsel %vm1625, %v6959, %v6960
      %v6962 = vrot.slane %v6419, 1
      %v6963 = vrot.slane %v6420, 1
      %v6964 = vsel %vm1625, %v6962, %v6963
      %v6965 = vrot.slane %v6421, 1
      %v6966 = vrot.slane %v6422, 1
      %v6967 = vsel %vm1625, %v6965, %v6966
      %v6968 = vrot.slane %v6423, 1
      %v6969 = vrot.slane %v6424, 1
      %v6970 = vsel %vm1625, %v6968, %v6969
      %v6971 = vrot.slane %v6425, 1
      %v6972 = vrot.slane %v6426, 1
      %v6973 = vsel %vm1625, %v6971, %v6972
      %v6974 = vrot.slane %v6427, 1
      %v6975 = vrot.slane %v6428, 1
      %v6976 = vsel %vm1625, %v6974, %v6975
      %6993 = vmatprep.subr.mxu0 0.0
      %6994 = vmatpush1.msra.mxu0 %v6463
      %6995 = vmatprep.subr.mxu0 0.0
      %6996 = vmatpush1.msra.mxu0 %v6464
      %6997 = vmatprep.subr.mxu0 0.0
      %6998 = vmatpush1.msra.mxu0 %v6465
      %6999 = vmatprep.subr.mxu0 0.0
      %7000 = vmatpush1.msra.mxu0 %v6466
      %7001 = vmatprep.subr.mxu0 0.0
      %7002 = vmatpush1.msra.mxu0 %v6467
      %7003 = vmatprep.subr.mxu0 0.0
      %7004 = vmatpush1.msra.mxu0 %v6468
      %7005 = vmatprep.subr.mxu0 0.0
      %7006 = vmatpush1.msra.mxu0 %v6469
      %7007 = vmatprep.subr.mxu0 0.0
      %7008 = vmatpush1.msra.mxu0 %v6470
      %7009 = vmatprep.subr.mxu0 0.0
      %7010 = vmatpush1.msra.mxu0 %v6471
      %7011 = vmatprep.subr.mxu0 0.0
      %7012 = vmatpush1.msra.mxu0 %v6472
      %7013 = vmatprep.subr.mxu0 0.0
      %7014 = vmatpush1.msra.mxu0 %v6473
      %7015 = vmatprep.subr.mxu0 0.0
      %7016 = vmatpush1.msra.mxu0 %v6474
      %7017 = vmatprep.subr.mxu0 0.0
      %7018 = vmatpush1.msra.mxu0 %v6475
      %7019 = vmatprep.subr.mxu0 0.0
      %7020 = vmatpush1.msra.mxu0 %v6476
      %7021 = vmatprep.subr.mxu0 0.0
      %7022 = vmatpush1.msra.mxu0 %v6477
      %7023 = vmatprep.subr.mxu0 0.0
      %7024 = vmatpush1.msra.mxu0 %v6478
      %7025 = vmatprep.subr.mxu0 0.0
      %7026 = vmatpush1.msra.mxu0 0.0
      %7027 = vmatprep.subr.mxu0 0.0
      %7028 = vmatpush1.msra.mxu0 0.0
      %7029 = vmatprep.subr.mxu0 0.0
      %7030 = vmatpush1.msra.mxu0 0.0
      %7031 = vmatprep.subr.mxu0 0.0
      %7032 = vmatpush1.msra.mxu0 0.0
      %7033 = vmatprep.subr.mxu0 0.0
      %7034 = vmatpush1.msra.mxu0 0.0
      %7035 = vmatprep.subr.mxu0 0.0
      %7036 = vmatpush1.msra.mxu0 0.0
      %7037 = vmatprep.subr.mxu0 0.0
      %7038 = vmatpush1.msra.mxu0 0.0
      %7039 = vmatprep.subr.mxu0 0.0
      %7040 = vmatpush1.msra.mxu0 0.0
      %7041 = vmatprep.subr.mxu0 0.0
      %7042 = vmatpush1.msra.mxu0 0.0
      %7043 = vmatprep.subr.mxu0 0.0
      %7044 = vmatpush1.msra.mxu0 0.0
      %7045 = vmatprep.subr.mxu0 0.0
      %7046 = vmatpush1.msra.mxu0 0.0
      %7047 = vmatprep.subr.mxu0 0.0
      %7048 = vmatpush1.msra.mxu0 0.0
      %7049 = vmatprep.subr.mxu0 0.0
      %7050 = vmatpush1.msra.mxu0 0.0
      %7051 = vmatprep.subr.mxu0 0.0
      %7052 = vmatpush1.msra.mxu0 0.0
      %7053 = vmatprep.subr.mxu0 0.0
      %7054 = vmatpush1.msra.mxu0 0.0
      %7055 = vmatprep.subr.mxu0 0.0
      %7056 = vmatpush1.msra.mxu0 0.0
      %7057 = vmatprep.mubr.f32.mxu0 0.0
      %7058 = vmatmul.mubr.f32.gmra.mrb[0].mxu0 %v6931
      %v7059 = vpop.f32.mrb[0].mxu0
      %v7060 = vadd.f32 0.0, %v7059
      %v7061 = vpop.f32.mrb[0].mxu0
      %7062 = vmatprep.mubr.f32.mxu0 0.0
      %7063 = vmatmul.mubr.f32.gmra.mrb[0].mxu0 %v6934
      %v7064 = vpop.f32.mrb[0].mxu0
      %v7065 = vadd.f32 0.0, %v7064
      %v7066 = vpop.f32.mrb[0].mxu0
      %7067 = vmatprep.mubr.f32.mxu0 0.0
      %7068 = vmatmul.mubr.f32.gmra.mrb[0].mxu0 %v6937
      %v7069 = vpop.f32.mrb[0].mxu0
      %v7070 = vadd.f32 0.0, %v7069
      %v7071 = vpop.f32.mrb[0].mxu0
      %7072 = vmatprep.mubr.f32.mxu0 0.0
      %7073 = vmatmul.mubr.f32.gmra.mrb[0].mxu0 %v6940
      %v7074 = vpop.f32.mrb[0].mxu0
      %v7075 = vadd.f32 0.0, %v7074
      %v7076 = vpop.f32.mrb[0].mxu0
      %7077 = vmatprep.mubr.f32.mxu0 0.0
      %7078 = vmatmul.mubr.f32.gmra.mrb[0].mxu0 %v6943
      %v7079 = vpop.f32.mrb[0].mxu0
      %v7080 = vadd.f32 0.0, %v7079
      %v7081 = vpop.f32.mrb[0].mxu0
      %7082 = vmatprep.mubr.f32.mxu0 0.0
      %7083 = vmatmul.mubr.f32.gmra.mrb[0].mxu0 %v6946
      %v7084 = vpop.f32.mrb[0].mxu0
      %v7085 = vadd.f32 0.0, %v7084
      %v7086 = vpop.f32.mrb[0].mxu0
      %7087 = vmatprep.mubr.f32.mxu0 0.0
      %7088 = vmatmul.mubr.f32.gmra.mrb[0].mxu0 %v6949
      %v7089 = vpop.f32.mrb[0].mxu0
      %v7090 = vadd.f32 0.0, %v7089
      %v7091 = vpop.f32.mrb[0].mxu0
      %7092 = vmatprep.mubr.f32.mxu0 0.0
      %7093 = vmatmul.mubr.f32.gmra.mrb[0].mxu0 %v6952
      %v7094 = vpop.f32.mrb[0].mxu0
      %v7095 = vadd.f32 0.0, %v7094
      %v7096 = vpop.f32.mrb[0].mxu0
      %7097 = vmatprep.mubr.f32.mxu0 0.0
      %7098 = vmatmul.mubr.f32.gmra.mrb[0].mxu0 %v6955
      %v7099 = vpop.f32.mrb[0].mxu0
      %v7100 = vadd.f32 0.0, %v7099
      %v7101 = vpop.f32.mrb[0].mxu0
      %7102 = vmatprep.mubr.f32.mxu0 0.0
      %7103 = vmatmul.mubr.f32.gmra.mrb[0].mxu0 %v6958
      %v7104 = vpop.f32.mrb[0].mxu0
      %v7105 = vadd.f32 0.0, %v7104
      %v7106 = vpop.f32.mrb[0].mxu0
      %7107 = vmatprep.mubr.f32.mxu0 0.0
      %7108 = vmatmul.mubr.f32.gmra.mrb[0].mxu0 %v6961
      %v7109 = vpop.f32.mrb[0].mxu0
      %v7110 = vadd.f32 0.0, %v7109
      %v7111 = vpop.f32.mrb[0].mxu0
      %7112 = vmatprep.mubr.f32.mxu0 0.0
      %7113 = vmatmul.mubr.f32.gmra.mrb[0].mxu0 %v6964
      %v7114 = vpop.f32.mrb[0].mxu0
      %v7115 = vadd.f32 0.0, %v7114
      %v7116 = vpop.f32.mrb[0].mxu0
      %7117 = vmatprep.mubr.f32.mxu0 0.0
      %7118 = vmatmul.mubr.f32.gmra.mrb[0].mxu0 %v6967
      %v7119 = vpop.f32.mrb[0].mxu0
      %v7120 = vadd.f32 0.0, %v7119
      %v7121 = vpop.f32.mrb[0].mxu0
      %7122 = vmatprep.mubr.f32.mxu0 0.0
      %7123 = vmatmul.mubr.f32.gmra.mrb[0].mxu0 %v6970
      %v7124 = vpop.f32.mrb[0].mxu0
      %v7125 = vadd.f32 0.0, %v7124
      %v7126 = vpop.f32.mrb[0].mxu0
      %7127 = vmatprep.mubr.f32.mxu0 0.0
      %7128 = vmatmul.mubr.f32.gmra.mrb[0].mxu0 %v6973
      %v7129 = vpop.f32.mrb[0].mxu0
      %v7130 = vadd.f32 0.0, %v7129
      %v7131 = vpop.f32.mrb[0].mxu0
      %7132 = vmatprep.mubr.f32.mxu0 0.0
      %7133 = vmatmul.mubr.f32.gmra.mrb[0].mxu0 %v6976
      %v7134 = vpop.f32.mrb[0].mxu0
      %v7135 = vadd.f32 0.0, %v7134
      %v7136 = vpop.f32.mrb[0].mxu0
      %7137 = vdwg.mxu0
      %v7138 = vadd.f32 %v6881, %v7060
      %v7139 = vadd.f32 %v6882, %v7065
      %v7140 = vadd.f32 %v6883, %v7070
      %v7141 = vadd.f32 %v6884, %v7075
      %v7142 = vadd.f32 %v6885, %v7080
      %v7143 = vadd.f32 %v6886, %v7085
      %v7144 = vadd.f32 %v6887, %v7090
      %v7145 = vadd.f32 %v6888, %v7095
      %v7146 = vadd.f32 %v6889, %v7100
      %v7147 = vadd.f32 %v6890, %v7105
      %v7148 = vadd.f32 %v6891, %v7110
      %v7149 = vadd.f32 %v6892, %v7115
      %v7150 = vadd.f32 %v6893, %v7120
      %v7151 = vadd.f32 %v6894, %v7125
      %v7152 = vadd.f32 %v6895, %v7130
      %v7153 = vadd.f32 %v6896, %v7135
      %7154 = vmatprep.subr.mxu0 0.0
      %7155 = vmatpush1.msra.mxu0 %v6429
      %7156 = vmatprep.subr.mxu0 0.0
      %7157 = vmatpush1.msra.mxu0 %v6430
      %7158 = vmatprep.subr.mxu0 0.0
      %7159 = vmatpush1.msra.mxu0 %v6431
      %7160 = vmatprep.subr.mxu0 0.0
      %7161 = vmatpush1.msra.mxu0 %v6432
      %7162 = vmatprep.subr.mxu0 0.0
      %7163 = vmatpush1.msra.mxu0 %v6433
      %7164 = vmatprep.subr.mxu0 0.0
      %7165 = vmatpush1.msra.mxu0 %v6434
      %7166 = vmatprep.subr.mxu0 0.0
      %7167 = vmatpush1.msra.mxu0 %v6435
      %7168 = vmatprep.subr.mxu0 0.0
      %7169 = vmatpush1.msra.mxu0 %v6436
      %7170 = vmatprep.subr.mxu0 0.0
      %7171 = vmatpush1.msra.mxu0 %v6437
      %7172 = vmatprep.subr.mxu0 0.0
      %7173 = vmatpush1.msra.mxu0 %v6438
      %7174 = vmatprep.subr.mxu0 0.0
      %7175 = vmatpush1.msra.mxu0 %v6439
      %7176 = vmatprep.subr.mxu0 0.0
      %7177 = vmatpush1.msra.mxu0 %v6440
      %7178 = vmatprep.subr.mxu0 0.0
      %7179 = vmatpush1.msra.mxu0 %v6441
      %7180 = vmatprep.subr.mxu0 0.0
      %7181 = vmatpush1.msra.mxu0 %v6442
      %7182 = vmatprep.subr.mxu0 0.0
      %7183 = vmatpush1.msra.mxu0 %v6443
      %7184 = vmatprep.subr.mxu0 0.0
      %7185 = vmatpush1.msra.mxu0 %v6444
      %7186 = vmatprep.subr.mxu0 0.0
      %7187 = vmatpush1.msra.mxu0 0.0
      %7188 = vmatprep.subr.mxu0 0.0
      %7189 = vmatpush1.msra.mxu0 0.0
      %7190 = vmatprep.subr.mxu0 0.0
      %7191 = vmatpush1.msra.mxu0 0.0
      %7192 = vmatprep.subr.mxu0 0.0
      %7193 = vmatpush1.msra.mxu0 0.0
      %7194 = vmatprep.subr.mxu0 0.0
      %7195 = vmatpush1.msra.mxu0 0.0
      %7196 = vmatprep.subr.mxu0 0.0
      %7197 = vmatpush1.msra.mxu0 0.0
      %7198 = vmatprep.subr.mxu0 0.0
      %7199 = vmatpush1.msra.mxu0 0.0
      %7200 = vmatprep.subr.mxu0 0.0
      %7201 = vmatpush1.msra.mxu0 0.0
      %7202 = vmatprep.subr.mxu0 0.0
      %7203 = vmatpush1.msra.mxu0 0.0
      %7204 = vmatprep.subr.mxu0 0.0
      %7205 = vmatpush1.msra.mxu0 0.0
      %7206 = vmatprep.subr.mxu0 0.0
      %7207 = vmatpush1.msra.mxu0 0.0
      %7208 = vmatprep.subr.mxu0 0.0
      %7209 = vmatpush1.msra.mxu0 0.0
      %7210 = vmatprep.subr.mxu0 0.0
      %7211 = vmatpush1.msra.mxu0 0.0
      %7212 = vmatprep.subr.mxu0 0.0
      %7213 = vmatpush1.msra.mxu0 0.0
      %7214 = vmatprep.subr.mxu0 0.0
      %7215 = vmatpush1.msra.mxu0 0.0
      %7216 = vmatprep.subr.mxu0 0.0
      %7217 = vmatpush1.msra.mxu0 0.0
      %7218 = vmatprep.mubr.f32.mxu0 0.0
      %7219 = vmatmul.mubr.f32.gmra.mrb[0].mxu0 %v6674
      %v7220 = vpop.f32.mrb[0].mxu0
      %v7221 = vadd.f32 0.0, %v7220
      %v7222 = vpop.f32.mrb[0].mxu0
      %7223 = vmatprep.mubr.f32.mxu0 0.0
      %7224 = vmatmul.mubr.f32.gmra.mrb[0].mxu0 %v6677
      %v7225 = vpop.f32.mrb[0].mxu0
      %v7226 = vadd.f32 0.0, %v7225
      %v7227 = vpop.f32.mrb[0].mxu0
      %7228 = vmatprep.mubr.f32.mxu0 0.0
      %7229 = vmatmul.mubr.f32.gmra.mrb[0].mxu0 %v6680
      %v7230 = vpop.f32.mrb[0].mxu0
      %v7231 = vadd.f32 0.0, %v7230
      %v7232 = vpop.f32.mrb[0].mxu0
      %7233 = vmatprep.mubr.f32.mxu0 0.0
      %7234 = vmatmul.mubr.f32.gmra.mrb[0].mxu0 %v6683
      %v7235 = vpop.f32.mrb[0].mxu0
      %v7236 = vadd.f32 0.0, %v7235
      %v7237 = vpop.f32.mrb[0].mxu0
      %7238 = vmatprep.mubr.f32.mxu0 0.0
      %7239 = vmatmul.mubr.f32.gmra.mrb[0].mxu0 %v6686
      %v7240 = vpop.f32.mrb[0].mxu0
      %v7241 = vadd.f32 0.0, %v7240
      %v7242 = vpop.f32.mrb[0].mxu0
      %7243 = vmatprep.mubr.f32.mxu0 0.0
      %7244 = vmatmul.mubr.f32.gmra.mrb[0].mxu0 %v6689
      %v7245 = vpop.f32.mrb[0].mxu0
      %v7246 = vadd.f32 0.0, %v7245
      %v7247 = vpop.f32.mrb[0].mxu0
      %7248 = vmatprep.mubr.f32.mxu0 0.0
      %7249 = vmatmul.mubr.f32.gmra.mrb[0].mxu0 %v6692
      %v7250 = vpop.f32.mrb[0].mxu0
      %v7251 = vadd.f32 0.0, %v7250
      %v7252 = vpop.f32.mrb[0].mxu0
      %7253 = vmatprep.mubr.f32.mxu0 0.0
      %7254 = vmatmul.mubr.f32.gmra.mrb[0].mxu0 %v6695
      %v7255 = vpop.f32.mrb[0].mxu0
      %v7256 = vadd.f32 0.0, %v7255
      %v7257 = vpop.f32.mrb[0].mxu0
      %7258 = vmatprep.mubr.f32.mxu0 0.0
      %7259 = vmatmul.mubr.f32.gmra.mrb[0].mxu0 %v6698
      %v7260 = vpop.f32.mrb[0].mxu0
      %v7261 = vadd.f32 0.0, %v7260
      %v7262 = vpop.f32.mrb[0].mxu0
      %7263 = vmatprep.mubr.f32.mxu0 0.0
      %7264 = vmatmul.mubr.f32.gmra.mrb[0].mxu0 %v6701
      %v7265 = vpop.f32.mrb[0].mxu0
      %v7266 = vadd.f32 0.0, %v7265
      %v7267 = vpop.f32.mrb[0].mxu0
      %7268 = vmatprep.mubr.f32.mxu0 0.0
      %7269 = vmatmul.mubr.f32.gmra.mrb[0].mxu0 %v6704
      %v7270 = vpop.f32.mrb[0].mxu0
      %v7271 = vadd.f32 0.0, %v7270
      %v7272 = vpop.f32.mrb[0].mxu0
      %7273 = vmatprep.mubr.f32.mxu0 0.0
      %7274 = vmatmul.mubr.f32.gmra.mrb[0].mxu0 %v6707
      %v7275 = vpop.f32.mrb[0].mxu0
      %v7276 = vadd.f32 0.0, %v7275
      %v7277 = vpop.f32.mrb[0].mxu0
      %7278 = vmatprep.mubr.f32.mxu0 0.0
      %7279 = vmatmul.mubr.f32.gmra.mrb[0].mxu0 %v6710
      %v7280 = vpop.f32.mrb[0].mxu0
      %v7281 = vadd.f32 0.0, %v7280
      %v7282 = vpop.f32.mrb[0].mxu0
      %7283 = vmatprep.mubr.f32.mxu0 0.0
      %7284 = vmatmul.mubr.f32.gmra.mrb[0].mxu0 %v6713
      %v7285 = vpop.f32.mrb[0].mxu0
      %v7286 = vadd.f32 0.0, %v7285
      %v7287 = vpop.f32.mrb[0].mxu0
      %7288 = vmatprep.mubr.f32.mxu0 0.0
      %7289 = vmatmul.mubr.f32.gmra.mrb[0].mxu0 %v6716
      %v7290 = vpop.f32.mrb[0].mxu0
      %v7291 = vadd.f32 0.0, %v7290
      %v7292 = vpop.f32.mrb[0].mxu0
      %7293 = vmatprep.mubr.f32.mxu0 0.0
      %7294 = vmatmul.mubr.f32.gmra.mrb[0].mxu0 %v6719
      %v7295 = vpop.f32.mrb[0].mxu0
      %v7296 = vadd.f32 0.0, %v7295
      %v7297 = vpop.f32.mrb[0].mxu0
      %7298 = vdwg.mxu0
      %v7299 = vadd.f32 %v6363, %v7221
      %v7300 = vadd.f32 %v6363, %v7226
      %v7301 = vadd.f32 %v6363, %v7231
      %v7302 = vadd.f32 %v6363, %v7236
      %v7303 = vadd.f32 %v6363, %v7241
      %v7304 = vadd.f32 %v6363, %v7246
      %v7305 = vadd.f32 %v6363, %v7251
      %v7306 = vadd.f32 %v6363, %v7256
      %v7307 = vadd.f32 %v6363, %v7261
      %v7308 = vadd.f32 %v6363, %v7266
      %v7309 = vadd.f32 %v6363, %v7271
      %v7310 = vadd.f32 %v6363, %v7276
      %v7311 = vadd.f32 %v6363, %v7281
      %v7312 = vadd.f32 %v6363, %v7286
      %v7313 = vadd.f32 %v6363, %v7291
      %v7314 = vadd.f32 %v6363, %v7296
      %7315 = vmatprep.subr.mxu0 0.0
      %7316 = vmatpush1.msra.mxu0 %v6446
      %7317 = vmatprep.subr.mxu0 0.0
      %7318 = vmatpush1.msra.mxu0 %v6447
      %7319 = vmatprep.subr.mxu0 0.0
      %7320 = vmatpush1.msra.mxu0 %v6448
      %7321 = vmatprep.subr.mxu0 0.0
      %7322 = vmatpush1.msra.mxu0 %v6449
      %7323 = vmatprep.subr.mxu0 0.0
      %7324 = vmatpush1.msra.mxu0 %v6450
      %7325 = vmatprep.subr.mxu0 0.0
      %7326 = vmatpush1.msra.mxu0 %v6451
      %7327 = vmatprep.subr.mxu0 0.0
      %7328 = vmatpush1.msra.mxu0 %v6452
      %7329 = vmatprep.subr.mxu0 0.0
      %7330 = vmatpush1.msra.mxu0 %v6453
      %7331 = vmatprep.subr.mxu0 0.0
      %7332 = vmatpush1.msra.mxu0 %v6454
      %7333 = vmatprep.subr.mxu0 0.0
      %7334 = vmatpush1.msra.mxu0 %v6455
      %7335 = vmatprep.subr.mxu0 0.0
      %7336 = vmatpush1.msra.mxu0 %v6456
      %7337 = vmatprep.subr.mxu0 0.0
      %7338 = vmatpush1.msra.mxu0 %v6457
      %7339 = vmatprep.subr.mxu0 0.0
      %7340 = vmatpush1.msra.mxu0 %v6458
      %7341 = vmatprep.subr.mxu0 0.0
      %7342 = vmatpush1.msra.mxu0 %v6459
      %7343 = vmatprep.subr.mxu0 0.0
      %7344 = vmatpush1.msra.mxu0 %v6460
      %7345 = vmatprep.subr.mxu0 0.0
      %7346 = vmatpush1.msra.mxu0 %v6461
      %7347 = vmatprep.subr.mxu0 0.0
      %7348 = vmatpush1.msra.mxu0 0.0
      %7349 = vmatprep.subr.mxu0 0.0
      %7350 = vmatpush1.msra.mxu0 0.0
      %7351 = vmatprep.subr.mxu0 0.0
      %7352 = vmatpush1.msra.mxu0 0.0
      %7353 = vmatprep.subr.mxu0 0.0
      %7354 = vmatpush1.msra.mxu0 0.0
      %7355 = vmatprep.subr.mxu0 0.0
      %7356 = vmatpush1.msra.mxu0 0.0
      %7357 = vmatprep.subr.mxu0 0.0
      %7358 = vmatpush1.msra.mxu0 0.0
      %7359 = vmatprep.subr.mxu0 0.0
      %7360 = vmatpush1.msra.mxu0 0.0
      %7361 = vmatprep.subr.mxu0 0.0
      %7362 = vmatpush1.msra.mxu0 0.0
      %7363 = vmatprep.subr.mxu0 0.0
      %7364 = vmatpush1.msra.mxu0 0.0
      %7365 = vmatprep.subr.mxu0 0.0
      %7366 = vmatpush1.msra.mxu0 0.0
      %7367 = vmatprep.subr.mxu0 0.0
      %7368 = vmatpush1.msra.mxu0 0.0
      %7369 = vmatprep.subr.mxu0 0.0
      %7370 = vmatpush1.msra.mxu0 0.0
      %7371 = vmatprep.subr.mxu0 0.0
      %7372 = vmatpush1.msra.mxu0 0.0
      %7373 = vmatprep.subr.mxu0 0.0
      %7374 = vmatpush1.msra.mxu0 0.0
      %7375 = vmatprep.subr.mxu0 0.0
      %7376 = vmatpush1.msra.mxu0 0.0
      %7377 = vmatprep.subr.mxu0 0.0
      %7378 = vmatpush1.msra.mxu0 0.0
      %7379 = vmatprep.mubr.f32.mxu0 0.0
      %7380 = vmatmul.mubr.f32.gmra.mrb[0].mxu0 %v6931
      %v7381 = vpop.f32.mrb[0].mxu0
      %v7382 = vadd.f32 0.0, %v7381
      %v7383 = vpop.f32.mrb[0].mxu0
      %7384 = vmatprep.mubr.f32.mxu0 0.0
      %7385 = vmatmul.mubr.f32.gmra.mrb[0].mxu0 %v6934
      %v7386 = vpop.f32.mrb[0].mxu0
      %v7387 = vadd.f32 0.0, %v7386
      %v7388 = vpop.f32.mrb[0].mxu0
      %7389 = vmatprep.mubr.f32.mxu0 0.0
      %7390 = vmatmul.mubr.f32.gmra.mrb[0].mxu0 %v6937
      %v7391 = vpop.f32.mrb[0].mxu0
      %v7392 = vadd.f32 0.0, %v7391
      %v7393 = vpop.f32.mrb[0].mxu0
      %7394 = vmatprep.mubr.f32.mxu0 0.0
      %7395 = vmatmul.mubr.f32.gmra.mrb[0].mxu0 %v6940
      %v7396 = vpop.f32.mrb[0].mxu0
      %v7397 = vadd.f32 0.0, %v7396
      %v7398 = vpop.f32.mrb[0].mxu0
      %7399 = vmatprep.mubr.f32.mxu0 0.0
      %7400 = vmatmul.mubr.f32.gmra.mrb[0].mxu0 %v6943
      %v7401 = vpop.f32.mrb[0].mxu0
      %v7402 = vadd.f32 0.0, %v7401
      %v7403 = vpop.f32.mrb[0].mxu0
      %7404 = vmatprep.mubr.f32.mxu0 0.0
      %7405 = vmatmul.mubr.f32.gmra.mrb[0].mxu0 %v6946
      %v7406 = vpop.f32.mrb[0].mxu0
      %v7407 = vadd.f32 0.0, %v7406
      %v7408 = vpop.f32.mrb[0].mxu0
      %7409 = vmatprep.mubr.f32.mxu0 0.0
      %7410 = vmatmul.mubr.f32.gmra.mrb[0].mxu0 %v6949
      %v7411 = vpop.f32.mrb[0].mxu0
      %v7412 = vadd.f32 0.0, %v7411
      %v7413 = vpop.f32.mrb[0].mxu0
      %7414 = vmatprep.mubr.f32.mxu0 0.0
      %7415 = vmatmul.mubr.f32.gmra.mrb[0].mxu0 %v6952
      %v7416 = vpop.f32.mrb[0].mxu0
      %v7417 = vadd.f32 0.0, %v7416
      %v7418 = vpop.f32.mrb[0].mxu0
      %7419 = vmatprep.mubr.f32.mxu0 0.0
      %7420 = vmatmul.mubr.f32.gmra.mrb[0].mxu0 %v6955
      %v7421 = vpop.f32.mrb[0].mxu0
      %v7422 = vadd.f32 0.0, %v7421
      %v7423 = vpop.f32.mrb[0].mxu0
      %7424 = vmatprep.mubr.f32.mxu0 0.0
      %7425 = vmatmul.mubr.f32.gmra.mrb[0].mxu0 %v6958
      %v7426 = vpop.f32.mrb[0].mxu0
      %v7427 = vadd.f32 0.0, %v7426
      %v7428 = vpop.f32.mrb[0].mxu0
      %7429 = vmatprep.mubr.f32.mxu0 0.0
      %7430 = vmatmul.mubr.f32.gmra.mrb[0].mxu0 %v6961
      %v7431 = vpop.f32.mrb[0].mxu0
      %v7432 = vadd.f32 0.0, %v7431
      %v7433 = vpop.f32.mrb[0].mxu0
      %7434 = vmatprep.mubr.f32.mxu0 0.0
      %7435 = vmatmul.mubr.f32.gmra.mrb[0].mxu0 %v6964
      %v7436 = vpop.f32.mrb[0].mxu0
      %v7437 = vadd.f32 0.0, %v7436
      %v7438 = vpop.f32.mrb[0].mxu0
      %7439 = vmatprep.mubr.f32.mxu0 0.0
      %7440 = vmatmul.mubr.f32.gmra.mrb[0].mxu0 %v6967
      %v7441 = vpop.f32.mrb[0].mxu0
      %v7442 = vadd.f32 0.0, %v7441
      %v7443 = vpop.f32.mrb[0].mxu0
      %7444 = vmatprep.mubr.f32.mxu0 0.0
      %7445 = vmatmul.mubr.f32.gmra.mrb[0].mxu0 %v6970
      %v7446 = vpop.f32.mrb[0].mxu0
      %v7447 = vadd.f32 0.0, %v7446
      %v7448 = vpop.f32.mrb[0].mxu0
      %7449 = vmatprep.mubr.f32.mxu0 0.0
      %7450 = vmatmul.mubr.f32.gmra.mrb[0].mxu0 %v6973
      %v7451 = vpop.f32.mrb[0].mxu0
      %v7452 = vadd.f32 0.0, %v7451
      %v7453 = vpop.f32.mrb[0].mxu0
      %7454 = vmatprep.mubr.f32.mxu0 0.0
      %7455 = vmatmul.mubr.f32.gmra.mrb[0].mxu0 %v6976
      %v7456 = vpop.f32.mrb[0].mxu0
      %v7457 = vadd.f32 0.0, %v7456
      %v7458 = vpop.f32.mrb[0].mxu0
      %7459 = vdwg.mxu0
      %v7460 = vadd.f32 %v7299, %v7382
      %v7461 = vadd.f32 %v7300, %v7387
      %v7462 = vadd.f32 %v7301, %v7392
      %v7463 = vadd.f32 %v7302, %v7397
      %v7464 = vadd.f32 %v7303, %v7402
      %v7465 = vadd.f32 %v7304, %v7407
      %v7466 = vadd.f32 %v7305, %v7412
      %v7467 = vadd.f32 %v7306, %v7417
      %v7468 = vadd.f32 %v7307, %v7422
      %v7469 = vadd.f32 %v7308, %v7427
      %v7470 = vadd.f32 %v7309, %v7432
      %v7471 = vadd.f32 %v7310, %v7437
      %v7472 = vadd.f32 %v7311, %v7442
      %v7473 = vadd.f32 %v7312, %v7447
      %v7474 = vadd.f32 %v7313, %v7452
      %v7475 = vadd.f32 %v7314, %v7457
      %v7476 = vrot.slane %v6365, 2
      %v7477 = vrot.slane %v6366, 2
      %v7478 = vsel %vm2590, %v7476, %v7477
      %v7479 = vrot.slane %v6367, 2
      %v7480 = vrot.slane %v6368, 2
      %v7481 = vsel %vm2590, %v7479, %v7480
      %v7482 = vrot.slane %v6369, 2
      %v7483 = vrot.slane %v6370, 2
      %v7484 = vsel %vm2590, %v7482, %v7483
      %v7485 = vrot.slane %v6371, 2
      %v7486 = vrot.slane %v6372, 2
      %v7487 = vsel %vm2590, %v7485, %v7486
      %v7488 = vrot.slane %v6373, 2
      %v7489 = vrot.slane %v6374, 2
      %v7490 = vsel %vm2590, %v7488, %v7489
      %v7491 = vrot.slane %v6375, 2
      %v7492 = vrot.slane %v6376, 2
      %v7493 = vsel %vm2590, %v7491, %v7492
      %v7494 = vrot.slane %v6377, 2
      %v7495 = vrot.slane %v6378, 2
      %v7496 = vsel %vm2590, %v7494, %v7495
      %v7497 = vrot.slane %v6379, 2
      %v7498 = vrot.slane %v6380, 2
      %v7499 = vsel %vm2590, %v7497, %v7498
      %v7500 = vrot.slane %v6381, 2
      %v7501 = vrot.slane %v6382, 2
      %v7502 = vsel %vm2590, %v7500, %v7501
      %v7503 = vrot.slane %v6383, 2
      %v7504 = vrot.slane %v6384, 2
      %v7505 = vsel %vm2590, %v7503, %v7504
      %v7506 = vrot.slane %v6385, 2
      %v7507 = vrot.slane %v6386, 2
      %v7508 = vsel %vm2590, %v7506, %v7507
      %v7509 = vrot.slane %v6387, 2
      %v7510 = vrot.slane %v6388, 2
      %v7511 = vsel %vm2590, %v7509, %v7510
      %v7512 = vrot.slane %v6389, 2
      %v7513 = vrot.slane %v6390, 2
      %v7514 = vsel %vm2590, %v7512, %v7513
      %v7515 = vrot.slane %v6391, 2
      %v7516 = vrot.slane %v6392, 2
      %v7517 = vsel %vm2590, %v7515, %v7516
      %v7518 = vrot.slane %v6393, 2
      %v7519 = vrot.slane %v6394, 2
      %v7520 = vsel %vm2590, %v7518, %v7519
      %v7521 = vrot.slane %v6395, 2
      %v7522 = vrot.slane %v6396, 2
      %v7523 = vsel %vm2590, %v7521, %v7522
      %7540 = vmatprep.subr.mxu0 0.0
      %7541 = vmatpush1.msra.mxu0 %v6463
      %7542 = vmatprep.subr.mxu0 0.0
      %7543 = vmatpush1.msra.mxu0 %v6464
      %7544 = vmatprep.subr.mxu0 0.0
      %7545 = vmatpush1.msra.mxu0 %v6465
      %7546 = vmatprep.subr.mxu0 0.0
      %7547 = vmatpush1.msra.mxu0 %v6466
      %7548 = vmatprep.subr.mxu0 0.0
      %7549 = vmatpush1.msra.mxu0 %v6467
      %7550 = vmatprep.subr.mxu0 0.0
      %7551 = vmatpush1.msra.mxu0 %v6468
      %7552 = vmatprep.subr.mxu0 0.0
      %7553 = vmatpush1.msra.mxu0 %v6469
      %7554 = vmatprep.subr.mxu0 0.0
      %7555 = vmatpush1.msra.mxu0 %v6470
      %7556 = vmatprep.subr.mxu0 0.0
      %7557 = vmatpush1.msra.mxu0 %v6471
      %7558 = vmatprep.subr.mxu0 0.0
      %7559 = vmatpush1.msra.mxu0 %v6472
      %7560 = vmatprep.subr.mxu0 0.0
      %7561 = vmatpush1.msra.mxu0 %v6473
      %7562 = vmatprep.subr.mxu0 0.0
      %7563 = vmatpush1.msra.mxu0 %v6474
      %7564 = vmatprep.subr.mxu0 0.0
      %7565 = vmatpush1.msra.mxu0 %v6475
      %7566 = vmatprep.subr.mxu0 0.0
      %7567 = vmatpush1.msra.mxu0 %v6476
      %7568 = vmatprep.subr.mxu0 0.0
      %7569 = vmatpush1.msra.mxu0 %v6477
      %7570 = vmatprep.subr.mxu0 0.0
      %7571 = vmatpush1.msra.mxu0 %v6478
      %7572 = vmatprep.subr.mxu0 0.0
      %7573 = vmatpush1.msra.mxu0 0.0
      %7574 = vmatprep.subr.mxu0 0.0
      %7575 = vmatpush1.msra.mxu0 0.0
      %7576 = vmatprep.subr.mxu0 0.0
      %7577 = vmatpush1.msra.mxu0 0.0
      %7578 = vmatprep.subr.mxu0 0.0
      %7579 = vmatpush1.msra.mxu0 0.0
      %7580 = vmatprep.subr.mxu0 0.0
      %7581 = vmatpush1.msra.mxu0 0.0
      %7582 = vmatprep.subr.mxu0 0.0
      %7583 = vmatpush1.msra.mxu0 0.0
      %7584 = vmatprep.subr.mxu0 0.0
      %7585 = vmatpush1.msra.mxu0 0.0
      %7586 = vmatprep.subr.mxu0 0.0
      %7587 = vmatpush1.msra.mxu0 0.0
      %7588 = vmatprep.subr.mxu0 0.0
      %7589 = vmatpush1.msra.mxu0 0.0
      %7590 = vmatprep.subr.mxu0 0.0
      %7591 = vmatpush1.msra.mxu0 0.0
      %7592 = vmatprep.subr.mxu0 0.0
      %7593 = vmatpush1.msra.mxu0 0.0
      %7594 = vmatprep.subr.mxu0 0.0
      %7595 = vmatpush1.msra.mxu0 0.0
      %7596 = vmatprep.subr.mxu0 0.0
      %7597 = vmatpush1.msra.mxu0 0.0
      %7598 = vmatprep.subr.mxu0 0.0
      %7599 = vmatpush1.msra.mxu0 0.0
      %7600 = vmatprep.subr.mxu0 0.0
      %7601 = vmatpush1.msra.mxu0 0.0
      %7602 = vmatprep.subr.mxu0 0.0
      %7603 = vmatpush1.msra.mxu0 0.0
      %7604 = vmatprep.mubr.f32.mxu0 0.0
      %7605 = vmatmul.mubr.f32.gmra.mrb[0].mxu0 %v7478
      %v7606 = vpop.f32.mrb[0].mxu0
      %v7607 = vadd.f32 0.0, %v7606
      %v7608 = vpop.f32.mrb[0].mxu0
      %7609 = vmatprep.mubr.f32.mxu0 0.0
      %7610 = vmatmul.mubr.f32.gmra.mrb[0].mxu0 %v7481
      %v7611 = vpop.f32.mrb[0].mxu0
      %v7612 = vadd.f32 0.0, %v7611
      %v7613 = vpop.f32.mrb[0].mxu0
      %7614 = vmatprep.mubr.f32.mxu0 0.0
      %7615 = vmatmul.mubr.f32.gmra.mrb[0].mxu0 %v7484
      %v7616 = vpop.f32.mrb[0].mxu0
      %v7617 = vadd.f32 0.0, %v7616
      %v7618 = vpop.f32.mrb[0].mxu0
      %7619 = vmatprep.mubr.f32.mxu0 0.0
      %7620 = vmatmul.mubr.f32.gmra.mrb[0].mxu0 %v7487
      %v7621 = vpop.f32.mrb[0].mxu0
      %v7622 = vadd.f32 0.0, %v7621
      %v7623 = vpop.f32.mrb[0].mxu0
      %7624 = vmatprep.mubr.f32.mxu0 0.0
      %7625 = vmatmul.mubr.f32.gmra.mrb[0].mxu0 %v7490
      %v7626 = vpop.f32.mrb[0].mxu0
      %v7627 = vadd.f32 0.0, %v7626
      %v7628 = vpop.f32.mrb[0].mxu0
      %7629 = vmatprep.mubr.f32.mxu0 0.0
      %7630 = vmatmul.mubr.f32.gmra.mrb[0].mxu0 %v7493
      %v7631 = vpop.f32.mrb[0].mxu0
      %v7632 = vadd.f32 0.0, %v7631
      %v7633 = vpop.f32.mrb[0].mxu0
      %7634 = vmatprep.mubr.f32.mxu0 0.0
      %7635 = vmatmul.mubr.f32.gmra.mrb[0].mxu0 %v7496
      %v7636 = vpop.f32.mrb[0].mxu0
      %v7637 = vadd.f32 0.0, %v7636
      %v7638 = vpop.f32.mrb[0].mxu0
      %7639 = vmatprep.mubr.f32.mxu0 0.0
      %7640 = vmatmul.mubr.f32.gmra.mrb[0].mxu0 %v7499
      %v7641 = vpop.f32.mrb[0].mxu0
      %v7642 = vadd.f32 0.0, %v7641
      %v7643 = vpop.f32.mrb[0].mxu0
      %7644 = vmatprep.mubr.f32.mxu0 0.0
      %7645 = vmatmul.mubr.f32.gmra.mrb[0].mxu0 %v7502
      %v7646 = vpop.f32.mrb[0].mxu0
      %v7647 = vadd.f32 0.0, %v7646
      %v7648 = vpop.f32.mrb[0].mxu0
      %7649 = vmatprep.mubr.f32.mxu0 0.0
      %7650 = vmatmul.mubr.f32.gmra.mrb[0].mxu0 %v7505
      %v7651 = vpop.f32.mrb[0].mxu0
      %v7652 = vadd.f32 0.0, %v7651
      %v7653 = vpop.f32.mrb[0].mxu0
      %7654 = vmatprep.mubr.f32.mxu0 0.0
      %7655 = vmatmul.mubr.f32.gmra.mrb[0].mxu0 %v7508
      %v7656 = vpop.f32.mrb[0].mxu0
      %v7657 = vadd.f32 0.0, %v7656
      %v7658 = vpop.f32.mrb[0].mxu0
      %7659 = vmatprep.mubr.f32.mxu0 0.0
      %7660 = vmatmul.mubr.f32.gmra.mrb[0].mxu0 %v7511
      %v7661 = vpop.f32.mrb[0].mxu0
      %v7662 = vadd.f32 0.0, %v7661
      %v7663 = vpop.f32.mrb[0].mxu0
      %7664 = vmatprep.mubr.f32.mxu0 0.0
      %7665 = vmatmul.mubr.f32.gmra.mrb[0].mxu0 %v7514
      %v7666 = vpop.f32.mrb[0].mxu0
      %v7667 = vadd.f32 0.0, %v7666
      %v7668 = vpop.f32.mrb[0].mxu0
      %7669 = vmatprep.mubr.f32.mxu0 0.0
      %7670 = vmatmul.mubr.f32.gmra.mrb[0].mxu0 %v7517
      %v7671 = vpop.f32.mrb[0].mxu0
      %v7672 = vadd.f32 0.0, %v7671
      %v7673 = vpop.f32.mrb[0].mxu0
      %7674 = vmatprep.mubr.f32.mxu0 0.0
      %7675 = vmatmul.mubr.f32.gmra.mrb[0].mxu0 %v7520
      %v7676 = vpop.f32.mrb[0].mxu0
      %v7677 = vadd.f32 0.0, %v7676
      %v7678 = vpop.f32.mrb[0].mxu0
      %7679 = vmatprep.mubr.f32.mxu0 0.0
      %7680 = vmatmul.mubr.f32.gmra.mrb[0].mxu0 %v7523
      %v7681 = vpop.f32.mrb[0].mxu0
      %v7682 = vadd.f32 0.0, %v7681
      %v7683 = vpop.f32.mrb[0].mxu0
      %7684 = vdwg.mxu0
      %v7685 = vadd.f32 %v7460, %v7607
      %v7686 = vadd.f32 %v7461, %v7612
      %v7687 = vadd.f32 %v7462, %v7617
      %v7688 = vadd.f32 %v7463, %v7622
      %v7689 = vadd.f32 %v7464, %v7627
      %v7690 = vadd.f32 %v7465, %v7632
      %v7691 = vadd.f32 %v7466, %v7637
      %v7692 = vadd.f32 %v7467, %v7642
      %v7693 = vadd.f32 %v7468, %v7647
      %v7694 = vadd.f32 %v7469, %v7652
      %v7695 = vadd.f32 %v7470, %v7657
      %v7696 = vadd.f32 %v7471, %v7662
      %v7697 = vadd.f32 %v7472, %v7667
      %v7698 = vadd.f32 %v7473, %v7672
      %v7699 = vadd.f32 %v7474, %v7677
      %v7700 = vadd.f32 %v7475, %v7682
      %v7701 = vld [vmem:[%s6324] sm:$0xff]
      %v7702 = vld [vmem:[%s6324 + $0x8] sm:$0x3]
      %v7703 = vld [vmem:[%s6324 + $0x10] sm:$0xff]
      %v7704 = vld [vmem:[%s6324 + $0x18] sm:$0x3]
      %v7705 = vld [vmem:[%s6324 + $0x20] sm:$0xff]
      %v7706 = vld [vmem:[%s6324 + $0x28] sm:$0x3]
      %v7707 = vld [vmem:[%s6324 + $0x30] sm:$0xff]
      %v7708 = vld [vmem:[%s6324 + $0x38] sm:$0x3]
      %v7709 = vld [vmem:[%s6324 + $0x40] sm:$0xff]
      %v7710 = vld [vmem:[%s6324 + $0x48] sm:$0x3]
      %v7711 = vld [vmem:[%s6324 + $0x50] sm:$0xff]
      %v7712 = vld [vmem:[%s6324 + $0x58] sm:$0x3]
      %v7713 = vld [vmem:[%s6324 + $0x60] sm:$0xff]
      %v7714 = vld [vmem:[%s6324 + $0x68] sm:$0x3]
      %v7715 = vld [vmem:[%s6324 + $0x70] sm:$0xff]
      %v7716 = vld [vmem:[%s6324 + $0x78] sm:$0x3]
      %v7717 = vld [vmem:[%s6324 + $0x80] sm:$0xff]
      %v7718 = vld [vmem:[%s6324 + $0x88] sm:$0x3]
      %v7719 = vld [vmem:[%s6324 + $0x90] sm:$0xff]
      %v7720 = vld [vmem:[%s6324 + $0x98] sm:$0x3]
      %v7721 = vld [vmem:[%s6324 + $0xa0] sm:$0xff]
      %v7722 = vld [vmem:[%s6324 + $0xa8] sm:$0x3]
      %v7723 = vld [vmem:[%s6324 + $0xb0] sm:$0xff]
      %v7724 = vld [vmem:[%s6324 + $0xb8] sm:$0x3]
      %v7725 = vld [vmem:[%s6324 + $0xc0] sm:$0xff]
      %v7726 = vld [vmem:[%s6324 + $0xc8] sm:$0x3]
      %v7727 = vld [vmem:[%s6324 + $0xd0] sm:$0xff]
      %v7728 = vld [vmem:[%s6324 + $0xd8] sm:$0x3]
      %v7729 = vld [vmem:[%s6324 + $0xe0] sm:$0xff]
      %v7730 = vld [vmem:[%s6324 + $0xe8] sm:$0x3]
      %v7731 = vld [vmem:[%s6324 + $0xf0] sm:$0xff]
      %v7732 = vld [vmem:[%s6324 + $0xf8] sm:$0x3]
      %v7733 = vld [vmem:[%s6341] sm:$0xff]
      %v7734 = vld [vmem:[%s6341 + $0x8] sm:$0x3]
      %v7735 = vld [vmem:[%s6341 + $0x10] sm:$0xff]
      %v7736 = vld [vmem:[%s6341 + $0x18] sm:$0x3]
      %v7737 = vld [vmem:[%s6341 + $0x20] sm:$0xff]
      %v7738 = vld [vmem:[%s6341 + $0x28] sm:$0x3]
      %v7739 = vld [vmem:[%s6341 + $0x30] sm:$0xff]
      %v7740 = vld [vmem:[%s6341 + $0x38] sm:$0x3]
      %v7741 = vld [vmem:[%s6341 + $0x40] sm:$0xff]
      %v7742 = vld [vmem:[%s6341 + $0x48] sm:$0x3]
      %v7743 = vld [vmem:[%s6341 + $0x50] sm:$0xff]
      %v7744 = vld [vmem:[%s6341 + $0x58] sm:$0x3]
      %v7745 = vld [vmem:[%s6341 + $0x60] sm:$0xff]
      %v7746 = vld [vmem:[%s6341 + $0x68] sm:$0x3]
      %v7747 = vld [vmem:[%s6341 + $0x70] sm:$0xff]
      %v7748 = vld [vmem:[%s6341 + $0x78] sm:$0x3]
      %v7749 = vld [vmem:[%s6341 + $0x80] sm:$0xff]
      %v7750 = vld [vmem:[%s6341 + $0x88] sm:$0x3]
      %v7751 = vld [vmem:[%s6341 + $0x90] sm:$0xff]
      %v7752 = vld [vmem:[%s6341 + $0x98] sm:$0x3]
      %v7753 = vld [vmem:[%s6341 + $0xa0] sm:$0xff]
      %v7754 = vld [vmem:[%s6341 + $0xa8] sm:$0x3]
      %v7755 = vld [vmem:[%s6341 + $0xb0] sm:$0xff]
      %v7756 = vld [vmem:[%s6341 + $0xb8] sm:$0x3]
      %v7757 = vld [vmem:[%s6341 + $0xc0] sm:$0xff]
      %v7758 = vld [vmem:[%s6341 + $0xc8] sm:$0x3]
      %v7759 = vld [vmem:[%s6341 + $0xd0] sm:$0xff]
      %v7760 = vld [vmem:[%s6341 + $0xd8] sm:$0x3]
      %v7761 = vld [vmem:[%s6341 + $0xe0] sm:$0xff]
      %v7762 = vld [vmem:[%s6341 + $0xe8] sm:$0x3]
      %v7763 = vld [vmem:[%s6341 + $0xf0] sm:$0xff]
      %v7764 = vld [vmem:[%s6341 + $0xf8] sm:$0x3]
      %s7765 = scalar_lea.vmem %s6, 384
      %v7766 = vld [vmem:[%s7765] sm:$0xff]
      %v7767 = vld [vmem:[%s7765 + $0x8] sm:$0xff]
      %v7768 = vld [vmem:[%s7765 + $0x10] sm:$0xff]
      %v7769 = vld [vmem:[%s7765 + $0x18] sm:$0xff]
      %v7770 = vld [vmem:[%s7765 + $0x20] sm:$0xff]
      %v7771 = vld [vmem:[%s7765 + $0x28] sm:$0xff]
      %v7772 = vld [vmem:[%s7765 + $0x30] sm:$0xff]
      %v7773 = vld [vmem:[%s7765 + $0x38] sm:$0xff]
      %v7774 = vld [vmem:[%s7765 + $0x40] sm:$0xff]
      %v7775 = vld [vmem:[%s7765 + $0x48] sm:$0xff]
      %v7776 = vld [vmem:[%s7765 + $0x50] sm:$0xff]
      %v7777 = vld [vmem:[%s7765 + $0x58] sm:$0xff]
      %v7778 = vld [vmem:[%s7765 + $0x60] sm:$0xff]
      %v7779 = vld [vmem:[%s7765 + $0x68] sm:$0xff]
      %v7780 = vld [vmem:[%s7765 + $0x70] sm:$0xff]
      %v7781 = vld [vmem:[%s7765 + $0x78] sm:$0xff]
      %s7782 = scalar_lea.vmem %s6, 512
      %v7783 = vld [vmem:[%s7782] sm:$0xff]
      %v7784 = vld [vmem:[%s7782 + $0x8] sm:$0xff]
      %v7785 = vld [vmem:[%s7782 + $0x10] sm:$0xff]
      %v7786 = vld [vmem:[%s7782 + $0x18] sm:$0xff]
      %v7787 = vld [vmem:[%s7782 + $0x20] sm:$0xff]
      %v7788 = vld [vmem:[%s7782 + $0x28] sm:$0xff]
      %v7789 = vld [vmem:[%s7782 + $0x30] sm:$0xff]
      %v7790 = vld [vmem:[%s7782 + $0x38] sm:$0xff]
      %v7791 = vld [vmem:[%s7782 + $0x40] sm:$0xff]
      %v7792 = vld [vmem:[%s7782 + $0x48] sm:$0xff]
      %v7793 = vld [vmem:[%s7782 + $0x50] sm:$0xff]
      %v7794 = vld [vmem:[%s7782 + $0x58] sm:$0xff]
      %v7795 = vld [vmem:[%s7782 + $0x60] sm:$0xff]
      %v7796 = vld [vmem:[%s7782 + $0x68] sm:$0xff]
      %v7797 = vld [vmem:[%s7782 + $0x70] sm:$0xff]
      %v7798 = vld [vmem:[%s7782 + $0x78] sm:$0xff]
      %s7799 = scalar_lea.vmem %s6, 640
      %v7800 = vld [vmem:[%s7799] sm:$0xff]
      %v7801 = vld [vmem:[%s7799 + $0x8] sm:$0xff]
      %v7802 = vld [vmem:[%s7799 + $0x10] sm:$0xff]
      %v7803 = vld [vmem:[%s7799 + $0x18] sm:$0xff]
      %v7804 = vld [vmem:[%s7799 + $0x20] sm:$0xff]
      %v7805 = vld [vmem:[%s7799 + $0x28] sm:$0xff]
      %v7806 = vld [vmem:[%s7799 + $0x30] sm:$0xff]
      %v7807 = vld [vmem:[%s7799 + $0x38] sm:$0xff]
      %v7808 = vld [vmem:[%s7799 + $0x40] sm:$0xff]
      %v7809 = vld [vmem:[%s7799 + $0x48] sm:$0xff]
      %v7810 = vld [vmem:[%s7799 + $0x50] sm:$0xff]
      %v7811 = vld [vmem:[%s7799 + $0x58] sm:$0xff]
      %v7812 = vld [vmem:[%s7799 + $0x60] sm:$0xff]
      %v7813 = vld [vmem:[%s7799 + $0x68] sm:$0xff]
      %v7814 = vld [vmem:[%s7799 + $0x70] sm:$0xff]
      %v7815 = vld [vmem:[%s7799 + $0x78] sm:$0xff]
      %7816 = vmatprep.subr.mxu0 0.0
      %7817 = vmatpush1.msra.mxu0 %v7766
      %7818 = vmatprep.subr.mxu0 0.0
      %7819 = vmatpush1.msra.mxu0 %v7767
      %7820 = vmatprep.subr.mxu0 0.0
      %7821 = vmatpush1.msra.mxu0 %v7768
      %7822 = vmatprep.subr.mxu0 0.0
      %7823 = vmatpush1.msra.mxu0 %v7769
      %7824 = vmatprep.subr.mxu0 0.0
      %7825 = vmatpush1.msra.mxu0 %v7770
      %7826 = vmatprep.subr.mxu0 0.0
      %7827 = vmatpush1.msra.mxu0 %v7771
      %7828 = vmatprep.subr.mxu0 0.0
      %7829 = vmatpush1.msra.mxu0 %v7772
      %7830 = vmatprep.subr.mxu0 0.0
      %7831 = vmatpush1.msra.mxu0 %v7773
      %7832 = vmatprep.subr.mxu0 0.0
      %7833 = vmatpush1.msra.mxu0 %v7774
      %7834 = vmatprep.subr.mxu0 0.0
      %7835 = vmatpush1.msra.mxu0 %v7775
      %7836 = vmatprep.subr.mxu0 0.0
      %7837 = vmatpush1.msra.mxu0 %v7776
      %7838 = vmatprep.subr.mxu0 0.0
      %7839 = vmatpush1.msra.mxu0 %v7777
      %7840 = vmatprep.subr.mxu0 0.0
      %7841 = vmatpush1.msra.mxu0 %v7778
      %7842 = vmatprep.subr.mxu0 0.0
      %7843 = vmatpush1.msra.mxu0 %v7779
      %7844 = vmatprep.subr.mxu0 0.0
      %7845 = vmatpush1.msra.mxu0 %v7780
      %7846 = vmatprep.subr.mxu0 0.0
      %7847 = vmatpush1.msra.mxu0 %v7781
      %7848 = vmatprep.subr.mxu0 0.0
      %7849 = vmatpush1.msra.mxu0 0.0
      %7850 = vmatprep.subr.mxu0 0.0
      %7851 = vmatpush1.msra.mxu0 0.0
      %7852 = vmatprep.subr.mxu0 0.0
      %7853 = vmatpush1.msra.mxu0 0.0
      %7854 = vmatprep.subr.mxu0 0.0
      %7855 = vmatpush1.msra.mxu0 0.0
      %7856 = vmatprep.subr.mxu0 0.0
      %7857 = vmatpush1.msra.mxu0 0.0
      %7858 = vmatprep.subr.mxu0 0.0
      %7859 = vmatpush1.msra.mxu0 0.0
      %7860 = vmatprep.subr.mxu0 0.0
      %7861 = vmatpush1.msra.mxu0 0.0
      %7862 = vmatprep.subr.mxu0 0.0
      %7863 = vmatpush1.msra.mxu0 0.0
      %7864 = vmatprep.subr.mxu0 0.0
      %7865 = vmatpush1.msra.mxu0 0.0
      %7866 = vmatprep.subr.mxu0 0.0
      %7867 = vmatpush1.msra.mxu0 0.0
      %7868 = vmatprep.subr.mxu0 0.0
      %7869 = vmatpush1.msra.mxu0 0.0
      %7870 = vmatprep.subr.mxu0 0.0
      %7871 = vmatpush1.msra.mxu0 0.0
      %7872 = vmatprep.subr.mxu0 0.0
      %7873 = vmatpush1.msra.mxu0 0.0
      %7874 = vmatprep.subr.mxu0 0.0
      %7875 = vmatpush1.msra.mxu0 0.0
      %7876 = vmatprep.subr.mxu0 0.0
      %7877 = vmatpush1.msra.mxu0 0.0
      %7878 = vmatprep.subr.mxu0 0.0
      %7879 = vmatpush1.msra.mxu0 0.0
      %7880 = vmatprep.mubr.f32.mxu0 0.0
      %7881 = vmatmul.mubr.f32.gmra.mrb[0].mxu0 %v7733
      %v7882 = vpop.f32.mrb[0].mxu0
      %v7883 = vadd.f32 0.0, %v7882
      %v7884 = vpop.f32.mrb[0].mxu0
      %7885 = vmatprep.mubr.f32.mxu0 0.0
      %7886 = vmatmul.mubr.f32.gmra.mrb[0].mxu0 %v7735
      %v7887 = vpop.f32.mrb[0].mxu0
      %v7888 = vadd.f32 0.0, %v7887
      %v7889 = vpop.f32.mrb[0].mxu0
      %7890 = vmatprep.mubr.f32.mxu0 0.0
      %7891 = vmatmul.mubr.f32.gmra.mrb[0].mxu0 %v7737
      %v7892 = vpop.f32.mrb[0].mxu0
      %v7893 = vadd.f32 0.0, %v7892
      %v7894 = vpop.f32.mrb[0].mxu0
      %7895 = vmatprep.mubr.f32.mxu0 0.0
      %7896 = vmatmul.mubr.f32.gmra.mrb[0].mxu0 %v7739
      %v7897 = vpop.f32.mrb[0].mxu0
      %v7898 = vadd.f32 0.0, %v7897
      %v7899 = vpop.f32.mrb[0].mxu0
      %7900 = vmatprep.mubr.f32.mxu0 0.0
      %7901 = vmatmul.mubr.f32.gmra.mrb[0].mxu0 %v7741
      %v7902 = vpop.f32.mrb[0].mxu0
      %v7903 = vadd.f32 0.0, %v7902
      %v7904 = vpop.f32.mrb[0].mxu0
      %7905 = vmatprep.mubr.f32.mxu0 0.0
      %7906 = vmatmul.mubr.f32.gmra.mrb[0].mxu0 %v7743
      %v7907 = vpop.f32.mrb[0].mxu0
      %v7908 = vadd.f32 0.0, %v7907
      %v7909 = vpop.f32.mrb[0].mxu0
      %7910 = vmatprep.mubr.f32.mxu0 0.0
      %7911 = vmatmul.mubr.f32.gmra.mrb[0].mxu0 %v7745
      %v7912 = vpop.f32.mrb[0].mxu0
      %v7913 = vadd.f32 0.0, %v7912
      %v7914 = vpop.f32.mrb[0].mxu0
      %7915 = vmatprep.mubr.f32.mxu0 0.0
      %7916 = vmatmul.mubr.f32.gmra.mrb[0].mxu0 %v7747
      %v7917 = vpop.f32.mrb[0].mxu0
      %v7918 = vadd.f32 0.0, %v7917
      %v7919 = vpop.f32.mrb[0].mxu0
      %7920 = vmatprep.mubr.f32.mxu0 0.0
      %7921 = vmatmul.mubr.f32.gmra.mrb[0].mxu0 %v7749
      %v7922 = vpop.f32.mrb[0].mxu0
      %v7923 = vadd.f32 0.0, %v7922
      %v7924 = vpop.f32.mrb[0].mxu0
      %7925 = vmatprep.mubr.f32.mxu0 0.0
      %7926 = vmatmul.mubr.f32.gmra.mrb[0].mxu0 %v7751
      %v7927 = vpop.f32.mrb[0].mxu0
      %v7928 = vadd.f32 0.0, %v7927
      %v7929 = vpop.f32.mrb[0].mxu0
      %7930 = vmatprep.mubr.f32.mxu0 0.0
      %7931 = vmatmul.mubr.f32.gmra.mrb[0].mxu0 %v7753
      %v7932 = vpop.f32.mrb[0].mxu0
      %v7933 = vadd.f32 0.0, %v7932
      %v7934 = vpop.f32.mrb[0].mxu0
      %7935 = vmatprep.mubr.f32.mxu0 0.0
      %7936 = vmatmul.mubr.f32.gmra.mrb[0].mxu0 %v7755
      %v7937 = vpop.f32.mrb[0].mxu0
      %v7938 = vadd.f32 0.0, %v7937
      %v7939 = vpop.f32.mrb[0].mxu0
      %7940 = vmatprep.mubr.f32.mxu0 0.0
      %7941 = vmatmul.mubr.f32.gmra.mrb[0].mxu0 %v7757
      %v7942 = vpop.f32.mrb[0].mxu0
      %v7943 = vadd.f32 0.0, %v7942
      %v7944 = vpop.f32.mrb[0].mxu0
      %7945 = vmatprep.mubr.f32.mxu0 0.0
      %7946 = vmatmul.mubr.f32.gmra.mrb[0].mxu0 %v7759
      %v7947 = vpop.f32.mrb[0].mxu0
      %v7948 = vadd.f32 0.0, %v7947
      %v7949 = vpop.f32.mrb[0].mxu0
      %7950 = vmatprep.mubr.f32.mxu0 0.0
      %7951 = vmatmul.mubr.f32.gmra.mrb[0].mxu0 %v7761
      %v7952 = vpop.f32.mrb[0].mxu0
      %v7953 = vadd.f32 0.0, %v7952
      %v7954 = vpop.f32.mrb[0].mxu0
      %7955 = vmatprep.mubr.f32.mxu0 0.0
      %7956 = vmatmul.mubr.f32.gmra.mrb[0].mxu0 %v7763
      %v7957 = vpop.f32.mrb[0].mxu0
      %v7958 = vadd.f32 0.0, %v7957
      %v7959 = vpop.f32.mrb[0].mxu0
      %7960 = vdwg.mxu0
      %v7961 = vadd.f32 %v7138, %v7883
      %v7962 = vadd.f32 %v7139, %v7888
      %v7963 = vadd.f32 %v7140, %v7893
      %v7964 = vadd.f32 %v7141, %v7898
      %v7965 = vadd.f32 %v7142, %v7903
      %v7966 = vadd.f32 %v7143, %v7908
      %v7967 = vadd.f32 %v7144, %v7913
      %v7968 = vadd.f32 %v7145, %v7918
      %v7969 = vadd.f32 %v7146, %v7923
      %v7970 = vadd.f32 %v7147, %v7928
      %v7971 = vadd.f32 %v7148, %v7933
      %v7972 = vadd.f32 %v7149, %v7938
      %v7973 = vadd.f32 %v7150, %v7943
      %v7974 = vadd.f32 %v7151, %v7948
      %v7975 = vadd.f32 %v7152, %v7953
      %v7976 = vadd.f32 %v7153, %v7958
      %v8009 = vrot.slane %v7701, 1
      %v8010 = vrot.slane %v7702, 1
      %v8011 = vsel %vm1625, %v8009, %v8010
      %v8012 = vrot.slane %v7703, 1
      %v8013 = vrot.slane %v7704, 1
      %v8014 = vsel %vm1625, %v8012, %v8013
      %v8015 = vrot.slane %v7705, 1
      %v8016 = vrot.slane %v7706, 1
      %v8017 = vsel %vm1625, %v8015, %v8016
      %v8018 = vrot.slane %v7707, 1
      %v8019 = vrot.slane %v7708, 1
      %v8020 = vsel %vm1625, %v8018, %v8019
      %v8021 = vrot.slane %v7709, 1
      %v8022 = vrot.slane %v7710, 1
      %v8023 = vsel %vm1625, %v8021, %v8022
      %v8024 = vrot.slane %v7711, 1
      %v8025 = vrot.slane %v7712, 1
      %v8026 = vsel %vm1625, %v8024, %v8025
      %v8027 = vrot.slane %v7713, 1
      %v8028 = vrot.slane %v7714, 1
      %v8029 = vsel %vm1625, %v8027, %v8028
      %v8030 = vrot.slane %v7715, 1
      %v8031 = vrot.slane %v7716, 1
      %v8032 = vsel %vm1625, %v8030, %v8031
      %v8033 = vrot.slane %v7717, 1
      %v8034 = vrot.slane %v7718, 1
      %v8035 = vsel %vm1625, %v8033, %v8034
      %v8036 = vrot.slane %v7719, 1
      %v8037 = vrot.slane %v7720, 1
      %v8038 = vsel %vm1625, %v8036, %v8037
      %v8039 = vrot.slane %v7721, 1
      %v8040 = vrot.slane %v7722, 1
      %v8041 = vsel %vm1625, %v8039, %v8040
      %v8042 = vrot.slane %v7723, 1
      %v8043 = vrot.slane %v7724, 1
      %v8044 = vsel %vm1625, %v8042, %v8043
      %v8045 = vrot.slane %v7725, 1
      %v8046 = vrot.slane %v7726, 1
      %v8047 = vsel %vm1625, %v8045, %v8046
      %v8048 = vrot.slane %v7727, 1
      %v8049 = vrot.slane %v7728, 1
      %v8050 = vsel %vm1625, %v8048, %v8049
      %v8051 = vrot.slane %v7729, 1
      %v8052 = vrot.slane %v7730, 1
      %v8053 = vsel %vm1625, %v8051, %v8052
      %v8054 = vrot.slane %v7731, 1
      %v8055 = vrot.slane %v7732, 1
      %v8056 = vsel %vm1625, %v8054, %v8055
      %8073 = vmatprep.subr.mxu0 0.0
      %8074 = vmatpush1.msra.mxu0 %v7783
      %8075 = vmatprep.subr.mxu0 0.0
      %8076 = vmatpush1.msra.mxu0 %v7784
      %8077 = vmatprep.subr.mxu0 0.0
      %8078 = vmatpush1.msra.mxu0 %v7785
      %8079 = vmatprep.subr.mxu0 0.0
      %8080 = vmatpush1.msra.mxu0 %v7786
      %8081 = vmatprep.subr.mxu0 0.0
      %8082 = vmatpush1.msra.mxu0 %v7787
      %8083 = vmatprep.subr.mxu0 0.0
      %8084 = vmatpush1.msra.mxu0 %v7788
      %8085 = vmatprep.subr.mxu0 0.0
      %8086 = vmatpush1.msra.mxu0 %v7789
      %8087 = vmatprep.subr.mxu0 0.0
      %8088 = vmatpush1.msra.mxu0 %v7790
      %8089 = vmatprep.subr.mxu0 0.0
      %8090 = vmatpush1.msra.mxu0 %v7791
      %8091 = vmatprep.subr.mxu0 0.0
      %8092 = vmatpush1.msra.mxu0 %v7792
      %8093 = vmatprep.subr.mxu0 0.0
      %8094 = vmatpush1.msra.mxu0 %v7793
      %8095 = vmatprep.subr.mxu0 0.0
      %8096 = vmatpush1.msra.mxu0 %v7794
      %8097 = vmatprep.subr.mxu0 0.0
      %8098 = vmatpush1.msra.mxu0 %v7795
      %8099 = vmatprep.subr.mxu0 0.0
      %8100 = vmatpush1.msra.mxu0 %v7796
      %8101 = vmatprep.subr.mxu0 0.0
      %8102 = vmatpush1.msra.mxu0 %v7797
      %8103 = vmatprep.subr.mxu0 0.0
      %8104 = vmatpush1.msra.mxu0 %v7798
      %8105 = vmatprep.subr.mxu0 0.0
      %8106 = vmatpush1.msra.mxu0 0.0
      %8107 = vmatprep.subr.mxu0 0.0
      %8108 = vmatpush1.msra.mxu0 0.0
      %8109 = vmatprep.subr.mxu0 0.0
      %8110 = vmatpush1.msra.mxu0 0.0
      %8111 = vmatprep.subr.mxu0 0.0
      %8112 = vmatpush1.msra.mxu0 0.0
      %8113 = vmatprep.subr.mxu0 0.0
      %8114 = vmatpush1.msra.mxu0 0.0
      %8115 = vmatprep.subr.mxu0 0.0
      %8116 = vmatpush1.msra.mxu0 0.0
      %8117 = vmatprep.subr.mxu0 0.0
      %8118 = vmatpush1.msra.mxu0 0.0
      %8119 = vmatprep.subr.mxu0 0.0
      %8120 = vmatpush1.msra.mxu0 0.0
      %8121 = vmatprep.subr.mxu0 0.0
      %8122 = vmatpush1.msra.mxu0 0.0
      %8123 = vmatprep.subr.mxu0 0.0
      %8124 = vmatpush1.msra.mxu0 0.0
      %8125 = vmatprep.subr.mxu0 0.0
      %8126 = vmatpush1.msra.mxu0 0.0
      %8127 = vmatprep.subr.mxu0 0.0
      %8128 = vmatpush1.msra.mxu0 0.0
      %8129 = vmatprep.subr.mxu0 0.0
      %8130 = vmatpush1.msra.mxu0 0.0
      %8131 = vmatprep.subr.mxu0 0.0
      %8132 = vmatpush1.msra.mxu0 0.0
      %8133 = vmatprep.subr.mxu0 0.0
      %8134 = vmatpush1.msra.mxu0 0.0
      %8135 = vmatprep.subr.mxu0 0.0
      %8136 = vmatpush1.msra.mxu0 0.0
      %8137 = vmatprep.mubr.f32.mxu0 0.0
      %8138 = vmatmul.mubr.f32.gmra.mrb[0].mxu0 %v8011
      %v8139 = vpop.f32.mrb[0].mxu0
      %v8140 = vadd.f32 0.0, %v8139
      %v8141 = vpop.f32.mrb[0].mxu0
      %8142 = vmatprep.mubr.f32.mxu0 0.0
      %8143 = vmatmul.mubr.f32.gmra.mrb[0].mxu0 %v8014
      %v8144 = vpop.f32.mrb[0].mxu0
      %v8145 = vadd.f32 0.0, %v8144
      %v8146 = vpop.f32.mrb[0].mxu0
      %8147 = vmatprep.mubr.f32.mxu0 0.0
      %8148 = vmatmul.mubr.f32.gmra.mrb[0].mxu0 %v8017
      %v8149 = vpop.f32.mrb[0].mxu0
      %v8150 = vadd.f32 0.0, %v8149
      %v8151 = vpop.f32.mrb[0].mxu0
      %8152 = vmatprep.mubr.f32.mxu0 0.0
      %8153 = vmatmul.mubr.f32.gmra.mrb[0].mxu0 %v8020
      %v8154 = vpop.f32.mrb[0].mxu0
      %v8155 = vadd.f32 0.0, %v8154
      %v8156 = vpop.f32.mrb[0].mxu0
      %8157 = vmatprep.mubr.f32.mxu0 0.0
      %8158 = vmatmul.mubr.f32.gmra.mrb[0].mxu0 %v8023
      %v8159 = vpop.f32.mrb[0].mxu0
      %v8160 = vadd.f32 0.0, %v8159
      %v8161 = vpop.f32.mrb[0].mxu0
      %8162 = vmatprep.mubr.f32.mxu0 0.0
      %8163 = vmatmul.mubr.f32.gmra.mrb[0].mxu0 %v8026
      %v8164 = vpop.f32.mrb[0].mxu0
      %v8165 = vadd.f32 0.0, %v8164
      %v8166 = vpop.f32.mrb[0].mxu0
      %8167 = vmatprep.mubr.f32.mxu0 0.0
      %8168 = vmatmul.mubr.f32.gmra.mrb[0].mxu0 %v8029
      %v8169 = vpop.f32.mrb[0].mxu0
      %v8170 = vadd.f32 0.0, %v8169
      %v8171 = vpop.f32.mrb[0].mxu0
      %8172 = vmatprep.mubr.f32.mxu0 0.0
      %8173 = vmatmul.mubr.f32.gmra.mrb[0].mxu0 %v8032
      %v8174 = vpop.f32.mrb[0].mxu0
      %v8175 = vadd.f32 0.0, %v8174
      %v8176 = vpop.f32.mrb[0].mxu0
      %8177 = vmatprep.mubr.f32.mxu0 0.0
      %8178 = vmatmul.mubr.f32.gmra.mrb[0].mxu0 %v8035
      %v8179 = vpop.f32.mrb[0].mxu0
      %v8180 = vadd.f32 0.0, %v8179
      %v8181 = vpop.f32.mrb[0].mxu0
      %8182 = vmatprep.mubr.f32.mxu0 0.0
      %8183 = vmatmul.mubr.f32.gmra.mrb[0].mxu0 %v8038
      %v8184 = vpop.f32.mrb[0].mxu0
      %v8185 = vadd.f32 0.0, %v8184
      %v8186 = vpop.f32.mrb[0].mxu0
      %8187 = vmatprep.mubr.f32.mxu0 0.0
      %8188 = vmatmul.mubr.f32.gmra.mrb[0].mxu0 %v8041
      %v8189 = vpop.f32.mrb[0].mxu0
      %v8190 = vadd.f32 0.0, %v8189
      %v8191 = vpop.f32.mrb[0].mxu0
      %8192 = vmatprep.mubr.f32.mxu0 0.0
      %8193 = vmatmul.mubr.f32.gmra.mrb[0].mxu0 %v8044
      %v8194 = vpop.f32.mrb[0].mxu0
      %v8195 = vadd.f32 0.0, %v8194
      %v8196 = vpop.f32.mrb[0].mxu0
      %8197 = vmatprep.mubr.f32.mxu0 0.0
      %8198 = vmatmul.mubr.f32.gmra.mrb[0].mxu0 %v8047
      %v8199 = vpop.f32.mrb[0].mxu0
      %v8200 = vadd.f32 0.0, %v8199
      %v8201 = vpop.f32.mrb[0].mxu0
      %8202 = vmatprep.mubr.f32.mxu0 0.0
      %8203 = vmatmul.mubr.f32.gmra.mrb[0].mxu0 %v8050
      %v8204 = vpop.f32.mrb[0].mxu0
      %v8205 = vadd.f32 0.0, %v8204
      %v8206 = vpop.f32.mrb[0].mxu0
      %8207 = vmatprep.mubr.f32.mxu0 0.0
      %8208 = vmatmul.mubr.f32.gmra.mrb[0].mxu0 %v8053
      %v8209 = vpop.f32.mrb[0].mxu0
      %v8210 = vadd.f32 0.0, %v8209
      %v8211 = vpop.f32.mrb[0].mxu0
      %8212 = vmatprep.mubr.f32.mxu0 0.0
      %8213 = vmatmul.mubr.f32.gmra.mrb[0].mxu0 %v8056
      %v8214 = vpop.f32.mrb[0].mxu0
      %v8215 = vadd.f32 0.0, %v8214
      %v8216 = vpop.f32.mrb[0].mxu0
      %8217 = vdwg.mxu0
      %v8218 = vadd.f32 %v7961, %v8140
      %v8219 = vadd.f32 %v7962, %v8145
      %v8220 = vadd.f32 %v7963, %v8150
      %v8221 = vadd.f32 %v7964, %v8155
      %v8222 = vadd.f32 %v7965, %v8160
      %v8223 = vadd.f32 %v7966, %v8165
      %v8224 = vadd.f32 %v7967, %v8170
      %v8225 = vadd.f32 %v7968, %v8175
      %v8226 = vadd.f32 %v7969, %v8180
      %v8227 = vadd.f32 %v7970, %v8185
      %v8228 = vadd.f32 %v7971, %v8190
      %v8229 = vadd.f32 %v7972, %v8195
      %v8230 = vadd.f32 %v7973, %v8200
      %v8231 = vadd.f32 %v7974, %v8205
      %v8232 = vadd.f32 %v7975, %v8210
      %v8233 = vadd.f32 %v7976, %v8215
      %v8266 = vrot.slane %v7733, 1
      %v8267 = vrot.slane %v7734, 1
      %v8268 = vsel %vm1625, %v8266, %v8267
      %v8269 = vrot.slane %v7735, 1
      %v8270 = vrot.slane %v7736, 1
      %v8271 = vsel %vm1625, %v8269, %v8270
      %v8272 = vrot.slane %v7737, 1
      %v8273 = vrot.slane %v7738, 1
      %v8274 = vsel %vm1625, %v8272, %v8273
      %v8275 = vrot.slane %v7739, 1
      %v8276 = vrot.slane %v7740, 1
      %v8277 = vsel %vm1625, %v8275, %v8276
      %v8278 = vrot.slane %v7741, 1
      %v8279 = vrot.slane %v7742, 1
      %v8280 = vsel %vm1625, %v8278, %v8279
      %v8281 = vrot.slane %v7743, 1
      %v8282 = vrot.slane %v7744, 1
      %v8283 = vsel %vm1625, %v8281, %v8282
      %v8284 = vrot.slane %v7745, 1
      %v8285 = vrot.slane %v7746, 1
      %v8286 = vsel %vm1625, %v8284, %v8285
      %v8287 = vrot.slane %v7747, 1
      %v8288 = vrot.slane %v7748, 1
      %v8289 = vsel %vm1625, %v8287, %v8288
      %v8290 = vrot.slane %v7749, 1
      %v8291 = vrot.slane %v7750, 1
      %v8292 = vsel %vm1625, %v8290, %v8291
      %v8293 = vrot.slane %v7751, 1
      %v8294 = vrot.slane %v7752, 1
      %v8295 = vsel %vm1625, %v8293, %v8294
      %v8296 = vrot.slane %v7753, 1
      %v8297 = vrot.slane %v7754, 1
      %v8298 = vsel %vm1625, %v8296, %v8297
      %v8299 = vrot.slane %v7755, 1
      %v8300 = vrot.slane %v7756, 1
      %v8301 = vsel %vm1625, %v8299, %v8300
      %v8302 = vrot.slane %v7757, 1
      %v8303 = vrot.slane %v7758, 1
      %v8304 = vsel %vm1625, %v8302, %v8303
      %v8305 = vrot.slane %v7759, 1
      %v8306 = vrot.slane %v7760, 1
      %v8307 = vsel %vm1625, %v8305, %v8306
      %v8308 = vrot.slane %v7761, 1
      %v8309 = vrot.slane %v7762, 1
      %v8310 = vsel %vm1625, %v8308, %v8309
      %v8311 = vrot.slane %v7763, 1
      %v8312 = vrot.slane %v7764, 1
      %v8313 = vsel %vm1625, %v8311, %v8312
      %8330 = vmatprep.subr.mxu0 0.0
      %8331 = vmatpush1.msra.mxu0 %v7800
      %8332 = vmatprep.subr.mxu0 0.0
      %8333 = vmatpush1.msra.mxu0 %v7801
      %8334 = vmatprep.subr.mxu0 0.0
      %8335 = vmatpush1.msra.mxu0 %v7802
      %8336 = vmatprep.subr.mxu0 0.0
      %8337 = vmatpush1.msra.mxu0 %v7803
      %8338 = vmatprep.subr.mxu0 0.0
      %8339 = vmatpush1.msra.mxu0 %v7804
      %8340 = vmatprep.subr.mxu0 0.0
      %8341 = vmatpush1.msra.mxu0 %v7805
      %8342 = vmatprep.subr.mxu0 0.0
      %8343 = vmatpush1.msra.mxu0 %v7806
      %8344 = vmatprep.subr.mxu0 0.0
      %8345 = vmatpush1.msra.mxu0 %v7807
      %8346 = vmatprep.subr.mxu0 0.0
      %8347 = vmatpush1.msra.mxu0 %v7808
      %8348 = vmatprep.subr.mxu0 0.0
      %8349 = vmatpush1.msra.mxu0 %v7809
      %8350 = vmatprep.subr.mxu0 0.0
      %8351 = vmatpush1.msra.mxu0 %v7810
      %8352 = vmatprep.subr.mxu0 0.0
      %8353 = vmatpush1.msra.mxu0 %v7811
      %8354 = vmatprep.subr.mxu0 0.0
      %8355 = vmatpush1.msra.mxu0 %v7812
      %8356 = vmatprep.subr.mxu0 0.0
      %8357 = vmatpush1.msra.mxu0 %v7813
      %8358 = vmatprep.subr.mxu0 0.0
      %8359 = vmatpush1.msra.mxu0 %v7814
      %8360 = vmatprep.subr.mxu0 0.0
      %8361 = vmatpush1.msra.mxu0 %v7815
      %8362 = vmatprep.subr.mxu0 0.0
      %8363 = vmatpush1.msra.mxu0 0.0
      %8364 = vmatprep.subr.mxu0 0.0
      %8365 = vmatpush1.msra.mxu0 0.0
      %8366 = vmatprep.subr.mxu0 0.0
      %8367 = vmatpush1.msra.mxu0 0.0
      %8368 = vmatprep.subr.mxu0 0.0
      %8369 = vmatpush1.msra.mxu0 0.0
      %8370 = vmatprep.subr.mxu0 0.0
      %8371 = vmatpush1.msra.mxu0 0.0
      %8372 = vmatprep.subr.mxu0 0.0
      %8373 = vmatpush1.msra.mxu0 0.0
      %8374 = vmatprep.subr.mxu0 0.0
      %8375 = vmatpush1.msra.mxu0 0.0
      %8376 = vmatprep.subr.mxu0 0.0
      %8377 = vmatpush1.msra.mxu0 0.0
      %8378 = vmatprep.subr.mxu0 0.0
      %8379 = vmatpush1.msra.mxu0 0.0
      %8380 = vmatprep.subr.mxu0 0.0
      %8381 = vmatpush1.msra.mxu0 0.0
      %8382 = vmatprep.subr.mxu0 0.0
      %8383 = vmatpush1.msra.mxu0 0.0
      %8384 = vmatprep.subr.mxu0 0.0
      %8385 = vmatpush1.msra.mxu0 0.0
      %8386 = vmatprep.subr.mxu0 0.0
      %8387 = vmatpush1.msra.mxu0 0.0
      %8388 = vmatprep.subr.mxu0 0.0
      %8389 = vmatpush1.msra.mxu0 0.0
      %8390 = vmatprep.subr.mxu0 0.0
      %8391 = vmatpush1.msra.mxu0 0.0
      %8392 = vmatprep.subr.mxu0 0.0
      %8393 = vmatpush1.msra.mxu0 0.0
      %8394 = vmatprep.mubr.f32.mxu0 0.0
      %8395 = vmatmul.mubr.f32.gmra.mrb[0].mxu0 %v8268
      %v8396 = vpop.f32.mrb[0].mxu0
      %v8397 = vadd.f32 0.0, %v8396
      %v8398 = vpop.f32.mrb[0].mxu0
      %8399 = vmatprep.mubr.f32.mxu0 0.0
      %8400 = vmatmul.mubr.f32.gmra.mrb[0].mxu0 %v8271
      %v8401 = vpop.f32.mrb[0].mxu0
      %v8402 = vadd.f32 0.0, %v8401
      %v8403 = vpop.f32.mrb[0].mxu0
      %8404 = vmatprep.mubr.f32.mxu0 0.0
      %8405 = vmatmul.mubr.f32.gmra.mrb[0].mxu0 %v8274
      %v8406 = vpop.f32.mrb[0].mxu0
      %v8407 = vadd.f32 0.0, %v8406
      %v8408 = vpop.f32.mrb[0].mxu0
      %8409 = vmatprep.mubr.f32.mxu0 0.0
      %8410 = vmatmul.mubr.f32.gmra.mrb[0].mxu0 %v8277
      %v8411 = vpop.f32.mrb[0].mxu0
      %v8412 = vadd.f32 0.0, %v8411
      %v8413 = vpop.f32.mrb[0].mxu0
      %8414 = vmatprep.mubr.f32.mxu0 0.0
      %8415 = vmatmul.mubr.f32.gmra.mrb[0].mxu0 %v8280
      %v8416 = vpop.f32.mrb[0].mxu0
      %v8417 = vadd.f32 0.0, %v8416
      %v8418 = vpop.f32.mrb[0].mxu0
      %8419 = vmatprep.mubr.f32.mxu0 0.0
      %8420 = vmatmul.mubr.f32.gmra.mrb[0].mxu0 %v8283
      %v8421 = vpop.f32.mrb[0].mxu0
      %v8422 = vadd.f32 0.0, %v8421
      %v8423 = vpop.f32.mrb[0].mxu0
      %8424 = vmatprep.mubr.f32.mxu0 0.0
      %8425 = vmatmul.mubr.f32.gmra.mrb[0].mxu0 %v8286
      %v8426 = vpop.f32.mrb[0].mxu0
      %v8427 = vadd.f32 0.0, %v8426
      %v8428 = vpop.f32.mrb[0].mxu0
      %8429 = vmatprep.mubr.f32.mxu0 0.0
      %8430 = vmatmul.mubr.f32.gmra.mrb[0].mxu0 %v8289
      %v8431 = vpop.f32.mrb[0].mxu0
      %v8432 = vadd.f32 0.0, %v8431
      %v8433 = vpop.f32.mrb[0].mxu0
      %8434 = vmatprep.mubr.f32.mxu0 0.0
      %8435 = vmatmul.mubr.f32.gmra.mrb[0].mxu0 %v8292
      %v8436 = vpop.f32.mrb[0].mxu0
      %v8437 = vadd.f32 0.0, %v8436
      %v8438 = vpop.f32.mrb[0].mxu0
      %8439 = vmatprep.mubr.f32.mxu0 0.0
      %8440 = vmatmul.mubr.f32.gmra.mrb[0].mxu0 %v8295
      %v8441 = vpop.f32.mrb[0].mxu0
      %v8442 = vadd.f32 0.0, %v8441
      %v8443 = vpop.f32.mrb[0].mxu0
      %8444 = vmatprep.mubr.f32.mxu0 0.0
      %8445 = vmatmul.mubr.f32.gmra.mrb[0].mxu0 %v8298
      %v8446 = vpop.f32.mrb[0].mxu0
      %v8447 = vadd.f32 0.0, %v8446
      %v8448 = vpop.f32.mrb[0].mxu0
      %8449 = vmatprep.mubr.f32.mxu0 0.0
      %8450 = vmatmul.mubr.f32.gmra.mrb[0].mxu0 %v8301
      %v8451 = vpop.f32.mrb[0].mxu0
      %v8452 = vadd.f32 0.0, %v8451
      %v8453 = vpop.f32.mrb[0].mxu0
      %8454 = vmatprep.mubr.f32.mxu0 0.0
      %8455 = vmatmul.mubr.f32.gmra.mrb[0].mxu0 %v8304
      %v8456 = vpop.f32.mrb[0].mxu0
      %v8457 = vadd.f32 0.0, %v8456
      %v8458 = vpop.f32.mrb[0].mxu0
      %8459 = vmatprep.mubr.f32.mxu0 0.0
      %8460 = vmatmul.mubr.f32.gmra.mrb[0].mxu0 %v8307
      %v8461 = vpop.f32.mrb[0].mxu0
      %v8462 = vadd.f32 0.0, %v8461
      %v8463 = vpop.f32.mrb[0].mxu0
      %8464 = vmatprep.mubr.f32.mxu0 0.0
      %8465 = vmatmul.mubr.f32.gmra.mrb[0].mxu0 %v8310
      %v8466 = vpop.f32.mrb[0].mxu0
      %v8467 = vadd.f32 0.0, %v8466
      %v8468 = vpop.f32.mrb[0].mxu0
      %8469 = vmatprep.mubr.f32.mxu0 0.0
      %8470 = vmatmul.mubr.f32.gmra.mrb[0].mxu0 %v8313
      %v8471 = vpop.f32.mrb[0].mxu0
      %v8472 = vadd.f32 0.0, %v8471
      %v8473 = vpop.f32.mrb[0].mxu0
      %8474 = vdwg.mxu0
      %v8475 = vadd.f32 %v8218, %v8397
      %v8476 = vadd.f32 %v8219, %v8402
      %v8477 = vadd.f32 %v8220, %v8407
      %v8478 = vadd.f32 %v8221, %v8412
      %v8479 = vadd.f32 %v8222, %v8417
      %v8480 = vadd.f32 %v8223, %v8422
      %v8481 = vadd.f32 %v8224, %v8427
      %v8482 = vadd.f32 %v8225, %v8432
      %v8483 = vadd.f32 %v8226, %v8437
      %v8484 = vadd.f32 %v8227, %v8442
      %v8485 = vadd.f32 %v8228, %v8447
      %v8486 = vadd.f32 %v8229, %v8452
      %v8487 = vadd.f32 %v8230, %v8457
      %v8488 = vadd.f32 %v8231, %v8462
      %v8489 = vadd.f32 %v8232, %v8467
      %v8490 = vadd.f32 %v8233, %v8472
      %8491 = vmatprep.subr.mxu0 0.0
      %8492 = vmatpush1.msra.mxu0 %v7766
      %8493 = vmatprep.subr.mxu0 0.0
      %8494 = vmatpush1.msra.mxu0 %v7767
      %8495 = vmatprep.subr.mxu0 0.0
      %8496 = vmatpush1.msra.mxu0 %v7768
      %8497 = vmatprep.subr.mxu0 0.0
      %8498 = vmatpush1.msra.mxu0 %v7769
      %8499 = vmatprep.subr.mxu0 0.0
      %8500 = vmatpush1.msra.mxu0 %v7770
      %8501 = vmatprep.subr.mxu0 0.0
      %8502 = vmatpush1.msra.mxu0 %v7771
      %8503 = vmatprep.subr.mxu0 0.0
      %8504 = vmatpush1.msra.mxu0 %v7772
      %8505 = vmatprep.subr.mxu0 0.0
      %8506 = vmatpush1.msra.mxu0 %v7773
      %8507 = vmatprep.subr.mxu0 0.0
      %8508 = vmatpush1.msra.mxu0 %v7774
      %8509 = vmatprep.subr.mxu0 0.0
      %8510 = vmatpush1.msra.mxu0 %v7775
      %8511 = vmatprep.subr.mxu0 0.0
      %8512 = vmatpush1.msra.mxu0 %v7776
      %8513 = vmatprep.subr.mxu0 0.0
      %8514 = vmatpush1.msra.mxu0 %v7777
      %8515 = vmatprep.subr.mxu0 0.0
      %8516 = vmatpush1.msra.mxu0 %v7778
      %8517 = vmatprep.subr.mxu0 0.0
      %8518 = vmatpush1.msra.mxu0 %v7779
      %8519 = vmatprep.subr.mxu0 0.0
      %8520 = vmatpush1.msra.mxu0 %v7780
      %8521 = vmatprep.subr.mxu0 0.0
      %8522 = vmatpush1.msra.mxu0 %v7781
      %8523 = vmatprep.subr.mxu0 0.0
      %8524 = vmatpush1.msra.mxu0 0.0
      %8525 = vmatprep.subr.mxu0 0.0
      %8526 = vmatpush1.msra.mxu0 0.0
      %8527 = vmatprep.subr.mxu0 0.0
      %8528 = vmatpush1.msra.mxu0 0.0
      %8529 = vmatprep.subr.mxu0 0.0
      %8530 = vmatpush1.msra.mxu0 0.0
      %8531 = vmatprep.subr.mxu0 0.0
      %8532 = vmatpush1.msra.mxu0 0.0
      %8533 = vmatprep.subr.mxu0 0.0
      %8534 = vmatpush1.msra.mxu0 0.0
      %8535 = vmatprep.subr.mxu0 0.0
      %8536 = vmatpush1.msra.mxu0 0.0
      %8537 = vmatprep.subr.mxu0 0.0
      %8538 = vmatpush1.msra.mxu0 0.0
      %8539 = vmatprep.subr.mxu0 0.0
      %8540 = vmatpush1.msra.mxu0 0.0
      %8541 = vmatprep.subr.mxu0 0.0
      %8542 = vmatpush1.msra.mxu0 0.0
      %8543 = vmatprep.subr.mxu0 0.0
      %8544 = vmatpush1.msra.mxu0 0.0
      %8545 = vmatprep.subr.mxu0 0.0
      %8546 = vmatpush1.msra.mxu0 0.0
      %8547 = vmatprep.subr.mxu0 0.0
      %8548 = vmatpush1.msra.mxu0 0.0
      %8549 = vmatprep.subr.mxu0 0.0
      %8550 = vmatpush1.msra.mxu0 0.0
      %8551 = vmatprep.subr.mxu0 0.0
      %8552 = vmatpush1.msra.mxu0 0.0
      %8553 = vmatprep.subr.mxu0 0.0
      %8554 = vmatpush1.msra.mxu0 0.0
      %8555 = vmatprep.mubr.f32.mxu0 0.0
      %8556 = vmatmul.mubr.f32.gmra.mrb[0].mxu0 %v8011
      %v8557 = vpop.f32.mrb[0].mxu0
      %v8558 = vadd.f32 0.0, %v8557
      %v8559 = vpop.f32.mrb[0].mxu0
      %8560 = vmatprep.mubr.f32.mxu0 0.0
      %8561 = vmatmul.mubr.f32.gmra.mrb[0].mxu0 %v8014
      %v8562 = vpop.f32.mrb[0].mxu0
      %v8563 = vadd.f32 0.0, %v8562
      %v8564 = vpop.f32.mrb[0].mxu0
      %8565 = vmatprep.mubr.f32.mxu0 0.0
      %8566 = vmatmul.mubr.f32.gmra.mrb[0].mxu0 %v8017
      %v8567 = vpop.f32.mrb[0].mxu0
      %v8568 = vadd.f32 0.0, %v8567
      %v8569 = vpop.f32.mrb[0].mxu0
      %8570 = vmatprep.mubr.f32.mxu0 0.0
      %8571 = vmatmul.mubr.f32.gmra.mrb[0].mxu0 %v8020
      %v8572 = vpop.f32.mrb[0].mxu0
      %v8573 = vadd.f32 0.0, %v8572
      %v8574 = vpop.f32.mrb[0].mxu0
      %8575 = vmatprep.mubr.f32.mxu0 0.0
      %8576 = vmatmul.mubr.f32.gmra.mrb[0].mxu0 %v8023
      %v8577 = vpop.f32.mrb[0].mxu0
      %v8578 = vadd.f32 0.0, %v8577
      %v8579 = vpop.f32.mrb[0].mxu0
      %8580 = vmatprep.mubr.f32.mxu0 0.0
      %8581 = vmatmul.mubr.f32.gmra.mrb[0].mxu0 %v8026
      %v8582 = vpop.f32.mrb[0].mxu0
      %v8583 = vadd.f32 0.0, %v8582
      %v8584 = vpop.f32.mrb[0].mxu0
      %8585 = vmatprep.mubr.f32.mxu0 0.0
      %8586 = vmatmul.mubr.f32.gmra.mrb[0].mxu0 %v8029
      %v8587 = vpop.f32.mrb[0].mxu0
      %v8588 = vadd.f32 0.0, %v8587
      %v8589 = vpop.f32.mrb[0].mxu0
      %8590 = vmatprep.mubr.f32.mxu0 0.0
      %8591 = vmatmul.mubr.f32.gmra.mrb[0].mxu0 %v8032
      %v8592 = vpop.f32.mrb[0].mxu0
      %v8593 = vadd.f32 0.0, %v8592
      %v8594 = vpop.f32.mrb[0].mxu0
      %8595 = vmatprep.mubr.f32.mxu0 0.0
      %8596 = vmatmul.mubr.f32.gmra.mrb[0].mxu0 %v8035
      %v8597 = vpop.f32.mrb[0].mxu0
      %v8598 = vadd.f32 0.0, %v8597
      %v8599 = vpop.f32.mrb[0].mxu0
      %8600 = vmatprep.mubr.f32.mxu0 0.0
      %8601 = vmatmul.mubr.f32.gmra.mrb[0].mxu0 %v8038
      %v8602 = vpop.f32.mrb[0].mxu0
      %v8603 = vadd.f32 0.0, %v8602
      %v8604 = vpop.f32.mrb[0].mxu0
      %8605 = vmatprep.mubr.f32.mxu0 0.0
      %8606 = vmatmul.mubr.f32.gmra.mrb[0].mxu0 %v8041
      %v8607 = vpop.f32.mrb[0].mxu0
      %v8608 = vadd.f32 0.0, %v8607
      %v8609 = vpop.f32.mrb[0].mxu0
      %8610 = vmatprep.mubr.f32.mxu0 0.0
      %8611 = vmatmul.mubr.f32.gmra.mrb[0].mxu0 %v8044
      %v8612 = vpop.f32.mrb[0].mxu0
      %v8613 = vadd.f32 0.0, %v8612
      %v8614 = vpop.f32.mrb[0].mxu0
      %8615 = vmatprep.mubr.f32.mxu0 0.0
      %8616 = vmatmul.mubr.f32.gmra.mrb[0].mxu0 %v8047
      %v8617 = vpop.f32.mrb[0].mxu0
      %v8618 = vadd.f32 0.0, %v8617
      %v8619 = vpop.f32.mrb[0].mxu0
      %8620 = vmatprep.mubr.f32.mxu0 0.0
      %8621 = vmatmul.mubr.f32.gmra.mrb[0].mxu0 %v8050
      %v8622 = vpop.f32.mrb[0].mxu0
      %v8623 = vadd.f32 0.0, %v8622
      %v8624 = vpop.f32.mrb[0].mxu0
      %8625 = vmatprep.mubr.f32.mxu0 0.0
      %8626 = vmatmul.mubr.f32.gmra.mrb[0].mxu0 %v8053
      %v8627 = vpop.f32.mrb[0].mxu0
      %v8628 = vadd.f32 0.0, %v8627
      %v8629 = vpop.f32.mrb[0].mxu0
      %8630 = vmatprep.mubr.f32.mxu0 0.0
      %8631 = vmatmul.mubr.f32.gmra.mrb[0].mxu0 %v8056
      %v8632 = vpop.f32.mrb[0].mxu0
      %v8633 = vadd.f32 0.0, %v8632
      %v8634 = vpop.f32.mrb[0].mxu0
      %8635 = vdwg.mxu0
      %v8636 = vadd.f32 %v7685, %v8558
      %v8637 = vadd.f32 %v7686, %v8563
      %v8638 = vadd.f32 %v7687, %v8568
      %v8639 = vadd.f32 %v7688, %v8573
      %v8640 = vadd.f32 %v7689, %v8578
      %v8641 = vadd.f32 %v7690, %v8583
      %v8642 = vadd.f32 %v7691, %v8588
      %v8643 = vadd.f32 %v7692, %v8593
      %v8644 = vadd.f32 %v7693, %v8598
      %v8645 = vadd.f32 %v7694, %v8603
      %v8646 = vadd.f32 %v7695, %v8608
      %v8647 = vadd.f32 %v7696, %v8613
      %v8648 = vadd.f32 %v7697, %v8618
      %v8649 = vadd.f32 %v7698, %v8623
      %v8650 = vadd.f32 %v7699, %v8628
      %v8651 = vadd.f32 %v7700, %v8633
      %8652 = vmatprep.subr.mxu0 0.0
      %8653 = vmatpush1.msra.mxu0 %v7783
      %8654 = vmatprep.subr.mxu0 0.0
      %8655 = vmatpush1.msra.mxu0 %v7784
      %8656 = vmatprep.subr.mxu0 0.0
      %8657 = vmatpush1.msra.mxu0 %v7785
      %8658 = vmatprep.subr.mxu0 0.0
      %8659 = vmatpush1.msra.mxu0 %v7786
      %8660 = vmatprep.subr.mxu0 0.0
      %8661 = vmatpush1.msra.mxu0 %v7787
      %8662 = vmatprep.subr.mxu0 0.0
      %8663 = vmatpush1.msra.mxu0 %v7788
      %8664 = vmatprep.subr.mxu0 0.0
      %8665 = vmatpush1.msra.mxu0 %v7789
      %8666 = vmatprep.subr.mxu0 0.0
      %8667 = vmatpush1.msra.mxu0 %v7790
      %8668 = vmatprep.subr.mxu0 0.0
      %8669 = vmatpush1.msra.mxu0 %v7791
      %8670 = vmatprep.subr.mxu0 0.0
      %8671 = vmatpush1.msra.mxu0 %v7792
      %8672 = vmatprep.subr.mxu0 0.0
      %8673 = vmatpush1.msra.mxu0 %v7793
      %8674 = vmatprep.subr.mxu0 0.0
      %8675 = vmatpush1.msra.mxu0 %v7794
      %8676 = vmatprep.subr.mxu0 0.0
      %8677 = vmatpush1.msra.mxu0 %v7795
      %8678 = vmatprep.subr.mxu0 0.0
      %8679 = vmatpush1.msra.mxu0 %v7796
      %8680 = vmatprep.subr.mxu0 0.0
      %8681 = vmatpush1.msra.mxu0 %v7797
      %8682 = vmatprep.subr.mxu0 0.0
      %8683 = vmatpush1.msra.mxu0 %v7798
      %8684 = vmatprep.subr.mxu0 0.0
      %8685 = vmatpush1.msra.mxu0 0.0
      %8686 = vmatprep.subr.mxu0 0.0
      %8687 = vmatpush1.msra.mxu0 0.0
      %8688 = vmatprep.subr.mxu0 0.0
      %8689 = vmatpush1.msra.mxu0 0.0
      %8690 = vmatprep.subr.mxu0 0.0
      %8691 = vmatpush1.msra.mxu0 0.0
      %8692 = vmatprep.subr.mxu0 0.0
      %8693 = vmatpush1.msra.mxu0 0.0
      %8694 = vmatprep.subr.mxu0 0.0
      %8695 = vmatpush1.msra.mxu0 0.0
      %8696 = vmatprep.subr.mxu0 0.0
      %8697 = vmatpush1.msra.mxu0 0.0
      %8698 = vmatprep.subr.mxu0 0.0
      %8699 = vmatpush1.msra.mxu0 0.0
      %8700 = vmatprep.subr.mxu0 0.0
      %8701 = vmatpush1.msra.mxu0 0.0
      %8702 = vmatprep.subr.mxu0 0.0
      %8703 = vmatpush1.msra.mxu0 0.0
      %8704 = vmatprep.subr.mxu0 0.0
      %8705 = vmatpush1.msra.mxu0 0.0
      %8706 = vmatprep.subr.mxu0 0.0
      %8707 = vmatpush1.msra.mxu0 0.0
      %8708 = vmatprep.subr.mxu0 0.0
      %8709 = vmatpush1.msra.mxu0 0.0
      %8710 = vmatprep.subr.mxu0 0.0
      %8711 = vmatpush1.msra.mxu0 0.0
      %8712 = vmatprep.subr.mxu0 0.0
      %8713 = vmatpush1.msra.mxu0 0.0
      %8714 = vmatprep.subr.mxu0 0.0
      %8715 = vmatpush1.msra.mxu0 0.0
      %8716 = vmatprep.mubr.f32.mxu0 0.0
      %8717 = vmatmul.mubr.f32.gmra.mrb[0].mxu0 %v8268
      %v8718 = vpop.f32.mrb[0].mxu0
      %v8719 = vadd.f32 0.0, %v8718
      %v8720 = vpop.f32.mrb[0].mxu0
      %8721 = vmatprep.mubr.f32.mxu0 0.0
      %8722 = vmatmul.mubr.f32.gmra.mrb[0].mxu0 %v8271
      %v8723 = vpop.f32.mrb[0].mxu0
      %v8724 = vadd.f32 0.0, %v8723
      %v8725 = vpop.f32.mrb[0].mxu0
      %8726 = vmatprep.mubr.f32.mxu0 0.0
      %8727 = vmatmul.mubr.f32.gmra.mrb[0].mxu0 %v8274
      %v8728 = vpop.f32.mrb[0].mxu0
      %v8729 = vadd.f32 0.0, %v8728
      %v8730 = vpop.f32.mrb[0].mxu0
      %8731 = vmatprep.mubr.f32.mxu0 0.0
      %8732 = vmatmul.mubr.f32.gmra.mrb[0].mxu0 %v8277
      %v8733 = vpop.f32.mrb[0].mxu0
      %v8734 = vadd.f32 0.0, %v8733
      %v8735 = vpop.f32.mrb[0].mxu0
      %8736 = vmatprep.mubr.f32.mxu0 0.0
      %8737 = vmatmul.mubr.f32.gmra.mrb[0].mxu0 %v8280
      %v8738 = vpop.f32.mrb[0].mxu0
      %v8739 = vadd.f32 0.0, %v8738
      %v8740 = vpop.f32.mrb[0].mxu0
      %8741 = vmatprep.mubr.f32.mxu0 0.0
      %8742 = vmatmul.mubr.f32.gmra.mrb[0].mxu0 %v8283
      %v8743 = vpop.f32.mrb[0].mxu0
      %v8744 = vadd.f32 0.0, %v8743
      %v8745 = vpop.f32.mrb[0].mxu0
      %8746 = vmatprep.mubr.f32.mxu0 0.0
      %8747 = vmatmul.mubr.f32.gmra.mrb[0].mxu0 %v8286
      %v8748 = vpop.f32.mrb[0].mxu0
      %v8749 = vadd.f32 0.0, %v8748
      %v8750 = vpop.f32.mrb[0].mxu0
      %8751 = vmatprep.mubr.f32.mxu0 0.0
      %8752 = vmatmul.mubr.f32.gmra.mrb[0].mxu0 %v8289
      %v8753 = vpop.f32.mrb[0].mxu0
      %v8754 = vadd.f32 0.0, %v8753
      %v8755 = vpop.f32.mrb[0].mxu0
      %8756 = vmatprep.mubr.f32.mxu0 0.0
      %8757 = vmatmul.mubr.f32.gmra.mrb[0].mxu0 %v8292
      %v8758 = vpop.f32.mrb[0].mxu0
      %v8759 = vadd.f32 0.0, %v8758
      %v8760 = vpop.f32.mrb[0].mxu0
      %8761 = vmatprep.mubr.f32.mxu0 0.0
      %8762 = vmatmul.mubr.f32.gmra.mrb[0].mxu0 %v8295
      %v8763 = vpop.f32.mrb[0].mxu0
      %v8764 = vadd.f32 0.0, %v8763
      %v8765 = vpop.f32.mrb[0].mxu0
      %8766 = vmatprep.mubr.f32.mxu0 0.0
      %8767 = vmatmul.mubr.f32.gmra.mrb[0].mxu0 %v8298
      %v8768 = vpop.f32.mrb[0].mxu0
      %v8769 = vadd.f32 0.0, %v8768
      %v8770 = vpop.f32.mrb[0].mxu0
      %8771 = vmatprep.mubr.f32.mxu0 0.0
      %8772 = vmatmul.mubr.f32.gmra.mrb[0].mxu0 %v8301
      %v8773 = vpop.f32.mrb[0].mxu0
      %v8774 = vadd.f32 0.0, %v8773
      %v8775 = vpop.f32.mrb[0].mxu0
      %8776 = vmatprep.mubr.f32.mxu0 0.0
      %8777 = vmatmul.mubr.f32.gmra.mrb[0].mxu0 %v8304
      %v8778 = vpop.f32.mrb[0].mxu0
      %v8779 = vadd.f32 0.0, %v8778
      %v8780 = vpop.f32.mrb[0].mxu0
      %8781 = vmatprep.mubr.f32.mxu0 0.0
      %8782 = vmatmul.mubr.f32.gmra.mrb[0].mxu0 %v8307
      %v8783 = vpop.f32.mrb[0].mxu0
      %v8784 = vadd.f32 0.0, %v8783
      %v8785 = vpop.f32.mrb[0].mxu0
      %8786 = vmatprep.mubr.f32.mxu0 0.0
      %8787 = vmatmul.mubr.f32.gmra.mrb[0].mxu0 %v8310
      %v8788 = vpop.f32.mrb[0].mxu0
      %v8789 = vadd.f32 0.0, %v8788
      %v8790 = vpop.f32.mrb[0].mxu0
      %8791 = vmatprep.mubr.f32.mxu0 0.0
      %8792 = vmatmul.mubr.f32.gmra.mrb[0].mxu0 %v8313
      %v8793 = vpop.f32.mrb[0].mxu0
      %v8794 = vadd.f32 0.0, %v8793
      %v8795 = vpop.f32.mrb[0].mxu0
      %8796 = vdwg.mxu0
      %v8797 = vadd.f32 %v8636, %v8719
      %v8798 = vadd.f32 %v8637, %v8724
      %v8799 = vadd.f32 %v8638, %v8729
      %v8800 = vadd.f32 %v8639, %v8734
      %v8801 = vadd.f32 %v8640, %v8739
      %v8802 = vadd.f32 %v8641, %v8744
      %v8803 = vadd.f32 %v8642, %v8749
      %v8804 = vadd.f32 %v8643, %v8754
      %v8805 = vadd.f32 %v8644, %v8759
      %v8806 = vadd.f32 %v8645, %v8764
      %v8807 = vadd.f32 %v8646, %v8769
      %v8808 = vadd.f32 %v8647, %v8774
      %v8809 = vadd.f32 %v8648, %v8779
      %v8810 = vadd.f32 %v8649, %v8784
      %v8811 = vadd.f32 %v8650, %v8789
      %v8812 = vadd.f32 %v8651, %v8794
      %v8813 = vrot.slane %v7701, 2
      %v8814 = vrot.slane %v7702, 2
      %v8815 = vsel %vm2590, %v8813, %v8814
      %v8816 = vrot.slane %v7703, 2
      %v8817 = vrot.slane %v7704, 2
      %v8818 = vsel %vm2590, %v8816, %v8817
      %v8819 = vrot.slane %v7705, 2
      %v8820 = vrot.slane %v7706, 2
      %v8821 = vsel %vm2590, %v8819, %v8820
      %v8822 = vrot.slane %v7707, 2
      %v8823 = vrot.slane %v7708, 2
      %v8824 = vsel %vm2590, %v8822, %v8823
      %v8825 = vrot.slane %v7709, 2
      %v8826 = vrot.slane %v7710, 2
      %v8827 = vsel %vm2590, %v8825, %v8826
      %v8828 = vrot.slane %v7711, 2
      %v8829 = vrot.slane %v7712, 2
      %v8830 = vsel %vm2590, %v8828, %v8829
      %v8831 = vrot.slane %v7713, 2
      %v8832 = vrot.slane %v7714, 2
      %v8833 = vsel %vm2590, %v8831, %v8832
      %v8834 = vrot.slane %v7715, 2
      %v8835 = vrot.slane %v7716, 2
      %v8836 = vsel %vm2590, %v8834, %v8835
      %v8837 = vrot.slane %v7717, 2
      %v8838 = vrot.slane %v7718, 2
      %v8839 = vsel %vm2590, %v8837, %v8838
      %v8840 = vrot.slane %v7719, 2
      %v8841 = vrot.slane %v7720, 2
      %v8842 = vsel %vm2590, %v8840, %v8841
      %v8843 = vrot.slane %v7721, 2
      %v8844 = vrot.slane %v7722, 2
      %v8845 = vsel %vm2590, %v8843, %v8844
      %v8846 = vrot.slane %v7723, 2
      %v8847 = vrot.slane %v7724, 2
      %v8848 = vsel %vm2590, %v8846, %v8847
      %v8849 = vrot.slane %v7725, 2
      %v8850 = vrot.slane %v7726, 2
      %v8851 = vsel %vm2590, %v8849, %v8850
      %v8852 = vrot.slane %v7727, 2
      %v8853 = vrot.slane %v7728, 2
      %v8854 = vsel %vm2590, %v8852, %v8853
      %v8855 = vrot.slane %v7729, 2
      %v8856 = vrot.slane %v7730, 2
      %v8857 = vsel %vm2590, %v8855, %v8856
      %v8858 = vrot.slane %v7731, 2
      %v8859 = vrot.slane %v7732, 2
      %v8860 = vsel %vm2590, %v8858, %v8859
      %8877 = vmatprep.subr.mxu0 0.0
      %8878 = vmatpush1.msra.mxu0 %v7800
      %8879 = vmatprep.subr.mxu0 0.0
      %8880 = vmatpush1.msra.mxu0 %v7801
      %8881 = vmatprep.subr.mxu0 0.0
      %8882 = vmatpush1.msra.mxu0 %v7802
      %8883 = vmatprep.subr.mxu0 0.0
      %8884 = vmatpush1.msra.mxu0 %v7803
      %8885 = vmatprep.subr.mxu0 0.0
      %8886 = vmatpush1.msra.mxu0 %v7804
      %8887 = vmatprep.subr.mxu0 0.0
      %8888 = vmatpush1.msra.mxu0 %v7805
      %8889 = vmatprep.subr.mxu0 0.0
      %8890 = vmatpush1.msra.mxu0 %v7806
      %8891 = vmatprep.subr.mxu0 0.0
      %8892 = vmatpush1.msra.mxu0 %v7807
      %8893 = vmatprep.subr.mxu0 0.0
      %8894 = vmatpush1.msra.mxu0 %v7808
      %8895 = vmatprep.subr.mxu0 0.0
      %8896 = vmatpush1.msra.mxu0 %v7809
      %8897 = vmatprep.subr.mxu0 0.0
      %8898 = vmatpush1.msra.mxu0 %v7810
      %8899 = vmatprep.subr.mxu0 0.0
      %8900 = vmatpush1.msra.mxu0 %v7811
      %8901 = vmatprep.subr.mxu0 0.0
      %8902 = vmatpush1.msra.mxu0 %v7812
      %8903 = vmatprep.subr.mxu0 0.0
      %8904 = vmatpush1.msra.mxu0 %v7813
      %8905 = vmatprep.subr.mxu0 0.0
      %8906 = vmatpush1.msra.mxu0 %v7814
      %8907 = vmatprep.subr.mxu0 0.0
      %8908 = vmatpush1.msra.mxu0 %v7815
      %8909 = vmatprep.subr.mxu0 0.0
      %8910 = vmatpush1.msra.mxu0 0.0
      %8911 = vmatprep.subr.mxu0 0.0
      %8912 = vmatpush1.msra.mxu0 0.0
      %8913 = vmatprep.subr.mxu0 0.0
      %8914 = vmatpush1.msra.mxu0 0.0
      %8915 = vmatprep.subr.mxu0 0.0
      %8916 = vmatpush1.msra.mxu0 0.0
      %8917 = vmatprep.subr.mxu0 0.0
      %8918 = vmatpush1.msra.mxu0 0.0
      %8919 = vmatprep.subr.mxu0 0.0
      %8920 = vmatpush1.msra.mxu0 0.0
      %8921 = vmatprep.subr.mxu0 0.0
      %8922 = vmatpush1.msra.mxu0 0.0
      %8923 = vmatprep.subr.mxu0 0.0
      %8924 = vmatpush1.msra.mxu0 0.0
      %8925 = vmatprep.subr.mxu0 0.0
      %8926 = vmatpush1.msra.mxu0 0.0
      %8927 = vmatprep.subr.mxu0 0.0
      %8928 = vmatpush1.msra.mxu0 0.0
      %8929 = vmatprep.subr.mxu0 0.0
      %8930 = vmatpush1.msra.mxu0 0.0
      %8931 = vmatprep.subr.mxu0 0.0
      %8932 = vmatpush1.msra.mxu0 0.0
      %8933 = vmatprep.subr.mxu0 0.0
      %8934 = vmatpush1.msra.mxu0 0.0
      %8935 = vmatprep.subr.mxu0 0.0
      %8936 = vmatpush1.msra.mxu0 0.0
      %8937 = vmatprep.subr.mxu0 0.0
      %8938 = vmatpush1.msra.mxu0 0.0
      %8939 = vmatprep.subr.mxu0 0.0
      %8940 = vmatpush1.msra.mxu0 0.0
      %8941 = vmatprep.mubr.f32.mxu0 0.0
      %8942 = vmatmul.mubr.f32.gmra.mrb[0].mxu0 %v8815
      %v8943 = vpop.f32.mrb[0].mxu0
      %v8944 = vadd.f32 0.0, %v8943
      %v8945 = vpop.f32.mrb[0].mxu0
      %8946 = vmatprep.mubr.f32.mxu0 0.0
      %8947 = vmatmul.mubr.f32.gmra.mrb[0].mxu0 %v8818
      %v8948 = vpop.f32.mrb[0].mxu0
      %v8949 = vadd.f32 0.0, %v8948
      %v8950 = vpop.f32.mrb[0].mxu0
      %8951 = vmatprep.mubr.f32.mxu0 0.0
      %8952 = vmatmul.mubr.f32.gmra.mrb[0].mxu0 %v8821
      %v8953 = vpop.f32.mrb[0].mxu0
      %v8954 = vadd.f32 0.0, %v8953
      %v8955 = vpop.f32.mrb[0].mxu0
      %8956 = vmatprep.mubr.f32.mxu0 0.0
      %8957 = vmatmul.mubr.f32.gmra.mrb[0].mxu0 %v8824
      %v8958 = vpop.f32.mrb[0].mxu0
      %v8959 = vadd.f32 0.0, %v8958
      %v8960 = vpop.f32.mrb[0].mxu0
      %8961 = vmatprep.mubr.f32.mxu0 0.0
      %8962 = vmatmul.mubr.f32.gmra.mrb[0].mxu0 %v8827
      %v8963 = vpop.f32.mrb[0].mxu0
      %v8964 = vadd.f32 0.0, %v8963
      %v8965 = vpop.f32.mrb[0].mxu0
      %8966 = vmatprep.mubr.f32.mxu0 0.0
      %8967 = vmatmul.mubr.f32.gmra.mrb[0].mxu0 %v8830
      %v8968 = vpop.f32.mrb[0].mxu0
      %v8969 = vadd.f32 0.0, %v8968
      %v8970 = vpop.f32.mrb[0].mxu0
      %8971 = vmatprep.mubr.f32.mxu0 0.0
      %8972 = vmatmul.mubr.f32.gmra.mrb[0].mxu0 %v8833
      %v8973 = vpop.f32.mrb[0].mxu0
      %v8974 = vadd.f32 0.0, %v8973
      %v8975 = vpop.f32.mrb[0].mxu0
      %8976 = vmatprep.mubr.f32.mxu0 0.0
      %8977 = vmatmul.mubr.f32.gmra.mrb[0].mxu0 %v8836
      %v8978 = vpop.f32.mrb[0].mxu0
      %v8979 = vadd.f32 0.0, %v8978
      %v8980 = vpop.f32.mrb[0].mxu0
      %8981 = vmatprep.mubr.f32.mxu0 0.0
      %8982 = vmatmul.mubr.f32.gmra.mrb[0].mxu0 %v8839
      %v8983 = vpop.f32.mrb[0].mxu0
      %v8984 = vadd.f32 0.0, %v8983
      %v8985 = vpop.f32.mrb[0].mxu0
      %8986 = vmatprep.mubr.f32.mxu0 0.0
      %8987 = vmatmul.mubr.f32.gmra.mrb[0].mxu0 %v8842
      %v8988 = vpop.f32.mrb[0].mxu0
      %v8989 = vadd.f32 0.0, %v8988
      %v8990 = vpop.f32.mrb[0].mxu0
      %8991 = vmatprep.mubr.f32.mxu0 0.0
      %8992 = vmatmul.mubr.f32.gmra.mrb[0].mxu0 %v8845
      %v8993 = vpop.f32.mrb[0].mxu0
      %v8994 = vadd.f32 0.0, %v8993
      %v8995 = vpop.f32.mrb[0].mxu0
      %8996 = vmatprep.mubr.f32.mxu0 0.0
      %8997 = vmatmul.mubr.f32.gmra.mrb[0].mxu0 %v8848
      %v8998 = vpop.f32.mrb[0].mxu0
      %v8999 = vadd.f32 0.0, %v8998
      %v9000 = vpop.f32.mrb[0].mxu0
      %9001 = vmatprep.mubr.f32.mxu0 0.0
      %9002 = vmatmul.mubr.f32.gmra.mrb[0].mxu0 %v8851
      %v9003 = vpop.f32.mrb[0].mxu0
      %v9004 = vadd.f32 0.0, %v9003
      %v9005 = vpop.f32.mrb[0].mxu0
      %9006 = vmatprep.mubr.f32.mxu0 0.0
      %9007 = vmatmul.mubr.f32.gmra.mrb[0].mxu0 %v8854
      %v9008 = vpop.f32.mrb[0].mxu0
      %v9009 = vadd.f32 0.0, %v9008
      %v9010 = vpop.f32.mrb[0].mxu0
      %9011 = vmatprep.mubr.f32.mxu0 0.0
      %9012 = vmatmul.mubr.f32.gmra.mrb[0].mxu0 %v8857
      %v9013 = vpop.f32.mrb[0].mxu0
      %v9014 = vadd.f32 0.0, %v9013
      %v9015 = vpop.f32.mrb[0].mxu0
      %9016 = vmatprep.mubr.f32.mxu0 0.0
      %9017 = vmatmul.mubr.f32.gmra.mrb[0].mxu0 %v8860
      %v9018 = vpop.f32.mrb[0].mxu0
      %v9019 = vadd.f32 0.0, %v9018
      %v9020 = vpop.f32.mrb[0].mxu0
      %9021 = vdwg.mxu0
      %v9022 = vadd.f32 %v8797, %v8944
      %v9023 = vadd.f32 %v8798, %v8949
      %v9024 = vadd.f32 %v8799, %v8954
      %v9025 = vadd.f32 %v8800, %v8959
      %v9026 = vadd.f32 %v8801, %v8964
      %v9027 = vadd.f32 %v8802, %v8969
      %v9028 = vadd.f32 %v8803, %v8974
      %v9029 = vadd.f32 %v8804, %v8979
      %v9030 = vadd.f32 %v8805, %v8984
      %v9031 = vadd.f32 %v8806, %v8989
      %v9032 = vadd.f32 %v8807, %v8994
      %v9033 = vadd.f32 %v8808, %v8999
      %v9034 = vadd.f32 %v8809, %v9004
      %v9035 = vadd.f32 %v8810, %v9009
      %v9036 = vadd.f32 %v8811, %v9014
      %v9037 = vadd.f32 %v8812, %v9019
      %s9038 = scalar_lea.vmem [#allocation4], 32
      %v9039 = vld [vmem:[%s9038] sm:$0xff]
      %v9040 = vld [vmem:[%s9038 + $0x8] sm:$0x3]
      %v9041 = vld [vmem:[%s9038 + $0x10] sm:$0xff]
      %v9042 = vld [vmem:[%s9038 + $0x18] sm:$0x3]
      %v9043 = vld [vmem:[%s9038 + $0x20] sm:$0xff]
      %v9044 = vld [vmem:[%s9038 + $0x28] sm:$0x3]
      %v9045 = vld [vmem:[%s9038 + $0x30] sm:$0xff]
      %v9046 = vld [vmem:[%s9038 + $0x38] sm:$0x3]
      %v9047 = vld [vmem:[%s9038 + $0x40] sm:$0xff]
      %v9048 = vld [vmem:[%s9038 + $0x48] sm:$0x3]
      %v9049 = vld [vmem:[%s9038 + $0x50] sm:$0xff]
      %v9050 = vld [vmem:[%s9038 + $0x58] sm:$0x3]
      %v9051 = vld [vmem:[%s9038 + $0x60] sm:$0xff]
      %v9052 = vld [vmem:[%s9038 + $0x68] sm:$0x3]
      %v9053 = vld [vmem:[%s9038 + $0x70] sm:$0xff]
      %v9054 = vld [vmem:[%s9038 + $0x78] sm:$0x3]
      %v9055 = vld [vmem:[%s9038 + $0x80] sm:$0xff]
      %v9056 = vld [vmem:[%s9038 + $0x88] sm:$0x3]
      %v9057 = vld [vmem:[%s9038 + $0x90] sm:$0xff]
      %v9058 = vld [vmem:[%s9038 + $0x98] sm:$0x3]
      %v9059 = vld [vmem:[%s9038 + $0xa0] sm:$0xff]
      %v9060 = vld [vmem:[%s9038 + $0xa8] sm:$0x3]
      %v9061 = vld [vmem:[%s9038 + $0xb0] sm:$0xff]
      %v9062 = vld [vmem:[%s9038 + $0xb8] sm:$0x3]
      %v9063 = vld [vmem:[%s9038 + $0xc0] sm:$0xff]
      %v9064 = vld [vmem:[%s9038 + $0xc8] sm:$0x3]
      %v9065 = vld [vmem:[%s9038 + $0xd0] sm:$0xff]
      %v9066 = vld [vmem:[%s9038 + $0xd8] sm:$0x3]
      %v9067 = vld [vmem:[%s9038 + $0xe0] sm:$0xff]
      %v9068 = vld [vmem:[%s9038 + $0xe8] sm:$0x3]
      %v9069 = vld [vmem:[%s9038 + $0xf0] sm:$0xff]
      %v9070 = vld [vmem:[%s9038 + $0xf8] sm:$0x3]
      %s9071 = scalar_lea.vmem [#allocation5], 32
      %v9072 = vld [vmem:[%s9071] sm:$0xff]
      %v9073 = vld [vmem:[%s9071 + $0x8] sm:$0x3]
      %v9074 = vld [vmem:[%s9071 + $0x10] sm:$0xff]
      %v9075 = vld [vmem:[%s9071 + $0x18] sm:$0x3]
      %v9076 = vld [vmem:[%s9071 + $0x20] sm:$0xff]
      %v9077 = vld [vmem:[%s9071 + $0x28] sm:$0x3]
      %v9078 = vld [vmem:[%s9071 + $0x30] sm:$0xff]
      %v9079 = vld [vmem:[%s9071 + $0x38] sm:$0x3]
      %v9080 = vld [vmem:[%s9071 + $0x40] sm:$0xff]
      %v9081 = vld [vmem:[%s9071 + $0x48] sm:$0x3]
      %v9082 = vld [vmem:[%s9071 + $0x50] sm:$0xff]
      %v9083 = vld [vmem:[%s9071 + $0x58] sm:$0x3]
      %v9084 = vld [vmem:[%s9071 + $0x60] sm:$0xff]
      %v9085 = vld [vmem:[%s9071 + $0x68] sm:$0x3]
      %v9086 = vld [vmem:[%s9071 + $0x70] sm:$0xff]
      %v9087 = vld [vmem:[%s9071 + $0x78] sm:$0x3]
      %v9088 = vld [vmem:[%s9071 + $0x80] sm:$0xff]
      %v9089 = vld [vmem:[%s9071 + $0x88] sm:$0x3]
      %v9090 = vld [vmem:[%s9071 + $0x90] sm:$0xff]
      %v9091 = vld [vmem:[%s9071 + $0x98] sm:$0x3]
      %v9092 = vld [vmem:[%s9071 + $0xa0] sm:$0xff]
      %v9093 = vld [vmem:[%s9071 + $0xa8] sm:$0x3]
      %v9094 = vld [vmem:[%s9071 + $0xb0] sm:$0xff]
      %v9095 = vld [vmem:[%s9071 + $0xb8] sm:$0x3]
      %v9096 = vld [vmem:[%s9071 + $0xc0] sm:$0xff]
      %v9097 = vld [vmem:[%s9071 + $0xc8] sm:$0x3]
      %v9098 = vld [vmem:[%s9071 + $0xd0] sm:$0xff]
      %v9099 = vld [vmem:[%s9071 + $0xd8] sm:$0x3]
      %v9100 = vld [vmem:[%s9071 + $0xe0] sm:$0xff]
      %v9101 = vld [vmem:[%s9071 + $0xe8] sm:$0x3]
      %v9102 = vld [vmem:[%s9071 + $0xf0] sm:$0xff]
      %v9103 = vld [vmem:[%s9071 + $0xf8] sm:$0x3]
      %s9104 = scalar_lea.vmem %s6, 768
      %v9105 = vld [vmem:[%s9104] sm:$0xff]
      %v9106 = vld [vmem:[%s9104 + $0x8] sm:$0xff]
      %v9107 = vld [vmem:[%s9104 + $0x10] sm:$0xff]
      %v9108 = vld [vmem:[%s9104 + $0x18] sm:$0xff]
      %v9109 = vld [vmem:[%s9104 + $0x20] sm:$0xff]
      %v9110 = vld [vmem:[%s9104 + $0x28] sm:$0xff]
      %v9111 = vld [vmem:[%s9104 + $0x30] sm:$0xff]
      %v9112 = vld [vmem:[%s9104 + $0x38] sm:$0xff]
      %v9113 = vld [vmem:[%s9104 + $0x40] sm:$0xff]
      %v9114 = vld [vmem:[%s9104 + $0x48] sm:$0xff]
      %v9115 = vld [vmem:[%s9104 + $0x50] sm:$0xff]
      %v9116 = vld [vmem:[%s9104 + $0x58] sm:$0xff]
      %v9117 = vld [vmem:[%s9104 + $0x60] sm:$0xff]
      %v9118 = vld [vmem:[%s9104 + $0x68] sm:$0xff]
      %v9119 = vld [vmem:[%s9104 + $0x70] sm:$0xff]
      %v9120 = vld [vmem:[%s9104 + $0x78] sm:$0xff]
      %s9121 = scalar_lea.vmem %s6, 896
      %v9122 = vld [vmem:[%s9121] sm:$0xff]
      %v9123 = vld [vmem:[%s9121 + $0x8] sm:$0xff]
      %v9124 = vld [vmem:[%s9121 + $0x10] sm:$0xff]
      %v9125 = vld [vmem:[%s9121 + $0x18] sm:$0xff]
      %v9126 = vld [vmem:[%s9121 + $0x20] sm:$0xff]
      %v9127 = vld [vmem:[%s9121 + $0x28] sm:$0xff]
      %v9128 = vld [vmem:[%s9121 + $0x30] sm:$0xff]
      %v9129 = vld [vmem:[%s9121 + $0x38] sm:$0xff]
      %v9130 = vld [vmem:[%s9121 + $0x40] sm:$0xff]
      %v9131 = vld [vmem:[%s9121 + $0x48] sm:$0xff]
      %v9132 = vld [vmem:[%s9121 + $0x50] sm:$0xff]
      %v9133 = vld [vmem:[%s9121 + $0x58] sm:$0xff]
      %v9134 = vld [vmem:[%s9121 + $0x60] sm:$0xff]
      %v9135 = vld [vmem:[%s9121 + $0x68] sm:$0xff]
      %v9136 = vld [vmem:[%s9121 + $0x70] sm:$0xff]
      %v9137 = vld [vmem:[%s9121 + $0x78] sm:$0xff]
      %s9138 = scalar_lea.vmem %s6, 1024
      %v9139 = vld [vmem:[%s9138] sm:$0xff]
      %v9140 = vld [vmem:[%s9138 + $0x8] sm:$0xff]
      %v9141 = vld [vmem:[%s9138 + $0x10] sm:$0xff]
      %v9142 = vld [vmem:[%s9138 + $0x18] sm:$0xff]
      %v9143 = vld [vmem:[%s9138 + $0x20] sm:$0xff]
      %v9144 = vld [vmem:[%s9138 + $0x28] sm:$0xff]
      %v9145 = vld [vmem:[%s9138 + $0x30] sm:$0xff]
      %v9146 = vld [vmem:[%s9138 + $0x38] sm:$0xff]
      %v9147 = vld [vmem:[%s9138 + $0x40] sm:$0xff]
      %v9148 = vld [vmem:[%s9138 + $0x48] sm:$0xff]
      %v9149 = vld [vmem:[%s9138 + $0x50] sm:$0xff]
      %v9150 = vld [vmem:[%s9138 + $0x58] sm:$0xff]
      %v9151 = vld [vmem:[%s9138 + $0x60] sm:$0xff]
      %v9152 = vld [vmem:[%s9138 + $0x68] sm:$0xff]
      %v9153 = vld [vmem:[%s9138 + $0x70] sm:$0xff]
      %v9154 = vld [vmem:[%s9138 + $0x78] sm:$0xff]
      %9155 = vmatprep.subr.mxu0 0.0
      %9156 = vmatpush1.msra.mxu0 %v9105
      %9157 = vmatprep.subr.mxu0 0.0
      %9158 = vmatpush1.msra.mxu0 %v9106
      %9159 = vmatprep.subr.mxu0 0.0
      %9160 = vmatpush1.msra.mxu0 %v9107
      %9161 = vmatprep.subr.mxu0 0.0
      %9162 = vmatpush1.msra.mxu0 %v9108
      %9163 = vmatprep.subr.mxu0 0.0
      %9164 = vmatpush1.msra.mxu0 %v9109
      %9165 = vmatprep.subr.mxu0 0.0
      %9166 = vmatpush1.msra.mxu0 %v9110
      %9167 = vmatprep.subr.mxu0 0.0
      %9168 = vmatpush1.msra.mxu0 %v9111
      %9169 = vmatprep.subr.mxu0 0.0
      %9170 = vmatpush1.msra.mxu0 %v9112
      %9171 = vmatprep.subr.mxu0 0.0
      %9172 = vmatpush1.msra.mxu0 %v9113
      %9173 = vmatprep.subr.mxu0 0.0
      %9174 = vmatpush1.msra.mxu0 %v9114
      %9175 = vmatprep.subr.mxu0 0.0
      %9176 = vmatpush1.msra.mxu0 %v9115
      %9177 = vmatprep.subr.mxu0 0.0
      %9178 = vmatpush1.msra.mxu0 %v9116
      %9179 = vmatprep.subr.mxu0 0.0
      %9180 = vmatpush1.msra.mxu0 %v9117
      %9181 = vmatprep.subr.mxu0 0.0
      %9182 = vmatpush1.msra.mxu0 %v9118
      %9183 = vmatprep.subr.mxu0 0.0
      %9184 = vmatpush1.msra.mxu0 %v9119
      %9185 = vmatprep.subr.mxu0 0.0
      %9186 = vmatpush1.msra.mxu0 %v9120
      %9187 = vmatprep.subr.mxu0 0.0
      %9188 = vmatpush1.msra.mxu0 0.0
      %9189 = vmatprep.subr.mxu0 0.0
      %9190 = vmatpush1.msra.mxu0 0.0
      %9191 = vmatprep.subr.mxu0 0.0
      %9192 = vmatpush1.msra.mxu0 0.0
      %9193 = vmatprep.subr.mxu0 0.0
      %9194 = vmatpush1.msra.mxu0 0.0
      %9195 = vmatprep.subr.mxu0 0.0
      %9196 = vmatpush1.msra.mxu0 0.0
      %9197 = vmatprep.subr.mxu0 0.0
      %9198 = vmatpush1.msra.mxu0 0.0
      %9199 = vmatprep.subr.mxu0 0.0
      %9200 = vmatpush1.msra.mxu0 0.0
      %9201 = vmatprep.subr.mxu0 0.0
      %9202 = vmatpush1.msra.mxu0 0.0
      %9203 = vmatprep.subr.mxu0 0.0
      %9204 = vmatpush1.msra.mxu0 0.0
      %9205 = vmatprep.subr.mxu0 0.0
      %9206 = vmatpush1.msra.mxu0 0.0
      %9207 = vmatprep.subr.mxu0 0.0
      %9208 = vmatpush1.msra.mxu0 0.0
      %9209 = vmatprep.subr.mxu0 0.0
      %9210 = vmatpush1.msra.mxu0 0.0
      %9211 = vmatprep.subr.mxu0 0.0
      %9212 = vmatpush1.msra.mxu0 0.0
      %9213 = vmatprep.subr.mxu0 0.0
      %9214 = vmatpush1.msra.mxu0 0.0
      %9215 = vmatprep.subr.mxu0 0.0
      %9216 = vmatpush1.msra.mxu0 0.0
      %9217 = vmatprep.subr.mxu0 0.0
      %9218 = vmatpush1.msra.mxu0 0.0
      %9219 = vmatprep.mubr.f32.mxu0 0.0
      %9220 = vmatmul.mubr.f32.gmra.mrb[0].mxu0 %v9072
      %v9221 = vpop.f32.mrb[0].mxu0
      %v9222 = vadd.f32 0.0, %v9221
      %v9223 = vpop.f32.mrb[0].mxu0
      %9224 = vmatprep.mubr.f32.mxu0 0.0
      %9225 = vmatmul.mubr.f32.gmra.mrb[0].mxu0 %v9074
      %v9226 = vpop.f32.mrb[0].mxu0
      %v9227 = vadd.f32 0.0, %v9226
      %v9228 = vpop.f32.mrb[0].mxu0
      %9229 = vmatprep.mubr.f32.mxu0 0.0
      %9230 = vmatmul.mubr.f32.gmra.mrb[0].mxu0 %v9076
      %v9231 = vpop.f32.mrb[0].mxu0
      %v9232 = vadd.f32 0.0, %v9231
      %v9233 = vpop.f32.mrb[0].mxu0
      %9234 = vmatprep.mubr.f32.mxu0 0.0
      %9235 = vmatmul.mubr.f32.gmra.mrb[0].mxu0 %v9078
      %v9236 = vpop.f32.mrb[0].mxu0
      %v9237 = vadd.f32 0.0, %v9236
      %v9238 = vpop.f32.mrb[0].mxu0
      %9239 = vmatprep.mubr.f32.mxu0 0.0
      %9240 = vmatmul.mubr.f32.gmra.mrb[0].mxu0 %v9080
      %v9241 = vpop.f32.mrb[0].mxu0
      %v9242 = vadd.f32 0.0, %v9241
      %v9243 = vpop.f32.mrb[0].mxu0
      %9244 = vmatprep.mubr.f32.mxu0 0.0
      %9245 = vmatmul.mubr.f32.gmra.mrb[0].mxu0 %v9082
      %v9246 = vpop.f32.mrb[0].mxu0
      %v9247 = vadd.f32 0.0, %v9246
      %v9248 = vpop.f32.mrb[0].mxu0
      %9249 = vmatprep.mubr.f32.mxu0 0.0
      %9250 = vmatmul.mubr.f32.gmra.mrb[0].mxu0 %v9084
      %v9251 = vpop.f32.mrb[0].mxu0
      %v9252 = vadd.f32 0.0, %v9251
      %v9253 = vpop.f32.mrb[0].mxu0
      %9254 = vmatprep.mubr.f32.mxu0 0.0
      %9255 = vmatmul.mubr.f32.gmra.mrb[0].mxu0 %v9086
      %v9256 = vpop.f32.mrb[0].mxu0
      %v9257 = vadd.f32 0.0, %v9256
      %v9258 = vpop.f32.mrb[0].mxu0
      %9259 = vmatprep.mubr.f32.mxu0 0.0
      %9260 = vmatmul.mubr.f32.gmra.mrb[0].mxu0 %v9088
      %v9261 = vpop.f32.mrb[0].mxu0
      %v9262 = vadd.f32 0.0, %v9261
      %v9263 = vpop.f32.mrb[0].mxu0
      %9264 = vmatprep.mubr.f32.mxu0 0.0
      %9265 = vmatmul.mubr.f32.gmra.mrb[0].mxu0 %v9090
      %v9266 = vpop.f32.mrb[0].mxu0
      %v9267 = vadd.f32 0.0, %v9266
      %v9268 = vpop.f32.mrb[0].mxu0
      %9269 = vmatprep.mubr.f32.mxu0 0.0
      %9270 = vmatmul.mubr.f32.gmra.mrb[0].mxu0 %v9092
      %v9271 = vpop.f32.mrb[0].mxu0
      %v9272 = vadd.f32 0.0, %v9271
      %v9273 = vpop.f32.mrb[0].mxu0
      %9274 = vmatprep.mubr.f32.mxu0 0.0
      %9275 = vmatmul.mubr.f32.gmra.mrb[0].mxu0 %v9094
      %v9276 = vpop.f32.mrb[0].mxu0
      %v9277 = vadd.f32 0.0, %v9276
      %v9278 = vpop.f32.mrb[0].mxu0
      %9279 = vmatprep.mubr.f32.mxu0 0.0
      %9280 = vmatmul.mubr.f32.gmra.mrb[0].mxu0 %v9096
      %v9281 = vpop.f32.mrb[0].mxu0
      %v9282 = vadd.f32 0.0, %v9281
      %v9283 = vpop.f32.mrb[0].mxu0
      %9284 = vmatprep.mubr.f32.mxu0 0.0
      %9285 = vmatmul.mubr.f32.gmra.mrb[0].mxu0 %v9098
      %v9286 = vpop.f32.mrb[0].mxu0
      %v9287 = vadd.f32 0.0, %v9286
      %v9288 = vpop.f32.mrb[0].mxu0
      %9289 = vmatprep.mubr.f32.mxu0 0.0
      %9290 = vmatmul.mubr.f32.gmra.mrb[0].mxu0 %v9100
      %v9291 = vpop.f32.mrb[0].mxu0
      %v9292 = vadd.f32 0.0, %v9291
      %v9293 = vpop.f32.mrb[0].mxu0
      %9294 = vmatprep.mubr.f32.mxu0 0.0
      %9295 = vmatmul.mubr.f32.gmra.mrb[0].mxu0 %v9102
      %v9296 = vpop.f32.mrb[0].mxu0
      %v9297 = vadd.f32 0.0, %v9296
      %v9298 = vpop.f32.mrb[0].mxu0
      %9299 = vdwg.mxu0
      %v9300 = vadd.f32 %v8475, %v9222
      %v9301 = vadd.f32 %v8476, %v9227
      %v9302 = vadd.f32 %v8477, %v9232
      %v9303 = vadd.f32 %v8478, %v9237
      %v9304 = vadd.f32 %v8479, %v9242
      %v9305 = vadd.f32 %v8480, %v9247
      %v9306 = vadd.f32 %v8481, %v9252
      %v9307 = vadd.f32 %v8482, %v9257
      %v9308 = vadd.f32 %v8483, %v9262
      %v9309 = vadd.f32 %v8484, %v9267
      %v9310 = vadd.f32 %v8485, %v9272
      %v9311 = vadd.f32 %v8486, %v9277
      %v9312 = vadd.f32 %v8487, %v9282
      %v9313 = vadd.f32 %v8488, %v9287
      %v9314 = vadd.f32 %v8489, %v9292
      %v9315 = vadd.f32 %v8490, %v9297
      %v9348 = vrot.slane %v9039, 1
      %v9349 = vrot.slane %v9040, 1
      %v9350 = vsel %vm1625, %v9348, %v9349
      %v9351 = vrot.slane %v9041, 1
      %v9352 = vrot.slane %v9042, 1
      %v9353 = vsel %vm1625, %v9351, %v9352
      %v9354 = vrot.slane %v9043, 1
      %v9355 = vrot.slane %v9044, 1
      %v9356 = vsel %vm1625, %v9354, %v9355
      %v9357 = vrot.slane %v9045, 1
      %v9358 = vrot.slane %v9046, 1
      %v9359 = vsel %vm1625, %v9357, %v9358
      %v9360 = vrot.slane %v9047, 1
      %v9361 = vrot.slane %v9048, 1
      %v9362 = vsel %vm1625, %v9360, %v9361
      %v9363 = vrot.slane %v9049, 1
      %v9364 = vrot.slane %v9050, 1
      %v9365 = vsel %vm1625, %v9363, %v9364
      %v9366 = vrot.slane %v9051, 1
      %v9367 = vrot.slane %v9052, 1
      %v9368 = vsel %vm1625, %v9366, %v9367
      %v9369 = vrot.slane %v9053, 1
      %v9370 = vrot.slane %v9054, 1
      %v9371 = vsel %vm1625, %v9369, %v9370
      %v9372 = vrot.slane %v9055, 1
      %v9373 = vrot.slane %v9056, 1
      %v9374 = vsel %vm1625, %v9372, %v9373
      %v9375 = vrot.slane %v9057, 1
      %v9376 = vrot.slane %v9058, 1
      %v9377 = vsel %vm1625, %v9375, %v9376
      %v9378 = vrot.slane %v9059, 1
      %v9379 = vrot.slane %v9060, 1
      %v9380 = vsel %vm1625, %v9378, %v9379
      %v9381 = vrot.slane %v9061, 1
      %v9382 = vrot.slane %v9062, 1
      %v9383 = vsel %vm1625, %v9381, %v9382
      %v9384 = vrot.slane %v9063, 1
      %v9385 = vrot.slane %v9064, 1
      %v9386 = vsel %vm1625, %v9384, %v9385
      %v9387 = vrot.slane %v9065, 1
      %v9388 = vrot.slane %v9066, 1
      %v9389 = vsel %vm1625, %v9387, %v9388
      %v9390 = vrot.slane %v9067, 1
      %v9391 = vrot.slane %v9068, 1
      %v9392 = vsel %vm1625, %v9390, %v9391
      %v9393 = vrot.slane %v9069, 1
      %v9394 = vrot.slane %v9070, 1
      %v9395 = vsel %vm1625, %v9393, %v9394
      %9412 = vmatprep.subr.mxu0 0.0
      %9413 = vmatpush1.msra.mxu0 %v9122
      %9414 = vmatprep.subr.mxu0 0.0
      %9415 = vmatpush1.msra.mxu0 %v9123
      %9416 = vmatprep.subr.mxu0 0.0
      %9417 = vmatpush1.msra.mxu0 %v9124
      %9418 = vmatprep.subr.mxu0 0.0
      %9419 = vmatpush1.msra.mxu0 %v9125
      %9420 = vmatprep.subr.mxu0 0.0
      %9421 = vmatpush1.msra.mxu0 %v9126
      %9422 = vmatprep.subr.mxu0 0.0
      %9423 = vmatpush1.msra.mxu0 %v9127
      %9424 = vmatprep.subr.mxu0 0.0
      %9425 = vmatpush1.msra.mxu0 %v9128
      %9426 = vmatprep.subr.mxu0 0.0
      %9427 = vmatpush1.msra.mxu0 %v9129
      %9428 = vmatprep.subr.mxu0 0.0
      %9429 = vmatpush1.msra.mxu0 %v9130
      %9430 = vmatprep.subr.mxu0 0.0
      %9431 = vmatpush1.msra.mxu0 %v9131
      %9432 = vmatprep.subr.mxu0 0.0
      %9433 = vmatpush1.msra.mxu0 %v9132
      %9434 = vmatprep.subr.mxu0 0.0
      %9435 = vmatpush1.msra.mxu0 %v9133
      %9436 = vmatprep.subr.mxu0 0.0
      %9437 = vmatpush1.msra.mxu0 %v9134
      %9438 = vmatprep.subr.mxu0 0.0
      %9439 = vmatpush1.msra.mxu0 %v9135
      %9440 = vmatprep.subr.mxu0 0.0
      %9441 = vmatpush1.msra.mxu0 %v9136
      %9442 = vmatprep.subr.mxu0 0.0
      %9443 = vmatpush1.msra.mxu0 %v9137
      %9444 = vmatprep.subr.mxu0 0.0
      %9445 = vmatpush1.msra.mxu0 0.0
      %9446 = vmatprep.subr.mxu0 0.0
      %9447 = vmatpush1.msra.mxu0 0.0
      %9448 = vmatprep.subr.mxu0 0.0
      %9449 = vmatpush1.msra.mxu0 0.0
      %9450 = vmatprep.subr.mxu0 0.0
      %9451 = vmatpush1.msra.mxu0 0.0
      %9452 = vmatprep.subr.mxu0 0.0
      %9453 = vmatpush1.msra.mxu0 0.0
      %9454 = vmatprep.subr.mxu0 0.0
      %9455 = vmatpush1.msra.mxu0 0.0
      %9456 = vmatprep.subr.mxu0 0.0
      %9457 = vmatpush1.msra.mxu0 0.0
      %9458 = vmatprep.subr.mxu0 0.0
      %9459 = vmatpush1.msra.mxu0 0.0
      %9460 = vmatprep.subr.mxu0 0.0
      %9461 = vmatpush1.msra.mxu0 0.0
      %9462 = vmatprep.subr.mxu0 0.0
      %9463 = vmatpush1.msra.mxu0 0.0
      %9464 = vmatprep.subr.mxu0 0.0
      %9465 = vmatpush1.msra.mxu0 0.0
      %9466 = vmatprep.subr.mxu0 0.0
      %9467 = vmatpush1.msra.mxu0 0.0
      %9468 = vmatprep.subr.mxu0 0.0
      %9469 = vmatpush1.msra.mxu0 0.0
      %9470 = vmatprep.subr.mxu0 0.0
      %9471 = vmatpush1.msra.mxu0 0.0
      %9472 = vmatprep.subr.mxu0 0.0
      %9473 = vmatpush1.msra.mxu0 0.0
      %9474 = vmatprep.subr.mxu0 0.0
      %9475 = vmatpush1.msra.mxu0 0.0
      %9476 = vmatprep.mubr.f32.mxu0 0.0
      %9477 = vmatmul.mubr.f32.gmra.mrb[0].mxu0 %v9350
      %v9478 = vpop.f32.mrb[0].mxu0
      %v9479 = vadd.f32 0.0, %v9478
      %v9480 = vpop.f32.mrb[0].mxu0
      %9481 = vmatprep.mubr.f32.mxu0 0.0
      %9482 = vmatmul.mubr.f32.gmra.mrb[0].mxu0 %v9353
      %v9483 = vpop.f32.mrb[0].mxu0
      %v9484 = vadd.f32 0.0, %v9483
      %v9485 = vpop.f32.mrb[0].mxu0
      %9486 = vmatprep.mubr.f32.mxu0 0.0
      %9487 = vmatmul.mubr.f32.gmra.mrb[0].mxu0 %v9356
      %v9488 = vpop.f32.mrb[0].mxu0
      %v9489 = vadd.f32 0.0, %v9488
      %v9490 = vpop.f32.mrb[0].mxu0
      %9491 = vmatprep.mubr.f32.mxu0 0.0
      %9492 = vmatmul.mubr.f32.gmra.mrb[0].mxu0 %v9359
      %v9493 = vpop.f32.mrb[0].mxu0
      %v9494 = vadd.f32 0.0, %v9493
      %v9495 = vpop.f32.mrb[0].mxu0
      %9496 = vmatprep.mubr.f32.mxu0 0.0
      %9497 = vmatmul.mubr.f32.gmra.mrb[0].mxu0 %v9362
      %v9498 = vpop.f32.mrb[0].mxu0
      %v9499 = vadd.f32 0.0, %v9498
      %v9500 = vpop.f32.mrb[0].mxu0
      %9501 = vmatprep.mubr.f32.mxu0 0.0
      %9502 = vmatmul.mubr.f32.gmra.mrb[0].mxu0 %v9365
      %v9503 = vpop.f32.mrb[0].mxu0
      %v9504 = vadd.f32 0.0, %v9503
      %v9505 = vpop.f32.mrb[0].mxu0
      %9506 = vmatprep.mubr.f32.mxu0 0.0
      %9507 = vmatmul.mubr.f32.gmra.mrb[0].mxu0 %v9368
      %v9508 = vpop.f32.mrb[0].mxu0
      %v9509 = vadd.f32 0.0, %v9508
      %v9510 = vpop.f32.mrb[0].mxu0
      %9511 = vmatprep.mubr.f32.mxu0 0.0
      %9512 = vmatmul.mubr.f32.gmra.mrb[0].mxu0 %v9371
      %v9513 = vpop.f32.mrb[0].mxu0
      %v9514 = vadd.f32 0.0, %v9513
      %v9515 = vpop.f32.mrb[0].mxu0
      %9516 = vmatprep.mubr.f32.mxu0 0.0
      %9517 = vmatmul.mubr.f32.gmra.mrb[0].mxu0 %v9374
      %v9518 = vpop.f32.mrb[0].mxu0
      %v9519 = vadd.f32 0.0, %v9518
      %v9520 = vpop.f32.mrb[0].mxu0
      %9521 = vmatprep.mubr.f32.mxu0 0.0
      %9522 = vmatmul.mubr.f32.gmra.mrb[0].mxu0 %v9377
      %v9523 = vpop.f32.mrb[0].mxu0
      %v9524 = vadd.f32 0.0, %v9523
      %v9525 = vpop.f32.mrb[0].mxu0
      %9526 = vmatprep.mubr.f32.mxu0 0.0
      %9527 = vmatmul.mubr.f32.gmra.mrb[0].mxu0 %v9380
      %v9528 = vpop.f32.mrb[0].mxu0
      %v9529 = vadd.f32 0.0, %v9528
      %v9530 = vpop.f32.mrb[0].mxu0
      %9531 = vmatprep.mubr.f32.mxu0 0.0
      %9532 = vmatmul.mubr.f32.gmra.mrb[0].mxu0 %v9383
      %v9533 = vpop.f32.mrb[0].mxu0
      %v9534 = vadd.f32 0.0, %v9533
      %v9535 = vpop.f32.mrb[0].mxu0
      %9536 = vmatprep.mubr.f32.mxu0 0.0
      %9537 = vmatmul.mubr.f32.gmra.mrb[0].mxu0 %v9386
      %v9538 = vpop.f32.mrb[0].mxu0
      %v9539 = vadd.f32 0.0, %v9538
      %v9540 = vpop.f32.mrb[0].mxu0
      %9541 = vmatprep.mubr.f32.mxu0 0.0
      %9542 = vmatmul.mubr.f32.gmra.mrb[0].mxu0 %v9389
      %v9543 = vpop.f32.mrb[0].mxu0
      %v9544 = vadd.f32 0.0, %v9543
      %v9545 = vpop.f32.mrb[0].mxu0
      %9546 = vmatprep.mubr.f32.mxu0 0.0
      %9547 = vmatmul.mubr.f32.gmra.mrb[0].mxu0 %v9392
      %v9548 = vpop.f32.mrb[0].mxu0
      %v9549 = vadd.f32 0.0, %v9548
      %v9550 = vpop.f32.mrb[0].mxu0
      %9551 = vmatprep.mubr.f32.mxu0 0.0
      %9552 = vmatmul.mubr.f32.gmra.mrb[0].mxu0 %v9395
      %v9553 = vpop.f32.mrb[0].mxu0
      %v9554 = vadd.f32 0.0, %v9553
      %v9555 = vpop.f32.mrb[0].mxu0
      %9556 = vdwg.mxu0
      %v9557 = vadd.f32 %v9300, %v9479
      %v9558 = vadd.f32 %v9301, %v9484
      %v9559 = vadd.f32 %v9302, %v9489
      %v9560 = vadd.f32 %v9303, %v9494
      %v9561 = vadd.f32 %v9304, %v9499
      %v9562 = vadd.f32 %v9305, %v9504
      %v9563 = vadd.f32 %v9306, %v9509
      %v9564 = vadd.f32 %v9307, %v9514
      %v9565 = vadd.f32 %v9308, %v9519
      %v9566 = vadd.f32 %v9309, %v9524
      %v9567 = vadd.f32 %v9310, %v9529
      %v9568 = vadd.f32 %v9311, %v9534
      %v9569 = vadd.f32 %v9312, %v9539
      %v9570 = vadd.f32 %v9313, %v9544
      %v9571 = vadd.f32 %v9314, %v9549
      %v9572 = vadd.f32 %v9315, %v9554
      %v9605 = vrot.slane %v9072, 1
      %v9606 = vrot.slane %v9073, 1
      %v9607 = vsel %vm1625, %v9605, %v9606
      %v9608 = vrot.slane %v9074, 1
      %v9609 = vrot.slane %v9075, 1
      %v9610 = vsel %vm1625, %v9608, %v9609
      %v9611 = vrot.slane %v9076, 1
      %v9612 = vrot.slane %v9077, 1
      %v9613 = vsel %vm1625, %v9611, %v9612
      %v9614 = vrot.slane %v9078, 1
      %v9615 = vrot.slane %v9079, 1
      %v9616 = vsel %vm1625, %v9614, %v9615
      %v9617 = vrot.slane %v9080, 1
      %v9618 = vrot.slane %v9081, 1
      %v9619 = vsel %vm1625, %v9617, %v9618
      %v9620 = vrot.slane %v9082, 1
      %v9621 = vrot.slane %v9083, 1
      %v9622 = vsel %vm1625, %v9620, %v9621
      %v9623 = vrot.slane %v9084, 1
      %v9624 = vrot.slane %v9085, 1
      %v9625 = vsel %vm1625, %v9623, %v9624
      %v9626 = vrot.slane %v9086, 1
      %v9627 = vrot.slane %v9087, 1
      %v9628 = vsel %vm1625, %v9626, %v9627
      %v9629 = vrot.slane %v9088, 1
      %v9630 = vrot.slane %v9089, 1
      %v9631 = vsel %vm1625, %v9629, %v9630
      %v9632 = vrot.slane %v9090, 1
      %v9633 = vrot.slane %v9091, 1
      %v9634 = vsel %vm1625, %v9632, %v9633
      %v9635 = vrot.slane %v9092, 1
      %v9636 = vrot.slane %v9093, 1
      %v9637 = vsel %vm1625, %v9635, %v9636
      %v9638 = vrot.slane %v9094, 1
      %v9639 = vrot.slane %v9095, 1
      %v9640 = vsel %vm1625, %v9638, %v9639
      %v9641 = vrot.slane %v9096, 1
      %v9642 = vrot.slane %v9097, 1
      %v9643 = vsel %vm1625, %v9641, %v9642
      %v9644 = vrot.slane %v9098, 1
      %v9645 = vrot.slane %v9099, 1
      %v9646 = vsel %vm1625, %v9644, %v9645
      %v9647 = vrot.slane %v9100, 1
      %v9648 = vrot.slane %v9101, 1
      %v9649 = vsel %vm1625, %v9647, %v9648
      %v9650 = vrot.slane %v9102, 1
      %v9651 = vrot.slane %v9103, 1
      %v9652 = vsel %vm1625, %v9650, %v9651
      %9669 = vmatprep.subr.mxu0 0.0
      %9670 = vmatpush1.msra.mxu0 %v9139
      %9671 = vmatprep.subr.mxu0 0.0
      %9672 = vmatpush1.msra.mxu0 %v9140
      %9673 = vmatprep.subr.mxu0 0.0
      %9674 = vmatpush1.msra.mxu0 %v9141
      %9675 = vmatprep.subr.mxu0 0.0
      %9676 = vmatpush1.msra.mxu0 %v9142
      %9677 = vmatprep.subr.mxu0 0.0
      %9678 = vmatpush1.msra.mxu0 %v9143
      %9679 = vmatprep.subr.mxu0 0.0
      %9680 = vmatpush1.msra.mxu0 %v9144
      %9681 = vmatprep.subr.mxu0 0.0
      %9682 = vmatpush1.msra.mxu0 %v9145
      %9683 = vmatprep.subr.mxu0 0.0
      %9684 = vmatpush1.msra.mxu0 %v9146
      %9685 = vmatprep.subr.mxu0 0.0
      %9686 = vmatpush1.msra.mxu0 %v9147
      %9687 = vmatprep.subr.mxu0 0.0
      %9688 = vmatpush1.msra.mxu0 %v9148
      %9689 = vmatprep.subr.mxu0 0.0
      %9690 = vmatpush1.msra.mxu0 %v9149
      %9691 = vmatprep.subr.mxu0 0.0
      %9692 = vmatpush1.msra.mxu0 %v9150
      %9693 = vmatprep.subr.mxu0 0.0
      %9694 = vmatpush1.msra.mxu0 %v9151
      %9695 = vmatprep.subr.mxu0 0.0
      %9696 = vmatpush1.msra.mxu0 %v9152
      %9697 = vmatprep.subr.mxu0 0.0
      %9698 = vmatpush1.msra.mxu0 %v9153
      %9699 = vmatprep.subr.mxu0 0.0
      %9700 = vmatpush1.msra.mxu0 %v9154
      %9701 = vmatprep.subr.mxu0 0.0
      %9702 = vmatpush1.msra.mxu0 0.0
      %9703 = vmatprep.subr.mxu0 0.0
      %9704 = vmatpush1.msra.mxu0 0.0
      %9705 = vmatprep.subr.mxu0 0.0
      %9706 = vmatpush1.msra.mxu0 0.0
      %9707 = vmatprep.subr.mxu0 0.0
      %9708 = vmatpush1.msra.mxu0 0.0
      %9709 = vmatprep.subr.mxu0 0.0
      %9710 = vmatpush1.msra.mxu0 0.0
      %9711 = vmatprep.subr.mxu0 0.0
      %9712 = vmatpush1.msra.mxu0 0.0
      %9713 = vmatprep.subr.mxu0 0.0
      %9714 = vmatpush1.msra.mxu0 0.0
      %9715 = vmatprep.subr.mxu0 0.0
      %9716 = vmatpush1.msra.mxu0 0.0
      %9717 = vmatprep.subr.mxu0 0.0
      %9718 = vmatpush1.msra.mxu0 0.0
      %9719 = vmatprep.subr.mxu0 0.0
      %9720 = vmatpush1.msra.mxu0 0.0
      %9721 = vmatprep.subr.mxu0 0.0
      %9722 = vmatpush1.msra.mxu0 0.0
      %9723 = vmatprep.subr.mxu0 0.0
      %9724 = vmatpush1.msra.mxu0 0.0
      %9725 = vmatprep.subr.mxu0 0.0
      %9726 = vmatpush1.msra.mxu0 0.0
      %9727 = vmatprep.subr.mxu0 0.0
      %9728 = vmatpush1.msra.mxu0 0.0
      %9729 = vmatprep.subr.mxu0 0.0
      %9730 = vmatpush1.msra.mxu0 0.0
      %9731 = vmatprep.subr.mxu0 0.0
      %9732 = vmatpush1.msra.mxu0 0.0
      %9733 = vmatprep.mubr.f32.mxu0 0.0
      %9734 = vmatmul.mubr.f32.gmra.mrb[0].mxu0 %v9607
      %v9735 = vpop.f32.mrb[0].mxu0
      %v9736 = vadd.f32 0.0, %v9735
      %v9737 = vpop.f32.mrb[0].mxu0
      %9738 = vmatprep.mubr.f32.mxu0 0.0
      %9739 = vmatmul.mubr.f32.gmra.mrb[0].mxu0 %v9610
      %v9740 = vpop.f32.mrb[0].mxu0
      %v9741 = vadd.f32 0.0, %v9740
      %v9742 = vpop.f32.mrb[0].mxu0
      %9743 = vmatprep.mubr.f32.mxu0 0.0
      %9744 = vmatmul.mubr.f32.gmra.mrb[0].mxu0 %v9613
      %v9745 = vpop.f32.mrb[0].mxu0
      %v9746 = vadd.f32 0.0, %v9745
      %v9747 = vpop.f32.mrb[0].mxu0
      %9748 = vmatprep.mubr.f32.mxu0 0.0
      %9749 = vmatmul.mubr.f32.gmra.mrb[0].mxu0 %v9616
      %v9750 = vpop.f32.mrb[0].mxu0
      %v9751 = vadd.f32 0.0, %v9750
      %v9752 = vpop.f32.mrb[0].mxu0
      %9753 = vmatprep.mubr.f32.mxu0 0.0
      %9754 = vmatmul.mubr.f32.gmra.mrb[0].mxu0 %v9619
      %v9755 = vpop.f32.mrb[0].mxu0
      %v9756 = vadd.f32 0.0, %v9755
      %v9757 = vpop.f32.mrb[0].mxu0
      %9758 = vmatprep.mubr.f32.mxu0 0.0
      %9759 = vmatmul.mubr.f32.gmra.mrb[0].mxu0 %v9622
      %v9760 = vpop.f32.mrb[0].mxu0
      %v9761 = vadd.f32 0.0, %v9760
      %v9762 = vpop.f32.mrb[0].mxu0
      %9763 = vmatprep.mubr.f32.mxu0 0.0
      %9764 = vmatmul.mubr.f32.gmra.mrb[0].mxu0 %v9625
      %v9765 = vpop.f32.mrb[0].mxu0
      %v9766 = vadd.f32 0.0, %v9765
      %v9767 = vpop.f32.mrb[0].mxu0
      %9768 = vmatprep.mubr.f32.mxu0 0.0
      %9769 = vmatmul.mubr.f32.gmra.mrb[0].mxu0 %v9628
      %v9770 = vpop.f32.mrb[0].mxu0
      %v9771 = vadd.f32 0.0, %v9770
      %v9772 = vpop.f32.mrb[0].mxu0
      %9773 = vmatprep.mubr.f32.mxu0 0.0
      %9774 = vmatmul.mubr.f32.gmra.mrb[0].mxu0 %v9631
      %v9775 = vpop.f32.mrb[0].mxu0
      %v9776 = vadd.f32 0.0, %v9775
      %v9777 = vpop.f32.mrb[0].mxu0
      %9778 = vmatprep.mubr.f32.mxu0 0.0
      %9779 = vmatmul.mubr.f32.gmra.mrb[0].mxu0 %v9634
      %v9780 = vpop.f32.mrb[0].mxu0
      %v9781 = vadd.f32 0.0, %v9780
      %v9782 = vpop.f32.mrb[0].mxu0
      %9783 = vmatprep.mubr.f32.mxu0 0.0
      %9784 = vmatmul.mubr.f32.gmra.mrb[0].mxu0 %v9637
      %v9785 = vpop.f32.mrb[0].mxu0
      %v9786 = vadd.f32 0.0, %v9785
      %v9787 = vpop.f32.mrb[0].mxu0
      %9788 = vmatprep.mubr.f32.mxu0 0.0
      %9789 = vmatmul.mubr.f32.gmra.mrb[0].mxu0 %v9640
      %v9790 = vpop.f32.mrb[0].mxu0
      %v9791 = vadd.f32 0.0, %v9790
      %v9792 = vpop.f32.mrb[0].mxu0
      %9793 = vmatprep.mubr.f32.mxu0 0.0
      %9794 = vmatmul.mubr.f32.gmra.mrb[0].mxu0 %v9643
      %v9795 = vpop.f32.mrb[0].mxu0
      %v9796 = vadd.f32 0.0, %v9795
      %v9797 = vpop.f32.mrb[0].mxu0
      %9798 = vmatprep.mubr.f32.mxu0 0.0
      %9799 = vmatmul.mubr.f32.gmra.mrb[0].mxu0 %v9646
      %v9800 = vpop.f32.mrb[0].mxu0
      %v9801 = vadd.f32 0.0, %v9800
      %v9802 = vpop.f32.mrb[0].mxu0
      %9803 = vmatprep.mubr.f32.mxu0 0.0
      %9804 = vmatmul.mubr.f32.gmra.mrb[0].mxu0 %v9649
      %v9805 = vpop.f32.mrb[0].mxu0
      %v9806 = vadd.f32 0.0, %v9805
      %v9807 = vpop.f32.mrb[0].mxu0
      %9808 = vmatprep.mubr.f32.mxu0 0.0
      %9809 = vmatmul.mubr.f32.gmra.mrb[0].mxu0 %v9652
      %v9810 = vpop.f32.mrb[0].mxu0
      %v9811 = vadd.f32 0.0, %v9810
      %v9812 = vpop.f32.mrb[0].mxu0
      %9813 = vdwg.mxu0
      %v9814 = vadd.f32 %v9557, %v9736
      %v9815 = vadd.f32 %v9558, %v9741
      %v9816 = vadd.f32 %v9559, %v9746
      %v9817 = vadd.f32 %v9560, %v9751
      %v9818 = vadd.f32 %v9561, %v9756
      %v9819 = vadd.f32 %v9562, %v9761
      %v9820 = vadd.f32 %v9563, %v9766
      %v9821 = vadd.f32 %v9564, %v9771
      %v9822 = vadd.f32 %v9565, %v9776
      %v9823 = vadd.f32 %v9566, %v9781
      %v9824 = vadd.f32 %v9567, %v9786
      %v9825 = vadd.f32 %v9568, %v9791
      %v9826 = vadd.f32 %v9569, %v9796
      %v9827 = vadd.f32 %v9570, %v9801
      %v9828 = vadd.f32 %v9571, %v9806
      %v9829 = vadd.f32 %v9572, %v9811
      %9830 = vmatprep.subr.mxu0 0.0
      %9831 = vmatpush1.msra.mxu0 %v9105
      %9832 = vmatprep.subr.mxu0 0.0
      %9833 = vmatpush1.msra.mxu0 %v9106
      %9834 = vmatprep.subr.mxu0 0.0
      %9835 = vmatpush1.msra.mxu0 %v9107
      %9836 = vmatprep.subr.mxu0 0.0
      %9837 = vmatpush1.msra.mxu0 %v9108
      %9838 = vmatprep.subr.mxu0 0.0
      %9839 = vmatpush1.msra.mxu0 %v9109
      %9840 = vmatprep.subr.mxu0 0.0
      %9841 = vmatpush1.msra.mxu0 %v9110
      %9842 = vmatprep.subr.mxu0 0.0
      %9843 = vmatpush1.msra.mxu0 %v9111
      %9844 = vmatprep.subr.mxu0 0.0
      %9845 = vmatpush1.msra.mxu0 %v9112
      %9846 = vmatprep.subr.mxu0 0.0
      %9847 = vmatpush1.msra.mxu0 %v9113
      %9848 = vmatprep.subr.mxu0 0.0
      %9849 = vmatpush1.msra.mxu0 %v9114
      %9850 = vmatprep.subr.mxu0 0.0
      %9851 = vmatpush1.msra.mxu0 %v9115
      %9852 = vmatprep.subr.mxu0 0.0
      %9853 = vmatpush1.msra.mxu0 %v9116
      %9854 = vmatprep.subr.mxu0 0.0
      %9855 = vmatpush1.msra.mxu0 %v9117
      %9856 = vmatprep.subr.mxu0 0.0
      %9857 = vmatpush1.msra.mxu0 %v9118
      %9858 = vmatprep.subr.mxu0 0.0
      %9859 = vmatpush1.msra.mxu0 %v9119
      %9860 = vmatprep.subr.mxu0 0.0
      %9861 = vmatpush1.msra.mxu0 %v9120
      %9862 = vmatprep.subr.mxu0 0.0
      %9863 = vmatpush1.msra.mxu0 0.0
      %9864 = vmatprep.subr.mxu0 0.0
      %9865 = vmatpush1.msra.mxu0 0.0
      %9866 = vmatprep.subr.mxu0 0.0
      %9867 = vmatpush1.msra.mxu0 0.0
      %9868 = vmatprep.subr.mxu0 0.0
      %9869 = vmatpush1.msra.mxu0 0.0
      %9870 = vmatprep.subr.mxu0 0.0
      %9871 = vmatpush1.msra.mxu0 0.0
      %9872 = vmatprep.subr.mxu0 0.0
      %9873 = vmatpush1.msra.mxu0 0.0
      %9874 = vmatprep.subr.mxu0 0.0
      %9875 = vmatpush1.msra.mxu0 0.0
      %9876 = vmatprep.subr.mxu0 0.0
      %9877 = vmatpush1.msra.mxu0 0.0
      %9878 = vmatprep.subr.mxu0 0.0
      %9879 = vmatpush1.msra.mxu0 0.0
      %9880 = vmatprep.subr.mxu0 0.0
      %9881 = vmatpush1.msra.mxu0 0.0
      %9882 = vmatprep.subr.mxu0 0.0
      %9883 = vmatpush1.msra.mxu0 0.0
      %9884 = vmatprep.subr.mxu0 0.0
      %9885 = vmatpush1.msra.mxu0 0.0
      %9886 = vmatprep.subr.mxu0 0.0
      %9887 = vmatpush1.msra.mxu0 0.0
      %9888 = vmatprep.subr.mxu0 0.0
      %9889 = vmatpush1.msra.mxu0 0.0
      %9890 = vmatprep.subr.mxu0 0.0
      %9891 = vmatpush1.msra.mxu0 0.0
      %9892 = vmatprep.subr.mxu0 0.0
      %9893 = vmatpush1.msra.mxu0 0.0
      %9894 = vmatprep.mubr.f32.mxu0 0.0
      %9895 = vmatmul.mubr.f32.gmra.mrb[0].mxu0 %v9350
      %v9896 = vpop.f32.mrb[0].mxu0
      %v9897 = vadd.f32 0.0, %v9896
      %v9898 = vpop.f32.mrb[0].mxu0
      %9899 = vmatprep.mubr.f32.mxu0 0.0
      %9900 = vmatmul.mubr.f32.gmra.mrb[0].mxu0 %v9353
      %v9901 = vpop.f32.mrb[0].mxu0
      %v9902 = vadd.f32 0.0, %v9901
      %v9903 = vpop.f32.mrb[0].mxu0
      %9904 = vmatprep.mubr.f32.mxu0 0.0
      %9905 = vmatmul.mubr.f32.gmra.mrb[0].mxu0 %v9356
      %v9906 = vpop.f32.mrb[0].mxu0
      %v9907 = vadd.f32 0.0, %v9906
      %v9908 = vpop.f32.mrb[0].mxu0
      %9909 = vmatprep.mubr.f32.mxu0 0.0
      %9910 = vmatmul.mubr.f32.gmra.mrb[0].mxu0 %v9359
      %v9911 = vpop.f32.mrb[0].mxu0
      %v9912 = vadd.f32 0.0, %v9911
      %v9913 = vpop.f32.mrb[0].mxu0
      %9914 = vmatprep.mubr.f32.mxu0 0.0
      %9915 = vmatmul.mubr.f32.gmra.mrb[0].mxu0 %v9362
      %v9916 = vpop.f32.mrb[0].mxu0
      %v9917 = vadd.f32 0.0, %v9916
      %v9918 = vpop.f32.mrb[0].mxu0
      %9919 = vmatprep.mubr.f32.mxu0 0.0
      %9920 = vmatmul.mubr.f32.gmra.mrb[0].mxu0 %v9365
      %v9921 = vpop.f32.mrb[0].mxu0
      %v9922 = vadd.f32 0.0, %v9921
      %v9923 = vpop.f32.mrb[0].mxu0
      %9924 = vmatprep.mubr.f32.mxu0 0.0
      %9925 = vmatmul.mubr.f32.gmra.mrb[0].mxu0 %v9368
      %v9926 = vpop.f32.mrb[0].mxu0
      %v9927 = vadd.f32 0.0, %v9926
      %v9928 = vpop.f32.mrb[0].mxu0
      %9929 = vmatprep.mubr.f32.mxu0 0.0
      %9930 = vmatmul.mubr.f32.gmra.mrb[0].mxu0 %v9371
      %v9931 = vpop.f32.mrb[0].mxu0
      %v9932 = vadd.f32 0.0, %v9931
      %v9933 = vpop.f32.mrb[0].mxu0
      %9934 = vmatprep.mubr.f32.mxu0 0.0
      %9935 = vmatmul.mubr.f32.gmra.mrb[0].mxu0 %v9374
      %v9936 = vpop.f32.mrb[0].mxu0
      %v9937 = vadd.f32 0.0, %v9936
      %v9938 = vpop.f32.mrb[0].mxu0
      %9939 = vmatprep.mubr.f32.mxu0 0.0
      %9940 = vmatmul.mubr.f32.gmra.mrb[0].mxu0 %v9377
      %v9941 = vpop.f32.mrb[0].mxu0
      %v9942 = vadd.f32 0.0, %v9941
      %v9943 = vpop.f32.mrb[0].mxu0
      %9944 = vmatprep.mubr.f32.mxu0 0.0
      %9945 = vmatmul.mubr.f32.gmra.mrb[0].mxu0 %v9380
      %v9946 = vpop.f32.mrb[0].mxu0
      %v9947 = vadd.f32 0.0, %v9946
      %v9948 = vpop.f32.mrb[0].mxu0
      %9949 = vmatprep.mubr.f32.mxu0 0.0
      %9950 = vmatmul.mubr.f32.gmra.mrb[0].mxu0 %v9383
      %v9951 = vpop.f32.mrb[0].mxu0
      %v9952 = vadd.f32 0.0, %v9951
      %v9953 = vpop.f32.mrb[0].mxu0
      %9954 = vmatprep.mubr.f32.mxu0 0.0
      %9955 = vmatmul.mubr.f32.gmra.mrb[0].mxu0 %v9386
      %v9956 = vpop.f32.mrb[0].mxu0
      %v9957 = vadd.f32 0.0, %v9956
      %v9958 = vpop.f32.mrb[0].mxu0
      %9959 = vmatprep.mubr.f32.mxu0 0.0
      %9960 = vmatmul.mubr.f32.gmra.mrb[0].mxu0 %v9389
      %v9961 = vpop.f32.mrb[0].mxu0
      %v9962 = vadd.f32 0.0, %v9961
      %v9963 = vpop.f32.mrb[0].mxu0
      %9964 = vmatprep.mubr.f32.mxu0 0.0
      %9965 = vmatmul.mubr.f32.gmra.mrb[0].mxu0 %v9392
      %v9966 = vpop.f32.mrb[0].mxu0
      %v9967 = vadd.f32 0.0, %v9966
      %v9968 = vpop.f32.mrb[0].mxu0
      %9969 = vmatprep.mubr.f32.mxu0 0.0
      %9970 = vmatmul.mubr.f32.gmra.mrb[0].mxu0 %v9395
      %v9971 = vpop.f32.mrb[0].mxu0
      %v9972 = vadd.f32 0.0, %v9971
      %v9973 = vpop.f32.mrb[0].mxu0
      %9974 = vdwg.mxu0
      %v9975 = vadd.f32 %v9022, %v9897
      %v9976 = vadd.f32 %v9023, %v9902
      %v9977 = vadd.f32 %v9024, %v9907
      %v9978 = vadd.f32 %v9025, %v9912
      %v9979 = vadd.f32 %v9026, %v9917
      %v9980 = vadd.f32 %v9027, %v9922
      %v9981 = vadd.f32 %v9028, %v9927
      %v9982 = vadd.f32 %v9029, %v9932
      %v9983 = vadd.f32 %v9030, %v9937
      %v9984 = vadd.f32 %v9031, %v9942
      %v9985 = vadd.f32 %v9032, %v9947
      %v9986 = vadd.f32 %v9033, %v9952
      %v9987 = vadd.f32 %v9034, %v9957
      %v9988 = vadd.f32 %v9035, %v9962
      %v9989 = vadd.f32 %v9036, %v9967
      %v9990 = vadd.f32 %v9037, %v9972
      %9991 = vmatprep.subr.mxu0 0.0
      %9992 = vmatpush1.msra.mxu0 %v9122
      %9993 = vmatprep.subr.mxu0 0.0
      %9994 = vmatpush1.msra.mxu0 %v9123
      %9995 = vmatprep.subr.mxu0 0.0
      %9996 = vmatpush1.msra.mxu0 %v9124
      %9997 = vmatprep.subr.mxu0 0.0
      %9998 = vmatpush1.msra.mxu0 %v9125
      %9999 = vmatprep.subr.mxu0 0.0
      %10000 = vmatpush1.msra.mxu0 %v9126
      %10001 = vmatprep.subr.mxu0 0.0
      %10002 = vmatpush1.msra.mxu0 %v9127
      %10003 = vmatprep.subr.mxu0 0.0
      %10004 = vmatpush1.msra.mxu0 %v9128
      %10005 = vmatprep.subr.mxu0 0.0
      %10006 = vmatpush1.msra.mxu0 %v9129
      %10007 = vmatprep.subr.mxu0 0.0
      %10008 = vmatpush1.msra.mxu0 %v9130
      %10009 = vmatprep.subr.mxu0 0.0
      %10010 = vmatpush1.msra.mxu0 %v9131
      %10011 = vmatprep.subr.mxu0 0.0
      %10012 = vmatpush1.msra.mxu0 %v9132
      %10013 = vmatprep.subr.mxu0 0.0
      %10014 = vmatpush1.msra.mxu0 %v9133
      %10015 = vmatprep.subr.mxu0 0.0
      %10016 = vmatpush1.msra.mxu0 %v9134
      %10017 = vmatprep.subr.mxu0 0.0
      %10018 = vmatpush1.msra.mxu0 %v9135
      %10019 = vmatprep.subr.mxu0 0.0
      %10020 = vmatpush1.msra.mxu0 %v9136
      %10021 = vmatprep.subr.mxu0 0.0
      %10022 = vmatpush1.msra.mxu0 %v9137
      %10023 = vmatprep.subr.mxu0 0.0
      %10024 = vmatpush1.msra.mxu0 0.0
      %10025 = vmatprep.subr.mxu0 0.0
      %10026 = vmatpush1.msra.mxu0 0.0
      %10027 = vmatprep.subr.mxu0 0.0
      %10028 = vmatpush1.msra.mxu0 0.0
      %10029 = vmatprep.subr.mxu0 0.0
      %10030 = vmatpush1.msra.mxu0 0.0
      %10031 = vmatprep.subr.mxu0 0.0
      %10032 = vmatpush1.msra.mxu0 0.0
      %10033 = vmatprep.subr.mxu0 0.0
      %10034 = vmatpush1.msra.mxu0 0.0
      %10035 = vmatprep.subr.mxu0 0.0
      %10036 = vmatpush1.msra.mxu0 0.0
      %10037 = vmatprep.subr.mxu0 0.0
      %10038 = vmatpush1.msra.mxu0 0.0
      %10039 = vmatprep.subr.mxu0 0.0
      %10040 = vmatpush1.msra.mxu0 0.0
      %10041 = vmatprep.subr.mxu0 0.0
      %10042 = vmatpush1.msra.mxu0 0.0
      %10043 = vmatprep.subr.mxu0 0.0
      %10044 = vmatpush1.msra.mxu0 0.0
      %10045 = vmatprep.subr.mxu0 0.0
      %10046 = vmatpush1.msra.mxu0 0.0
      %10047 = vmatprep.subr.mxu0 0.0
      %10048 = vmatpush1.msra.mxu0 0.0
      %10049 = vmatprep.subr.mxu0 0.0
      %10050 = vmatpush1.msra.mxu0 0.0
      %10051 = vmatprep.subr.mxu0 0.0
      %10052 = vmatpush1.msra.mxu0 0.0
      %10053 = vmatprep.subr.mxu0 0.0
      %10054 = vmatpush1.msra.mxu0 0.0
      %10055 = vmatprep.mubr.f32.mxu0 0.0
      %10056 = vmatmul.mubr.f32.gmra.mrb[0].mxu0 %v9607
      %v10057 = vpop.f32.mrb[0].mxu0
      %v10058 = vadd.f32 0.0, %v10057
      %v10059 = vpop.f32.mrb[0].mxu0
      %10060 = vmatprep.mubr.f32.mxu0 0.0
      %10061 = vmatmul.mubr.f32.gmra.mrb[0].mxu0 %v9610
      %v10062 = vpop.f32.mrb[0].mxu0
      %v10063 = vadd.f32 0.0, %v10062
      %v10064 = vpop.f32.mrb[0].mxu0
      %10065 = vmatprep.mubr.f32.mxu0 0.0
      %10066 = vmatmul.mubr.f32.gmra.mrb[0].mxu0 %v9613
      %v10067 = vpop.f32.mrb[0].mxu0
      %v10068 = vadd.f32 0.0, %v10067
      %v10069 = vpop.f32.mrb[0].mxu0
      %10070 = vmatprep.mubr.f32.mxu0 0.0
      %10071 = vmatmul.mubr.f32.gmra.mrb[0].mxu0 %v9616
      %v10072 = vpop.f32.mrb[0].mxu0
      %v10073 = vadd.f32 0.0, %v10072
      %v10074 = vpop.f32.mrb[0].mxu0
      %10075 = vmatprep.mubr.f32.mxu0 0.0
      %10076 = vmatmul.mubr.f32.gmra.mrb[0].mxu0 %v9619
      %v10077 = vpop.f32.mrb[0].mxu0
      %v10078 = vadd.f32 0.0, %v10077
      %v10079 = vpop.f32.mrb[0].mxu0
      %10080 = vmatprep.mubr.f32.mxu0 0.0
      %10081 = vmatmul.mubr.f32.gmra.mrb[0].mxu0 %v9622
      %v10082 = vpop.f32.mrb[0].mxu0
      %v10083 = vadd.f32 0.0, %v10082
      %v10084 = vpop.f32.mrb[0].mxu0
      %10085 = vmatprep.mubr.f32.mxu0 0.0
      %10086 = vmatmul.mubr.f32.gmra.mrb[0].mxu0 %v9625
      %v10087 = vpop.f32.mrb[0].mxu0
      %v10088 = vadd.f32 0.0, %v10087
      %v10089 = vpop.f32.mrb[0].mxu0
      %10090 = vmatprep.mubr.f32.mxu0 0.0
      %10091 = vmatmul.mubr.f32.gmra.mrb[0].mxu0 %v9628
      %v10092 = vpop.f32.mrb[0].mxu0
      %v10093 = vadd.f32 0.0, %v10092
      %v10094 = vpop.f32.mrb[0].mxu0
      %10095 = vmatprep.mubr.f32.mxu0 0.0
      %10096 = vmatmul.mubr.f32.gmra.mrb[0].mxu0 %v9631
      %v10097 = vpop.f32.mrb[0].mxu0
      %v10098 = vadd.f32 0.0, %v10097
      %v10099 = vpop.f32.mrb[0].mxu0
      %10100 = vmatprep.mubr.f32.mxu0 0.0
      %10101 = vmatmul.mubr.f32.gmra.mrb[0].mxu0 %v9634
      %v10102 = vpop.f32.mrb[0].mxu0
      %v10103 = vadd.f32 0.0, %v10102
      %v10104 = vpop.f32.mrb[0].mxu0
      %10105 = vmatprep.mubr.f32.mxu0 0.0
      %10106 = vmatmul.mubr.f32.gmra.mrb[0].mxu0 %v9637
      %v10107 = vpop.f32.mrb[0].mxu0
      %v10108 = vadd.f32 0.0, %v10107
      %v10109 = vpop.f32.mrb[0].mxu0
      %10110 = vmatprep.mubr.f32.mxu0 0.0
      %10111 = vmatmul.mubr.f32.gmra.mrb[0].mxu0 %v9640
      %v10112 = vpop.f32.mrb[0].mxu0
      %v10113 = vadd.f32 0.0, %v10112
      %v10114 = vpop.f32.mrb[0].mxu0
      %10115 = vmatprep.mubr.f32.mxu0 0.0
      %10116 = vmatmul.mubr.f32.gmra.mrb[0].mxu0 %v9643
      %v10117 = vpop.f32.mrb[0].mxu0
      %v10118 = vadd.f32 0.0, %v10117
      %v10119 = vpop.f32.mrb[0].mxu0
      %10120 = vmatprep.mubr.f32.mxu0 0.0
      %10121 = vmatmul.mubr.f32.gmra.mrb[0].mxu0 %v9646
      %v10122 = vpop.f32.mrb[0].mxu0
      %v10123 = vadd.f32 0.0, %v10122
      %v10124 = vpop.f32.mrb[0].mxu0
      %10125 = vmatprep.mubr.f32.mxu0 0.0
      %10126 = vmatmul.mubr.f32.gmra.mrb[0].mxu0 %v9649
      %v10127 = vpop.f32.mrb[0].mxu0
      %v10128 = vadd.f32 0.0, %v10127
      %v10129 = vpop.f32.mrb[0].mxu0
      %10130 = vmatprep.mubr.f32.mxu0 0.0
      %10131 = vmatmul.mubr.f32.gmra.mrb[0].mxu0 %v9652
      %v10132 = vpop.f32.mrb[0].mxu0
      %v10133 = vadd.f32 0.0, %v10132
      %v10134 = vpop.f32.mrb[0].mxu0
      %10135 = vdwg.mxu0
      %v10136 = vadd.f32 %v9975, %v10058
      %v10137 = vadd.f32 %v9976, %v10063
      %v10138 = vadd.f32 %v9977, %v10068
      %v10139 = vadd.f32 %v9978, %v10073
      %v10140 = vadd.f32 %v9979, %v10078
      %v10141 = vadd.f32 %v9980, %v10083
      %v10142 = vadd.f32 %v9981, %v10088
      %v10143 = vadd.f32 %v9982, %v10093
      %v10144 = vadd.f32 %v9983, %v10098
      %v10145 = vadd.f32 %v9984, %v10103
      %v10146 = vadd.f32 %v9985, %v10108
      %v10147 = vadd.f32 %v9986, %v10113
      %v10148 = vadd.f32 %v9987, %v10118
      %v10149 = vadd.f32 %v9988, %v10123
      %v10150 = vadd.f32 %v9989, %v10128
      %v10151 = vadd.f32 %v9990, %v10133
      %v10152 = vrot.slane %v9039, 2
      %v10153 = vrot.slane %v9040, 2
      %v10154 = vsel %vm2590, %v10152, %v10153
      %v10155 = vrot.slane %v9041, 2
      %v10156 = vrot.slane %v9042, 2
      %v10157 = vsel %vm2590, %v10155, %v10156
      %v10158 = vrot.slane %v9043, 2
      %v10159 = vrot.slane %v9044, 2
      %v10160 = vsel %vm2590, %v10158, %v10159
      %v10161 = vrot.slane %v9045, 2
      %v10162 = vrot.slane %v9046, 2
      %v10163 = vsel %vm2590, %v10161, %v10162
      %v10164 = vrot.slane %v9047, 2
      %v10165 = vrot.slane %v9048, 2
      %v10166 = vsel %vm2590, %v10164, %v10165
      %v10167 = vrot.slane %v9049, 2
      %v10168 = vrot.slane %v9050, 2
      %v10169 = vsel %vm2590, %v10167, %v10168
      %v10170 = vrot.slane %v9051, 2
      %v10171 = vrot.slane %v9052, 2
      %v10172 = vsel %vm2590, %v10170, %v10171
      %v10173 = vrot.slane %v9053, 2
      %v10174 = vrot.slane %v9054, 2
      %v10175 = vsel %vm2590, %v10173, %v10174
      %v10176 = vrot.slane %v9055, 2
      %v10177 = vrot.slane %v9056, 2
      %v10178 = vsel %vm2590, %v10176, %v10177
      %v10179 = vrot.slane %v9057, 2
      %v10180 = vrot.slane %v9058, 2
      %v10181 = vsel %vm2590, %v10179, %v10180
      %v10182 = vrot.slane %v9059, 2
      %v10183 = vrot.slane %v9060, 2
      %v10184 = vsel %vm2590, %v10182, %v10183
      %v10185 = vrot.slane %v9061, 2
      %v10186 = vrot.slane %v9062, 2
      %v10187 = vsel %vm2590, %v10185, %v10186
      %v10188 = vrot.slane %v9063, 2
      %v10189 = vrot.slane %v9064, 2
      %v10190 = vsel %vm2590, %v10188, %v10189
      %v10191 = vrot.slane %v9065, 2
      %v10192 = vrot.slane %v9066, 2
      %v10193 = vsel %vm2590, %v10191, %v10192
      %v10194 = vrot.slane %v9067, 2
      %v10195 = vrot.slane %v9068, 2
      %v10196 = vsel %vm2590, %v10194, %v10195
      %v10197 = vrot.slane %v9069, 2
      %v10198 = vrot.slane %v9070, 2
      %v10199 = vsel %vm2590, %v10197, %v10198
      %10216 = vmatprep.subr.mxu0 0.0
      %10217 = vmatpush1.msra.mxu0 %v9139
      %10218 = vmatprep.subr.mxu0 0.0
      %10219 = vmatpush1.msra.mxu0 %v9140
      %10220 = vmatprep.subr.mxu0 0.0
      %10221 = vmatpush1.msra.mxu0 %v9141
      %10222 = vmatprep.subr.mxu0 0.0
      %10223 = vmatpush1.msra.mxu0 %v9142
      %10224 = vmatprep.subr.mxu0 0.0
      %10225 = vmatpush1.msra.mxu0 %v9143
      %10226 = vmatprep.subr.mxu0 0.0
      %10227 = vmatpush1.msra.mxu0 %v9144
      %10228 = vmatprep.subr.mxu0 0.0
      %10229 = vmatpush1.msra.mxu0 %v9145
      %10230 = vmatprep.subr.mxu0 0.0
      %10231 = vmatpush1.msra.mxu0 %v9146
      %10232 = vmatprep.subr.mxu0 0.0
      %10233 = vmatpush1.msra.mxu0 %v9147
      %10234 = vmatprep.subr.mxu0 0.0
      %10235 = vmatpush1.msra.mxu0 %v9148
      %10236 = vmatprep.subr.mxu0 0.0
      %10237 = vmatpush1.msra.mxu0 %v9149
      %10238 = vmatprep.subr.mxu0 0.0
      %10239 = vmatpush1.msra.mxu0 %v9150
      %10240 = vmatprep.subr.mxu0 0.0
      %10241 = vmatpush1.msra.mxu0 %v9151
      %10242 = vmatprep.subr.mxu0 0.0
      %10243 = vmatpush1.msra.mxu0 %v9152
      %10244 = vmatprep.subr.mxu0 0.0
      %10245 = vmatpush1.msra.mxu0 %v9153
      %10246 = vmatprep.subr.mxu0 0.0
      %10247 = vmatpush1.msra.mxu0 %v9154
      %10248 = vmatprep.subr.mxu0 0.0
      %10249 = vmatpush1.msra.mxu0 0.0
      %10250 = vmatprep.subr.mxu0 0.0
      %10251 = vmatpush1.msra.mxu0 0.0
      %10252 = vmatprep.subr.mxu0 0.0
      %10253 = vmatpush1.msra.mxu0 0.0
      %10254 = vmatprep.subr.mxu0 0.0
      %10255 = vmatpush1.msra.mxu0 0.0
      %10256 = vmatprep.subr.mxu0 0.0
      %10257 = vmatpush1.msra.mxu0 0.0
      %10258 = vmatprep.subr.mxu0 0.0
      %10259 = vmatpush1.msra.mxu0 0.0
      %10260 = vmatprep.subr.mxu0 0.0
      %10261 = vmatpush1.msra.mxu0 0.0
      %10262 = vmatprep.subr.mxu0 0.0
      %10263 = vmatpush1.msra.mxu0 0.0
      %10264 = vmatprep.subr.mxu0 0.0
      %10265 = vmatpush1.msra.mxu0 0.0
      %10266 = vmatprep.subr.mxu0 0.0
      %10267 = vmatpush1.msra.mxu0 0.0
      %10268 = vmatprep.subr.mxu0 0.0
      %10269 = vmatpush1.msra.mxu0 0.0
      %10270 = vmatprep.subr.mxu0 0.0
      %10271 = vmatpush1.msra.mxu0 0.0
      %10272 = vmatprep.subr.mxu0 0.0
      %10273 = vmatpush1.msra.mxu0 0.0
      %10274 = vmatprep.subr.mxu0 0.0
      %10275 = vmatpush1.msra.mxu0 0.0
      %10276 = vmatprep.subr.mxu0 0.0
      %10277 = vmatpush1.msra.mxu0 0.0
      %10278 = vmatprep.subr.mxu0 0.0
      %10279 = vmatpush1.msra.mxu0 0.0
      %10280 = vmatprep.mubr.f32.mxu0 0.0
      %10281 = vmatmul.mubr.f32.gmra.mrb[0].mxu0 %v10154
      %v10282 = vpop.f32.mrb[0].mxu0
      %v10283 = vadd.f32 0.0, %v10282
      %v10284 = vpop.f32.mrb[0].mxu0
      %10285 = vmatprep.mubr.f32.mxu0 0.0
      %10286 = vmatmul.mubr.f32.gmra.mrb[0].mxu0 %v10157
      %v10287 = vpop.f32.mrb[0].mxu0
      %v10288 = vadd.f32 0.0, %v10287
      %v10289 = vpop.f32.mrb[0].mxu0
      %10290 = vmatprep.mubr.f32.mxu0 0.0
      %10291 = vmatmul.mubr.f32.gmra.mrb[0].mxu0 %v10160
      %v10292 = vpop.f32.mrb[0].mxu0
      %v10293 = vadd.f32 0.0, %v10292
      %v10294 = vpop.f32.mrb[0].mxu0
      %10295 = vmatprep.mubr.f32.mxu0 0.0
      %10296 = vmatmul.mubr.f32.gmra.mrb[0].mxu0 %v10163
      %v10297 = vpop.f32.mrb[0].mxu0
      %v10298 = vadd.f32 0.0, %v10297
      %v10299 = vpop.f32.mrb[0].mxu0
      %10300 = vmatprep.mubr.f32.mxu0 0.0
      %10301 = vmatmul.mubr.f32.gmra.mrb[0].mxu0 %v10166
      %v10302 = vpop.f32.mrb[0].mxu0
      %v10303 = vadd.f32 0.0, %v10302
      %v10304 = vpop.f32.mrb[0].mxu0
      %10305 = vmatprep.mubr.f32.mxu0 0.0
      %10306 = vmatmul.mubr.f32.gmra.mrb[0].mxu0 %v10169
      %v10307 = vpop.f32.mrb[0].mxu0
      %v10308 = vadd.f32 0.0, %v10307
      %v10309 = vpop.f32.mrb[0].mxu0
      %10310 = vmatprep.mubr.f32.mxu0 0.0
      %10311 = vmatmul.mubr.f32.gmra.mrb[0].mxu0 %v10172
      %v10312 = vpop.f32.mrb[0].mxu0
      %v10313 = vadd.f32 0.0, %v10312
      %v10314 = vpop.f32.mrb[0].mxu0
      %10315 = vmatprep.mubr.f32.mxu0 0.0
      %10316 = vmatmul.mubr.f32.gmra.mrb[0].mxu0 %v10175
      %v10317 = vpop.f32.mrb[0].mxu0
      %v10318 = vadd.f32 0.0, %v10317
      %v10319 = vpop.f32.mrb[0].mxu0
      %10320 = vmatprep.mubr.f32.mxu0 0.0
      %10321 = vmatmul.mubr.f32.gmra.mrb[0].mxu0 %v10178
      %v10322 = vpop.f32.mrb[0].mxu0
      %v10323 = vadd.f32 0.0, %v10322
      %v10324 = vpop.f32.mrb[0].mxu0
      %10325 = vmatprep.mubr.f32.mxu0 0.0
      %10326 = vmatmul.mubr.f32.gmra.mrb[0].mxu0 %v10181
      %v10327 = vpop.f32.mrb[0].mxu0
      %v10328 = vadd.f32 0.0, %v10327
      %v10329 = vpop.f32.mrb[0].mxu0
      %10330 = vmatprep.mubr.f32.mxu0 0.0
      %10331 = vmatmul.mubr.f32.gmra.mrb[0].mxu0 %v10184
      %v10332 = vpop.f32.mrb[0].mxu0
      %v10333 = vadd.f32 0.0, %v10332
      %v10334 = vpop.f32.mrb[0].mxu0
      %10335 = vmatprep.mubr.f32.mxu0 0.0
      %10336 = vmatmul.mubr.f32.gmra.mrb[0].mxu0 %v10187
      %v10337 = vpop.f32.mrb[0].mxu0
      %v10338 = vadd.f32 0.0, %v10337
      %v10339 = vpop.f32.mrb[0].mxu0
      %10340 = vmatprep.mubr.f32.mxu0 0.0
      %10341 = vmatmul.mubr.f32.gmra.mrb[0].mxu0 %v10190
      %v10342 = vpop.f32.mrb[0].mxu0
      %v10343 = vadd.f32 0.0, %v10342
      %v10344 = vpop.f32.mrb[0].mxu0
      %10345 = vmatprep.mubr.f32.mxu0 0.0
      %10346 = vmatmul.mubr.f32.gmra.mrb[0].mxu0 %v10193
      %v10347 = vpop.f32.mrb[0].mxu0
      %v10348 = vadd.f32 0.0, %v10347
      %v10349 = vpop.f32.mrb[0].mxu0
      %10350 = vmatprep.mubr.f32.mxu0 0.0
      %10351 = vmatmul.mubr.f32.gmra.mrb[0].mxu0 %v10196
      %v10352 = vpop.f32.mrb[0].mxu0
      %v10353 = vadd.f32 0.0, %v10352
      %v10354 = vpop.f32.mrb[0].mxu0
      %10355 = vmatprep.mubr.f32.mxu0 0.0
      %10356 = vmatmul.mubr.f32.gmra.mrb[0].mxu0 %v10199
      %v10357 = vpop.f32.mrb[0].mxu0
      %v10358 = vadd.f32 0.0, %v10357
      %v10359 = vpop.f32.mrb[0].mxu0
      %10360 = vdwg.mxu0
      %v10361 = vadd.f32 %v10136, %v10283
      %v10362 = vadd.f32 %v10137, %v10288
      %v10363 = vadd.f32 %v10138, %v10293
      %v10364 = vadd.f32 %v10139, %v10298
      %v10365 = vadd.f32 %v10140, %v10303
      %v10366 = vadd.f32 %v10141, %v10308
      %v10367 = vadd.f32 %v10142, %v10313
      %v10368 = vadd.f32 %v10143, %v10318
      %v10369 = vadd.f32 %v10144, %v10323
      %v10370 = vadd.f32 %v10145, %v10328
      %v10371 = vadd.f32 %v10146, %v10333
      %v10372 = vadd.f32 %v10147, %v10338
      %v10373 = vadd.f32 %v10148, %v10343
      %v10374 = vadd.f32 %v10149, %v10348
      %v10375 = vadd.f32 %v10150, %v10353
      %v10376 = vadd.f32 %v10151, %v10358
      %v10377 = vmax.f32 %v9814, 0.0
      %v10378 = vmax.f32 %v9815, 0.0
      %v10379 = vmax.f32 %v9816, 0.0
      %v10380 = vmax.f32 %v9817, 0.0
      %v10381 = vmax.f32 %v9818, 0.0
      %v10382 = vmax.f32 %v9819, 0.0
      %v10383 = vmax.f32 %v9820, 0.0
      %v10384 = vmax.f32 %v9821, 0.0
      %v10385 = vmax.f32 %v9822, 0.0
      %v10386 = vmax.f32 %v9823, 0.0
      %v10387 = vmax.f32 %v9824, 0.0
      %v10388 = vmax.f32 %v9825, 0.0
      %v10389 = vmax.f32 %v9826, 0.0
      %v10390 = vmax.f32 %v9827, 0.0
      %v10391 = vmax.f32 %v9828, 0.0
      %v10392 = vmax.f32 %v9829, 0.0
      %v10393 = vmax.f32 %v10361, 0.0
      %v10394 = vmax.f32 %v10362, 0.0
      %v10395 = vmax.f32 %v10363, 0.0
      %v10396 = vmax.f32 %v10364, 0.0
      %v10397 = vmax.f32 %v10365, 0.0
      %v10398 = vmax.f32 %v10366, 0.0
      %v10399 = vmax.f32 %v10367, 0.0
      %v10400 = vmax.f32 %v10368, 0.0
      %v10401 = vmax.f32 %v10369, 0.0
      %v10402 = vmax.f32 %v10370, 0.0
      %v10403 = vmax.f32 %v10371, 0.0
      %v10404 = vmax.f32 %v10372, 0.0
      %v10405 = vmax.f32 %v10373, 0.0
      %v10406 = vmax.f32 %v10374, 0.0
      %v10407 = vmax.f32 %v10375, 0.0
      %v10408 = vmax.f32 %v10376, 0.0
      %vm10409 = vcmask 31744
      %10410 = vst.msk [vmem:[%s325] sm:$0xff] %vm10409, %v10377
      %10411 = vst.msk [vmem:[%s325 + $0x8] sm:$0xff] %vm10409, %v10378
      %10412 = vst.msk [vmem:[%s325 + $0x10] sm:$0xff] %vm10409, %v10379
      %10413 = vst.msk [vmem:[%s325 + $0x18] sm:$0xff] %vm10409, %v10380
      %10414 = vst.msk [vmem:[%s325 + $0x20] sm:$0xff] %vm10409, %v10381
      %10415 = vst.msk [vmem:[%s325 + $0x28] sm:$0xff] %vm10409, %v10382
      %10416 = vst.msk [vmem:[%s325 + $0x30] sm:$0xff] %vm10409, %v10383
      %10417 = vst.msk [vmem:[%s325 + $0x38] sm:$0xff] %vm10409, %v10384
      %10418 = vst.msk [vmem:[%s325 + $0x40] sm:$0xff] %vm10409, %v10385
      %10419 = vst.msk [vmem:[%s325 + $0x48] sm:$0xff] %vm10409, %v10386
      %10420 = vst.msk [vmem:[%s325 + $0x50] sm:$0xff] %vm10409, %v10387
      %10421 = vst.msk [vmem:[%s325 + $0x58] sm:$0xff] %vm10409, %v10388
      %10422 = vst.msk [vmem:[%s325 + $0x60] sm:$0xff] %vm10409, %v10389
      %10423 = vst.msk [vmem:[%s325 + $0x68] sm:$0xff] %vm10409, %v10390
      %10424 = vst.msk [vmem:[%s325 + $0x70] sm:$0xff] %vm10409, %v10391
      %10425 = vst.msk [vmem:[%s325 + $0x78] sm:$0xff] %vm10409, %v10392
      %10442 = vrot.lane.b32.xlu0 %v10393, 4
      %v10443 = vpop.permute.xlu0 %10442
      %10444 = vrot.lane.b32.xlu0 %v10394, 4
      %v10445 = vpop.permute.xlu0 %10444
      %10446 = vrot.lane.b32.xlu0 %v10395, 4
      %v10447 = vpop.permute.xlu0 %10446
      %10448 = vrot.lane.b32.xlu0 %v10396, 4
      %v10449 = vpop.permute.xlu0 %10448
      %10450 = vrot.lane.b32.xlu0 %v10397, 4
      %v10451 = vpop.permute.xlu0 %10450
      %10452 = vrot.lane.b32.xlu0 %v10398, 4
      %v10453 = vpop.permute.xlu0 %10452
      %10454 = vrot.lane.b32.xlu0 %v10399, 4
      %v10455 = vpop.permute.xlu0 %10454
      %10456 = vrot.lane.b32.xlu0 %v10400, 4
      %v10457 = vpop.permute.xlu0 %10456
      %10458 = vrot.lane.b32.xlu0 %v10401, 4
      %v10459 = vpop.permute.xlu0 %10458
      %10460 = vrot.lane.b32.xlu0 %v10402, 4
      %v10461 = vpop.permute.xlu0 %10460
      %10462 = vrot.lane.b32.xlu0 %v10403, 4
      %v10463 = vpop.permute.xlu0 %10462
      %10464 = vrot.lane.b32.xlu0 %v10404, 4
      %v10465 = vpop.permute.xlu0 %10464
      %10466 = vrot.lane.b32.xlu0 %v10405, 4
      %v10467 = vpop.permute.xlu0 %10466
      %10468 = vrot.lane.b32.xlu0 %v10406, 4
      %v10469 = vpop.permute.xlu0 %10468
      %10470 = vrot.lane.b32.xlu0 %v10407, 4
      %v10471 = vpop.permute.xlu0 %10470
      %10472 = vrot.lane.b32.xlu0 %v10408, 4
      %v10473 = vpop.permute.xlu0 %10472
      %vm10490 = vcmask 64544
      %10491 = vst.msk [vmem:[%s325] sm:$0xff] %vm10490, %v10443
      %10492 = vst.msk [vmem:[%s325 + $0x8] sm:$0xff] %vm10490, %v10445
      %10493 = vst.msk [vmem:[%s325 + $0x10] sm:$0xff] %vm10490, %v10447
      %10494 = vst.msk [vmem:[%s325 + $0x18] sm:$0xff] %vm10490, %v10449
      %10495 = vst.msk [vmem:[%s325 + $0x20] sm:$0xff] %vm10490, %v10451
      %10496 = vst.msk [vmem:[%s325 + $0x28] sm:$0xff] %vm10490, %v10453
      %10497 = vst.msk [vmem:[%s325 + $0x30] sm:$0xff] %vm10490, %v10455
      %10498 = vst.msk [vmem:[%s325 + $0x38] sm:$0xff] %vm10490, %v10457
      %10499 = vst.msk [vmem:[%s325 + $0x40] sm:$0xff] %vm10490, %v10459
      %10500 = vst.msk [vmem:[%s325 + $0x48] sm:$0xff] %vm10490, %v10461
      %10501 = vst.msk [vmem:[%s325 + $0x50] sm:$0xff] %vm10490, %v10463
      %10502 = vst.msk [vmem:[%s325 + $0x58] sm:$0xff] %vm10490, %v10465
      %10503 = vst.msk [vmem:[%s325 + $0x60] sm:$0xff] %vm10490, %v10467
      %10504 = vst.msk [vmem:[%s325 + $0x68] sm:$0xff] %vm10490, %v10469
      %10505 = vst.msk [vmem:[%s325 + $0x70] sm:$0xff] %vm10490, %v10471
      %10506 = vst.msk [vmem:[%s325 + $0x78] sm:$0xff] %vm10490, %v10473
      %p10507 = scmp.lt.s32.totalorder %s19, 1
      %s10508 = scalar_select %p10507, %s19, 1
      %s10509 = smul.addr %s10508, 16
      %s10510 = smul.addr %s10509, 8
      %s10511 = scalar_lea.vmem %s8, %s10510
      // Predicated region
      $region53: #{unet_up_block.1} parent=51 // pred_check
        %p10512 = pneg %p215
      $region54: #{unet_up_block.1} parent=51 // pred_check_branch
        %10514 = sbr.rel (%p10512) target = $region56
      $region55: #{unet_up_block.1} parent=51 // pred_region
        _
      $region56: #{unet_up_block.1} parent=51 // pred_fallthru
        _
    $region52: #{unet_up_block.1} parent=5 // pred_fallthru
      _
    %p10515 = scmp.le.s32.totalorder 2, %s14
    // Predicated region
    $region57: #{unet_up_block.1} parent=5 // pred_check
      %p10516 = pneg %p10515
    $region58: #{unet_up_block.1} parent=5 // pred_check_branch
      %10518 = sbr.rel (%p10516) target = $region60
    $region59: #{unet_up_block.1} parent=5 // pred_region
      %s10519 = ssub.s32 %s14, 2
      // Predicated region
      $region61: #{unet_up_block.1} parent=59 // pred_check
        %p10520 = pneg %p221
      $region62: #{unet_up_block.1} parent=59 // pred_check_branch
        %10522 = sbr.rel (%p10520) target = $region64
      $region63: #{unet_up_block.1} parent=59 // pred_region
        %p10523 = scmp.lt.s32.totalorder %s20, 1
        %s10524 = scalar_select %p10523, %s20, 1
        %s10525 = smul.addr %s10524, 16
        %s10526 = smul.addr %s10525, 8
        %s10527 = scalar_lea.vmem %s8, %s10526
      $region64: #{unet_up_block.1} parent=59 // pred_fallthru
        _
    $region60: #{unet_up_block.1} parent=5 // pred_fallthru
      _
  $region6: #{unet_up_block.1} parent=0 // loop_footer
    %s18 = sadd.s32 1, %s14
  $region7: #{unet_up_block.1} parent=0 // loop_footer_branch
    %13 = sbr.rel target = $region3
  $region8: #{unet_up_block.1} parent=0 // loop_exit
    _

</llo_original>
